<compile_context>
chip_gen: v7x
topology: tpu7x:2x2x1
jax: 0.10.0
libtpu: 0.0.40
codegen_flags: <defaults>
</compile_context>

<pallas_src>
import jax
import jax.numpy as jnp
import numpy as np
from jax.experimental import pallas as pl
from jax.experimental.pallas import tpu as pltpu


def _round_up(x, m):
    return ((x + m - 1) // m) * m


# chain convs: (name, src buffer, dst (buffer key or output slot), masked?)
_CHAIN = (
    ("branch7x7_2",    "a", "b", True),   # 1x7
    ("branch7x7_3",    "b", 1,   False),  # 7x1 -> out slot 1
    ("branch7x7dbl_2", "c", "a", True),   # 7x1
    ("branch7x7dbl_3", "a", "b", True),   # 1x7
    ("branch7x7dbl_4", "b", "a", True),   # 7x1
    ("branch7x7dbl_5", "a", 2,   False),  # 1x7 -> out slot 2
)


# ------------------------------ fused kernel -------------------------------- #

def _make_inception_c_kernel(*, M, band_start, band_end, TM, c7, trio_split,
                             chain_offsets, chain_routes, pool_offsets):
    """Build the fused InceptionC kernel for static geometry."""
    n_chain = len(chain_offsets)

    def kernel(*refs):
        x_ref = refs[0]                          # (1, M, Cin) bf16, zero halo
        mask_ref = refs[1]                       # (BAND, 1) f32, 1.0 on interior cols
        w_trio, s_trio, b_trio = refs[2:5]       # fused 1x1 trio
        chain_refs = refs[5:5 + 3 * n_chain]     # per chain conv: w, scale, bias
        w_pool, s_pool, b_pool = refs[5 + 3 * n_chain:8 + 3 * n_chain]
        o_ref = refs[8 + 3 * n_chain]            # (1, 4, BAND, 192) bf16
        buf_a, buf_b, buf_c = refs[9 + 3 * n_chain:12 + 3 * n_chain]
        bufs = {"a": buf_a, "b": buf_b, "c": buf_c}

        # Zero only the 3*WP top/bottom halo row bands of the chain buffers (the
        # interior band is fully overwritten by the masked conv writes below).
        # NOTE: done every grid step (no program_id==0 guard) so a megacore-split
        # batch axis stays correct.
        halo = band_start                        # == M - band_end == 3*WP
        zrows = jnp.zeros((halo, c7), buf_a.dtype)
        for buf in (buf_a, buf_b, buf_c):
            buf[0:band_start, :] = zrows
            buf[band_end:M, :] = zrows

        def band_tiles():
            for m0 in range(band_start, band_end, TM):
                yield m0, min(TM, band_end - m0)

        def epilogue(acc, scale, bias):
            return jnp.maximum(acc * scale + bias, 0.0)

        # ---- fused 1x1 trio: [branch7x7_1 | branch7x7dbl_1 | branch1x1] ----
        c_a, c_c = trio_split
        st, bt = s_trio[...], b_trio[...]
        for m0, tm in band_tiles():
            r0 = m0 - band_start
            xt = x_ref[0, m0:m0 + tm, :]
            acc = jnp.dot(xt, w_trio[...], preferred_element_type=jnp.float32)
            # single masked BN+ReLU epilogue for all three 1x1 convs
            y = epilogue(acc, st, bt) * mask_ref[r0:r0 + tm, :]
            buf_a[m0:m0 + tm, :] = y[:, 0:c_a].astype(buf_a.dtype)
            buf_c[m0:m0 + tm, :] = y[:, c_a:c_a + c_c].astype(buf_c.dtype)
            o_ref[0, 0, r0:r0 + tm, :] = y[:, c_a + c_c:].astype(o_ref.dtype)

        # ---- 1x7 / 7x1 chain convs (per-tap matmuls on the flat grid) ----
        for ci in range(n_chain):
            w_ref = chain_refs[3 * ci]
            scale = chain_refs[3 * ci + 1][...]
            bias = chain_refs[3 * ci + 2][...]
            offs = chain_offsets[ci]
            src, dst, masked = chain_routes[ci]
            src_buf = bufs[src]
            for m0, tm in band_tiles():
                r0 = m0 - band_start
                acc = jnp.dot(src_buf[m0 + offs[0]:m0 + offs[0] + tm, :], w_ref[0],
                              preferred_element_type=jnp.float32)
                for t in range(1, len(offs)):
                    acc = acc + jnp.dot(
                        src_buf[m0 + offs[t]:m0 + offs[t] + tm, :], w_ref[t],
                        preferred_element_type=jnp.float32)
                y = epilogue(acc, scale, bias)
                if masked:
                    # keep the zero halo exact for the next shifted conv
                    y = y * mask_ref[r0:r0 + tm, :]
                    bufs[dst][m0:m0 + tm, :] = y.astype(buf_a.dtype)
                else:
                    o_ref[0, dst, r0:r0 + tm, :] = y.astype(o_ref.dtype)

        # ---- 3x3 avg-pool (count_include_pad) fused with the 1x1 conv ----
        sp, bp = s_pool[...], b_pool[...]
        for m0, tm in band_tiles():
            r0 = m0 - band_start
            ps = x_ref[0, m0 + pool_offsets[0]:m0 + pool_offsets[0] + tm, :].astype(jnp.float32)
            for off in pool_offsets[1:]:
                ps = ps + x_ref[0, m0 + off:m0 + off + tm, :].astype(jnp.float32)
            ps = (ps * (1.0 / 9.0)).astype(jnp.bfloat16)
            acc = jnp.dot(ps, w_pool[0], preferred_element_type=jnp.float32)
            y = epilogue(acc, sp, bp)
            o_ref[0, 3, r0:r0 + tm, :] = y.astype(o_ref.dtype)

    return kernel


# ------------------------------ module forward ------------------------------ #

def inception_c_forward(params, x_nchw, *, tile_rows=256):
    """InceptionC forward.  x: (N, Cin, H, W) f32 -> (N, 768, H, W) f32."""
    N, Cin, H, W = x_nchw.shape
    HP = H + 6
    WP = _round_up(W + 6, 8)                    # pad-3 halo, W rounded to sublanes
    M = HP * WP
    band_start = 3 * WP                          # first interior-H flat row
    band_end = (3 + H) * WP                      # one past last interior-H flat row
    BAND = band_end - band_start                 # = H * WP, multiple of 8
    TM = max(8, min(_round_up(tile_rows, 8), BAND))

    c7 = params["branch7x7_1"]["w"].shape[0]

    # NCHW f32 -> bf16 -> padded, flattened NHWC (single pad shared by all branches).
    xb = x_nchw.astype(jnp.bfloat16)
    x_nhwc = jnp.transpose(xb, (0, 2, 3, 1))
    x_pad = jnp.pad(x_nhwc, ((0, 0), (3, 3), (3, WP - W - 3), (0, 0)))
    x_flat = x_pad.reshape(N, M, Cin)

    # interior-column mask for band rows (band rows always have interior H index)
    wcol = jnp.arange(WP)
    mask_w = ((wcol >= 3) & (wcol < 3 + W)).astype(jnp.float32)
    mask = jnp.tile(mask_w, H).reshape(BAND, 1)

    def fold_w(name):
        w = params[name]["w"]                    # (Cout, Cin_i, KH, KW) f32
        cout, cin, kh, kw = w.shape
        wk = jnp.transpose(w, (2, 3, 1, 0)).reshape(kh * kw, cin, cout)
        wk = wk.astype(jnp.bfloat16)             # bf16 MXU operands
        offs = tuple((ih - (kh - 1) // 2) * WP + (iw - (kw - 1) // 2)
                     for ih in range(kh) for iw in range(kw))
        return wk, offs, cout

    def fold_sb(name, cout):
        p = params[name]
        return (p["scale"].reshape(1, cout).astype(jnp.float32),
                p["bias"].reshape(1, cout).astype(jnp.float32))

    # fused 1x1 trio: [branch7x7_1 (c7) | branch7x7dbl_1 (c7) | branch1x1 (192)]
    trio_w, trio_s, trio_b, trio_couts = [], [], [], []
    for nm in ("branch7x7_1", "branch7x7dbl_1", "branch1x1"):
        wk, _, cout = fold_w(nm)
        s, b = fold_sb(nm, cout)
        trio_w.append(wk[0]); trio_s.append(s); trio_b.append(b)
        trio_couts.append(cout)
    w_trio = jnp.concatenate(trio_w, axis=-1)    # (Cin, 2*c7 + 192)
    s_trio = jnp.concatenate(trio_s, axis=-1)
    b_trio = jnp.concatenate(trio_b, axis=-1)
    Ctot = w_trio.shape[-1]

    inputs = [x_flat, mask, w_trio, s_trio, b_trio]
    in_specs = [
        pl.BlockSpec((1, M, Cin), lambda n: (n, 0, 0)),
        pl.BlockSpec((BAND, 1), lambda n: (0, 0)),
        pl.BlockSpec((Cin, Ctot), lambda n: (0, 0)),
        pl.BlockSpec((1, Ctot), lambda n: (0, 0)),
        pl.BlockSpec((1, Ctot), lambda n: (0, 0)),
    ]

    chain_routes = tuple((src, dst, masked) for _, src, dst, masked in _CHAIN)
    chain_offsets = []
    for nm, _, _, _ in _CHAIN:
        wk, offs, cout = fold_w(nm)
        s, b = fold_sb(nm, cout)
        chain_offsets.append(offs)
        kt, cin_i = wk.shape[0], wk.shape[1]
        inputs += [wk, s, b]
        in_specs += [pl.BlockSpec((kt, cin_i, cout), lambda n: (0, 0, 0)),
                     pl.BlockSpec((1, cout), lambda n: (0, 0)),
                     pl.BlockSpec((1, cout), lambda n: (0, 0))]

    wk_pool, _, cout_pool = fold_w("branch_pool")
    sp, bp = fold_sb("branch_pool", cout_pool)
    inputs += [wk_pool, sp, bp]
    in_specs += [pl.BlockSpec((1, Cin, cout_pool), lambda n: (0, 0, 0)),
                 pl.BlockSpec((1, cout_pool), lambda n: (0, 0)),
                 pl.BlockSpec((1, cout_pool), lambda n: (0, 0))]

    pool_offsets = tuple((ih - 1) * WP + (iw - 1)
                         for ih in range(3) for iw in range(3))

    kernel = _make_inception_c_kernel(
        M=M, band_start=band_start, band_end=band_end, TM=TM, c7=c7,
        trio_split=(trio_couts[0], trio_couts[1]),
        chain_offsets=tuple(chain_offsets), chain_routes=chain_routes,
        pool_offsets=pool_offsets)

    out = pl.pallas_call(
        kernel,
        out_shape=jax.ShapeDtypeStruct((N, 4, BAND, 192), jnp.bfloat16),
        grid=(N,),
        in_specs=in_specs,
        out_specs=pl.BlockSpec((1, 4, BAND, 192), lambda n: (n, 0, 0, 0)),
        scratch_shapes=[pltpu.VMEM((M, c7), jnp.bfloat16),
                        pltpu.VMEM((M, c7), jnp.bfloat16),
                        pltpu.VMEM((M, c7), jnp.bfloat16)],
        compiler_params=pltpu.CompilerParams(
            dimension_semantics=("parallel",),
            vmem_limit_bytes=32 * 1024 * 1024),
    )(*inputs)

    # crop the W halo, move branches back to the channel axis, NHWC -> NCHW, upcast
    out = out.reshape(N, 4, H, WP, 192)[:, :, :, 3:3 + W, :]
    out = jnp.transpose(out, (0, 1, 4, 2, 3)).reshape(N, 4 * 192, H, W)
    return out.astype(jnp.float32)


# ----------------------------- parameter setup ------------------------------ #

def make_basic_conv_params(key, in_c, out_c, kh, kw, eps=1e-3):
    k1, k2, k3, k4, k5 = jax.random.split(key, 5)
    w = 0.1 * jax.random.normal(k1, (out_c, in_c, kh, kw), jnp.float32)
    gamma = 1.0 + 0.1 * jax.random.normal(k2, (out_c,), jnp.float32)
    beta = 0.1 * jax.random.normal(k3, (out_c,), jnp.float32)
    running_mean = 0.1 * jax.random.normal(k4, (out_c,), jnp.float32)
    running_var = jax.random.uniform(k5, (out_c,), jnp.float32, 0.5, 1.5)
    scale = gamma / jnp.sqrt(running_var + eps)
    bias = beta - running_mean * scale
    return dict(w=w, scale=scale, bias=bias)


def init_inception_c_params(key, in_channels, channels_7x7):
    c7 = channels_7x7
    ks = jax.random.split(key, 10)
    return {
        "branch1x1":      make_basic_conv_params(ks[0], in_channels, 192, 1, 1),
        "branch7x7_1":    make_basic_conv_params(ks[1], in_channels, c7, 1, 1),
        "branch7x7_2":    make_basic_conv_params(ks[2], c7, c7, 1, 7),
        "branch7x7_3":    make_basic_conv_params(ks[3], c7, 192, 7, 1),
        "branch7x7dbl_1": make_basic_conv_params(ks[4], in_channels, c7, 1, 1),
        "branch7x7dbl_2": make_basic_conv_params(ks[5], c7, c7, 7, 1),
        "branch7x7dbl_3": make_basic_conv_params(ks[6], c7, c7, 1, 7),
        "branch7x7dbl_4": make_basic_conv_params(ks[7], c7, c7, 7, 1),
        "branch7x7dbl_5": make_basic_conv_params(ks[8], c7, 192, 1, 7),
        "branch_pool":    make_basic_conv_params(ks[9], in_channels, 192, 1, 1),
    }


# ------------------------- pure-JAX reference check -------------------------- #

def _ref_conv_bn_relu(x_nchw, p):
    kh, kw = p["w"].shape[2], p["w"].shape[3]
    ph, pw = (kh - 1) // 2, (kw - 1) // 2
    y = jax.lax.conv_general_dilated(
        x_nchw, p["w"], window_strides=(1, 1),
        padding=((ph, ph), (pw, pw)),
        dimension_numbers=("NCHW", "OIHW", "NCHW"))
    y = y * p["scale"][None, :, None, None] + p["bias"][None, :, None, None]
    return jnp.maximum(y, 0.0)


def inception_c_reference(params, x):
    b1 = _ref_conv_bn_relu(x, params["branch1x1"])
    b7 = _ref_conv_bn_relu(x, params["branch7x7_1"])
    b7 = _ref_conv_bn_relu(b7, params["branch7x7_2"])
    b7 = _ref_conv_bn_relu(b7, params["branch7x7_3"])
    b7d = _ref_conv_bn_relu(x, params["branch7x7dbl_1"])
    for n in ["branch7x7dbl_2", "branch7x7dbl_3", "branch7x7dbl_4", "branch7x7dbl_5"]:
        b7d = _ref_conv_bn_relu(b7d, params[n])
    bp = jax.lax.reduce_window(
        x, 0.0, jax.lax.add, (1, 1, 3, 3), (1, 1, 1, 1),
        ((0, 0), (0, 0), (1, 1), (1, 1))) / 9.0
    bp = _ref_conv_bn_relu(bp, params["branch_pool"])
    return jnp.concatenate([b1, b7, b7d, bp], axis=1)


if __name__ == "__main__":
    key = jax.random.PRNGKey(0)
    kx, kp = jax.random.split(key)

    # small shapes: batch=2, in_channels=8, channels_7x7=8, spatial 8x8
    N, C, H, W = 2, 8, 8, 8
    c7 = 8
    x = jax.random.normal(kx, (N, C, H, W), jnp.float32)
    params = init_inception_c_params(kp, C, c7)

    # Round x / conv weights to bf16-representable values so the f32 reference and
    # the bf16-MXU kernel see identical operands (the kernel's bf16 intermediate /
    # output storage then accounts for the remaining ~1e-2-level difference).
    x = x.astype(jnp.bfloat16).astype(jnp.float32)
    for name in params:
        params[name]["w"] = params[name]["w"].astype(jnp.bfloat16).astype(jnp.float32)

    out = jax.jit(inception_c_forward)(params, x)
    out = jax.block_until_ready(out)

    assert out.shape == (N, 4 * 192, H, W), out.shape
    ref = inception_c_reference(params, x)
    np.testing.assert_allclose(np.asarray(out), np.asarray(ref), atol=3e-2, rtol=3e-2)

    print("KERNEL_OK")
</pallas_src>

<mosaic_0001>
module attributes {stable_mosaic.version = 11 : i64} {
  func.func @kernel(%arg0: i32, %arg1: memref<1x224x8xbf16, #tpu.memory_space<vmem>>, %arg2: memref<128x1xf32, #tpu.memory_space<vmem>>, %arg3: memref<8x208xbf16, #tpu.memory_space<vmem>>, %arg4: memref<1x208xf32, #tpu.memory_space<vmem>>, %arg5: memref<1x208xf32, #tpu.memory_space<vmem>>, %arg6: memref<7x8x8xbf16, #tpu.memory_space<vmem>>, %arg7: memref<1x8xf32, #tpu.memory_space<vmem>>, %arg8: memref<1x8xf32, #tpu.memory_space<vmem>>, %arg9: memref<7x8x192xbf16, #tpu.memory_space<vmem>>, %arg10: memref<1x192xf32, #tpu.memory_space<vmem>>, %arg11: memref<1x192xf32, #tpu.memory_space<vmem>>, %arg12: memref<7x8x8xbf16, #tpu.memory_space<vmem>>, %arg13: memref<1x8xf32, #tpu.memory_space<vmem>>, %arg14: memref<1x8xf32, #tpu.memory_space<vmem>>, %arg15: memref<7x8x8xbf16, #tpu.memory_space<vmem>>, %arg16: memref<1x8xf32, #tpu.memory_space<vmem>>, %arg17: memref<1x8xf32, #tpu.memory_space<vmem>>, %arg18: memref<7x8x8xbf16, #tpu.memory_space<vmem>>, %arg19: memref<1x8xf32, #tpu.memory_space<vmem>>, %arg20: memref<1x8xf32, #tpu.memory_space<vmem>>, %arg21: memref<7x8x192xbf16, #tpu.memory_space<vmem>>, %arg22: memref<1x192xf32, #tpu.memory_space<vmem>>, %arg23: memref<1x192xf32, #tpu.memory_space<vmem>>, %arg24: memref<1x8x192xbf16, #tpu.memory_space<vmem>>, %arg25: memref<1x192xf32, #tpu.memory_space<vmem>>, %arg26: memref<1x192xf32, #tpu.memory_space<vmem>>, %arg27: memref<1x4x128x192xbf16, #tpu.memory_space<vmem>>, %arg28: memref<224x8xbf16, #tpu.memory_space<vmem>>, %arg29: memref<224x8xbf16, #tpu.memory_space<vmem>>, %arg30: memref<224x8xbf16, #tpu.memory_space<vmem>>) attributes {dimension_semantics = [#tpu.dimension_semantics<parallel>], iteration_bounds = array<i64: 2>, scalar_prefetch = 0 : i64, scratch_operands = 3 : i64, tpu.core_type = #tpu.core_type<tc>, window_params = [{transform_indices = @transform_0, window_bounds = array<i64: 1, 224, 8>}, {pipeline_mode = #tpu.pipeline_mode<synchronous>, transform_indices = @transform_1, window_bounds = array<i64: 128, 1>}, {pipeline_mode = #tpu.pipeline_mode<synchronous>, transform_indices = @transform_2, window_bounds = array<i64: 8, 208>}, {pipeline_mode = #tpu.pipeline_mode<synchronous>, transform_indices = @transform_3, window_bounds = array<i64: 1, 208>}, {pipeline_mode = #tpu.pipeline_mode<synchronous>, transform_indices = @transform_4, window_bounds = array<i64: 1, 208>}, {pipeline_mode = #tpu.pipeline_mode<synchronous>, transform_indices = @transform_5, window_bounds = array<i64: 7, 8, 8>}, {pipeline_mode = #tpu.pipeline_mode<synchronous>, transform_indices = @transform_6, window_bounds = array<i64: 1, 8>}, {pipeline_mode = #tpu.pipeline_mode<synchronous>, transform_indices = @transform_7, window_bounds = array<i64: 1, 8>}, {pipeline_mode = #tpu.pipeline_mode<synchronous>, transform_indices = @transform_8, window_bounds = array<i64: 7, 8, 192>}, {pipeline_mode = #tpu.pipeline_mode<synchronous>, transform_indices = @transform_9, window_bounds = array<i64: 1, 192>}, {pipeline_mode = #tpu.pipeline_mode<synchronous>, transform_indices = @transform_10, window_bounds = array<i64: 1, 192>}, {pipeline_mode = #tpu.pipeline_mode<synchronous>, transform_indices = @transform_11, window_bounds = array<i64: 7, 8, 8>}, {pipeline_mode = #tpu.pipeline_mode<synchronous>, transform_indices = @transform_12, window_bounds = array<i64: 1, 8>}, {pipeline_mode = #tpu.pipeline_mode<synchronous>, transform_indices = @transform_13, window_bounds = array<i64: 1, 8>}, {pipeline_mode = #tpu.pipeline_mode<synchronous>, transform_indices = @transform_14, window_bounds = array<i64: 7, 8, 8>}, {pipeline_mode = #tpu.pipeline_mode<synchronous>, transform_indices = @transform_15, window_bounds = array<i64: 1, 8>}, {pipeline_mode = #tpu.pipeline_mode<synchronous>, transform_indices = @transform_16, window_bounds = array<i64: 1, 8>}, {pipeline_mode = #tpu.pipeline_mode<synchronous>, transform_indices = @transform_17, window_bounds = array<i64: 7, 8, 8>}, {pipeline_mode = #tpu.pipeline_mode<synchronous>, transform_indices = @transform_18, window_bounds = array<i64: 1, 8>}, {pipeline_mode = #tpu.pipeline_mode<synchronous>, transform_indices = @transform_19, window_bounds = array<i64: 1, 8>}, {pipeline_mode = #tpu.pipeline_mode<synchronous>, transform_indices = @transform_20, window_bounds = array<i64: 7, 8, 192>}, {pipeline_mode = #tpu.pipeline_mode<synchronous>, transform_indices = @transform_21, window_bounds = array<i64: 1, 192>}, {pipeline_mode = #tpu.pipeline_mode<synchronous>, transform_indices = @transform_22, window_bounds = array<i64: 1, 192>}, {pipeline_mode = #tpu.pipeline_mode<synchronous>, transform_indices = @transform_23, window_bounds = array<i64: 1, 8, 192>}, {pipeline_mode = #tpu.pipeline_mode<synchronous>, transform_indices = @transform_24, window_bounds = array<i64: 1, 192>}, {pipeline_mode = #tpu.pipeline_mode<synchronous>, transform_indices = @transform_25, window_bounds = array<i64: 1, 192>}, {transform_indices = @transform_26, window_bounds = array<i64: 1, 4, 128, 192>}]} {
    %cst = arith.constant 0.000000e+00 : bf16
    %0 = vector.broadcast %cst : bf16 to vector<48x8xbf16>
    %c0 = arith.constant 0 : index
    %c0_0 = arith.constant 0 : index
    %1 = vector.load %arg28[%c0, %c0_0] : memref<224x8xbf16, #tpu.memory_space<vmem>>, vector<48x8xbf16>
    tpu.vector_store %arg28[%c0, %c0_0], %0 {strides = array<i32>} : memref<224x8xbf16, #tpu.memory_space<vmem>>, vector<48x8xbf16>,
    %c176 = arith.constant 176 : index
    %c0_1 = arith.constant 0 : index
    %2 = vector.load %arg28[%c176, %c0_1] : memref<224x8xbf16, #tpu.memory_space<vmem>>, vector<48x8xbf16>
    tpu.vector_store %arg28[%c176, %c0_1], %0 {strides = array<i32>} : memref<224x8xbf16, #tpu.memory_space<vmem>>, vector<48x8xbf16>,
    %c0_2 = arith.constant 0 : index
    %c0_3 = arith.constant 0 : index
    %3 = vector.load %arg29[%c0_2, %c0_3] : memref<224x8xbf16, #tpu.memory_space<vmem>>, vector<48x8xbf16>
    tpu.vector_store %arg29[%c0_2, %c0_3], %0 {strides = array<i32>} : memref<224x8xbf16, #tpu.memory_space<vmem>>, vector<48x8xbf16>,
    %c176_4 = arith.constant 176 : index
    %c0_5 = arith.constant 0 : index
    %4 = vector.load %arg29[%c176_4, %c0_5] : memref<224x8xbf16, #tpu.memory_space<vmem>>, vector<48x8xbf16>
    tpu.vector_store %arg29[%c176_4, %c0_5], %0 {strides = array<i32>} : memref<224x8xbf16, #tpu.memory_space<vmem>>, vector<48x8xbf16>,
    %c0_6 = arith.constant 0 : index
    %c0_7 = arith.constant 0 : index
    %5 = vector.load %arg30[%c0_6, %c0_7] : memref<224x8xbf16, #tpu.memory_space<vmem>>, vector<48x8xbf16>
    tpu.vector_store %arg30[%c0_6, %c0_7], %0 {strides = array<i32>} : memref<224x8xbf16, #tpu.memory_space<vmem>>, vector<48x8xbf16>,
    %c176_8 = arith.constant 176 : index
    %c0_9 = arith.constant 0 : index
    %6 = vector.load %arg30[%c176_8, %c0_9] : memref<224x8xbf16, #tpu.memory_space<vmem>>, vector<48x8xbf16>
    tpu.vector_store %arg30[%c176_8, %c0_9], %0 {strides = array<i32>} : memref<224x8xbf16, #tpu.memory_space<vmem>>, vector<48x8xbf16>,
    %c0_10 = arith.constant 0 : index
    %c0_11 = arith.constant 0 : index
    %7 = vector.load %arg4[%c0_10, %c0_11] : memref<1x208xf32, #tpu.memory_space<vmem>>, vector<1x208xf32>
    %c0_12 = arith.constant 0 : index
    %c0_13 = arith.constant 0 : index
    %8 = vector.load %arg5[%c0_12, %c0_13] : memref<1x208xf32, #tpu.memory_space<vmem>>, vector<1x208xf32>
    %c0_14 = arith.constant 0 : index
    %c48 = arith.constant 48 : index
    %c0_15 = arith.constant 0 : index
    %9 = vector.load %arg1[%c0_14, %c48, %c0_15] : memref<1x224x8xbf16, #tpu.memory_space<vmem>>, vector<1x128x8xbf16>
    %10 = vector.shape_cast %9 : vector<1x128x8xbf16> to vector<128x8xbf16>
    %c0_16 = arith.constant 0 : index
    %c0_17 = arith.constant 0 : index
    %11 = vector.load %arg3[%c0_16, %c0_17] : memref<8x208xbf16, #tpu.memory_space<vmem>>, vector<8x208xbf16>
    %cst_18 = arith.constant dense<0.000000e+00> : vector<128x208xf32>
    %12 = tpu.matmul %10, %11, %cst_18 {dimension_numbers = #tpu.dot_dimension_numbers<[1], [0], [0], [1], [0, 0, 1, 1], [], []>} : vector<128x8xbf16>, vector<8x208xbf16>, vector<128x208xf32> -> vector<128x208xf32>
    %13 = vector.broadcast %7 : vector<1x208xf32> to vector<128x208xf32>
    %14 = arith.mulf %12, %13 : vector<128x208xf32>
    %15 = vector.broadcast %8 : vector<1x208xf32> to vector<128x208xf32>
    %16 = arith.addf %14, %15 : vector<128x208xf32>
    %cst_19 = arith.constant 0.000000e+00 : f32
    %17 = vector.broadcast %cst_19 : f32 to vector<128x208xf32>
    %18 = arith.maximumf %16, %17 : vector<128x208xf32>
    %c0_20 = arith.constant 0 : index
    %c0_21 = arith.constant 0 : index
    %19 = vector.load %arg2[%c0_20, %c0_21] : memref<128x1xf32, #tpu.memory_space<vmem>>, vector<128x1xf32>
    %20 = vector.broadcast %19 : vector<128x1xf32> to vector<128x208xf32>
    %21 = arith.mulf %18, %20 : vector<128x208xf32>
    %22 = vector.extract_strided_slice %21 {offsets = [0, 0], sizes = [128, 8], strides = [1, 1]} : vector<128x208xf32> to vector<128x8xf32>
    %23 = arith.truncf %22 : vector<128x8xf32> to vector<128x8xbf16>
    %c48_22 = arith.constant 48 : index
    %c0_23 = arith.constant 0 : index
    %24 = vector.load %arg28[%c48_22, %c0_23] : memref<224x8xbf16, #tpu.memory_space<vmem>>, vector<128x8xbf16>
    tpu.vector_store %arg28[%c48_22, %c0_23], %23 {strides = array<i32>} : memref<224x8xbf16, #tpu.memory_space<vmem>>, vector<128x8xbf16>,
    %25 = vector.extract_strided_slice %21 {offsets = [0, 8], sizes = [128, 8], strides = [1, 1]} : vector<128x208xf32> to vector<128x8xf32>
    %26 = arith.truncf %25 : vector<128x8xf32> to vector<128x8xbf16>
    %c48_24 = arith.constant 48 : index
    %c0_25 = arith.constant 0 : index
    %27 = vector.load %arg30[%c48_24, %c0_25] : memref<224x8xbf16, #tpu.memory_space<vmem>>, vector<128x8xbf16>
    tpu.vector_store %arg30[%c48_24, %c0_25], %26 {strides = array<i32>} : memref<224x8xbf16, #tpu.memory_space<vmem>>, vector<128x8xbf16>,
    %28 = vector.extract_strided_slice %21 {offsets = [0, 16], sizes = [128, 192], strides = [1, 1]} : vector<128x208xf32> to vector<128x192xf32>
    %29 = arith.truncf %28 : vector<128x192xf32> to vector<128x192xbf16>
    %c0_26 = arith.constant 0 : index
    %c0_27 = arith.constant 0 : index
    %c0_28 = arith.constant 0 : index
    %c0_29 = arith.constant 0 : index
    %30 = vector.load %arg27[%c0_26, %c0_27, %c0_28, %c0_29] : memref<1x4x128x192xbf16, #tpu.memory_space<vmem>>, vector<1x1x128x192xbf16>
    %31 = vector.shape_cast %30 : vector<1x1x128x192xbf16> to vector<128x192xbf16>
    %32 = vector.shape_cast %29 : vector<128x192xbf16> to vector<1x1x128x192xbf16>
    tpu.vector_store %arg27[%c0_26, %c0_27, %c0_28, %c0_29], %32 {strides = array<i32>} : memref<1x4x128x192xbf16, #tpu.memory_space<vmem>>, vector<1x1x128x192xbf16>,
    %c0_30 = arith.constant 0 : index
    %c0_31 = arith.constant 0 : index
    %33 = vector.load %arg7[%c0_30, %c0_31] : memref<1x8xf32, #tpu.memory_space<vmem>>, vector<1x8xf32>
    %c0_32 = arith.constant 0 : index
    %c0_33 = arith.constant 0 : index
    %34 = vector.load %arg8[%c0_32, %c0_33] : memref<1x8xf32, #tpu.memory_space<vmem>>, vector<1x8xf32>
    %c45 = arith.constant 45 : index
    %c0_34 = arith.constant 0 : index
    %35 = vector.load %arg28[%c45, %c0_34] : memref<224x8xbf16, #tpu.memory_space<vmem>>, vector<128x8xbf16>
    %c0_35 = arith.constant 0 : index
    %c0_36 = arith.constant 0 : index
    %c0_37 = arith.constant 0 : index
    %36 = vector.load %arg6[%c0_35, %c0_36, %c0_37] : memref<7x8x8xbf16, #tpu.memory_space<vmem>>, vector<1x8x8xbf16>
    %37 = vector.shape_cast %36 : vector<1x8x8xbf16> to vector<8x8xbf16>
    %cst_38 = arith.constant dense<0.000000e+00> : vector<128x8xf32>
    %38 = tpu.matmul %35, %37, %cst_38 {dimension_numbers = #tpu.dot_dimension_numbers<[1], [0], [0], [1], [0, 0, 1, 1], [], []>} : vector<128x8xbf16>, vector<8x8xbf16>, vector<128x8xf32> -> vector<128x8xf32>
    %c46 = arith.constant 46 : index
    %c0_39 = arith.constant 0 : index
    %39 = vector.load %arg28[%c46, %c0_39] : memref<224x8xbf16, #tpu.memory_space<vmem>>, vector<128x8xbf16>
    %c1 = arith.constant 1 : index
    %c0_40 = arith.constant 0 : index
    %c0_41 = arith.constant 0 : index
    %40 = vector.load %arg6[%c1, %c0_40, %c0_41] : memref<7x8x8xbf16, #tpu.memory_space<vmem>>, vector<1x8x8xbf16>
    %41 = vector.shape_cast %40 : vector<1x8x8xbf16> to vector<8x8xbf16>
    %cst_42 = arith.constant dense<0.000000e+00> : vector<128x8xf32>
    %42 = tpu.matmul %39, %41, %cst_42 {dimension_numbers = #tpu.dot_dimension_numbers<[1], [0], [0], [1], [0, 0, 1, 1], [], []>} : vector<128x8xbf16>, vector<8x8xbf16>, vector<128x8xf32> -> vector<128x8xf32>
    %43 = arith.addf %38, %42 : vector<128x8xf32>
    %c47 = arith.constant 47 : index
    %c0_43 = arith.constant 0 : index
    %44 = vector.load %arg28[%c47, %c0_43] : memref<224x8xbf16, #tpu.memory_space<vmem>>, vector<128x8xbf16>
    %c2 = arith.constant 2 : index
    %c0_44 = arith.constant 0 : index
    %c0_45 = arith.constant 0 : index
    %45 = vector.load %arg6[%c2, %c0_44, %c0_45] : memref<7x8x8xbf16, #tpu.memory_space<vmem>>, vector<1x8x8xbf16>
    %46 = vector.shape_cast %45 : vector<1x8x8xbf16> to vector<8x8xbf16>
    %cst_46 = arith.constant dense<0.000000e+00> : vector<128x8xf32>
    %47 = tpu.matmul %44, %46, %cst_46 {dimension_numbers = #tpu.dot_dimension_numbers<[1], [0], [0], [1], [0, 0, 1, 1], [], []>} : vector<128x8xbf16>, vector<8x8xbf16>, vector<128x8xf32> -> vector<128x8xf32>
    %48 = arith.addf %43, %47 : vector<128x8xf32>
    %c48_47 = arith.constant 48 : index
    %c0_48 = arith.constant 0 : index
    %49 = vector.load %arg28[%c48_47, %c0_48] : memref<224x8xbf16, #tpu.memory_space<vmem>>, vector<128x8xbf16>
    %c3 = arith.constant 3 : index
    %c0_49 = arith.constant 0 : index
    %c0_50 = arith.constant 0 : index
    %50 = vector.load %arg6[%c3, %c0_49, %c0_50] : memref<7x8x8xbf16, #tpu.memory_space<vmem>>, vector<1x8x8xbf16>
    %51 = vector.shape_cast %50 : vector<1x8x8xbf16> to vector<8x8xbf16>
    %cst_51 = arith.constant dense<0.000000e+00> : vector<128x8xf32>
    %52 = tpu.matmul %49, %51, %cst_51 {dimension_numbers = #tpu.dot_dimension_numbers<[1], [0], [0], [1], [0, 0, 1, 1], [], []>} : vector<128x8xbf16>, vector<8x8xbf16>, vector<128x8xf32> -> vector<128x8xf32>
    %53 = arith.addf %48, %52 : vector<128x8xf32>
    %c49 = arith.constant 49 : index
    %c0_52 = arith.constant 0 : index
    %54 = vector.load %arg28[%c49, %c0_52] : memref<224x8xbf16, #tpu.memory_space<vmem>>, vector<128x8xbf16>
    %c4 = arith.constant 4 : index
    %c0_53 = arith.constant 0 : index
    %c0_54 = arith.constant 0 : index
    %55 = vector.load %arg6[%c4, %c0_53, %c0_54] : memref<7x8x8xbf16, #tpu.memory_space<vmem>>, vector<1x8x8xbf16>
    %56 = vector.shape_cast %55 : vector<1x8x8xbf16> to vector<8x8xbf16>
    %cst_55 = arith.constant dense<0.000000e+00> : vector<128x8xf32>
    %57 = tpu.matmul %54, %56, %cst_55 {dimension_numbers = #tpu.dot_dimension_numbers<[1], [0], [0], [1], [0, 0, 1, 1], [], []>} : vector<128x8xbf16>, vector<8x8xbf16>, vector<128x8xf32> -> vector<128x8xf32>
    %58 = arith.addf %53, %57 : vector<128x8xf32>
    %c50 = arith.constant 50 : index
    %c0_56 = arith.constant 0 : index
    %59 = vector.load %arg28[%c50, %c0_56] : memref<224x8xbf16, #tpu.memory_space<vmem>>, vector<128x8xbf16>
    %c5 = arith.constant 5 : index
    %c0_57 = arith.constant 0 : index
    %c0_58 = arith.constant 0 : index
    %60 = vector.load %arg6[%c5, %c0_57, %c0_58] : memref<7x8x8xbf16, #tpu.memory_space<vmem>>, vector<1x8x8xbf16>
    %61 = vector.shape_cast %60 : vector<1x8x8xbf16> to vector<8x8xbf16>
    %cst_59 = arith.constant dense<0.000000e+00> : vector<128x8xf32>
    %62 = tpu.matmul %59, %61, %cst_59 {dimension_numbers = #tpu.dot_dimension_numbers<[1], [0], [0], [1], [0, 0, 1, 1], [], []>} : vector<128x8xbf16>, vector<8x8xbf16>, vector<128x8xf32> -> vector<128x8xf32>
    %63 = arith.addf %58, %62 : vector<128x8xf32>
    %c51 = arith.constant 51 : index
    %c0_60 = arith.constant 0 : index
    %64 = vector.load %arg28[%c51, %c0_60] : memref<224x8xbf16, #tpu.memory_space<vmem>>, vector<128x8xbf16>
    %c6 = arith.constant 6 : index
    %c0_61 = arith.constant 0 : index
    %c0_62 = arith.constant 0 : index
    %65 = vector.load %arg6[%c6, %c0_61, %c0_62] : memref<7x8x8xbf16, #tpu.memory_space<vmem>>, vector<1x8x8xbf16>
    %66 = vector.shape_cast %65 : vector<1x8x8xbf16> to vector<8x8xbf16>
    %cst_63 = arith.constant dense<0.000000e+00> : vector<128x8xf32>
    %67 = tpu.matmul %64, %66, %cst_63 {dimension_numbers = #tpu.dot_dimension_numbers<[1], [0], [0], [1], [0, 0, 1, 1], [], []>} : vector<128x8xbf16>, vector<8x8xbf16>, vector<128x8xf32> -> vector<128x8xf32>
    %68 = arith.addf %63, %67 : vector<128x8xf32>
    %69 = vector.broadcast %33 : vector<1x8xf32> to vector<128x8xf32>
    %70 = arith.mulf %68, %69 : vector<128x8xf32>
    %71 = vector.broadcast %34 : vector<1x8xf32> to vector<128x8xf32>
    %72 = arith.addf %70, %71 : vector<128x8xf32>
    %cst_64 = arith.constant 0.000000e+00 : f32
    %73 = vector.broadcast %cst_64 : f32 to vector<128x8xf32>
    %74 = arith.maximumf %72, %73 : vector<128x8xf32>
    %c0_65 = arith.constant 0 : index
    %c0_66 = arith.constant 0 : index
    %75 = vector.load %arg2[%c0_65, %c0_66] : memref<128x1xf32, #tpu.memory_space<vmem>>, vector<128x1xf32>
    %76 = vector.broadcast %75 : vector<128x1xf32> to vector<128x8xf32>
    %77 = arith.mulf %74, %76 : vector<128x8xf32>
    %78 = arith.truncf %77 : vector<128x8xf32> to vector<128x8xbf16>
    %c48_67 = arith.constant 48 : index
    %c0_68 = arith.constant 0 : index
    %79 = vector.load %arg29[%c48_67, %c0_68] : memref<224x8xbf16, #tpu.memory_space<vmem>>, vector<128x8xbf16>
    tpu.vector_store %arg29[%c48_67, %c0_68], %78 {strides = array<i32>} : memref<224x8xbf16, #tpu.memory_space<vmem>>, vector<128x8xbf16>,
    %c0_69 = arith.constant 0 : index
    %c0_70 = arith.constant 0 : index
    %80 = vector.load %arg10[%c0_69, %c0_70] : memref<1x192xf32, #tpu.memory_space<vmem>>, vector<1x192xf32>
    %c0_71 = arith.constant 0 : index
    %c0_72 = arith.constant 0 : index
    %81 = vector.load %arg11[%c0_71, %c0_72] : memref<1x192xf32, #tpu.memory_space<vmem>>, vector<1x192xf32>
    %c0_73 = arith.constant 0 : index
    %c0_74 = arith.constant 0 : index
    %82 = vector.load %arg29[%c0_73, %c0_74] : memref<224x8xbf16, #tpu.memory_space<vmem>>, vector<128x8xbf16>
    %c0_75 = arith.constant 0 : index
    %c0_76 = arith.constant 0 : index
    %c0_77 = arith.constant 0 : index
    %83 = vector.load %arg9[%c0_75, %c0_76, %c0_77] : memref<7x8x192xbf16, #tpu.memory_space<vmem>>, vector<1x8x192xbf16>
    %84 = vector.shape_cast %83 : vector<1x8x192xbf16> to vector<8x192xbf16>
    %cst_78 = arith.constant dense<0.000000e+00> : vector<128x192xf32>
    %85 = tpu.matmul %82, %84, %cst_78 {dimension_numbers = #tpu.dot_dimension_numbers<[1], [0], [0], [1], [0, 0, 1, 1], [], []>} : vector<128x8xbf16>, vector<8x192xbf16>, vector<128x192xf32> -> vector<128x192xf32>
    %c16 = arith.constant 16 : index
    %c0_79 = arith.constant 0 : index
    %86 = vector.load %arg29[%c16, %c0_79] : memref<224x8xbf16, #tpu.memory_space<vmem>>, vector<128x8xbf16>
    %c1_80 = arith.constant 1 : index
    %c0_81 = arith.constant 0 : index
    %c0_82 = arith.constant 0 : index
    %87 = vector.load %arg9[%c1_80, %c0_81, %c0_82] : memref<7x8x192xbf16, #tpu.memory_space<vmem>>, vector<1x8x192xbf16>
    %88 = vector.shape_cast %87 : vector<1x8x192xbf16> to vector<8x192xbf16>
    %cst_83 = arith.constant dense<0.000000e+00> : vector<128x192xf32>
    %89 = tpu.matmul %86, %88, %cst_83 {dimension_numbers = #tpu.dot_dimension_numbers<[1], [0], [0], [1], [0, 0, 1, 1], [], []>} : vector<128x8xbf16>, vector<8x192xbf16>, vector<128x192xf32> -> vector<128x192xf32>
    %90 = arith.addf %85, %89 : vector<128x192xf32>
    %c32 = arith.constant 32 : index
    %c0_84 = arith.constant 0 : index
    %91 = vector.load %arg29[%c32, %c0_84] : memref<224x8xbf16, #tpu.memory_space<vmem>>, vector<128x8xbf16>
    %c2_85 = arith.constant 2 : index
    %c0_86 = arith.constant 0 : index
    %c0_87 = arith.constant 0 : index
    %92 = vector.load %arg9[%c2_85, %c0_86, %c0_87] : memref<7x8x192xbf16, #tpu.memory_space<vmem>>, vector<1x8x192xbf16>
    %93 = vector.shape_cast %92 : vector<1x8x192xbf16> to vector<8x192xbf16>
    %cst_88 = arith.constant dense<0.000000e+00> : vector<128x192xf32>
    %94 = tpu.matmul %91, %93, %cst_88 {dimension_numbers = #tpu.dot_dimension_numbers<[1], [0], [0], [1], [0, 0, 1, 1], [], []>} : vector<128x8xbf16>, vector<8x192xbf16>, vector<128x192xf32> -> vector<128x192xf32>
    %95 = arith.addf %90, %94 : vector<128x192xf32>
    %c48_89 = arith.constant 48 : index
    %c0_90 = arith.constant 0 : index
    %96 = vector.load %arg29[%c48_89, %c0_90] : memref<224x8xbf16, #tpu.memory_space<vmem>>, vector<128x8xbf16>
    %c3_91 = arith.constant 3 : index
    %c0_92 = arith.constant 0 : index
    %c0_93 = arith.constant 0 : index
    %97 = vector.load %arg9[%c3_91, %c0_92, %c0_93] : memref<7x8x192xbf16, #tpu.memory_space<vmem>>, vector<1x8x192xbf16>
    %98 = vector.shape_cast %97 : vector<1x8x192xbf16> to vector<8x192xbf16>
    %cst_94 = arith.constant dense<0.000000e+00> : vector<128x192xf32>
    %99 = tpu.matmul %96, %98, %cst_94 {dimension_numbers = #tpu.dot_dimension_numbers<[1], [0], [0], [1], [0, 0, 1, 1], [], []>} : vector<128x8xbf16>, vector<8x192xbf16>, vector<128x192xf32> -> vector<128x192xf32>
    %100 = arith.addf %95, %99 : vector<128x192xf32>
    %c64 = arith.constant 64 : index
    %c0_95 = arith.constant 0 : index
    %101 = vector.load %arg29[%c64, %c0_95] : memref<224x8xbf16, #tpu.memory_space<vmem>>, vector<128x8xbf16>
    %c4_96 = arith.constant 4 : index
    %c0_97 = arith.constant 0 : index
    %c0_98 = arith.constant 0 : index
    %102 = vector.load %arg9[%c4_96, %c0_97, %c0_98] : memref<7x8x192xbf16, #tpu.memory_space<vmem>>, vector<1x8x192xbf16>
    %103 = vector.shape_cast %102 : vector<1x8x192xbf16> to vector<8x192xbf16>
    %cst_99 = arith.constant dense<0.000000e+00> : vector<128x192xf32>
    %104 = tpu.matmul %101, %103, %cst_99 {dimension_numbers = #tpu.dot_dimension_numbers<[1], [0], [0], [1], [0, 0, 1, 1], [], []>} : vector<128x8xbf16>, vector<8x192xbf16>, vector<128x192xf32> -> vector<128x192xf32>
    %105 = arith.addf %100, %104 : vector<128x192xf32>
    %c80 = arith.constant 80 : index
    %c0_100 = arith.constant 0 : index
    %106 = vector.load %arg29[%c80, %c0_100] : memref<224x8xbf16, #tpu.memory_space<vmem>>, vector<128x8xbf16>
    %c5_101 = arith.constant 5 : index
    %c0_102 = arith.constant 0 : index
    %c0_103 = arith.constant 0 : index
    %107 = vector.load %arg9[%c5_101, %c0_102, %c0_103] : memref<7x8x192xbf16, #tpu.memory_space<vmem>>, vector<1x8x192xbf16>
    %108 = vector.shape_cast %107 : vector<1x8x192xbf16> to vector<8x192xbf16>
    %cst_104 = arith.constant dense<0.000000e+00> : vector<128x192xf32>
    %109 = tpu.matmul %106, %108, %cst_104 {dimension_numbers = #tpu.dot_dimension_numbers<[1], [0], [0], [1], [0, 0, 1, 1], [], []>} : vector<128x8xbf16>, vector<8x192xbf16>, vector<128x192xf32> -> vector<128x192xf32>
    %110 = arith.addf %105, %109 : vector<128x192xf32>
    %c96 = arith.constant 96 : index
    %c0_105 = arith.constant 0 : index
    %111 = vector.load %arg29[%c96, %c0_105] : memref<224x8xbf16, #tpu.memory_space<vmem>>, vector<128x8xbf16>
    %c6_106 = arith.constant 6 : index
    %c0_107 = arith.constant 0 : index
    %c0_108 = arith.constant 0 : index
    %112 = vector.load %arg9[%c6_106, %c0_107, %c0_108] : memref<7x8x192xbf16, #tpu.memory_space<vmem>>, vector<1x8x192xbf16>
    %113 = vector.shape_cast %112 : vector<1x8x192xbf16> to vector<8x192xbf16>
    %cst_109 = arith.constant dense<0.000000e+00> : vector<128x192xf32>
    %114 = tpu.matmul %111, %113, %cst_109 {dimension_numbers = #tpu.dot_dimension_numbers<[1], [0], [0], [1], [0, 0, 1, 1], [], []>} : vector<128x8xbf16>, vector<8x192xbf16>, vector<128x192xf32> -> vector<128x192xf32>
    %115 = arith.addf %110, %114 : vector<128x192xf32>
    %116 = vector.broadcast %80 : vector<1x192xf32> to vector<128x192xf32>
    %117 = arith.mulf %115, %116 : vector<128x192xf32>
    %118 = vector.broadcast %81 : vector<1x192xf32> to vector<128x192xf32>
    %119 = arith.addf %117, %118 : vector<128x192xf32>
    %cst_110 = arith.constant 0.000000e+00 : f32
    %120 = vector.broadcast %cst_110 : f32 to vector<128x192xf32>
    %121 = arith.maximumf %119, %120 : vector<128x192xf32>
    %122 = arith.truncf %121 : vector<128x192xf32> to vector<128x192xbf16>
    %c0_111 = arith.constant 0 : index
    %c1_112 = arith.constant 1 : index
    %c0_113 = arith.constant 0 : index
    %c0_114 = arith.constant 0 : index
    %123 = vector.load %arg27[%c0_111, %c1_112, %c0_113, %c0_114] : memref<1x4x128x192xbf16, #tpu.memory_space<vmem>>, vector<1x1x128x192xbf16>
    %124 = vector.shape_cast %123 : vector<1x1x128x192xbf16> to vector<128x192xbf16>
    %125 = vector.shape_cast %122 : vector<128x192xbf16> to vector<1x1x128x192xbf16>
    tpu.vector_store %arg27[%c0_111, %c1_112, %c0_113, %c0_114], %125 {strides = array<i32>} : memref<1x4x128x192xbf16, #tpu.memory_space<vmem>>, vector<1x1x128x192xbf16>,
    %c0_115 = arith.constant 0 : index
    %c0_116 = arith.constant 0 : index
    %126 = vector.load %arg13[%c0_115, %c0_116] : memref<1x8xf32, #tpu.memory_space<vmem>>, vector<1x8xf32>
    %c0_117 = arith.constant 0 : index
    %c0_118 = arith.constant 0 : index
    %127 = vector.load %arg14[%c0_117, %c0_118] : memref<1x8xf32, #tpu.memory_space<vmem>>, vector<1x8xf32>
    %c0_119 = arith.constant 0 : index
    %c0_120 = arith.constant 0 : index
    %128 = vector.load %arg30[%c0_119, %c0_120] : memref<224x8xbf16, #tpu.memory_space<vmem>>, vector<128x8xbf16>
    %c0_121 = arith.constant 0 : index
    %c0_122 = arith.constant 0 : index
    %c0_123 = arith.constant 0 : index
    %129 = vector.load %arg12[%c0_121, %c0_122, %c0_123] : memref<7x8x8xbf16, #tpu.memory_space<vmem>>, vector<1x8x8xbf16>
    %130 = vector.shape_cast %129 : vector<1x8x8xbf16> to vector<8x8xbf16>
    %cst_124 = arith.constant dense<0.000000e+00> : vector<128x8xf32>
    %131 = tpu.matmul %128, %130, %cst_124 {dimension_numbers = #tpu.dot_dimension_numbers<[1], [0], [0], [1], [0, 0, 1, 1], [], []>} : vector<128x8xbf16>, vector<8x8xbf16>, vector<128x8xf32> -> vector<128x8xf32>
    %c16_125 = arith.constant 16 : index
    %c0_126 = arith.constant 0 : index
    %132 = vector.load %arg30[%c16_125, %c0_126] : memref<224x8xbf16, #tpu.memory_space<vmem>>, vector<128x8xbf16>
    %c1_127 = arith.constant 1 : index
    %c0_128 = arith.constant 0 : index
    %c0_129 = arith.constant 0 : index
    %133 = vector.load %arg12[%c1_127, %c0_128, %c0_129] : memref<7x8x8xbf16, #tpu.memory_space<vmem>>, vector<1x8x8xbf16>
    %134 = vector.shape_cast %133 : vector<1x8x8xbf16> to vector<8x8xbf16>
    %cst_130 = arith.constant dense<0.000000e+00> : vector<128x8xf32>
    %135 = tpu.matmul %132, %134, %cst_130 {dimension_numbers = #tpu.dot_dimension_numbers<[1], [0], [0], [1], [0, 0, 1, 1], [], []>} : vector<128x8xbf16>, vector<8x8xbf16>, vector<128x8xf32> -> vector<128x8xf32>
    %136 = arith.addf %131, %135 : vector<128x8xf32>
    %c32_131 = arith.constant 32 : index
    %c0_132 = arith.constant 0 : index
    %137 = vector.load %arg30[%c32_131, %c0_132] : memref<224x8xbf16, #tpu.memory_space<vmem>>, vector<128x8xbf16>
    %c2_133 = arith.constant 2 : index
    %c0_134 = arith.constant 0 : index
    %c0_135 = arith.constant 0 : index
    %138 = vector.load %arg12[%c2_133, %c0_134, %c0_135] : memref<7x8x8xbf16, #tpu.memory_space<vmem>>, vector<1x8x8xbf16>
    %139 = vector.shape_cast %138 : vector<1x8x8xbf16> to vector<8x8xbf16>
    %cst_136 = arith.constant dense<0.000000e+00> : vector<128x8xf32>
    %140 = tpu.matmul %137, %139, %cst_136 {dimension_numbers = #tpu.dot_dimension_numbers<[1], [0], [0], [1], [0, 0, 1, 1], [], []>} : vector<128x8xbf16>, vector<8x8xbf16>, vector<128x8xf32> -> vector<128x8xf32>
    %141 = arith.addf %136, %140 : vector<128x8xf32>
    %c48_137 = arith.constant 48 : index
    %c0_138 = arith.constant 0 : index
    %142 = vector.load %arg30[%c48_137, %c0_138] : memref<224x8xbf16, #tpu.memory_space<vmem>>, vector<128x8xbf16>
    %c3_139 = arith.constant 3 : index
    %c0_140 = arith.constant 0 : index
    %c0_141 = arith.constant 0 : index
    %143 = vector.load %arg12[%c3_139, %c0_140, %c0_141] : memref<7x8x8xbf16, #tpu.memory_space<vmem>>, vector<1x8x8xbf16>
    %144 = vector.shape_cast %143 : vector<1x8x8xbf16> to vector<8x8xbf16>
    %cst_142 = arith.constant dense<0.000000e+00> : vector<128x8xf32>
    %145 = tpu.matmul %142, %144, %cst_142 {dimension_numbers = #tpu.dot_dimension_numbers<[1], [0], [0], [1], [0, 0, 1, 1], [], []>} : vector<128x8xbf16>, vector<8x8xbf16>, vector<128x8xf32> -> vector<128x8xf32>
    %146 = arith.addf %141, %145 : vector<128x8xf32>
    %c64_143 = arith.constant 64 : index
    %c0_144 = arith.constant 0 : index
    %147 = vector.load %arg30[%c64_143, %c0_144] : memref<224x8xbf16, #tpu.memory_space<vmem>>, vector<128x8xbf16>
    %c4_145 = arith.constant 4 : index
    %c0_146 = arith.constant 0 : index
    %c0_147 = arith.constant 0 : index
    %148 = vector.load %arg12[%c4_145, %c0_146, %c0_147] : memref<7x8x8xbf16, #tpu.memory_space<vmem>>, vector<1x8x8xbf16>
    %149 = vector.shape_cast %148 : vector<1x8x8xbf16> to vector<8x8xbf16>
    %cst_148 = arith.constant dense<0.000000e+00> : vector<128x8xf32>
    %150 = tpu.matmul %147, %149, %cst_148 {dimension_numbers = #tpu.dot_dimension_numbers<[1], [0], [0], [1], [0, 0, 1, 1], [], []>} : vector<128x8xbf16>, vector<8x8xbf16>, vector<128x8xf32> -> vector<128x8xf32>
    %151 = arith.addf %146, %150 : vector<128x8xf32>
    %c80_149 = arith.constant 80 : index
    %c0_150 = arith.constant 0 : index
    %152 = vector.load %arg30[%c80_149, %c0_150] : memref<224x8xbf16, #tpu.memory_space<vmem>>, vector<128x8xbf16>
    %c5_151 = arith.constant 5 : index
    %c0_152 = arith.constant 0 : index
    %c0_153 = arith.constant 0 : index
    %153 = vector.load %arg12[%c5_151, %c0_152, %c0_153] : memref<7x8x8xbf16, #tpu.memory_space<vmem>>, vector<1x8x8xbf16>
    %154 = vector.shape_cast %153 : vector<1x8x8xbf16> to vector<8x8xbf16>
    %cst_154 = arith.constant dense<0.000000e+00> : vector<128x8xf32>
    %155 = tpu.matmul %152, %154, %cst_154 {dimension_numbers = #tpu.dot_dimension_numbers<[1], [0], [0], [1], [0, 0, 1, 1], [], []>} : vector<128x8xbf16>, vector<8x8xbf16>, vector<128x8xf32> -> vector<128x8xf32>
    %156 = arith.addf %151, %155 : vector<128x8xf32>
    %c96_155 = arith.constant 96 : index
    %c0_156 = arith.constant 0 : index
    %157 = vector.load %arg30[%c96_155, %c0_156] : memref<224x8xbf16, #tpu.memory_space<vmem>>, vector<128x8xbf16>
    %c6_157 = arith.constant 6 : index
    %c0_158 = arith.constant 0 : index
    %c0_159 = arith.constant 0 : index
    %158 = vector.load %arg12[%c6_157, %c0_158, %c0_159] : memref<7x8x8xbf16, #tpu.memory_space<vmem>>, vector<1x8x8xbf16>
    %159 = vector.shape_cast %158 : vector<1x8x8xbf16> to vector<8x8xbf16>
    %cst_160 = arith.constant dense<0.000000e+00> : vector<128x8xf32>
    %160 = tpu.matmul %157, %159, %cst_160 {dimension_numbers = #tpu.dot_dimension_numbers<[1], [0], [0], [1], [0, 0, 1, 1], [], []>} : vector<128x8xbf16>, vector<8x8xbf16>, vector<128x8xf32> -> vector<128x8xf32>
    %161 = arith.addf %156, %160 : vector<128x8xf32>
    %162 = vector.broadcast %126 : vector<1x8xf32> to vector<128x8xf32>
    %163 = arith.mulf %161, %162 : vector<128x8xf32>
    %164 = vector.broadcast %127 : vector<1x8xf32> to vector<128x8xf32>
    %165 = arith.addf %163, %164 : vector<128x8xf32>
    %cst_161 = arith.constant 0.000000e+00 : f32
    %166 = vector.broadcast %cst_161 : f32 to vector<128x8xf32>
    %167 = arith.maximumf %165, %166 : vector<128x8xf32>
    %c0_162 = arith.constant 0 : index
    %c0_163 = arith.constant 0 : index
    %168 = vector.load %arg2[%c0_162, %c0_163] : memref<128x1xf32, #tpu.memory_space<vmem>>, vector<128x1xf32>
    %169 = vector.broadcast %168 : vector<128x1xf32> to vector<128x8xf32>
    %170 = arith.mulf %167, %169 : vector<128x8xf32>
    %171 = arith.truncf %170 : vector<128x8xf32> to vector<128x8xbf16>
    %c48_164 = arith.constant 48 : index
    %c0_165 = arith.constant 0 : index
    %172 = vector.load %arg28[%c48_164, %c0_165] : memref<224x8xbf16, #tpu.memory_space<vmem>>, vector<128x8xbf16>
    tpu.vector_store %arg28[%c48_164, %c0_165], %171 {strides = array<i32>} : memref<224x8xbf16, #tpu.memory_space<vmem>>, vector<128x8xbf16>,
    %c0_166 = arith.constant 0 : index
    %c0_167 = arith.constant 0 : index
    %173 = vector.load %arg16[%c0_166, %c0_167] : memref<1x8xf32, #tpu.memory_space<vmem>>, vector<1x8xf32>
    %c0_168 = arith.constant 0 : index
    %c0_169 = arith.constant 0 : index
    %174 = vector.load %arg17[%c0_168, %c0_169] : memref<1x8xf32, #tpu.memory_space<vmem>>, vector<1x8xf32>
    %c45_170 = arith.constant 45 : index
    %c0_171 = arith.constant 0 : index
    %175 = vector.load %arg28[%c45_170, %c0_171] : memref<224x8xbf16, #tpu.memory_space<vmem>>, vector<128x8xbf16>
    %c0_172 = arith.constant 0 : index
    %c0_173 = arith.constant 0 : index
    %c0_174 = arith.constant 0 : index
    %176 = vector.load %arg15[%c0_172, %c0_173, %c0_174] : memref<7x8x8xbf16, #tpu.memory_space<vmem>>, vector<1x8x8xbf16>
    %177 = vector.shape_cast %176 : vector<1x8x8xbf16> to vector<8x8xbf16>
    %cst_175 = arith.constant dense<0.000000e+00> : vector<128x8xf32>
    %178 = tpu.matmul %175, %177, %cst_175 {dimension_numbers = #tpu.dot_dimension_numbers<[1], [0], [0], [1], [0, 0, 1, 1], [], []>} : vector<128x8xbf16>, vector<8x8xbf16>, vector<128x8xf32> -> vector<128x8xf32>
    %c46_176 = arith.constant 46 : index
    %c0_177 = arith.constant 0 : index
    %179 = vector.load %arg28[%c46_176, %c0_177] : memref<224x8xbf16, #tpu.memory_space<vmem>>, vector<128x8xbf16>
    %c1_178 = arith.constant 1 : index
    %c0_179 = arith.constant 0 : index
    %c0_180 = arith.constant 0 : index
    %180 = vector.load %arg15[%c1_178, %c0_179, %c0_180] : memref<7x8x8xbf16, #tpu.memory_space<vmem>>, vector<1x8x8xbf16>
    %181 = vector.shape_cast %180 : vector<1x8x8xbf16> to vector<8x8xbf16>
    %cst_181 = arith.constant dense<0.000000e+00> : vector<128x8xf32>
    %182 = tpu.matmul %179, %181, %cst_181 {dimension_numbers = #tpu.dot_dimension_numbers<[1], [0], [0], [1], [0, 0, 1, 1], [], []>} : vector<128x8xbf16>, vector<8x8xbf16>, vector<128x8xf32> -> vector<128x8xf32>
    %183 = arith.addf %178, %182 : vector<128x8xf32>
    %c47_182 = arith.constant 47 : index
    %c0_183 = arith.constant 0 : index
    %184 = vector.load %arg28[%c47_182, %c0_183] : memref<224x8xbf16, #tpu.memory_space<vmem>>, vector<128x8xbf16>
    %c2_184 = arith.constant 2 : index
    %c0_185 = arith.constant 0 : index
    %c0_186 = arith.constant 0 : index
    %185 = vector.load %arg15[%c2_184, %c0_185, %c0_186] : memref<7x8x8xbf16, #tpu.memory_space<vmem>>, vector<1x8x8xbf16>
    %186 = vector.shape_cast %185 : vector<1x8x8xbf16> to vector<8x8xbf16>
    %cst_187 = arith.constant dense<0.000000e+00> : vector<128x8xf32>
    %187 = tpu.matmul %184, %186, %cst_187 {dimension_numbers = #tpu.dot_dimension_numbers<[1], [0], [0], [1], [0, 0, 1, 1], [], []>} : vector<128x8xbf16>, vector<8x8xbf16>, vector<128x8xf32> -> vector<128x8xf32>
    %188 = arith.addf %183, %187 : vector<128x8xf32>
    %c48_188 = arith.constant 48 : index
    %c0_189 = arith.constant 0 : index
    %189 = vector.load %arg28[%c48_188, %c0_189] : memref<224x8xbf16, #tpu.memory_space<vmem>>, vector<128x8xbf16>
    %c3_190 = arith.constant 3 : index
    %c0_191 = arith.constant 0 : index
    %c0_192 = arith.constant 0 : index
    %190 = vector.load %arg15[%c3_190, %c0_191, %c0_192] : memref<7x8x8xbf16, #tpu.memory_space<vmem>>, vector<1x8x8xbf16>
    %191 = vector.shape_cast %190 : vector<1x8x8xbf16> to vector<8x8xbf16>
    %cst_193 = arith.constant dense<0.000000e+00> : vector<128x8xf32>
    %192 = tpu.matmul %189, %191, %cst_193 {dimension_numbers = #tpu.dot_dimension_numbers<[1], [0], [0], [1], [0, 0, 1, 1], [], []>} : vector<128x8xbf16>, vector<8x8xbf16>, vector<128x8xf32> -> vector<128x8xf32>
    %193 = arith.addf %188, %192 : vector<128x8xf32>
    %c49_194 = arith.constant 49 : index
    %c0_195 = arith.constant 0 : index
    %194 = vector.load %arg28[%c49_194, %c0_195] : memref<224x8xbf16, #tpu.memory_space<vmem>>, vector<128x8xbf16>
    %c4_196 = arith.constant 4 : index
    %c0_197 = arith.constant 0 : index
    %c0_198 = arith.constant 0 : index
    %195 = vector.load %arg15[%c4_196, %c0_197, %c0_198] : memref<7x8x8xbf16, #tpu.memory_space<vmem>>, vector<1x8x8xbf16>
    %196 = vector.shape_cast %195 : vector<1x8x8xbf16> to vector<8x8xbf16>
    %cst_199 = arith.constant dense<0.000000e+00> : vector<128x8xf32>
    %197 = tpu.matmul %194, %196, %cst_199 {dimension_numbers = #tpu.dot_dimension_numbers<[1], [0], [0], [1], [0, 0, 1, 1], [], []>} : vector<128x8xbf16>, vector<8x8xbf16>, vector<128x8xf32> -> vector<128x8xf32>
    %198 = arith.addf %193, %197 : vector<128x8xf32>
    %c50_200 = arith.constant 50 : index
    %c0_201 = arith.constant 0 : index
    %199 = vector.load %arg28[%c50_200, %c0_201] : memref<224x8xbf16, #tpu.memory_space<vmem>>, vector<128x8xbf16>
    %c5_202 = arith.constant 5 : index
    %c0_203 = arith.constant 0 : index
    %c0_204 = arith.constant 0 : index
    %200 = vector.load %arg15[%c5_202, %c0_203, %c0_204] : memref<7x8x8xbf16, #tpu.memory_space<vmem>>, vector<1x8x8xbf16>
    %201 = vector.shape_cast %200 : vector<1x8x8xbf16> to vector<8x8xbf16>
    %cst_205 = arith.constant dense<0.000000e+00> : vector<128x8xf32>
    %202 = tpu.matmul %199, %201, %cst_205 {dimension_numbers = #tpu.dot_dimension_numbers<[1], [0], [0], [1], [0, 0, 1, 1], [], []>} : vector<128x8xbf16>, vector<8x8xbf16>, vector<128x8xf32> -> vector<128x8xf32>
    %203 = arith.addf %198, %202 : vector<128x8xf32>
    %c51_206 = arith.constant 51 : index
    %c0_207 = arith.constant 0 : index
    %204 = vector.load %arg28[%c51_206, %c0_207] : memref<224x8xbf16, #tpu.memory_space<vmem>>, vector<128x8xbf16>
    %c6_208 = arith.constant 6 : index
    %c0_209 = arith.constant 0 : index
    %c0_210 = arith.constant 0 : index
    %205 = vector.load %arg15[%c6_208, %c0_209, %c0_210] : memref<7x8x8xbf16, #tpu.memory_space<vmem>>, vector<1x8x8xbf16>
    %206 = vector.shape_cast %205 : vector<1x8x8xbf16> to vector<8x8xbf16>
    %cst_211 = arith.constant dense<0.000000e+00> : vector<128x8xf32>
    %207 = tpu.matmul %204, %206, %cst_211 {dimension_numbers = #tpu.dot_dimension_numbers<[1], [0], [0], [1], [0, 0, 1, 1], [], []>} : vector<128x8xbf16>, vector<8x8xbf16>, vector<128x8xf32> -> vector<128x8xf32>
    %208 = arith.addf %203, %207 : vector<128x8xf32>
    %209 = vector.broadcast %173 : vector<1x8xf32> to vector<128x8xf32>
    %210 = arith.mulf %208, %209 : vector<128x8xf32>
    %211 = vector.broadcast %174 : vector<1x8xf32> to vector<128x8xf32>
    %212 = arith.addf %210, %211 : vector<128x8xf32>
    %cst_212 = arith.constant 0.000000e+00 : f32
    %213 = vector.broadcast %cst_212 : f32 to vector<128x8xf32>
    %214 = arith.maximumf %212, %213 : vector<128x8xf32>
    %c0_213 = arith.constant 0 : index
    %c0_214 = arith.constant 0 : index
    %215 = vector.load %arg2[%c0_213, %c0_214] : memref<128x1xf32, #tpu.memory_space<vmem>>, vector<128x1xf32>
    %216 = vector.broadcast %215 : vector<128x1xf32> to vector<128x8xf32>
    %217 = arith.mulf %214, %216 : vector<128x8xf32>
    %218 = arith.truncf %217 : vector<128x8xf32> to vector<128x8xbf16>
    %c48_215 = arith.constant 48 : index
    %c0_216 = arith.constant 0 : index
    %219 = vector.load %arg29[%c48_215, %c0_216] : memref<224x8xbf16, #tpu.memory_space<vmem>>, vector<128x8xbf16>
    tpu.vector_store %arg29[%c48_215, %c0_216], %218 {strides = array<i32>} : memref<224x8xbf16, #tpu.memory_space<vmem>>, vector<128x8xbf16>,
    %c0_217 = arith.constant 0 : index
    %c0_218 = arith.constant 0 : index
    %220 = vector.load %arg19[%c0_217, %c0_218] : memref<1x8xf32, #tpu.memory_space<vmem>>, vector<1x8xf32>
    %c0_219 = arith.constant 0 : index
    %c0_220 = arith.constant 0 : index
    %221 = vector.load %arg20[%c0_219, %c0_220] : memref<1x8xf32, #tpu.memory_space<vmem>>, vector<1x8xf32>
    %c0_221 = arith.constant 0 : index
    %c0_222 = arith.constant 0 : index
    %222 = vector.load %arg29[%c0_221, %c0_222] : memref<224x8xbf16, #tpu.memory_space<vmem>>, vector<128x8xbf16>
    %c0_223 = arith.constant 0 : index
    %c0_224 = arith.constant 0 : index
    %c0_225 = arith.constant 0 : index
    %223 = vector.load %arg18[%c0_223, %c0_224, %c0_225] : memref<7x8x8xbf16, #tpu.memory_space<vmem>>, vector<1x8x8xbf16>
    %224 = vector.shape_cast %223 : vector<1x8x8xbf16> to vector<8x8xbf16>
    %cst_226 = arith.constant dense<0.000000e+00> : vector<128x8xf32>
    %225 = tpu.matmul %222, %224, %cst_226 {dimension_numbers = #tpu.dot_dimension_numbers<[1], [0], [0], [1], [0, 0, 1, 1], [], []>} : vector<128x8xbf16>, vector<8x8xbf16>, vector<128x8xf32> -> vector<128x8xf32>
    %c16_227 = arith.constant 16 : index
    %c0_228 = arith.constant 0 : index
    %226 = vector.load %arg29[%c16_227, %c0_228] : memref<224x8xbf16, #tpu.memory_space<vmem>>, vector<128x8xbf16>
    %c1_229 = arith.constant 1 : index
    %c0_230 = arith.constant 0 : index
    %c0_231 = arith.constant 0 : index
    %227 = vector.load %arg18[%c1_229, %c0_230, %c0_231] : memref<7x8x8xbf16, #tpu.memory_space<vmem>>, vector<1x8x8xbf16>
    %228 = vector.shape_cast %227 : vector<1x8x8xbf16> to vector<8x8xbf16>
    %cst_232 = arith.constant dense<0.000000e+00> : vector<128x8xf32>
    %229 = tpu.matmul %226, %228, %cst_232 {dimension_numbers = #tpu.dot_dimension_numbers<[1], [0], [0], [1], [0, 0, 1, 1], [], []>} : vector<128x8xbf16>, vector<8x8xbf16>, vector<128x8xf32> -> vector<128x8xf32>
    %230 = arith.addf %225, %229 : vector<128x8xf32>
    %c32_233 = arith.constant 32 : index
    %c0_234 = arith.constant 0 : index
    %231 = vector.load %arg29[%c32_233, %c0_234] : memref<224x8xbf16, #tpu.memory_space<vmem>>, vector<128x8xbf16>
    %c2_235 = arith.constant 2 : index
    %c0_236 = arith.constant 0 : index
    %c0_237 = arith.constant 0 : index
    %232 = vector.load %arg18[%c2_235, %c0_236, %c0_237] : memref<7x8x8xbf16, #tpu.memory_space<vmem>>, vector<1x8x8xbf16>
    %233 = vector.shape_cast %232 : vector<1x8x8xbf16> to vector<8x8xbf16>
    %cst_238 = arith.constant dense<0.000000e+00> : vector<128x8xf32>
    %234 = tpu.matmul %231, %233, %cst_238 {dimension_numbers = #tpu.dot_dimension_numbers<[1], [0], [0], [1], [0, 0, 1, 1], [], []>} : vector<128x8xbf16>, vector<8x8xbf16>, vector<128x8xf32> -> vector<128x8xf32>
    %235 = arith.addf %230, %234 : vector<128x8xf32>
    %c48_239 = arith.constant 48 : index
    %c0_240 = arith.constant 0 : index
    %236 = vector.load %arg29[%c48_239, %c0_240] : memref<224x8xbf16, #tpu.memory_space<vmem>>, vector<128x8xbf16>
    %c3_241 = arith.constant 3 : index
    %c0_242 = arith.constant 0 : index
    %c0_243 = arith.constant 0 : index
    %237 = vector.load %arg18[%c3_241, %c0_242, %c0_243] : memref<7x8x8xbf16, #tpu.memory_space<vmem>>, vector<1x8x8xbf16>
    %238 = vector.shape_cast %237 : vector<1x8x8xbf16> to vector<8x8xbf16>
    %cst_244 = arith.constant dense<0.000000e+00> : vector<128x8xf32>
    %239 = tpu.matmul %236, %238, %cst_244 {dimension_numbers = #tpu.dot_dimension_numbers<[1], [0], [0], [1], [0, 0, 1, 1], [], []>} : vector<128x8xbf16>, vector<8x8xbf16>, vector<128x8xf32> -> vector<128x8xf32>
    %240 = arith.addf %235, %239 : vector<128x8xf32>
    %c64_245 = arith.constant 64 : index
    %c0_246 = arith.constant 0 : index
    %241 = vector.load %arg29[%c64_245, %c0_246] : memref<224x8xbf16, #tpu.memory_space<vmem>>, vector<128x8xbf16>
    %c4_247 = arith.constant 4 : index
    %c0_248 = arith.constant 0 : index
    %c0_249 = arith.constant 0 : index
    %242 = vector.load %arg18[%c4_247, %c0_248, %c0_249] : memref<7x8x8xbf16, #tpu.memory_space<vmem>>, vector<1x8x8xbf16>
    %243 = vector.shape_cast %242 : vector<1x8x8xbf16> to vector<8x8xbf16>
    %cst_250 = arith.constant dense<0.000000e+00> : vector<128x8xf32>
    %244 = tpu.matmul %241, %243, %cst_250 {dimension_numbers = #tpu.dot_dimension_numbers<[1], [0], [0], [1], [0, 0, 1, 1], [], []>} : vector<128x8xbf16>, vector<8x8xbf16>, vector<128x8xf32> -> vector<128x8xf32>
    %245 = arith.addf %240, %244 : vector<128x8xf32>
    %c80_251 = arith.constant 80 : index
    %c0_252 = arith.constant 0 : index
    %246 = vector.load %arg29[%c80_251, %c0_252] : memref<224x8xbf16, #tpu.memory_space<vmem>>, vector<128x8xbf16>
    %c5_253 = arith.constant 5 : index
    %c0_254 = arith.constant 0 : index
    %c0_255 = arith.constant 0 : index
    %247 = vector.load %arg18[%c5_253, %c0_254, %c0_255] : memref<7x8x8xbf16, #tpu.memory_space<vmem>>, vector<1x8x8xbf16>
    %248 = vector.shape_cast %247 : vector<1x8x8xbf16> to vector<8x8xbf16>
    %cst_256 = arith.constant dense<0.000000e+00> : vector<128x8xf32>
    %249 = tpu.matmul %246, %248, %cst_256 {dimension_numbers = #tpu.dot_dimension_numbers<[1], [0], [0], [1], [0, 0, 1, 1], [], []>} : vector<128x8xbf16>, vector<8x8xbf16>, vector<128x8xf32> -> vector<128x8xf32>
    %250 = arith.addf %245, %249 : vector<128x8xf32>
    %c96_257 = arith.constant 96 : index
    %c0_258 = arith.constant 0 : index
    %251 = vector.load %arg29[%c96_257, %c0_258] : memref<224x8xbf16, #tpu.memory_space<vmem>>, vector<128x8xbf16>
    %c6_259 = arith.constant 6 : index
    %c0_260 = arith.constant 0 : index
    %c0_261 = arith.constant 0 : index
    %252 = vector.load %arg18[%c6_259, %c0_260, %c0_261] : memref<7x8x8xbf16, #tpu.memory_space<vmem>>, vector<1x8x8xbf16>
    %253 = vector.shape_cast %252 : vector<1x8x8xbf16> to vector<8x8xbf16>
    %cst_262 = arith.constant dense<0.000000e+00> : vector<128x8xf32>
    %254 = tpu.matmul %251, %253, %cst_262 {dimension_numbers = #tpu.dot_dimension_numbers<[1], [0], [0], [1], [0, 0, 1, 1], [], []>} : vector<128x8xbf16>, vector<8x8xbf16>, vector<128x8xf32> -> vector<128x8xf32>
    %255 = arith.addf %250, %254 : vector<128x8xf32>
    %256 = vector.broadcast %220 : vector<1x8xf32> to vector<128x8xf32>
    %257 = arith.mulf %255, %256 : vector<128x8xf32>
    %258 = vector.broadcast %221 : vector<1x8xf32> to vector<128x8xf32>
    %259 = arith.addf %257, %258 : vector<128x8xf32>
    %cst_263 = arith.constant 0.000000e+00 : f32
    %260 = vector.broadcast %cst_263 : f32 to vector<128x8xf32>
    %261 = arith.maximumf %259, %260 : vector<128x8xf32>
    %c0_264 = arith.constant 0 : index
    %c0_265 = arith.constant 0 : index
    %262 = vector.load %arg2[%c0_264, %c0_265] : memref<128x1xf32, #tpu.memory_space<vmem>>, vector<128x1xf32>
    %263 = vector.broadcast %262 : vector<128x1xf32> to vector<128x8xf32>
    %264 = arith.mulf %261, %263 : vector<128x8xf32>
    %265 = arith.truncf %264 : vector<128x8xf32> to vector<128x8xbf16>
    %c48_266 = arith.constant 48 : index
    %c0_267 = arith.constant 0 : index
    %266 = vector.load %arg28[%c48_266, %c0_267] : memref<224x8xbf16, #tpu.memory_space<vmem>>, vector<128x8xbf16>
    tpu.vector_store %arg28[%c48_266, %c0_267], %265 {strides = array<i32>} : memref<224x8xbf16, #tpu.memory_space<vmem>>, vector<128x8xbf16>,
    %c0_268 = arith.constant 0 : index
    %c0_269 = arith.constant 0 : index
    %267 = vector.load %arg22[%c0_268, %c0_269] : memref<1x192xf32, #tpu.memory_space<vmem>>, vector<1x192xf32>
    %c0_270 = arith.constant 0 : index
    %c0_271 = arith.constant 0 : index
    %268 = vector.load %arg23[%c0_270, %c0_271] : memref<1x192xf32, #tpu.memory_space<vmem>>, vector<1x192xf32>
    %c45_272 = arith.constant 45 : index
    %c0_273 = arith.constant 0 : index
    %269 = vector.load %arg28[%c45_272, %c0_273] : memref<224x8xbf16, #tpu.memory_space<vmem>>, vector<128x8xbf16>
    %c0_274 = arith.constant 0 : index
    %c0_275 = arith.constant 0 : index
    %c0_276 = arith.constant 0 : index
    %270 = vector.load %arg21[%c0_274, %c0_275, %c0_276] : memref<7x8x192xbf16, #tpu.memory_space<vmem>>, vector<1x8x192xbf16>
    %271 = vector.shape_cast %270 : vector<1x8x192xbf16> to vector<8x192xbf16>
    %cst_277 = arith.constant dense<0.000000e+00> : vector<128x192xf32>
    %272 = tpu.matmul %269, %271, %cst_277 {dimension_numbers = #tpu.dot_dimension_numbers<[1], [0], [0], [1], [0, 0, 1, 1], [], []>} : vector<128x8xbf16>, vector<8x192xbf16>, vector<128x192xf32> -> vector<128x192xf32>
    %c46_278 = arith.constant 46 : index
    %c0_279 = arith.constant 0 : index
    %273 = vector.load %arg28[%c46_278, %c0_279] : memref<224x8xbf16, #tpu.memory_space<vmem>>, vector<128x8xbf16>
    %c1_280 = arith.constant 1 : index
    %c0_281 = arith.constant 0 : index
    %c0_282 = arith.constant 0 : index
    %274 = vector.load %arg21[%c1_280, %c0_281, %c0_282] : memref<7x8x192xbf16, #tpu.memory_space<vmem>>, vector<1x8x192xbf16>
    %275 = vector.shape_cast %274 : vector<1x8x192xbf16> to vector<8x192xbf16>
    %cst_283 = arith.constant dense<0.000000e+00> : vector<128x192xf32>
    %276 = tpu.matmul %273, %275, %cst_283 {dimension_numbers = #tpu.dot_dimension_numbers<[1], [0], [0], [1], [0, 0, 1, 1], [], []>} : vector<128x8xbf16>, vector<8x192xbf16>, vector<128x192xf32> -> vector<128x192xf32>
    %277 = arith.addf %272, %276 : vector<128x192xf32>
    %c47_284 = arith.constant 47 : index
    %c0_285 = arith.constant 0 : index
    %278 = vector.load %arg28[%c47_284, %c0_285] : memref<224x8xbf16, #tpu.memory_space<vmem>>, vector<128x8xbf16>
    %c2_286 = arith.constant 2 : index
    %c0_287 = arith.constant 0 : index
    %c0_288 = arith.constant 0 : index
    %279 = vector.load %arg21[%c2_286, %c0_287, %c0_288] : memref<7x8x192xbf16, #tpu.memory_space<vmem>>, vector<1x8x192xbf16>
    %280 = vector.shape_cast %279 : vector<1x8x192xbf16> to vector<8x192xbf16>
    %cst_289 = arith.constant dense<0.000000e+00> : vector<128x192xf32>
    %281 = tpu.matmul %278, %280, %cst_289 {dimension_numbers = #tpu.dot_dimension_numbers<[1], [0], [0], [1], [0, 0, 1, 1], [], []>} : vector<128x8xbf16>, vector<8x192xbf16>, vector<128x192xf32> -> vector<128x192xf32>
    %282 = arith.addf %277, %281 : vector<128x192xf32>
    %c48_290 = arith.constant 48 : index
    %c0_291 = arith.constant 0 : index
    %283 = vector.load %arg28[%c48_290, %c0_291] : memref<224x8xbf16, #tpu.memory_space<vmem>>, vector<128x8xbf16>
    %c3_292 = arith.constant 3 : index
    %c0_293 = arith.constant 0 : index
    %c0_294 = arith.constant 0 : index
    %284 = vector.load %arg21[%c3_292, %c0_293, %c0_294] : memref<7x8x192xbf16, #tpu.memory_space<vmem>>, vector<1x8x192xbf16>
    %285 = vector.shape_cast %284 : vector<1x8x192xbf16> to vector<8x192xbf16>
    %cst_295 = arith.constant dense<0.000000e+00> : vector<128x192xf32>
    %286 = tpu.matmul %283, %285, %cst_295 {dimension_numbers = #tpu.dot_dimension_numbers<[1], [0], [0], [1], [0, 0, 1, 1], [], []>} : vector<128x8xbf16>, vector<8x192xbf16>, vector<128x192xf32> -> vector<128x192xf32>
    %287 = arith.addf %282, %286 : vector<128x192xf32>
    %c49_296 = arith.constant 49 : index
    %c0_297 = arith.constant 0 : index
    %288 = vector.load %arg28[%c49_296, %c0_297] : memref<224x8xbf16, #tpu.memory_space<vmem>>, vector<128x8xbf16>
    %c4_298 = arith.constant 4 : index
    %c0_299 = arith.constant 0 : index
    %c0_300 = arith.constant 0 : index
    %289 = vector.load %arg21[%c4_298, %c0_299, %c0_300] : memref<7x8x192xbf16, #tpu.memory_space<vmem>>, vector<1x8x192xbf16>
    %290 = vector.shape_cast %289 : vector<1x8x192xbf16> to vector<8x192xbf16>
    %cst_301 = arith.constant dense<0.000000e+00> : vector<128x192xf32>
    %291 = tpu.matmul %288, %290, %cst_301 {dimension_numbers = #tpu.dot_dimension_numbers<[1], [0], [0], [1], [0, 0, 1, 1], [], []>} : vector<128x8xbf16>, vector<8x192xbf16>, vector<128x192xf32> -> vector<128x192xf32>
    %292 = arith.addf %287, %291 : vector<128x192xf32>
    %c50_302 = arith.constant 50 : index
    %c0_303 = arith.constant 0 : index
    %293 = vector.load %arg28[%c50_302, %c0_303] : memref<224x8xbf16, #tpu.memory_space<vmem>>, vector<128x8xbf16>
    %c5_304 = arith.constant 5 : index
    %c0_305 = arith.constant 0 : index
    %c0_306 = arith.constant 0 : index
    %294 = vector.load %arg21[%c5_304, %c0_305, %c0_306] : memref<7x8x192xbf16, #tpu.memory_space<vmem>>, vector<1x8x192xbf16>
    %295 = vector.shape_cast %294 : vector<1x8x192xbf16> to vector<8x192xbf16>
    %cst_307 = arith.constant dense<0.000000e+00> : vector<128x192xf32>
    %296 = tpu.matmul %293, %295, %cst_307 {dimension_numbers = #tpu.dot_dimension_numbers<[1], [0], [0], [1], [0, 0, 1, 1], [], []>} : vector<128x8xbf16>, vector<8x192xbf16>, vector<128x192xf32> -> vector<128x192xf32>
    %297 = arith.addf %292, %296 : vector<128x192xf32>
    %c51_308 = arith.constant 51 : index
    %c0_309 = arith.constant 0 : index
    %298 = vector.load %arg28[%c51_308, %c0_309] : memref<224x8xbf16, #tpu.memory_space<vmem>>, vector<128x8xbf16>
    %c6_310 = arith.constant 6 : index
    %c0_311 = arith.constant 0 : index
    %c0_312 = arith.constant 0 : index
    %299 = vector.load %arg21[%c6_310, %c0_311, %c0_312] : memref<7x8x192xbf16, #tpu.memory_space<vmem>>, vector<1x8x192xbf16>
    %300 = vector.shape_cast %299 : vector<1x8x192xbf16> to vector<8x192xbf16>
    %cst_313 = arith.constant dense<0.000000e+00> : vector<128x192xf32>
    %301 = tpu.matmul %298, %300, %cst_313 {dimension_numbers = #tpu.dot_dimension_numbers<[1], [0], [0], [1], [0, 0, 1, 1], [], []>} : vector<128x8xbf16>, vector<8x192xbf16>, vector<128x192xf32> -> vector<128x192xf32>
    %302 = arith.addf %297, %301 : vector<128x192xf32>
    %303 = vector.broadcast %267 : vector<1x192xf32> to vector<128x192xf32>
    %304 = arith.mulf %302, %303 : vector<128x192xf32>
    %305 = vector.broadcast %268 : vector<1x192xf32> to vector<128x192xf32>
    %306 = arith.addf %304, %305 : vector<128x192xf32>
    %cst_314 = arith.constant 0.000000e+00 : f32
    %307 = vector.broadcast %cst_314 : f32 to vector<128x192xf32>
    %308 = arith.maximumf %306, %307 : vector<128x192xf32>
    %309 = arith.truncf %308 : vector<128x192xf32> to vector<128x192xbf16>
    %c0_315 = arith.constant 0 : index
    %c2_316 = arith.constant 2 : index
    %c0_317 = arith.constant 0 : index
    %c0_318 = arith.constant 0 : index
    %310 = vector.load %arg27[%c0_315, %c2_316, %c0_317, %c0_318] : memref<1x4x128x192xbf16, #tpu.memory_space<vmem>>, vector<1x1x128x192xbf16>
    %311 = vector.shape_cast %310 : vector<1x1x128x192xbf16> to vector<128x192xbf16>
    %312 = vector.shape_cast %309 : vector<128x192xbf16> to vector<1x1x128x192xbf16>
    tpu.vector_store %arg27[%c0_315, %c2_316, %c0_317, %c0_318], %312 {strides = array<i32>} : memref<1x4x128x192xbf16, #tpu.memory_space<vmem>>, vector<1x1x128x192xbf16>,
    %c0_319 = arith.constant 0 : index
    %c0_320 = arith.constant 0 : index
    %313 = vector.load %arg25[%c0_319, %c0_320] : memref<1x192xf32, #tpu.memory_space<vmem>>, vector<1x192xf32>
    %c0_321 = arith.constant 0 : index
    %c0_322 = arith.constant 0 : index
    %314 = vector.load %arg26[%c0_321, %c0_322] : memref<1x192xf32, #tpu.memory_space<vmem>>, vector<1x192xf32>
    %c0_323 = arith.constant 0 : index
    %c31 = arith.constant 31 : index
    %c0_324 = arith.constant 0 : index
    %315 = vector.load %arg1[%c0_323, %c31, %c0_324] : memref<1x224x8xbf16, #tpu.memory_space<vmem>>, vector<1x128x8xbf16>
    %316 = vector.shape_cast %315 : vector<1x128x8xbf16> to vector<128x8xbf16>
    %317 = arith.extf %316 : vector<128x8xbf16> to vector<128x8xf32>
    %c0_325 = arith.constant 0 : index
    %c32_326 = arith.constant 32 : index
    %c0_327 = arith.constant 0 : index
    %318 = vector.load %arg1[%c0_325, %c32_326, %c0_327] : memref<1x224x8xbf16, #tpu.memory_space<vmem>>, vector<1x128x8xbf16>
    %319 = vector.shape_cast %318 : vector<1x128x8xbf16> to vector<128x8xbf16>
    %320 = arith.extf %319 : vector<128x8xbf16> to vector<128x8xf32>
    %321 = arith.addf %317, %320 : vector<128x8xf32>
    %c0_328 = arith.constant 0 : index
    %c33 = arith.constant 33 : index
    %c0_329 = arith.constant 0 : index
    %322 = vector.load %arg1[%c0_328, %c33, %c0_329] : memref<1x224x8xbf16, #tpu.memory_space<vmem>>, vector<1x128x8xbf16>
    %323 = vector.shape_cast %322 : vector<1x128x8xbf16> to vector<128x8xbf16>
    %324 = arith.extf %323 : vector<128x8xbf16> to vector<128x8xf32>
    %325 = arith.addf %321, %324 : vector<128x8xf32>
    %c0_330 = arith.constant 0 : index
    %c47_331 = arith.constant 47 : index
    %c0_332 = arith.constant 0 : index
    %326 = vector.load %arg1[%c0_330, %c47_331, %c0_332] : memref<1x224x8xbf16, #tpu.memory_space<vmem>>, vector<1x128x8xbf16>
    %327 = vector.shape_cast %326 : vector<1x128x8xbf16> to vector<128x8xbf16>
    %328 = arith.extf %327 : vector<128x8xbf16> to vector<128x8xf32>
    %329 = arith.addf %325, %328 : vector<128x8xf32>
    %c0_333 = arith.constant 0 : index
    %c48_334 = arith.constant 48 : index
    %c0_335 = arith.constant 0 : index
    %330 = vector.load %arg1[%c0_333, %c48_334, %c0_335] : memref<1x224x8xbf16, #tpu.memory_space<vmem>>, vector<1x128x8xbf16>
    %331 = vector.shape_cast %330 : vector<1x128x8xbf16> to vector<128x8xbf16>
    %332 = arith.extf %331 : vector<128x8xbf16> to vector<128x8xf32>
    %333 = arith.addf %329, %332 : vector<128x8xf32>
    %c0_336 = arith.constant 0 : index
    %c49_337 = arith.constant 49 : index
    %c0_338 = arith.constant 0 : index
    %334 = vector.load %arg1[%c0_336, %c49_337, %c0_338] : memref<1x224x8xbf16, #tpu.memory_space<vmem>>, vector<1x128x8xbf16>
    %335 = vector.shape_cast %334 : vector<1x128x8xbf16> to vector<128x8xbf16>
    %336 = arith.extf %335 : vector<128x8xbf16> to vector<128x8xf32>
    %337 = arith.addf %333, %336 : vector<128x8xf32>
    %c0_339 = arith.constant 0 : index
    %c63 = arith.constant 63 : index
    %c0_340 = arith.constant 0 : index
    %338 = vector.load %arg1[%c0_339, %c63, %c0_340] : memref<1x224x8xbf16, #tpu.memory_space<vmem>>, vector<1x128x8xbf16>
    %339 = vector.shape_cast %338 : vector<1x128x8xbf16> to vector<128x8xbf16>
    %340 = arith.extf %339 : vector<128x8xbf16> to vector<128x8xf32>
    %341 = arith.addf %337, %340 : vector<128x8xf32>
    %c0_341 = arith.constant 0 : index
    %c64_342 = arith.constant 64 : index
    %c0_343 = arith.constant 0 : index
    %342 = vector.load %arg1[%c0_341, %c64_342, %c0_343] : memref<1x224x8xbf16, #tpu.memory_space<vmem>>, vector<1x128x8xbf16>
    %343 = vector.shape_cast %342 : vector<1x128x8xbf16> to vector<128x8xbf16>
    %344 = arith.extf %343 : vector<128x8xbf16> to vector<128x8xf32>
    %345 = arith.addf %341, %344 : vector<128x8xf32>
    %c0_344 = arith.constant 0 : index
    %c65 = arith.constant 65 : index
    %c0_345 = arith.constant 0 : index
    %346 = vector.load %arg1[%c0_344, %c65, %c0_345] : memref<1x224x8xbf16, #tpu.memory_space<vmem>>, vector<1x128x8xbf16>
    %347 = vector.shape_cast %346 : vector<1x128x8xbf16> to vector<128x8xbf16>
    %348 = arith.extf %347 : vector<128x8xbf16> to vector<128x8xf32>
    %349 = arith.addf %345, %348 : vector<128x8xf32>
    %cst_346 = arith.constant 0.111111112 : f32
    %350 = vector.broadcast %cst_346 : f32 to vector<128x8xf32>
    %351 = arith.mulf %349, %350 : vector<128x8xf32>
    %352 = arith.truncf %351 : vector<128x8xf32> to vector<128x8xbf16>
    %c0_347 = arith.constant 0 : index
    %c0_348 = arith.constant 0 : index
    %c0_349 = arith.constant 0 : index
    %353 = vector.load %arg24[%c0_347, %c0_348, %c0_349] : memref<1x8x192xbf16, #tpu.memory_space<vmem>>, vector<1x8x192xbf16>
    %354 = vector.shape_cast %353 : vector<1x8x192xbf16> to vector<8x192xbf16>
    %cst_350 = arith.constant dense<0.000000e+00> : vector<128x192xf32>
    %355 = tpu.matmul %352, %354, %cst_350 {dimension_numbers = #tpu.dot_dimension_numbers<[1], [0], [0], [1], [0, 0, 1, 1], [], []>} : vector<128x8xbf16>, vector<8x192xbf16>, vector<128x192xf32> -> vector<128x192xf32>
    %356 = vector.broadcast %313 : vector<1x192xf32> to vector<128x192xf32>
    %357 = arith.mulf %355, %356 : vector<128x192xf32>
    %358 = vector.broadcast %314 : vector<1x192xf32> to vector<128x192xf32>
    %359 = arith.addf %357, %358 : vector<128x192xf32>
    %cst_351 = arith.constant 0.000000e+00 : f32
    %360 = vector.broadcast %cst_351 : f32 to vector<128x192xf32>
    %361 = arith.maximumf %359, %360 : vector<128x192xf32>
    %362 = arith.truncf %361 : vector<128x192xf32> to vector<128x192xbf16>
    %c0_352 = arith.constant 0 : index
    %c3_353 = arith.constant 3 : index
    %c0_354 = arith.constant 0 : index
    %c0_355 = arith.constant 0 : index
    %363 = vector.load %arg27[%c0_352, %c3_353, %c0_354, %c0_355] : memref<1x4x128x192xbf16, #tpu.memory_space<vmem>>, vector<1x1x128x192xbf16>
    %364 = vector.shape_cast %363 : vector<1x1x128x192xbf16> to vector<128x192xbf16>
    %365 = vector.shape_cast %362 : vector<128x192xbf16> to vector<1x1x128x192xbf16>
    tpu.vector_store %arg27[%c0_352, %c3_353, %c0_354, %c0_355], %365 {strides = array<i32>} : memref<1x4x128x192xbf16, #tpu.memory_space<vmem>>, vector<1x1x128x192xbf16>,
    return
  }
  func.func @transform_0(%arg0: i32) -> (i32, i32, i32) {
    %c0_i32 = arith.constant 0 : i32
    %c0_i32_0 = arith.constant 0 : i32
    %c0_i32_1 = arith.constant 0 : i32
    return %arg0, %c0_i32, %c0_i32_0 : i32, i32, i32
  }
  func.func @transform_1(%arg0: i32) -> (i32, i32) {
    %c0_i32 = arith.constant 0 : i32
    %c0_i32_0 = arith.constant 0 : i32
    %c0_i32_1 = arith.constant 0 : i32
    return %c0_i32, %c0_i32_0 : i32, i32
  }
  func.func @transform_2(%arg0: i32) -> (i32, i32) {
    %c0_i32 = arith.constant 0 : i32
    %c0_i32_0 = arith.constant 0 : i32
    %c0_i32_1 = arith.constant 0 : i32
    return %c0_i32, %c0_i32_0 : i32, i32
  }
  func.func @transform_3(%arg0: i32) -> (i32, i32) {
    %c0_i32 = arith.constant 0 : i32
    %c0_i32_0 = arith.constant 0 : i32
    %c0_i32_1 = arith.constant 0 : i32
    return %c0_i32, %c0_i32_0 : i32, i32
  }
  func.func @transform_4(%arg0: i32) -> (i32, i32) {
    %c0_i32 = arith.constant 0 : i32
    %c0_i32_0 = arith.constant 0 : i32
    %c0_i32_1 = arith.constant 0 : i32
    return %c0_i32, %c0_i32_0 : i32, i32
  }
  func.func @transform_5(%arg0: i32) -> (i32, i32, i32) {
    %c0_i32 = arith.constant 0 : i32
    %c0_i32_0 = arith.constant 0 : i32
    %c0_i32_1 = arith.constant 0 : i32
    %c0_i32_2 = arith.constant 0 : i32
    return %c0_i32, %c0_i32_0, %c0_i32_1 : i32, i32, i32
  }
  func.func @transform_6(%arg0: i32) -> (i32, i32) {
    %c0_i32 = arith.constant 0 : i32
    %c0_i32_0 = arith.constant 0 : i32
    %c0_i32_1 = arith.constant 0 : i32
    return %c0_i32, %c0_i32_0 : i32, i32
  }
  func.func @transform_7(%arg0: i32) -> (i32, i32) {
    %c0_i32 = arith.constant 0 : i32
    %c0_i32_0 = arith.constant 0 : i32
    %c0_i32_1 = arith.constant 0 : i32
    return %c0_i32, %c0_i32_0 : i32, i32
  }
  func.func @transform_8(%arg0: i32) -> (i32, i32, i32) {
    %c0_i32 = arith.constant 0 : i32
    %c0_i32_0 = arith.constant 0 : i32
    %c0_i32_1 = arith.constant 0 : i32
    %c0_i32_2 = arith.constant 0 : i32
    return %c0_i32, %c0_i32_0, %c0_i32_1 : i32, i32, i32
  }
  func.func @transform_9(%arg0: i32) -> (i32, i32) {
    %c0_i32 = arith.constant 0 : i32
    %c0_i32_0 = arith.constant 0 : i32
    %c0_i32_1 = arith.constant 0 : i32
    return %c0_i32, %c0_i32_0 : i32, i32
  }
  func.func @transform_10(%arg0: i32) -> (i32, i32) {
    %c0_i32 = arith.constant 0 : i32
    %c0_i32_0 = arith.constant 0 : i32
    %c0_i32_1 = arith.constant 0 : i32
    return %c0_i32, %c0_i32_0 : i32, i32
  }
  func.func @transform_11(%arg0: i32) -> (i32, i32, i32) {
    %c0_i32 = arith.constant 0 : i32
    %c0_i32_0 = arith.constant 0 : i32
    %c0_i32_1 = arith.constant 0 : i32
    %c0_i32_2 = arith.constant 0 : i32
    return %c0_i32, %c0_i32_0, %c0_i32_1 : i32, i32, i32
  }
  func.func @transform_12(%arg0: i32) -> (i32, i32) {
    %c0_i32 = arith.constant 0 : i32
    %c0_i32_0 = arith.constant 0 : i32
    %c0_i32_1 = arith.constant 0 : i32
    return %c0_i32, %c0_i32_0 : i32, i32
  }
  func.func @transform_13(%arg0: i32) -> (i32, i32) {
    %c0_i32 = arith.constant 0 : i32
    %c0_i32_0 = arith.constant 0 : i32
    %c0_i32_1 = arith.constant 0 : i32
    return %c0_i32, %c0_i32_0 : i32, i32
  }
  func.func @transform_14(%arg0: i32) -> (i32, i32, i32) {
    %c0_i32 = arith.constant 0 : i32
    %c0_i32_0 = arith.constant 0 : i32
    %c0_i32_1 = arith.constant 0 : i32
    %c0_i32_2 = arith.constant 0 : i32
    return %c0_i32, %c0_i32_0, %c0_i32_1 : i32, i32, i32
  }
  func.func @transform_15(%arg0: i32) -> (i32, i32) {
    %c0_i32 = arith.constant 0 : i32
    %c0_i32_0 = arith.constant 0 : i32
    %c0_i32_1 = arith.constant 0 : i32
    return %c0_i32, %c0_i32_0 : i32, i32
  }
  func.func @transform_16(%arg0: i32) -> (i32, i32) {
    %c0_i32 = arith.constant 0 : i32
    %c0_i32_0 = arith.constant 0 : i32
    %c0_i32_1 = arith.constant 0 : i32
    return %c0_i32, %c0_i32_0 : i32, i32
  }
  func.func @transform_17(%arg0: i32) -> (i32, i32, i32) {
    %c0_i32 = arith.constant 0 : i32
    %c0_i32_0 = arith.constant 0 : i32
    %c0_i32_1 = arith.constant 0 : i32
    %c0_i32_2 = arith.constant 0 : i32
    return %c0_i32, %c0_i32_0, %c0_i32_1 : i32, i32, i32
  }
  func.func @transform_18(%arg0: i32) -> (i32, i32) {
    %c0_i32 = arith.constant 0 : i32
    %c0_i32_0 = arith.constant 0 : i32
    %c0_i32_1 = arith.constant 0 : i32
    return %c0_i32, %c0_i32_0 : i32, i32
  }
  func.func @transform_19(%arg0: i32) -> (i32, i32) {
    %c0_i32 = arith.constant 0 : i32
    %c0_i32_0 = arith.constant 0 : i32
    %c0_i32_1 = arith.constant 0 : i32
    return %c0_i32, %c0_i32_0 : i32, i32
  }
  func.func @transform_20(%arg0: i32) -> (i32, i32, i32) {
    %c0_i32 = arith.constant 0 : i32
    %c0_i32_0 = arith.constant 0 : i32
    %c0_i32_1 = arith.constant 0 : i32
    %c0_i32_2 = arith.constant 0 : i32
    return %c0_i32, %c0_i32_0, %c0_i32_1 : i32, i32, i32
  }
  func.func @transform_21(%arg0: i32) -> (i32, i32) {
    %c0_i32 = arith.constant 0 : i32
    %c0_i32_0 = arith.constant 0 : i32
    %c0_i32_1 = arith.constant 0 : i32
    return %c0_i32, %c0_i32_0 : i32, i32
  }
  func.func @transform_22(%arg0: i32) -> (i32, i32) {
    %c0_i32 = arith.constant 0 : i32
    %c0_i32_0 = arith.constant 0 : i32
    %c0_i32_1 = arith.constant 0 : i32
    return %c0_i32, %c0_i32_0 : i32, i32
  }
  func.func @transform_23(%arg0: i32) -> (i32, i32, i32) {
    %c0_i32 = arith.constant 0 : i32
    %c0_i32_0 = arith.constant 0 : i32
    %c0_i32_1 = arith.constant 0 : i32
    %c0_i32_2 = arith.constant 0 : i32
    return %c0_i32, %c0_i32_0, %c0_i32_1 : i32, i32, i32
  }
  func.func @transform_24(%arg0: i32) -> (i32, i32) {
    %c0_i32 = arith.constant 0 : i32
    %c0_i32_0 = arith.constant 0 : i32
    %c0_i32_1 = arith.constant 0 : i32
    return %c0_i32, %c0_i32_0 : i32, i32
  }
  func.func @transform_25(%arg0: i32) -> (i32, i32) {
    %c0_i32 = arith.constant 0 : i32
    %c0_i32_0 = arith.constant 0 : i32
    %c0_i32_1 = arith.constant 0 : i32
    return %c0_i32, %c0_i32_0 : i32, i32
  }
  func.func @transform_26(%arg0: i32) -> (i32, i32, i32, i32) {
    %c0_i32 = arith.constant 0 : i32
    %c0_i32_0 = arith.constant 0 : i32
    %c0_i32_1 = arith.constant 0 : i32
    %c0_i32_2 = arith.constant 0 : i32
    return %arg0, %c0_i32, %c0_i32_0, %c0_i32_1 : i32, i32, i32, i32
  }
}

</mosaic_0001>

<llo_original>
// kernel: tile.8
$region0: #{tile.8}
  #allocation0 [shape = 's32[1]{0}', space=sflag, size = 0x4, scoped, tag = 'scoped memory for tile.8']
  %s0 = inlined_call_operand.vmem [shape: f32[16], index: 0, kind: input, shape index: {}]
  %s1 = inlined_call_operand.vmem [shape: f32[8,16], index: 1, kind: output, shape index: {}]
  // Predicated region
  $region2: #{tile.8} parent=0 // pred_check
    _
  $region3: #{tile.8} parent=0 // pred_check_branch
    %3 = sbr.rel (0) target = $region5
  $region4: #{tile.8} parent=0 // pred_region
    _
  $region5: #{tile.8} parent=0 // pred_fallthru
    _
  %v4 = vld [vmem:[%s0] ss:$0 sm:$0xff]
  %5 = vst [vmem:[%s1] sm:$0xff] %v4

// kernel: tile.0
$region0: #{tile.0}
  %s0 = inlined_call_operand.vmem [shape: f32[8,16], index: 0, kind: input, shape index: {}]
  %s1 = inlined_call_operand.vmem [shape: f32[128,1], index: 1, kind: output, shape index: {}]
  %v2 = vld [vmem:[%s0] sm:$0xff]
  %vm3 = vcmask 7168
  %4 = vst.msk [vmem:[%s1] ss:$16 sm:$0x3] %vm3, %v2
  %5 = vst.msk [vmem:[%s1] ss:$16 sm:$0xc] %vm3, %v2
  %6 = vst.msk [vmem:[%s1] ss:$16 sm:$0x30] %vm3, %v2
  %7 = vst.msk [vmem:[%s1] ss:$16 sm:$0xc0] %vm3, %v2
  %v8 = vld [vmem:[%s0] sm:$0xff]
  %9 = vrot.lane.b32.xlu0 %v8, 127
  %v10 = vpop.permute.xlu0 %9
  %vm11 = vcmask 7168
  %s12 = scalar_lea.vmem %s1, 1
  %13 = vst.msk [vmem:[%s12] ss:$16 sm:$0x3] %vm11, %v10
  %s14 = scalar_lea.vmem %s1, 1
  %15 = vst.msk [vmem:[%s14] ss:$16 sm:$0xc] %vm11, %v10
  %s16 = scalar_lea.vmem %s1, 1
  %17 = vst.msk [vmem:[%s16] ss:$16 sm:$0x30] %vm11, %v10
  %s18 = scalar_lea.vmem %s1, 1
  %19 = vst.msk [vmem:[%s18] ss:$16 sm:$0xc0] %vm11, %v10
  %v20 = vld [vmem:[%s0] sm:$0xff]
  %21 = vrot.lane.b32.xlu0 %v20, 126
  %v22 = vpop.permute.xlu0 %21
  %vm23 = vcmask 7168
  %s24 = scalar_lea.vmem %s1, 2
  %25 = vst.msk [vmem:[%s24] ss:$16 sm:$0x3] %vm23, %v22
  %s26 = scalar_lea.vmem %s1, 2
  %27 = vst.msk [vmem:[%s26] ss:$16 sm:$0xc] %vm23, %v22
  %s28 = scalar_lea.vmem %s1, 2
  %29 = vst.msk [vmem:[%s28] ss:$16 sm:$0x30] %vm23, %v22
  %s30 = scalar_lea.vmem %s1, 2
  %31 = vst.msk [vmem:[%s30] ss:$16 sm:$0xc0] %vm23, %v22
  %v32 = vld [vmem:[%s0] sm:$0xff]
  %33 = vrot.lane.b32.xlu0 %v32, 125
  %v34 = vpop.permute.xlu0 %33
  %vm35 = vcmask 7168
  %s36 = scalar_lea.vmem %s1, 3
  %37 = vst.msk [vmem:[%s36] ss:$16 sm:$0x3] %vm35, %v34
  %s38 = scalar_lea.vmem %s1, 3
  %39 = vst.msk [vmem:[%s38] ss:$16 sm:$0xc] %vm35, %v34
  %s40 = scalar_lea.vmem %s1, 3
  %41 = vst.msk [vmem:[%s40] ss:$16 sm:$0x30] %vm35, %v34
  %s42 = scalar_lea.vmem %s1, 3
  %43 = vst.msk [vmem:[%s42] ss:$16 sm:$0xc0] %vm35, %v34
  %v44 = vld [vmem:[%s0] sm:$0xff]
  %45 = vrot.lane.b32.xlu0 %v44, 124
  %v46 = vpop.permute.xlu0 %45
  %vm47 = vcmask 7168
  %s48 = scalar_lea.vmem %s1, 4
  %49 = vst.msk [vmem:[%s48] ss:$16 sm:$0x3] %vm47, %v46
  %s50 = scalar_lea.vmem %s1, 4
  %51 = vst.msk [vmem:[%s50] ss:$16 sm:$0xc] %vm47, %v46
  %s52 = scalar_lea.vmem %s1, 4
  %53 = vst.msk [vmem:[%s52] ss:$16 sm:$0x30] %vm47, %v46
  %s54 = scalar_lea.vmem %s1, 4
  %55 = vst.msk [vmem:[%s54] ss:$16 sm:$0xc0] %vm47, %v46
  %v56 = vld [vmem:[%s0] sm:$0xff]
  %57 = vrot.lane.b32.xlu0 %v56, 123
  %v58 = vpop.permute.xlu0 %57
  %vm59 = vcmask 7168
  %s60 = scalar_lea.vmem %s1, 5
  %61 = vst.msk [vmem:[%s60] ss:$16 sm:$0x3] %vm59, %v58
  %s62 = scalar_lea.vmem %s1, 5
  %63 = vst.msk [vmem:[%s62] ss:$16 sm:$0xc] %vm59, %v58
  %s64 = scalar_lea.vmem %s1, 5
  %65 = vst.msk [vmem:[%s64] ss:$16 sm:$0x30] %vm59, %v58
  %s66 = scalar_lea.vmem %s1, 5
  %67 = vst.msk [vmem:[%s66] ss:$16 sm:$0xc0] %vm59, %v58
  %v68 = vld [vmem:[%s0] sm:$0xff]
  %69 = vrot.lane.b32.xlu0 %v68, 122
  %v70 = vpop.permute.xlu0 %69
  %vm71 = vcmask 7168
  %s72 = scalar_lea.vmem %s1, 6
  %73 = vst.msk [vmem:[%s72] ss:$16 sm:$0x3] %vm71, %v70
  %s74 = scalar_lea.vmem %s1, 6
  %75 = vst.msk [vmem:[%s74] ss:$16 sm:$0xc] %vm71, %v70
  %s76 = scalar_lea.vmem %s1, 6
  %77 = vst.msk [vmem:[%s76] ss:$16 sm:$0x30] %vm71, %v70
  %s78 = scalar_lea.vmem %s1, 6
  %79 = vst.msk [vmem:[%s78] ss:$16 sm:$0xc0] %vm71, %v70
  %v80 = vld [vmem:[%s0] sm:$0xff]
  %81 = vrot.lane.b32.xlu0 %v80, 121
  %v82 = vpop.permute.xlu0 %81
  %vm83 = vcmask 7168
  %s84 = scalar_lea.vmem %s1, 7
  %85 = vst.msk [vmem:[%s84] ss:$16 sm:$0x3] %vm83, %v82
  %s86 = scalar_lea.vmem %s1, 7
  %87 = vst.msk [vmem:[%s86] ss:$16 sm:$0xc] %vm83, %v82
  %s88 = scalar_lea.vmem %s1, 7
  %89 = vst.msk [vmem:[%s88] ss:$16 sm:$0x30] %vm83, %v82
  %s90 = scalar_lea.vmem %s1, 7
  %91 = vst.msk [vmem:[%s90] ss:$16 sm:$0xc0] %vm83, %v82
  %v92 = vld [vmem:[%s0] sm:$0xff]
  %93 = vrot.lane.b32.xlu0 %v92, 120
  %v94 = vpop.permute.xlu0 %93
  %vm95 = vcmask 7168
  %s96 = scalar_lea.vmem %s1, 8
  %97 = vst.msk [vmem:[%s96] ss:$16 sm:$0x3] %vm95, %v94
  %s98 = scalar_lea.vmem %s1, 8
  %99 = vst.msk [vmem:[%s98] ss:$16 sm:$0xc] %vm95, %v94
  %s100 = scalar_lea.vmem %s1, 8
  %101 = vst.msk [vmem:[%s100] ss:$16 sm:$0x30] %vm95, %v94
  %s102 = scalar_lea.vmem %s1, 8
  %103 = vst.msk [vmem:[%s102] ss:$16 sm:$0xc0] %vm95, %v94
  %v104 = vld [vmem:[%s0] sm:$0xff]
  %105 = vrot.lane.b32.xlu0 %v104, 119
  %v106 = vpop.permute.xlu0 %105
  %vm107 = vcmask 7168
  %s108 = scalar_lea.vmem %s1, 9
  %109 = vst.msk [vmem:[%s108] ss:$16 sm:$0x3] %vm107, %v106
  %s110 = scalar_lea.vmem %s1, 9
  %111 = vst.msk [vmem:[%s110] ss:$16 sm:$0xc] %vm107, %v106
  %s112 = scalar_lea.vmem %s1, 9
  %113 = vst.msk [vmem:[%s112] ss:$16 sm:$0x30] %vm107, %v106
  %s114 = scalar_lea.vmem %s1, 9
  %115 = vst.msk [vmem:[%s114] ss:$16 sm:$0xc0] %vm107, %v106
  %v116 = vld [vmem:[%s0] sm:$0xff]
  %117 = vrot.lane.b32.xlu0 %v116, 118
  %v118 = vpop.permute.xlu0 %117
  %vm119 = vcmask 7168
  %s120 = scalar_lea.vmem %s1, 10
  %121 = vst.msk [vmem:[%s120] ss:$16 sm:$0x3] %vm119, %v118
  %s122 = scalar_lea.vmem %s1, 10
  %123 = vst.msk [vmem:[%s122] ss:$16 sm:$0xc] %vm119, %v118
  %s124 = scalar_lea.vmem %s1, 10
  %125 = vst.msk [vmem:[%s124] ss:$16 sm:$0x30] %vm119, %v118
  %s126 = scalar_lea.vmem %s1, 10
  %127 = vst.msk [vmem:[%s126] ss:$16 sm:$0xc0] %vm119, %v118
  %v128 = vld [vmem:[%s0] sm:$0xff]
  %129 = vrot.lane.b32.xlu0 %v128, 117
  %v130 = vpop.permute.xlu0 %129
  %vm131 = vcmask 7168
  %s132 = scalar_lea.vmem %s1, 11
  %133 = vst.msk [vmem:[%s132] ss:$16 sm:$0x3] %vm131, %v130
  %s134 = scalar_lea.vmem %s1, 11
  %135 = vst.msk [vmem:[%s134] ss:$16 sm:$0xc] %vm131, %v130
  %s136 = scalar_lea.vmem %s1, 11
  %137 = vst.msk [vmem:[%s136] ss:$16 sm:$0x30] %vm131, %v130
  %s138 = scalar_lea.vmem %s1, 11
  %139 = vst.msk [vmem:[%s138] ss:$16 sm:$0xc0] %vm131, %v130
  %v140 = vld [vmem:[%s0] sm:$0xff]
  %141 = vrot.lane.b32.xlu0 %v140, 116
  %v142 = vpop.permute.xlu0 %141
  %vm143 = vcmask 7168
  %s144 = scalar_lea.vmem %s1, 12
  %145 = vst.msk [vmem:[%s144] ss:$16 sm:$0x3] %vm143, %v142
  %s146 = scalar_lea.vmem %s1, 12
  %147 = vst.msk [vmem:[%s146] ss:$16 sm:$0xc] %vm143, %v142
  %s148 = scalar_lea.vmem %s1, 12
  %149 = vst.msk [vmem:[%s148] ss:$16 sm:$0x30] %vm143, %v142
  %s150 = scalar_lea.vmem %s1, 12
  %151 = vst.msk [vmem:[%s150] ss:$16 sm:$0xc0] %vm143, %v142
  %v152 = vld [vmem:[%s0] sm:$0xff]
  %153 = vrot.lane.b32.xlu0 %v152, 115
  %v154 = vpop.permute.xlu0 %153
  %vm155 = vcmask 7168
  %s156 = scalar_lea.vmem %s1, 13
  %157 = vst.msk [vmem:[%s156] ss:$16 sm:$0x3] %vm155, %v154
  %s158 = scalar_lea.vmem %s1, 13
  %159 = vst.msk [vmem:[%s158] ss:$16 sm:$0xc] %vm155, %v154
  %s160 = scalar_lea.vmem %s1, 13
  %161 = vst.msk [vmem:[%s160] ss:$16 sm:$0x30] %vm155, %v154
  %s162 = scalar_lea.vmem %s1, 13
  %163 = vst.msk [vmem:[%s162] ss:$16 sm:$0xc0] %vm155, %v154
  %v164 = vld [vmem:[%s0] sm:$0xff]
  %165 = vrot.lane.b32.xlu0 %v164, 114
  %v166 = vpop.permute.xlu0 %165
  %vm167 = vcmask 7168
  %s168 = scalar_lea.vmem %s1, 14
  %169 = vst.msk [vmem:[%s168] ss:$16 sm:$0x3] %vm167, %v166
  %s170 = scalar_lea.vmem %s1, 14
  %171 = vst.msk [vmem:[%s170] ss:$16 sm:$0xc] %vm167, %v166
  %s172 = scalar_lea.vmem %s1, 14
  %173 = vst.msk [vmem:[%s172] ss:$16 sm:$0x30] %vm167, %v166
  %s174 = scalar_lea.vmem %s1, 14
  %175 = vst.msk [vmem:[%s174] ss:$16 sm:$0xc0] %vm167, %v166
  %v176 = vld [vmem:[%s0] sm:$0xff]
  %177 = vrot.lane.b32.xlu0 %v176, 113
  %v178 = vpop.permute.xlu0 %177
  %vm179 = vcmask 7168
  %s180 = scalar_lea.vmem %s1, 15
  %181 = vst.msk [vmem:[%s180] ss:$16 sm:$0x3] %vm179, %v178
  %s182 = scalar_lea.vmem %s1, 15
  %183 = vst.msk [vmem:[%s182] ss:$16 sm:$0xc] %vm179, %v178
  %s184 = scalar_lea.vmem %s1, 15
  %185 = vst.msk [vmem:[%s184] ss:$16 sm:$0x30] %vm179, %v178
  %s186 = scalar_lea.vmem %s1, 15
  %187 = vst.msk [vmem:[%s186] ss:$16 sm:$0xc0] %vm179, %v178

// kernel: inception_c_forward.1
$region0: #{inception_c_forward.1}
  #allocation0 [shape = 'u32[]', space=smem, size = 0x4, offset = 0x4, fixed_abs, tag = 'smem constant byte address 0x4 - core index']
  #allocation1 [shape = 'u32[144,128]{1,0:T(1,128)}', space=vmem, size = 0x12000, scoped, tag = 'internal scratch']
  #allocation2 [shape = 'bf16[224,8]{1,0:T(16,128)(2,1)}', space=vmem, size = 0xe000, scoped, tag = 'scratch operand']
  #allocation3 [shape = 'bf16[224,8]{1,0:T(16,128)(2,1)}', space=vmem, size = 0xe000, scoped, tag = 'scratch operand']
  #allocation4 [shape = 'bf16[224,8]{1,0:T(16,128)(2,1)}', space=vmem, size = 0xe000, scoped, tag = 'scratch operand']
  %s0 = inlined_call_operand.vmem [shape: bf16[2,224,8], index: 0, kind: input, shape index: {}]
  %s1 = inlined_call_operand.vmem [shape: f32[128,1], index: 1, kind: input, shape index: {}]
  %s2 = inlined_call_operand.vmem [shape: bf16[8,208], index: 2, kind: input, shape index: {}]
  %s3 = inlined_call_operand.vmem [shape: f32[1,208], index: 3, kind: input, shape index: {}]
  %s4 = inlined_call_operand.vmem [shape: f32[1,208], index: 4, kind: input, shape index: {}]
  %s5 = inlined_call_operand.vmem [shape: bf16[7,8,8], index: 5, kind: input, shape index: {}]
  %s6 = inlined_call_operand.vmem [shape: f32[1,8], index: 6, kind: input, shape index: {}]
  %s7 = inlined_call_operand.vmem [shape: f32[1,8], index: 7, kind: input, shape index: {}]
  %s8 = inlined_call_operand.vmem [shape: bf16[7,8,192], index: 8, kind: input, shape index: {}]
  %s9 = inlined_call_operand.vmem [shape: f32[1,192], index: 9, kind: input, shape index: {}]
  %s10 = inlined_call_operand.vmem [shape: f32[1,192], index: 10, kind: input, shape index: {}]
  %s11 = inlined_call_operand.vmem [shape: bf16[7,8,8], index: 11, kind: input, shape index: {}]
  %s12 = inlined_call_operand.vmem [shape: f32[1,8], index: 12, kind: input, shape index: {}]
  %s13 = inlined_call_operand.vmem [shape: f32[1,8], index: 13, kind: input, shape index: {}]
  %s14 = inlined_call_operand.vmem [shape: bf16[7,8,8], index: 14, kind: input, shape index: {}]
  %s15 = inlined_call_operand.vmem [shape: f32[1,8], index: 15, kind: input, shape index: {}]
  %s16 = inlined_call_operand.vmem [shape: f32[1,8], index: 16, kind: input, shape index: {}]
  %s17 = inlined_call_operand.vmem [shape: bf16[7,8,8], index: 17, kind: input, shape index: {}]
  %s18 = inlined_call_operand.vmem [shape: f32[1,8], index: 18, kind: input, shape index: {}]
  %s19 = inlined_call_operand.vmem [shape: f32[1,8], index: 19, kind: input, shape index: {}]
  %s20 = inlined_call_operand.vmem [shape: bf16[7,8,192], index: 20, kind: input, shape index: {}]
  %s21 = inlined_call_operand.vmem [shape: f32[1,192], index: 21, kind: input, shape index: {}]
  %s22 = inlined_call_operand.vmem [shape: f32[1,192], index: 22, kind: input, shape index: {}]
  %s23 = inlined_call_operand.vmem [shape: bf16[1,8,192], index: 23, kind: input, shape index: {}]
  %s24 = inlined_call_operand.vmem [shape: f32[1,192], index: 24, kind: input, shape index: {}]
  %s25 = inlined_call_operand.vmem [shape: f32[1,192], index: 25, kind: input, shape index: {}]
  %s26 = inlined_call_operand.vmem [shape: bf16[2,4,128,192], index: 26, kind: output, shape index: {}]
  %s27 = sld [smem:[#allocation0]]
  $region137: #{inception_c_forward.1} parent=0
    _
  %s29 = ssub.s32 1, %s27
  %s30 = scalar_select 0, %s29, %s27
  loop: start=0, step=1, limit=4
  $region2: #{inception_c_forward.1} parent=0 // loop_pre_header
    _
  $region3: #{inception_c_forward.1} parent=0 // loop_header
    %s32 = sphi 0, %s36
    %p33 = scmp.ge.s32.totalorder %s32, 4
    %s42 = sphi 0, %s44
    %s45 = sphi 0, %s42
    %s46 = sphi 0, %s45
    %s62 = sphi 0, %s46
    %s66 = sphi 0, %s66
    %s68 = sphi 0, %s66
    %s69 = sphi 0, %s68
    %s83 = sphi 0, %s69
    %s87 = sphi 0, %s87
    %s89 = sphi 0, %s87
    %s90 = sphi 0, %s89
    %s104 = sphi 0, %s90
    %s108 = sphi 0, %s108
    %s110 = sphi 0, %s108
    %s111 = sphi 0, %s110
    %s125 = sphi 0, %s111
    %s129 = sphi 0, %s129
    %s131 = sphi 0, %s129
    %s132 = sphi 0, %s131
    %s146 = sphi 0, %s132
    %s150 = sphi 0, %s150
    %s152 = sphi 0, %s150
    %s153 = sphi 0, %s152
    %s167 = sphi 0, %s153
    %s171 = sphi 0, %s171
    %s173 = sphi 0, %s171
    %s174 = sphi 0, %s173
    %s188 = sphi 0, %s174
    %s192 = sphi 0, %s192
    %s194 = sphi 0, %s192
    %s195 = sphi 0, %s194
    %s209 = sphi 0, %s195
    %s213 = sphi 0, %s213
    %s215 = sphi 0, %s213
    %s216 = sphi 0, %s215
    %s230 = sphi 0, %s216
    %s234 = sphi 0, %s234
    %s236 = sphi 0, %s234
    %s237 = sphi 0, %s236
    %s251 = sphi 0, %s237
    %s255 = sphi 0, %s255
    %s257 = sphi 0, %s255
    %s258 = sphi 0, %s257
    %s272 = sphi 0, %s258
    %s276 = sphi 0, %s276
    %s278 = sphi 0, %s276
    %s279 = sphi 0, %s278
    %s293 = sphi 0, %s279
    %s297 = sphi 0, %s297
    %s299 = sphi 0, %s297
    %s300 = sphi 0, %s299
    %s314 = sphi 0, %s300
    %s318 = sphi 0, %s318
    %s320 = sphi 0, %s318
    %s321 = sphi 0, %s320
    %s335 = sphi 0, %s321
    %s339 = sphi 0, %s339
    %s341 = sphi 0, %s339
    %s342 = sphi 0, %s341
    %s356 = sphi 0, %s342
    %s360 = sphi 0, %s360
    %s362 = sphi 0, %s360
    %s363 = sphi 0, %s362
    %s377 = sphi 0, %s363
    %s381 = sphi 0, %s381
    %s383 = sphi 0, %s381
    %s384 = sphi 0, %s383
    %s398 = sphi 0, %s384
    %s402 = sphi 0, %s402
    %s404 = sphi 0, %s402
    %s405 = sphi 0, %s404
    %s419 = sphi 0, %s405
    %s423 = sphi 0, %s423
    %s425 = sphi 0, %s423
    %s426 = sphi 0, %s425
    %s440 = sphi 0, %s426
    %s444 = sphi 0, %s444
    %s446 = sphi 0, %s444
    %s447 = sphi 0, %s446
    %s461 = sphi 0, %s447
    %s465 = sphi 0, %s465
    %s467 = sphi 0, %s465
    %s468 = sphi 0, %s467
    %s482 = sphi 0, %s468
    %s486 = sphi 0, %s486
    %s488 = sphi 0, %s486
    %s489 = sphi 0, %s488
    %s503 = sphi 0, %s489
    %s507 = sphi 0, %s507
    %s509 = sphi 0, %s507
    %s510 = sphi 0, %s509
    %s524 = sphi 0, %s510
    %s528 = sphi 0, %s528
    %s530 = sphi 0, %s528
    %s531 = sphi 0, %s530
    %s545 = sphi 0, %s531
    %s549 = sphi 0, %s549
    %s551 = sphi 0, %s549
    %s552 = sphi 0, %s551
    %s566 = sphi 0, %s552
    %s570 = sphi 0, %s570
    %s572 = sphi 0, %s570
    %s573 = sphi 0, %s572
    %s587 = sphi 0, %s573
    %s593 = sphi 0, %s595
    %s596 = sphi 0, %s593
    %s597 = sphi 0, %s596
    %s613 = sphi 0, %s597
  $region4: #{inception_c_forward.1} parent=0 // loop_header_branch
    %35 = sbr.rel (%p33) target = $region8
  $region5: #{inception_c_forward.1} parent=0 // loop_body
    %s37 = ssub.s32 %s32, 1
    %s38 = ssub.s32 %s32, 2
    %s39 = sadd.s32 %s32, 1
    %s40 = ssub.s32 %s32, %s39
    %p41 = scmp.eq.s32.totalorder %s40, 0
    %s43 = sadd.s32 %s42, 1
    %s44 = scalar_select %p41, %s42, %s43
    %p47 = pneg %p41
    %p48 = scmp.eq.s32.totalorder %s32, 1
    %p49 = por %p47, %p48
    %p50 = scmp.ne.s32.totalorder %s42, %s45
    %p51 = scmp.eq.s32.totalorder %s32, 0
    %p52 = por %p50, %p51
    %p53 = scmp.ne.s32.totalorder %s42, %s45
    %p54 = scmp.eq.s32.totalorder %s37, 1
    %p55 = por %p53, %p54
    %p56 = scmp.ne.s32.totalorder %s45, %s46
    %p57 = scmp.eq.s32.totalorder %s37, 0
    %p58 = por %p56, %p57
    %p59 = scmp.ne.s32.totalorder %s45, %s46
    %p60 = scmp.eq.s32.totalorder %s38, 1
    %p61 = por %p59, %p60
    %p63 = scmp.ne.s32.totalorder %s46, %s62
    %p64 = scmp.eq.s32.totalorder %s38, 0
    %p65 = por %p63, %p64
    %s67 = sadd.s32 %s66, 1
    %p70 = scmp.eq.s32.totalorder %s32, 1
    %p71 = scmp.ne.s32.totalorder %s66, %s68
    %p72 = scmp.eq.s32.totalorder %s32, 0
    %p73 = por %p71, %p72
    %p74 = scmp.ne.s32.totalorder %s66, %s68
    %p75 = scmp.eq.s32.totalorder %s37, 1
    %p76 = por %p74, %p75
    %p77 = scmp.ne.s32.totalorder %s68, %s69
    %p78 = scmp.eq.s32.totalorder %s37, 0
    %p79 = por %p77, %p78
    %p80 = scmp.ne.s32.totalorder %s68, %s69
    %p81 = scmp.eq.s32.totalorder %s38, 1
    %p82 = por %p80, %p81
    %p84 = scmp.ne.s32.totalorder %s69, %s83
    %p85 = scmp.eq.s32.totalorder %s38, 0
    %p86 = por %p84, %p85
    %s88 = sadd.s32 %s87, 1
    %p91 = scmp.eq.s32.totalorder %s32, 1
    %p92 = scmp.ne.s32.totalorder %s87, %s89
    %p93 = scmp.eq.s32.totalorder %s32, 0
    %p94 = por %p92, %p93
    %p95 = scmp.ne.s32.totalorder %s87, %s89
    %p96 = scmp.eq.s32.totalorder %s37, 1
    %p97 = por %p95, %p96
    %p98 = scmp.ne.s32.totalorder %s89, %s90
    %p99 = scmp.eq.s32.totalorder %s37, 0
    %p100 = por %p98, %p99
    %p101 = scmp.ne.s32.totalorder %s89, %s90
    %p102 = scmp.eq.s32.totalorder %s38, 1
    %p103 = por %p101, %p102
    %p105 = scmp.ne.s32.totalorder %s90, %s104
    %p106 = scmp.eq.s32.totalorder %s38, 0
    %p107 = por %p105, %p106
    %s109 = sadd.s32 %s108, 1
    %p112 = scmp.eq.s32.totalorder %s32, 1
    %p113 = scmp.ne.s32.totalorder %s108, %s110
    %p114 = scmp.eq.s32.totalorder %s32, 0
    %p115 = por %p113, %p114
    %p116 = scmp.ne.s32.totalorder %s108, %s110
    %p117 = scmp.eq.s32.totalorder %s37, 1
    %p118 = por %p116, %p117
    %p119 = scmp.ne.s32.totalorder %s110, %s111
    %p120 = scmp.eq.s32.totalorder %s37, 0
    %p121 = por %p119, %p120
    %p122 = scmp.ne.s32.totalorder %s110, %s111
    %p123 = scmp.eq.s32.totalorder %s38, 1
    %p124 = por %p122, %p123
    %p126 = scmp.ne.s32.totalorder %s111, %s125
    %p127 = scmp.eq.s32.totalorder %s38, 0
    %p128 = por %p126, %p127
    %s130 = sadd.s32 %s129, 1
    %p133 = scmp.eq.s32.totalorder %s32, 1
    %p134 = scmp.ne.s32.totalorder %s129, %s131
    %p135 = scmp.eq.s32.totalorder %s32, 0
    %p136 = por %p134, %p135
    %p137 = scmp.ne.s32.totalorder %s129, %s131
    %p138 = scmp.eq.s32.totalorder %s37, 1
    %p139 = por %p137, %p138
    %p140 = scmp.ne.s32.totalorder %s131, %s132
    %p141 = scmp.eq.s32.totalorder %s37, 0
    %p142 = por %p140, %p141
    %p143 = scmp.ne.s32.totalorder %s131, %s132
    %p144 = scmp.eq.s32.totalorder %s38, 1
    %p145 = por %p143, %p144
    %p147 = scmp.ne.s32.totalorder %s132, %s146
    %p148 = scmp.eq.s32.totalorder %s38, 0
    %p149 = por %p147, %p148
    %s151 = sadd.s32 %s150, 1
    %p154 = scmp.eq.s32.totalorder %s32, 1
    %p155 = scmp.ne.s32.totalorder %s150, %s152
    %p156 = scmp.eq.s32.totalorder %s32, 0
    %p157 = por %p155, %p156
    %p158 = scmp.ne.s32.totalorder %s150, %s152
    %p159 = scmp.eq.s32.totalorder %s37, 1
    %p160 = por %p158, %p159
    %p161 = scmp.ne.s32.totalorder %s152, %s153
    %p162 = scmp.eq.s32.totalorder %s37, 0
    %p163 = por %p161, %p162
    %p164 = scmp.ne.s32.totalorder %s152, %s153
    %p165 = scmp.eq.s32.totalorder %s38, 1
    %p166 = por %p164, %p165
    %p168 = scmp.ne.s32.totalorder %s153, %s167
    %p169 = scmp.eq.s32.totalorder %s38, 0
    %p170 = por %p168, %p169
    %s172 = sadd.s32 %s171, 1
    %p175 = scmp.eq.s32.totalorder %s32, 1
    %p176 = scmp.ne.s32.totalorder %s171, %s173
    %p177 = scmp.eq.s32.totalorder %s32, 0
    %p178 = por %p176, %p177
    %p179 = scmp.ne.s32.totalorder %s171, %s173
    %p180 = scmp.eq.s32.totalorder %s37, 1
    %p181 = por %p179, %p180
    %p182 = scmp.ne.s32.totalorder %s173, %s174
    %p183 = scmp.eq.s32.totalorder %s37, 0
    %p184 = por %p182, %p183
    %p185 = scmp.ne.s32.totalorder %s173, %s174
    %p186 = scmp.eq.s32.totalorder %s38, 1
    %p187 = por %p185, %p186
    %p189 = scmp.ne.s32.totalorder %s174, %s188
    %p190 = scmp.eq.s32.totalorder %s38, 0
    %p191 = por %p189, %p190
    %s193 = sadd.s32 %s192, 1
    %p196 = scmp.eq.s32.totalorder %s32, 1
    %p197 = scmp.ne.s32.totalorder %s192, %s194
    %p198 = scmp.eq.s32.totalorder %s32, 0
    %p199 = por %p197, %p198
    %p200 = scmp.ne.s32.totalorder %s192, %s194
    %p201 = scmp.eq.s32.totalorder %s37, 1
    %p202 = por %p200, %p201
    %p203 = scmp.ne.s32.totalorder %s194, %s195
    %p204 = scmp.eq.s32.totalorder %s37, 0
    %p205 = por %p203, %p204
    %p206 = scmp.ne.s32.totalorder %s194, %s195
    %p207 = scmp.eq.s32.totalorder %s38, 1
    %p208 = por %p206, %p207
    %p210 = scmp.ne.s32.totalorder %s195, %s209
    %p211 = scmp.eq.s32.totalorder %s38, 0
    %p212 = por %p210, %p211
    %s214 = sadd.s32 %s213, 1
    %p217 = scmp.eq.s32.totalorder %s32, 1
    %p218 = scmp.ne.s32.totalorder %s213, %s215
    %p219 = scmp.eq.s32.totalorder %s32, 0
    %p220 = por %p218, %p219
    %p221 = scmp.ne.s32.totalorder %s213, %s215
    %p222 = scmp.eq.s32.totalorder %s37, 1
    %p223 = por %p221, %p222
    %p224 = scmp.ne.s32.totalorder %s215, %s216
    %p225 = scmp.eq.s32.totalorder %s37, 0
    %p226 = por %p224, %p225
    %p227 = scmp.ne.s32.totalorder %s215, %s216
    %p228 = scmp.eq.s32.totalorder %s38, 1
    %p229 = por %p227, %p228
    %p231 = scmp.ne.s32.totalorder %s216, %s230
    %p232 = scmp.eq.s32.totalorder %s38, 0
    %p233 = por %p231, %p232
    %s235 = sadd.s32 %s234, 1
    %p238 = scmp.eq.s32.totalorder %s32, 1
    %p239 = scmp.ne.s32.totalorder %s234, %s236
    %p240 = scmp.eq.s32.totalorder %s32, 0
    %p241 = por %p239, %p240
    %p242 = scmp.ne.s32.totalorder %s234, %s236
    %p243 = scmp.eq.s32.totalorder %s37, 1
    %p244 = por %p242, %p243
    %p245 = scmp.ne.s32.totalorder %s236, %s237
    %p246 = scmp.eq.s32.totalorder %s37, 0
    %p247 = por %p245, %p246
    %p248 = scmp.ne.s32.totalorder %s236, %s237
    %p249 = scmp.eq.s32.totalorder %s38, 1
    %p250 = por %p248, %p249
    %p252 = scmp.ne.s32.totalorder %s237, %s251
    %p253 = scmp.eq.s32.totalorder %s38, 0
    %p254 = por %p252, %p253
    %s256 = sadd.s32 %s255, 1
    %p259 = scmp.eq.s32.totalorder %s32, 1
    %p260 = scmp.ne.s32.totalorder %s255, %s257
    %p261 = scmp.eq.s32.totalorder %s32, 0
    %p262 = por %p260, %p261
    %p263 = scmp.ne.s32.totalorder %s255, %s257
    %p264 = scmp.eq.s32.totalorder %s37, 1
    %p265 = por %p263, %p264
    %p266 = scmp.ne.s32.totalorder %s257, %s258
    %p267 = scmp.eq.s32.totalorder %s37, 0
    %p268 = por %p266, %p267
    %p269 = scmp.ne.s32.totalorder %s257, %s258
    %p270 = scmp.eq.s32.totalorder %s38, 1
    %p271 = por %p269, %p270
    %p273 = scmp.ne.s32.totalorder %s258, %s272
    %p274 = scmp.eq.s32.totalorder %s38, 0
    %p275 = por %p273, %p274
    %s277 = sadd.s32 %s276, 1
    %p280 = scmp.eq.s32.totalorder %s32, 1
    %p281 = scmp.ne.s32.totalorder %s276, %s278
    %p282 = scmp.eq.s32.totalorder %s32, 0
    %p283 = por %p281, %p282
    %p284 = scmp.ne.s32.totalorder %s276, %s278
    %p285 = scmp.eq.s32.totalorder %s37, 1
    %p286 = por %p284, %p285
    %p287 = scmp.ne.s32.totalorder %s278, %s279
    %p288 = scmp.eq.s32.totalorder %s37, 0
    %p289 = por %p287, %p288
    %p290 = scmp.ne.s32.totalorder %s278, %s279
    %p291 = scmp.eq.s32.totalorder %s38, 1
    %p292 = por %p290, %p291
    %p294 = scmp.ne.s32.totalorder %s279, %s293
    %p295 = scmp.eq.s32.totalorder %s38, 0
    %p296 = por %p294, %p295
    %s298 = sadd.s32 %s297, 1
    %p301 = scmp.eq.s32.totalorder %s32, 1
    %p302 = scmp.ne.s32.totalorder %s297, %s299
    %p303 = scmp.eq.s32.totalorder %s32, 0
    %p304 = por %p302, %p303
    %p305 = scmp.ne.s32.totalorder %s297, %s299
    %p306 = scmp.eq.s32.totalorder %s37, 1
    %p307 = por %p305, %p306
    %p308 = scmp.ne.s32.totalorder %s299, %s300
    %p309 = scmp.eq.s32.totalorder %s37, 0
    %p310 = por %p308, %p309
    %p311 = scmp.ne.s32.totalorder %s299, %s300
    %p312 = scmp.eq.s32.totalorder %s38, 1
    %p313 = por %p311, %p312
    %p315 = scmp.ne.s32.totalorder %s300, %s314
    %p316 = scmp.eq.s32.totalorder %s38, 0
    %p317 = por %p315, %p316
    %s319 = sadd.s32 %s318, 1
    %p322 = scmp.eq.s32.totalorder %s32, 1
    %p323 = scmp.ne.s32.totalorder %s318, %s320
    %p324 = scmp.eq.s32.totalorder %s32, 0
    %p325 = por %p323, %p324
    %p326 = scmp.ne.s32.totalorder %s318, %s320
    %p327 = scmp.eq.s32.totalorder %s37, 1
    %p328 = por %p326, %p327
    %p329 = scmp.ne.s32.totalorder %s320, %s321
    %p330 = scmp.eq.s32.totalorder %s37, 0
    %p331 = por %p329, %p330
    %p332 = scmp.ne.s32.totalorder %s320, %s321
    %p333 = scmp.eq.s32.totalorder %s38, 1
    %p334 = por %p332, %p333
    %p336 = scmp.ne.s32.totalorder %s321, %s335
    %p337 = scmp.eq.s32.totalorder %s38, 0
    %p338 = por %p336, %p337
    %s340 = sadd.s32 %s339, 1
    %p343 = scmp.eq.s32.totalorder %s32, 1
    %p344 = scmp.ne.s32.totalorder %s339, %s341
    %p345 = scmp.eq.s32.totalorder %s32, 0
    %p346 = por %p344, %p345
    %p347 = scmp.ne.s32.totalorder %s339, %s341
    %p348 = scmp.eq.s32.totalorder %s37, 1
    %p349 = por %p347, %p348
    %p350 = scmp.ne.s32.totalorder %s341, %s342
    %p351 = scmp.eq.s32.totalorder %s37, 0
    %p352 = por %p350, %p351
    %p353 = scmp.ne.s32.totalorder %s341, %s342
    %p354 = scmp.eq.s32.totalorder %s38, 1
    %p355 = por %p353, %p354
    %p357 = scmp.ne.s32.totalorder %s342, %s356
    %p358 = scmp.eq.s32.totalorder %s38, 0
    %p359 = por %p357, %p358
    %s361 = sadd.s32 %s360, 1
    %p364 = scmp.eq.s32.totalorder %s32, 1
    %p365 = scmp.ne.s32.totalorder %s360, %s362
    %p366 = scmp.eq.s32.totalorder %s32, 0
    %p367 = por %p365, %p366
    %p368 = scmp.ne.s32.totalorder %s360, %s362
    %p369 = scmp.eq.s32.totalorder %s37, 1
    %p370 = por %p368, %p369
    %p371 = scmp.ne.s32.totalorder %s362, %s363
    %p372 = scmp.eq.s32.totalorder %s37, 0
    %p373 = por %p371, %p372
    %p374 = scmp.ne.s32.totalorder %s362, %s363
    %p375 = scmp.eq.s32.totalorder %s38, 1
    %p376 = por %p374, %p375
    %p378 = scmp.ne.s32.totalorder %s363, %s377
    %p379 = scmp.eq.s32.totalorder %s38, 0
    %p380 = por %p378, %p379
    %s382 = sadd.s32 %s381, 1
    %p385 = scmp.eq.s32.totalorder %s32, 1
    %p386 = scmp.ne.s32.totalorder %s381, %s383
    %p387 = scmp.eq.s32.totalorder %s32, 0
    %p388 = por %p386, %p387
    %p389 = scmp.ne.s32.totalorder %s381, %s383
    %p390 = scmp.eq.s32.totalorder %s37, 1
    %p391 = por %p389, %p390
    %p392 = scmp.ne.s32.totalorder %s383, %s384
    %p393 = scmp.eq.s32.totalorder %s37, 0
    %p394 = por %p392, %p393
    %p395 = scmp.ne.s32.totalorder %s383, %s384
    %p396 = scmp.eq.s32.totalorder %s38, 1
    %p397 = por %p395, %p396
    %p399 = scmp.ne.s32.totalorder %s384, %s398
    %p400 = scmp.eq.s32.totalorder %s38, 0
    %p401 = por %p399, %p400
    %s403 = sadd.s32 %s402, 1
    %p406 = scmp.eq.s32.totalorder %s32, 1
    %p407 = scmp.ne.s32.totalorder %s402, %s404
    %p408 = scmp.eq.s32.totalorder %s32, 0
    %p409 = por %p407, %p408
    %p410 = scmp.ne.s32.totalorder %s402, %s404
    %p411 = scmp.eq.s32.totalorder %s37, 1
    %p412 = por %p410, %p411
    %p413 = scmp.ne.s32.totalorder %s404, %s405
    %p414 = scmp.eq.s32.totalorder %s37, 0
    %p415 = por %p413, %p414
    %p416 = scmp.ne.s32.totalorder %s404, %s405
    %p417 = scmp.eq.s32.totalorder %s38, 1
    %p418 = por %p416, %p417
    %p420 = scmp.ne.s32.totalorder %s405, %s419
    %p421 = scmp.eq.s32.totalorder %s38, 0
    %p422 = por %p420, %p421
    %s424 = sadd.s32 %s423, 1
    %p427 = scmp.eq.s32.totalorder %s32, 1
    %p428 = scmp.ne.s32.totalorder %s423, %s425
    %p429 = scmp.eq.s32.totalorder %s32, 0
    %p430 = por %p428, %p429
    %p431 = scmp.ne.s32.totalorder %s423, %s425
    %p432 = scmp.eq.s32.totalorder %s37, 1
    %p433 = por %p431, %p432
    %p434 = scmp.ne.s32.totalorder %s425, %s426
    %p435 = scmp.eq.s32.totalorder %s37, 0
    %p436 = por %p434, %p435
    %p437 = scmp.ne.s32.totalorder %s425, %s426
    %p438 = scmp.eq.s32.totalorder %s38, 1
    %p439 = por %p437, %p438
    %p441 = scmp.ne.s32.totalorder %s426, %s440
    %p442 = scmp.eq.s32.totalorder %s38, 0
    %p443 = por %p441, %p442
    %s445 = sadd.s32 %s444, 1
    %p448 = scmp.eq.s32.totalorder %s32, 1
    %p449 = scmp.ne.s32.totalorder %s444, %s446
    %p450 = scmp.eq.s32.totalorder %s32, 0
    %p451 = por %p449, %p450
    %p452 = scmp.ne.s32.totalorder %s444, %s446
    %p453 = scmp.eq.s32.totalorder %s37, 1
    %p454 = por %p452, %p453
    %p455 = scmp.ne.s32.totalorder %s446, %s447
    %p456 = scmp.eq.s32.totalorder %s37, 0
    %p457 = por %p455, %p456
    %p458 = scmp.ne.s32.totalorder %s446, %s447
    %p459 = scmp.eq.s32.totalorder %s38, 1
    %p460 = por %p458, %p459
    %p462 = scmp.ne.s32.totalorder %s447, %s461
    %p463 = scmp.eq.s32.totalorder %s38, 0
    %p464 = por %p462, %p463
    %s466 = sadd.s32 %s465, 1
    %p469 = scmp.eq.s32.totalorder %s32, 1
    %p470 = scmp.ne.s32.totalorder %s465, %s467
    %p471 = scmp.eq.s32.totalorder %s32, 0
    %p472 = por %p470, %p471
    %p473 = scmp.ne.s32.totalorder %s465, %s467
    %p474 = scmp.eq.s32.totalorder %s37, 1
    %p475 = por %p473, %p474
    %p476 = scmp.ne.s32.totalorder %s467, %s468
    %p477 = scmp.eq.s32.totalorder %s37, 0
    %p478 = por %p476, %p477
    %p479 = scmp.ne.s32.totalorder %s467, %s468
    %p480 = scmp.eq.s32.totalorder %s38, 1
    %p481 = por %p479, %p480
    %p483 = scmp.ne.s32.totalorder %s468, %s482
    %p484 = scmp.eq.s32.totalorder %s38, 0
    %p485 = por %p483, %p484
    %s487 = sadd.s32 %s486, 1
    %p490 = scmp.eq.s32.totalorder %s32, 1
    %p491 = scmp.ne.s32.totalorder %s486, %s488
    %p492 = scmp.eq.s32.totalorder %s32, 0
    %p493 = por %p491, %p492
    %p494 = scmp.ne.s32.totalorder %s486, %s488
    %p495 = scmp.eq.s32.totalorder %s37, 1
    %p496 = por %p494, %p495
    %p497 = scmp.ne.s32.totalorder %s488, %s489
    %p498 = scmp.eq.s32.totalorder %s37, 0
    %p499 = por %p497, %p498
    %p500 = scmp.ne.s32.totalorder %s488, %s489
    %p501 = scmp.eq.s32.totalorder %s38, 1
    %p502 = por %p500, %p501
    %p504 = scmp.ne.s32.totalorder %s489, %s503
    %p505 = scmp.eq.s32.totalorder %s38, 0
    %p506 = por %p504, %p505
    %s508 = sadd.s32 %s507, 1
    %p511 = scmp.eq.s32.totalorder %s32, 1
    %p512 = scmp.ne.s32.totalorder %s507, %s509
    %p513 = scmp.eq.s32.totalorder %s32, 0
    %p514 = por %p512, %p513
    %p515 = scmp.ne.s32.totalorder %s507, %s509
    %p516 = scmp.eq.s32.totalorder %s37, 1
    %p517 = por %p515, %p516
    %p518 = scmp.ne.s32.totalorder %s509, %s510
    %p519 = scmp.eq.s32.totalorder %s37, 0
    %p520 = por %p518, %p519
    %p521 = scmp.ne.s32.totalorder %s509, %s510
    %p522 = scmp.eq.s32.totalorder %s38, 1
    %p523 = por %p521, %p522
    %p525 = scmp.ne.s32.totalorder %s510, %s524
    %p526 = scmp.eq.s32.totalorder %s38, 0
    %p527 = por %p525, %p526
    %s529 = sadd.s32 %s528, 1
    %p532 = scmp.eq.s32.totalorder %s32, 1
    %p533 = scmp.ne.s32.totalorder %s528, %s530
    %p534 = scmp.eq.s32.totalorder %s32, 0
    %p535 = por %p533, %p534
    %p536 = scmp.ne.s32.totalorder %s528, %s530
    %p537 = scmp.eq.s32.totalorder %s37, 1
    %p538 = por %p536, %p537
    %p539 = scmp.ne.s32.totalorder %s530, %s531
    %p540 = scmp.eq.s32.totalorder %s37, 0
    %p541 = por %p539, %p540
    %p542 = scmp.ne.s32.totalorder %s530, %s531
    %p543 = scmp.eq.s32.totalorder %s38, 1
    %p544 = por %p542, %p543
    %p546 = scmp.ne.s32.totalorder %s531, %s545
    %p547 = scmp.eq.s32.totalorder %s38, 0
    %p548 = por %p546, %p547
    %s550 = sadd.s32 %s549, 1
    %p553 = scmp.eq.s32.totalorder %s32, 1
    %p554 = scmp.ne.s32.totalorder %s549, %s551
    %p555 = scmp.eq.s32.totalorder %s32, 0
    %p556 = por %p554, %p555
    %p557 = scmp.ne.s32.totalorder %s549, %s551
    %p558 = scmp.eq.s32.totalorder %s37, 1
    %p559 = por %p557, %p558
    %p560 = scmp.ne.s32.totalorder %s551, %s552
    %p561 = scmp.eq.s32.totalorder %s37, 0
    %p562 = por %p560, %p561
    %p563 = scmp.ne.s32.totalorder %s551, %s552
    %p564 = scmp.eq.s32.totalorder %s38, 1
    %p565 = por %p563, %p564
    %p567 = scmp.ne.s32.totalorder %s552, %s566
    %p568 = scmp.eq.s32.totalorder %s38, 0
    %p569 = por %p567, %p568
    %s571 = sadd.s32 %s570, 1
    %p574 = scmp.eq.s32.totalorder %s32, 1
    %p575 = scmp.ne.s32.totalorder %s570, %s572
    %p576 = scmp.eq.s32.totalorder %s32, 0
    %p577 = por %p575, %p576
    %p578 = scmp.ne.s32.totalorder %s570, %s572
    %p579 = scmp.eq.s32.totalorder %s37, 1
    %p580 = por %p578, %p579
    %p581 = scmp.ne.s32.totalorder %s572, %s573
    %p582 = scmp.eq.s32.totalorder %s37, 0
    %p583 = por %p581, %p582
    %p584 = scmp.ne.s32.totalorder %s572, %s573
    %p585 = scmp.eq.s32.totalorder %s38, 1
    %p586 = por %p584, %p585
    %p588 = scmp.ne.s32.totalorder %s573, %s587
    %p589 = scmp.eq.s32.totalorder %s38, 0
    %p590 = por %p588, %p589
    %s591 = ssub.s32 %s32, %s39
    %p592 = scmp.eq.s32.totalorder %s591, 0
    %s594 = sadd.s32 %s593, 1
    %s595 = scalar_select %p592, %s593, %s594
    %p598 = pneg %p592
    %p599 = scmp.eq.s32.totalorder %s32, 1
    %p600 = por %p598, %p599
    %p601 = scmp.ne.s32.totalorder %s593, %s596
    %p602 = scmp.eq.s32.totalorder %s32, 0
    %p603 = por %p601, %p602
    %p604 = scmp.ne.s32.totalorder %s593, %s596
    %p605 = scmp.eq.s32.totalorder %s37, 1
    %p606 = por %p604, %p605
    %p607 = scmp.ne.s32.totalorder %s596, %s597
    %p608 = scmp.eq.s32.totalorder %s37, 0
    %p609 = por %p607, %p608
    %p610 = scmp.ne.s32.totalorder %s596, %s597
    %p611 = scmp.eq.s32.totalorder %s38, 1
    %p612 = por %p610, %p611
    %p614 = scmp.ne.s32.totalorder %s597, %s613
    %p615 = scmp.eq.s32.totalorder %s38, 0
    %p616 = por %p614, %p615
    %p617 = scmp.le.s32.totalorder 1, %s32
    %p618 = scmp.lt.s32.totalorder %s32, 3
    %p619 = pnand %p617, %p618
    %p620 = pneg %p619
    // Predicated region
    $region9: #{inception_c_forward.1} parent=5 // pred_check
      _
    $region10: #{inception_c_forward.1} parent=5 // pred_check_branch
      %622 = sbr.rel (%p619) target = $region12
    $region11: #{inception_c_forward.1} parent=5 // pred_region
      %s623 = ssub.s32 %s32, 1
      // Predicated region
      $region13: #{inception_c_forward.1} parent=11 // pred_check
        %p624 = pneg %p79
      $region14: #{inception_c_forward.1} parent=11 // pred_check_branch
        %626 = sbr.rel (%p624) target = $region16
      $region15: #{inception_c_forward.1} parent=11 // pred_region
        _
      $region16: #{inception_c_forward.1} parent=11 // pred_fallthru
        _
      // Predicated region
      $region17: #{inception_c_forward.1} parent=11 // pred_check
        %p627 = pneg %p100
      $region18: #{inception_c_forward.1} parent=11 // pred_check_branch
        %629 = sbr.rel (%p627) target = $region20
      $region19: #{inception_c_forward.1} parent=11 // pred_region
        _
      $region20: #{inception_c_forward.1} parent=11 // pred_fallthru
        _
      // Predicated region
      $region21: #{inception_c_forward.1} parent=11 // pred_check
        %p630 = pneg %p121
      $region22: #{inception_c_forward.1} parent=11 // pred_check_branch
        %632 = sbr.rel (%p630) target = $region24
      $region23: #{inception_c_forward.1} parent=11 // pred_region
        _
      $region24: #{inception_c_forward.1} parent=11 // pred_fallthru
        _
      // Predicated region
      $region25: #{inception_c_forward.1} parent=11 // pred_check
        %p633 = pneg %p142
      $region26: #{inception_c_forward.1} parent=11 // pred_check_branch
        %635 = sbr.rel (%p633) target = $region28
      $region27: #{inception_c_forward.1} parent=11 // pred_region
        _
      $region28: #{inception_c_forward.1} parent=11 // pred_fallthru
        _
      // Predicated region
      $region29: #{inception_c_forward.1} parent=11 // pred_check
        %p636 = pneg %p163
      $region30: #{inception_c_forward.1} parent=11 // pred_check_branch
        %638 = sbr.rel (%p636) target = $region32
      $region31: #{inception_c_forward.1} parent=11 // pred_region
        _
      $region32: #{inception_c_forward.1} parent=11 // pred_fallthru
        _
      // Predicated region
      $region33: #{inception_c_forward.1} parent=11 // pred_check
        %p639 = pneg %p184
      $region34: #{inception_c_forward.1} parent=11 // pred_check_branch
        %641 = sbr.rel (%p639) target = $region36
      $region35: #{inception_c_forward.1} parent=11 // pred_region
        _
      $region36: #{inception_c_forward.1} parent=11 // pred_fallthru
        _
      // Predicated region
      $region37: #{inception_c_forward.1} parent=11 // pred_check
        %p642 = pneg %p205
      $region38: #{inception_c_forward.1} parent=11 // pred_check_branch
        %644 = sbr.rel (%p642) target = $region40
      $region39: #{inception_c_forward.1} parent=11 // pred_region
        _
      $region40: #{inception_c_forward.1} parent=11 // pred_fallthru
        _
      // Predicated region
      $region41: #{inception_c_forward.1} parent=11 // pred_check
        %p645 = pneg %p226
      $region42: #{inception_c_forward.1} parent=11 // pred_check_branch
        %647 = sbr.rel (%p645) target = $region44
      $region43: #{inception_c_forward.1} parent=11 // pred_region
        _
      $region44: #{inception_c_forward.1} parent=11 // pred_fallthru
        _
      // Predicated region
      $region45: #{inception_c_forward.1} parent=11 // pred_check
        %p648 = pneg %p247
      $region46: #{inception_c_forward.1} parent=11 // pred_check_branch
        %650 = sbr.rel (%p648) target = $region48
      $region47: #{inception_c_forward.1} parent=11 // pred_region
        _
      $region48: #{inception_c_forward.1} parent=11 // pred_fallthru
        _
      // Predicated region
      $region49: #{inception_c_forward.1} parent=11 // pred_check
        %p651 = pneg %p268
      $region50: #{inception_c_forward.1} parent=11 // pred_check_branch
        %653 = sbr.rel (%p651) target = $region52
      $region51: #{inception_c_forward.1} parent=11 // pred_region
        _
      $region52: #{inception_c_forward.1} parent=11 // pred_fallthru
        _
      // Predicated region
      $region53: #{inception_c_forward.1} parent=11 // pred_check
        %p654 = pneg %p289
      $region54: #{inception_c_forward.1} parent=11 // pred_check_branch
        %656 = sbr.rel (%p654) target = $region56
      $region55: #{inception_c_forward.1} parent=11 // pred_region
        _
      $region56: #{inception_c_forward.1} parent=11 // pred_fallthru
        _
      // Predicated region
      $region57: #{inception_c_forward.1} parent=11 // pred_check
        %p657 = pneg %p310
      $region58: #{inception_c_forward.1} parent=11 // pred_check_branch
        %659 = sbr.rel (%p657) target = $region60
      $region59: #{inception_c_forward.1} parent=11 // pred_region
        _
      $region60: #{inception_c_forward.1} parent=11 // pred_fallthru
        _
      // Predicated region
      $region61: #{inception_c_forward.1} parent=11 // pred_check
        %p660 = pneg %p331
      $region62: #{inception_c_forward.1} parent=11 // pred_check_branch
        %662 = sbr.rel (%p660) target = $region64
      $region63: #{inception_c_forward.1} parent=11 // pred_region
        _
      $region64: #{inception_c_forward.1} parent=11 // pred_fallthru
        _
      // Predicated region
      $region65: #{inception_c_forward.1} parent=11 // pred_check
        %p663 = pneg %p352
      $region66: #{inception_c_forward.1} parent=11 // pred_check_branch
        %665 = sbr.rel (%p663) target = $region68
      $region67: #{inception_c_forward.1} parent=11 // pred_region
        _
      $region68: #{inception_c_forward.1} parent=11 // pred_fallthru
        _
      // Predicated region
      $region69: #{inception_c_forward.1} parent=11 // pred_check
        %p666 = pneg %p373
      $region70: #{inception_c_forward.1} parent=11 // pred_check_branch
        %668 = sbr.rel (%p666) target = $region72
      $region71: #{inception_c_forward.1} parent=11 // pred_region
        _
      $region72: #{inception_c_forward.1} parent=11 // pred_fallthru
        _
      // Predicated region
      $region73: #{inception_c_forward.1} parent=11 // pred_check
        %p669 = pneg %p394
      $region74: #{inception_c_forward.1} parent=11 // pred_check_branch
        %671 = sbr.rel (%p669) target = $region76
      $region75: #{inception_c_forward.1} parent=11 // pred_region
        _
      $region76: #{inception_c_forward.1} parent=11 // pred_fallthru
        _
      // Predicated region
      $region77: #{inception_c_forward.1} parent=11 // pred_check
        %p672 = pneg %p415
      $region78: #{inception_c_forward.1} parent=11 // pred_check_branch
        %674 = sbr.rel (%p672) target = $region80
      $region79: #{inception_c_forward.1} parent=11 // pred_region
        _
      $region80: #{inception_c_forward.1} parent=11 // pred_fallthru
        _
      // Predicated region
      $region81: #{inception_c_forward.1} parent=11 // pred_check
        %p675 = pneg %p436
      $region82: #{inception_c_forward.1} parent=11 // pred_check_branch
        %677 = sbr.rel (%p675) target = $region84
      $region83: #{inception_c_forward.1} parent=11 // pred_region
        _
      $region84: #{inception_c_forward.1} parent=11 // pred_fallthru
        _
      // Predicated region
      $region85: #{inception_c_forward.1} parent=11 // pred_check
        %p678 = pneg %p457
      $region86: #{inception_c_forward.1} parent=11 // pred_check_branch
        %680 = sbr.rel (%p678) target = $region88
      $region87: #{inception_c_forward.1} parent=11 // pred_region
        _
      $region88: #{inception_c_forward.1} parent=11 // pred_fallthru
        _
      // Predicated region
      $region89: #{inception_c_forward.1} parent=11 // pred_check
        %p681 = pneg %p478
      $region90: #{inception_c_forward.1} parent=11 // pred_check_branch
        %683 = sbr.rel (%p681) target = $region92
      $region91: #{inception_c_forward.1} parent=11 // pred_region
        _
      $region92: #{inception_c_forward.1} parent=11 // pred_fallthru
        _
      // Predicated region
      $region93: #{inception_c_forward.1} parent=11 // pred_check
        %p684 = pneg %p499
      $region94: #{inception_c_forward.1} parent=11 // pred_check_branch
        %686 = sbr.rel (%p684) target = $region96
      $region95: #{inception_c_forward.1} parent=11 // pred_region
        _
      $region96: #{inception_c_forward.1} parent=11 // pred_fallthru
        _
      // Predicated region
      $region97: #{inception_c_forward.1} parent=11 // pred_check
        %p687 = pneg %p520
      $region98: #{inception_c_forward.1} parent=11 // pred_check_branch
        %689 = sbr.rel (%p687) target = $region100
      $region99: #{inception_c_forward.1} parent=11 // pred_region
        _
      $region100: #{inception_c_forward.1} parent=11 // pred_fallthru
        _
      // Predicated region
      $region101: #{inception_c_forward.1} parent=11 // pred_check
        %p690 = pneg %p541
      $region102: #{inception_c_forward.1} parent=11 // pred_check_branch
        %692 = sbr.rel (%p690) target = $region104
      $region103: #{inception_c_forward.1} parent=11 // pred_region
        _
      $region104: #{inception_c_forward.1} parent=11 // pred_fallthru
        _
      // Predicated region
      $region105: #{inception_c_forward.1} parent=11 // pred_check
        %p693 = pneg %p562
      $region106: #{inception_c_forward.1} parent=11 // pred_check_branch
        %695 = sbr.rel (%p693) target = $region108
      $region107: #{inception_c_forward.1} parent=11 // pred_region
        _
      $region108: #{inception_c_forward.1} parent=11 // pred_fallthru
        _
      // Predicated region
      $region109: #{inception_c_forward.1} parent=11 // pred_check
        %p696 = pneg %p583
      $region110: #{inception_c_forward.1} parent=11 // pred_check_branch
        %698 = sbr.rel (%p696) target = $region112
      $region111: #{inception_c_forward.1} parent=11 // pred_region
        _
      $region112: #{inception_c_forward.1} parent=11 // pred_fallthru
        _
    $region12: #{inception_c_forward.1} parent=5 // pred_fallthru
      _
    %p699 = scmp.lt.s32.totalorder %s32, 2
    // Predicated region
    $region113: #{inception_c_forward.1} parent=5 // pred_check
      %p700 = pneg %p699
    $region114: #{inception_c_forward.1} parent=5 // pred_check_branch
      %702 = sbr.rel (%p700) target = $region116
    $region115: #{inception_c_forward.1} parent=5 // pred_region
      // Predicated region
      $region117: #{inception_c_forward.1} parent=115 // pred_check
        %p703 = pneg %p52
      $region118: #{inception_c_forward.1} parent=115 // pred_check_branch
        %705 = sbr.rel (%p703) target = $region120
      $region119: #{inception_c_forward.1} parent=115 // pred_region
        %p706 = scmp.lt.s32.totalorder %s32, 1
        %s707 = scalar_select %p706, %s32, 1
        %s708 = smul.addr %s707, 28
        %s709 = smul.addr %s708, 4
        %s710 = scalar_lea.vmem %s0, %s709
      $region120: #{inception_c_forward.1} parent=115 // pred_fallthru
        _
    $region116: #{inception_c_forward.1} parent=5 // pred_fallthru
      _
    %p711 = scmp.le.s32.totalorder 1, %s32
    %p712 = scmp.lt.s32.totalorder %s32, 3
    %p713 = pnand %p711, %p712
    %p714 = pneg %p713
    // Predicated region
    $region121: #{inception_c_forward.1} parent=5 // pred_check
      _
    $region122: #{inception_c_forward.1} parent=5 // pred_check_branch
      %716 = sbr.rel (%p713) target = $region124
    $region123: #{inception_c_forward.1} parent=5 // pred_region
      %s717 = ssub.s32 %s32, 1
      %p718 = scmp.lt.s32.totalorder %s37, 1
      %s719 = scalar_select %p718, %s37, 1
      %s720 = smul.addr %s719, 28
      %s721 = smul.addr %s720, 4
      %s722 = scalar_lea.vmem %s0, %s721
      %p723 = pneg %p58
      %p724 = pneg %p55
      %p725 = pneg %p79
      %p726 = pneg %p76
      %p727 = pneg %p100
      %p728 = pneg %p97
      %p729 = pneg %p121
      %p730 = pneg %p118
      %p731 = pneg %p142
      %p732 = pneg %p139
      %p733 = pneg %p163
      %p734 = pneg %p160
      %p735 = pneg %p184
      %p736 = pneg %p181
      %p737 = pneg %p205
      %p738 = pneg %p202
      %p739 = pneg %p226
      %p740 = pneg %p223
      %p741 = pneg %p247
      %p742 = pneg %p244
      %p743 = pneg %p268
      %p744 = pneg %p265
      %p745 = pneg %p289
      %p746 = pneg %p286
      %p747 = pneg %p310
      %p748 = pneg %p307
      %p749 = pneg %p331
      %p750 = pneg %p328
      %p751 = pneg %p352
      %p752 = pneg %p349
      %p753 = pneg %p373
      %p754 = pneg %p370
      %p755 = pneg %p394
      %p756 = pneg %p391
      %p757 = pneg %p415
      %p758 = pneg %p412
      %p759 = pneg %p436
      %p760 = pneg %p433
      %p761 = pneg %p457
      %p762 = pneg %p454
      %p763 = pneg %p478
      %p764 = pneg %p475
      %p765 = pneg %p499
      %p766 = pneg %p496
      %p767 = pneg %p520
      %p768 = pneg %p517
      %p769 = pneg %p541
      %p770 = pneg %p538
      %p771 = pneg %p562
      %p772 = pneg %p559
      %p773 = pneg %p583
      %p774 = pneg %p580
      %p775 = pneg %p609
      %p776 = pneg %p606
      %p777 = scmp.lt.s32.totalorder %s37, 1
      %s778 = scalar_select %p777, %s37, 1
      %s779 = smul.addr %s778, 128
      %s780 = smul.addr %s779, 4
      %s781 = scalar_lea.vmem %s26, %s780
      %p782 = scmp.lt.s32.totalorder %s37, 1
      %s783 = scalar_select %p782, %s37, 1
      %s784 = smul.addr %s783, 28
      %s785 = smul.addr %s784, 4
      %s786 = scalar_lea.vmem %s0, %s785
      %p787 = scmp.lt.s32.totalorder %s37, 1
      %s788 = scalar_select %p787, %s37, 1
      %s789 = smul.addr %s788, 128
      %s790 = smul.addr %s789, 4
      %s791 = scalar_lea.vmem %s26, %s790
      %vm793 = vcmask 64512
      %794 = vst.msk [vmem:[#allocation2] sm:$0xff] %vm793, 0
      %795 = vst.msk [vmem:[#allocation2 + $0x8] sm:$0xff] %vm793, 0
      %796 = vst.msk [vmem:[#allocation2 + $0x10] sm:$0xff] %vm793, 0
      %797 = vst.msk [vmem:[#allocation2 + $0x58] sm:$0xff] %vm793, 0
      %798 = vst.msk [vmem:[#allocation2 + $0x60] sm:$0xff] %vm793, 0
      %799 = vst.msk [vmem:[#allocation2 + $0x68] sm:$0xff] %vm793, 0
      %800 = vst.msk [vmem:[#allocation3] sm:$0xff] %vm793, 0
      %801 = vst.msk [vmem:[#allocation3 + $0x8] sm:$0xff] %vm793, 0
      %802 = vst.msk [vmem:[#allocation3 + $0x10] sm:$0xff] %vm793, 0
      %803 = vst.msk [vmem:[#allocation3 + $0x58] sm:$0xff] %vm793, 0
      %804 = vst.msk [vmem:[#allocation3 + $0x60] sm:$0xff] %vm793, 0
      %805 = vst.msk [vmem:[#allocation3 + $0x68] sm:$0xff] %vm793, 0
      %806 = vst.msk [vmem:[#allocation4] sm:$0xff] %vm793, 0
      %807 = vst.msk [vmem:[#allocation4 + $0x8] sm:$0xff] %vm793, 0
      %808 = vst.msk [vmem:[#allocation4 + $0x10] sm:$0xff] %vm793, 0
      %809 = vst.msk [vmem:[#allocation4 + $0x58] sm:$0xff] %vm793, 0
      %810 = vst.msk [vmem:[#allocation4 + $0x60] sm:$0xff] %vm793, 0
      %811 = vst.msk [vmem:[#allocation4 + $0x68] sm:$0xff] %vm793, 0
      %v812 = vld [vmem:[%s3] sm:$0x3]
      %v813 = vld [vmem:[%s4] sm:$0x3]
      %v814 = vld [vmem:[%s786 + $0x18] sm:$0xf]
      %v815 = vld [vmem:[%s786 + $0x1c] sm:$0xf]
      %v816 = vld [vmem:[%s786 + $0x20] sm:$0xf]
      %v817 = vld [vmem:[%s786 + $0x24] sm:$0xf]
      %v818 = vld [vmem:[%s786 + $0x28] sm:$0xf]
      %v819 = vld [vmem:[%s786 + $0x2c] sm:$0xf]
      %v820 = vld [vmem:[%s786 + $0x30] sm:$0xf]
      %v821 = vld [vmem:[%s786 + $0x34] sm:$0xf]
      %v822 = vld [vmem:[%s786 + $0x38] sm:$0xf]
      %v823 = vld [vmem:[%s786 + $0x3c] sm:$0xf]
      %v824 = vld [vmem:[%s786 + $0x40] sm:$0xf]
      %v825 = vld [vmem:[%s786 + $0x44] sm:$0xf]
      %v826 = vld [vmem:[%s786 + $0x48] sm:$0xf]
      %v827 = vld [vmem:[%s786 + $0x4c] sm:$0xf]
      %v828 = vld [vmem:[%s786 + $0x50] sm:$0xf]
      %v829 = vld [vmem:[%s786 + $0x54] sm:$0xf]
      %v830 = vld [vmem:[%s2] sm:$0xff]
      %v847 = vunpack.c.l.b16 %v814
      %v848 = vunpack.c.l.b16 %v815
      %v849 = vunpack.c.l.b16 %v816
      %v850 = vunpack.c.l.b16 %v817
      %v851 = vunpack.c.l.b16 %v818
      %v852 = vunpack.c.l.b16 %v819
      %v853 = vunpack.c.l.b16 %v820
      %v854 = vunpack.c.l.b16 %v821
      %v855 = vunpack.c.l.b16 %v822
      %v856 = vunpack.c.l.b16 %v823
      %v857 = vunpack.c.l.b16 %v824
      %v858 = vunpack.c.l.b16 %v825
      %v859 = vunpack.c.l.b16 %v826
      %v860 = vunpack.c.l.b16 %v827
      %v861 = vunpack.c.l.b16 %v828
      %v862 = vunpack.c.l.b16 %v829
      %v863 = vpack.c.b16 %v848, %v847
      %v864 = vpack.c.b16 %v850, %v849
      %v865 = vpack.c.b16 %v852, %v851
      %v866 = vpack.c.b16 %v854, %v853
      %v867 = vpack.c.b16 %v856, %v855
      %v868 = vpack.c.b16 %v858, %v857
      %v869 = vpack.c.b16 %v860, %v859
      %v870 = vpack.c.b16 %v862, %v861
      %v872 = vunpack.c.l.b16 %v830
      %v873 = vunpack.c.h.b16 %v830
      %v874 = vpack.c.b16 %v872, %v872
      %v875 = vpack.c.b16 %v873, %v873
      %v877 = vsel %vm793, %v863, 0
      %v880 = vsel %vm793, %v864, 0
      %v883 = vsel %vm793, %v865, 0
      %v886 = vsel %vm793, %v866, 0
      %v889 = vsel %vm793, %v867, 0
      %v892 = vsel %vm793, %v868, 0
      %v895 = vsel %vm793, %v869, 0
      %v898 = vsel %vm793, %v870, 0
      %vm900 = vcmask 1043456
      %v902 = vsel %vm900, %v874, 0
      %v905 = vsel %vm900, %v875, 0
      %907 = vmatprep.subr.bf16.mxu0 %v905
      %908 = vmatpush1.bf16.msra.mxu0 %v902
      %909 = vmatprep.subr.bf16.mxu0 0
      %910 = vmatpush1.bf16.msra.mxu0 0
      %911 = vmatprep.subr.bf16.mxu0 0
      %912 = vmatpush1.bf16.msra.mxu0 0
      %913 = vmatprep.subr.bf16.mxu0 0
      %914 = vmatpush1.bf16.msra.mxu0 0
      %915 = vmatprep.subr.bf16.mxu0 0
      %916 = vmatpush1.bf16.msra.mxu0 0
      %917 = vmatprep.subr.bf16.mxu0 0
      %918 = vmatpush1.bf16.msra.mxu0 0
      %919 = vmatprep.subr.bf16.mxu0 0
      %920 = vmatpush1.bf16.msra.mxu0 0
      %921 = vmatprep.subr.bf16.mxu0 0
      %922 = vmatpush1.bf16.msra.mxu0 0
      %923 = vmatprep.subr.bf16.mxu0 0
      %924 = vmatpush1.bf16.msra.mxu0 0
      %925 = vmatprep.subr.bf16.mxu0 0
      %926 = vmatpush1.bf16.msra.mxu0 0
      %927 = vmatprep.subr.bf16.mxu0 0
      %928 = vmatpush1.bf16.msra.mxu0 0
      %929 = vmatprep.subr.bf16.mxu0 0
      %930 = vmatpush1.bf16.msra.mxu0 0
      %931 = vmatprep.subr.bf16.mxu0 0
      %932 = vmatpush1.bf16.msra.mxu0 0
      %933 = vmatprep.subr.bf16.mxu0 0
      %934 = vmatpush1.bf16.msra.mxu0 0
      %935 = vmatprep.subr.bf16.mxu0 0
      %936 = vmatpush1.bf16.msra.mxu0 0
      %937 = vmatprep.subr.bf16.mxu0 0
      %938 = vmatpush1.bf16.msra.mxu0 0
      %939 = vmatprep.mubr.bf16.mxu0 0
      %940 = vmatmul.mubr.bf16.gmra.mrb[0].mxu0 %v877
      %v941 = vpop.f32.mrb[0].mxu0
      %v942 = vadd.f32 0.0, %v941
      %v943 = vpop.f32.mrb[0].mxu0
      %v944 = vadd.f32 0.0, %v943
      %v945 = vpop.f32.mrb[0].mxu0
      %v946 = vadd.f32 0.0, %v945
      %v947 = vpop.f32.mrb[0].mxu0
      %v948 = vadd.f32 0.0, %v947
      %949 = vmatprep.mubr.bf16.mxu0 0
      %950 = vmatmul.mubr.bf16.gmra.mrb[0].mxu0 %v880
      %v951 = vpop.f32.mrb[0].mxu0
      %v952 = vadd.f32 0.0, %v951
      %v953 = vpop.f32.mrb[0].mxu0
      %v954 = vadd.f32 0.0, %v953
      %v955 = vpop.f32.mrb[0].mxu0
      %v956 = vadd.f32 0.0, %v955
      %v957 = vpop.f32.mrb[0].mxu0
      %v958 = vadd.f32 0.0, %v957
      %959 = vmatprep.mubr.bf16.mxu0 0
      %960 = vmatmul.mubr.bf16.gmra.mrb[0].mxu0 %v883
      %v961 = vpop.f32.mrb[0].mxu0
      %v962 = vadd.f32 0.0, %v961
      %v963 = vpop.f32.mrb[0].mxu0
      %v964 = vadd.f32 0.0, %v963
      %v965 = vpop.f32.mrb[0].mxu0
      %v966 = vadd.f32 0.0, %v965
      %v967 = vpop.f32.mrb[0].mxu0
      %v968 = vadd.f32 0.0, %v967
      %969 = vmatprep.mubr.bf16.mxu0 0
      %970 = vmatmul.mubr.bf16.gmra.mrb[0].mxu0 %v886
      %v971 = vpop.f32.mrb[0].mxu0
      %v972 = vadd.f32 0.0, %v971
      %v973 = vpop.f32.mrb[0].mxu0
      %v974 = vadd.f32 0.0, %v973
      %v975 = vpop.f32.mrb[0].mxu0
      %v976 = vadd.f32 0.0, %v975
      %v977 = vpop.f32.mrb[0].mxu0
      %v978 = vadd.f32 0.0, %v977
      %979 = vmatprep.mubr.bf16.mxu0 0
      %980 = vmatmul.mubr.bf16.gmra.mrb[0].mxu0 %v889
      %v981 = vpop.f32.mrb[0].mxu0
      %v982 = vadd.f32 0.0, %v981
      %v983 = vpop.f32.mrb[0].mxu0
      %v984 = vadd.f32 0.0, %v983
      %v985 = vpop.f32.mrb[0].mxu0
      %v986 = vadd.f32 0.0, %v985
      %v987 = vpop.f32.mrb[0].mxu0
      %v988 = vadd.f32 0.0, %v987
      %989 = vmatprep.mubr.bf16.mxu0 0
      %990 = vmatmul.mubr.bf16.gmra.mrb[0].mxu0 %v892
      %v991 = vpop.f32.mrb[0].mxu0
      %v992 = vadd.f32 0.0, %v991
      %v993 = vpop.f32.mrb[0].mxu0
      %v994 = vadd.f32 0.0, %v993
      %v995 = vpop.f32.mrb[0].mxu0
      %v996 = vadd.f32 0.0, %v995
      %v997 = vpop.f32.mrb[0].mxu0
      %v998 = vadd.f32 0.0, %v997
      %999 = vmatprep.mubr.bf16.mxu0 0
      %1000 = vmatmul.mubr.bf16.gmra.mrb[0].mxu0 %v895
      %v1001 = vpop.f32.mrb[0].mxu0
      %v1002 = vadd.f32 0.0, %v1001
      %v1003 = vpop.f32.mrb[0].mxu0
      %v1004 = vadd.f32 0.0, %v1003
      %v1005 = vpop.f32.mrb[0].mxu0
      %v1006 = vadd.f32 0.0, %v1005
      %v1007 = vpop.f32.mrb[0].mxu0
      %v1008 = vadd.f32 0.0, %v1007
      %1009 = vmatprep.mubr.bf16.mxu0 0
      %1010 = vmatmul.mubr.bf16.gmra.mrb[0].mxu0 %v898
      %v1011 = vpop.f32.mrb[0].mxu0
      %v1012 = vadd.f32 0.0, %v1011
      %v1013 = vpop.f32.mrb[0].mxu0
      %v1014 = vadd.f32 0.0, %v1013
      %v1015 = vpop.f32.mrb[0].mxu0
      %v1016 = vadd.f32 0.0, %v1015
      %v1017 = vpop.f32.mrb[0].mxu0
      %v1018 = vadd.f32 0.0, %v1017
      %1019 = vdwg.mxu0
      %v1021 = vlaneseq
      %v1022 = vshrl.u32 %v1021, 7
      %v1023 = vsub.s32 0, %v1022
      %v1024 = vrot.slane %v812, %v1023
      %v1025 = vlaneseq
      %v1026 = vshrl.u32 %v1025, 7
      %v1027 = vsub.s32 1, %v1026
      %v1028 = vrot.slane %v812, %v1027
      %v1031 = vmul.f32 %v942, %v1024
      %v1032 = vmul.f32 %v944, %v1028
      %v1033 = vmul.f32 %v946, %v1024
      %v1034 = vmul.f32 %v948, %v1028
      %v1035 = vmul.f32 %v952, %v1024
      %v1036 = vmul.f32 %v954, %v1028
      %v1037 = vmul.f32 %v956, %v1024
      %v1038 = vmul.f32 %v958, %v1028
      %v1039 = vmul.f32 %v962, %v1024
      %v1040 = vmul.f32 %v964, %v1028
      %v1041 = vmul.f32 %v966, %v1024
      %v1042 = vmul.f32 %v968, %v1028
      %v1043 = vmul.f32 %v972, %v1024
      %v1044 = vmul.f32 %v974, %v1028
      %v1045 = vmul.f32 %v976, %v1024
      %v1046 = vmul.f32 %v978, %v1028
      %v1047 = vmul.f32 %v982, %v1024
      %v1048 = vmul.f32 %v984, %v1028
      %v1049 = vmul.f32 %v986, %v1024
      %v1050 = vmul.f32 %v988, %v1028
      %v1051 = vmul.f32 %v992, %v1024
      %v1052 = vmul.f32 %v994, %v1028
      %v1053 = vmul.f32 %v996, %v1024
      %v1054 = vmul.f32 %v998, %v1028
      %v1055 = vmul.f32 %v1002, %v1024
      %v1056 = vmul.f32 %v1004, %v1028
      %v1057 = vmul.f32 %v1006, %v1024
      %v1058 = vmul.f32 %v1008, %v1028
      %v1059 = vmul.f32 %v1012, %v1024
      %v1060 = vmul.f32 %v1014, %v1028
      %v1061 = vmul.f32 %v1016, %v1024
      %v1062 = vmul.f32 %v1018, %v1028
      %v1064 = vlaneseq
      %v1065 = vshrl.u32 %v1064, 7
      %v1066 = vsub.s32 0, %v1065
      %v1067 = vrot.slane %v813, %v1066
      %v1068 = vlaneseq
      %v1069 = vshrl.u32 %v1068, 7
      %v1070 = vsub.s32 1, %v1069
      %v1071 = vrot.slane %v813, %v1070
      %v1074 = vadd.f32 %v1031, %v1067
      %v1075 = vadd.f32 %v1032, %v1071
      %v1076 = vadd.f32 %v1033, %v1067
      %v1077 = vadd.f32 %v1034, %v1071
      %v1078 = vadd.f32 %v1035, %v1067
      %v1079 = vadd.f32 %v1036, %v1071
      %v1080 = vadd.f32 %v1037, %v1067
      %v1081 = vadd.f32 %v1038, %v1071
      %v1082 = vadd.f32 %v1039, %v1067
      %v1083 = vadd.f32 %v1040, %v1071
      %v1084 = vadd.f32 %v1041, %v1067
      %v1085 = vadd.f32 %v1042, %v1071
      %v1086 = vadd.f32 %v1043, %v1067
      %v1087 = vadd.f32 %v1044, %v1071
      %v1088 = vadd.f32 %v1045, %v1067
      %v1089 = vadd.f32 %v1046, %v1071
      %v1090 = vadd.f32 %v1047, %v1067
      %v1091 = vadd.f32 %v1048, %v1071
      %v1092 = vadd.f32 %v1049, %v1067
      %v1093 = vadd.f32 %v1050, %v1071
      %v1094 = vadd.f32 %v1051, %v1067
      %v1095 = vadd.f32 %v1052, %v1071
      %v1096 = vadd.f32 %v1053, %v1067
      %v1097 = vadd.f32 %v1054, %v1071
      %v1098 = vadd.f32 %v1055, %v1067
      %v1099 = vadd.f32 %v1056, %v1071
      %v1100 = vadd.f32 %v1057, %v1067
      %v1101 = vadd.f32 %v1058, %v1071
      %v1102 = vadd.f32 %v1059, %v1067
      %v1103 = vadd.f32 %v1060, %v1071
      %v1104 = vadd.f32 %v1061, %v1067
      %v1105 = vadd.f32 %v1062, %v1071
      %v1106 = vmax.f32 %v1074, 0.0
      %v1107 = vmax.f32 %v1075, 0.0
      %v1108 = vmax.f32 %v1076, 0.0
      %v1109 = vmax.f32 %v1077, 0.0
      %v1110 = vmax.f32 %v1078, 0.0
      %v1111 = vmax.f32 %v1079, 0.0
      %v1112 = vmax.f32 %v1080, 0.0
      %v1113 = vmax.f32 %v1081, 0.0
      %v1114 = vmax.f32 %v1082, 0.0
      %v1115 = vmax.f32 %v1083, 0.0
      %v1116 = vmax.f32 %v1084, 0.0
      %v1117 = vmax.f32 %v1085, 0.0
      %v1118 = vmax.f32 %v1086, 0.0
      %v1119 = vmax.f32 %v1087, 0.0
      %v1120 = vmax.f32 %v1088, 0.0
      %v1121 = vmax.f32 %v1089, 0.0
      %v1122 = vmax.f32 %v1090, 0.0
      %v1123 = vmax.f32 %v1091, 0.0
      %v1124 = vmax.f32 %v1092, 0.0
      %v1125 = vmax.f32 %v1093, 0.0
      %v1126 = vmax.f32 %v1094, 0.0
      %v1127 = vmax.f32 %v1095, 0.0
      %v1128 = vmax.f32 %v1096, 0.0
      %v1129 = vmax.f32 %v1097, 0.0
      %v1130 = vmax.f32 %v1098, 0.0
      %v1131 = vmax.f32 %v1099, 0.0
      %v1132 = vmax.f32 %v1100, 0.0
      %v1133 = vmax.f32 %v1101, 0.0
      %v1134 = vmax.f32 %v1102, 0.0
      %v1135 = vmax.f32 %v1103, 0.0
      %v1136 = vmax.f32 %v1104, 0.0
      %v1137 = vmax.f32 %v1105, 0.0
      %v1138 = vld [vmem:[%s1] sm:$0xff]
      %v1139 = vld [vmem:[%s1 + $0x8] sm:$0xff]
      %v1140 = vld [vmem:[%s1 + $0x10] sm:$0xff]
      %v1141 = vld [vmem:[%s1 + $0x18] sm:$0xff]
      %v1142 = vld [vmem:[%s1 + $0x20] sm:$0xff]
      %v1143 = vld [vmem:[%s1 + $0x28] sm:$0xff]
      %v1144 = vld [vmem:[%s1 + $0x30] sm:$0xff]
      %v1145 = vld [vmem:[%s1 + $0x38] sm:$0xff]
      %v1146 = vld [vmem:[%s1 + $0x40] sm:$0xff]
      %v1147 = vld [vmem:[%s1 + $0x48] sm:$0xff]
      %v1148 = vld [vmem:[%s1 + $0x50] sm:$0xff]
      %v1149 = vld [vmem:[%s1 + $0x58] sm:$0xff]
      %v1150 = vld [vmem:[%s1 + $0x60] sm:$0xff]
      %v1151 = vld [vmem:[%s1 + $0x68] sm:$0xff]
      %v1152 = vld [vmem:[%s1 + $0x70] sm:$0xff]
      %v1153 = vld [vmem:[%s1 + $0x78] sm:$0xff]
      %1155 = vset.pattern.permute.xlu0 0
      %1156 = vperm.xlu0 %1155, %v1138
      %v1157 = vpop.permute.xlu0 %1156
      %1160 = vset.pattern.permute.xlu0 0
      %1161 = vperm.xlu0 %1160, %v1139
      %v1162 = vpop.permute.xlu0 %1161
      %1165 = vset.pattern.permute.xlu0 0
      %1166 = vperm.xlu0 %1165, %v1140
      %v1167 = vpop.permute.xlu0 %1166
      %1170 = vset.pattern.permute.xlu0 0
      %1171 = vperm.xlu0 %1170, %v1141
      %v1172 = vpop.permute.xlu0 %1171
      %1175 = vset.pattern.permute.xlu0 0
      %1176 = vperm.xlu0 %1175, %v1142
      %v1177 = vpop.permute.xlu0 %1176
      %1180 = vset.pattern.permute.xlu0 0
      %1181 = vperm.xlu0 %1180, %v1143
      %v1182 = vpop.permute.xlu0 %1181
      %1185 = vset.pattern.permute.xlu0 0
      %1186 = vperm.xlu0 %1185, %v1144
      %v1187 = vpop.permute.xlu0 %1186
      %1190 = vset.pattern.permute.xlu0 0
      %1191 = vperm.xlu0 %1190, %v1145
      %v1192 = vpop.permute.xlu0 %1191
      %1195 = vset.pattern.permute.xlu0 0
      %1196 = vperm.xlu0 %1195, %v1146
      %v1197 = vpop.permute.xlu0 %1196
      %1200 = vset.pattern.permute.xlu0 0
      %1201 = vperm.xlu0 %1200, %v1147
      %v1202 = vpop.permute.xlu0 %1201
      %1205 = vset.pattern.permute.xlu0 0
      %1206 = vperm.xlu0 %1205, %v1148
      %v1207 = vpop.permute.xlu0 %1206
      %1210 = vset.pattern.permute.xlu0 0
      %1211 = vperm.xlu0 %1210, %v1149
      %v1212 = vpop.permute.xlu0 %1211
      %1215 = vset.pattern.permute.xlu0 0
      %1216 = vperm.xlu0 %1215, %v1150
      %v1217 = vpop.permute.xlu0 %1216
      %1220 = vset.pattern.permute.xlu0 0
      %1221 = vperm.xlu0 %1220, %v1151
      %v1222 = vpop.permute.xlu0 %1221
      %1225 = vset.pattern.permute.xlu0 0
      %1226 = vperm.xlu0 %1225, %v1152
      %v1227 = vpop.permute.xlu0 %1226
      %1230 = vset.pattern.permute.xlu0 0
      %1231 = vperm.xlu0 %1230, %v1153
      %v1232 = vpop.permute.xlu0 %1231
      %v1234 = vmul.f32 %v1106, %v1157
      %v1235 = vmul.f32 %v1107, %v1157
      %v1236 = vmul.f32 %v1108, %v1162
      %v1237 = vmul.f32 %v1109, %v1162
      %v1238 = vmul.f32 %v1110, %v1167
      %v1239 = vmul.f32 %v1111, %v1167
      %v1240 = vmul.f32 %v1112, %v1172
      %v1241 = vmul.f32 %v1113, %v1172
      %v1242 = vmul.f32 %v1114, %v1177
      %v1243 = vmul.f32 %v1115, %v1177
      %v1244 = vmul.f32 %v1116, %v1182
      %v1245 = vmul.f32 %v1117, %v1182
      %v1246 = vmul.f32 %v1118, %v1187
      %v1247 = vmul.f32 %v1119, %v1187
      %v1248 = vmul.f32 %v1120, %v1192
      %v1249 = vmul.f32 %v1121, %v1192
      %v1250 = vmul.f32 %v1122, %v1197
      %v1251 = vmul.f32 %v1123, %v1197
      %v1252 = vmul.f32 %v1124, %v1202
      %v1253 = vmul.f32 %v1125, %v1202
      %v1254 = vmul.f32 %v1126, %v1207
      %v1255 = vmul.f32 %v1127, %v1207
      %v1256 = vmul.f32 %v1128, %v1212
      %v1257 = vmul.f32 %v1129, %v1212
      %v1258 = vmul.f32 %v1130, %v1217
      %v1259 = vmul.f32 %v1131, %v1217
      %v1260 = vmul.f32 %v1132, %v1222
      %v1261 = vmul.f32 %v1133, %v1222
      %v1262 = vmul.f32 %v1134, %v1227
      %v1263 = vmul.f32 %v1135, %v1227
      %v1264 = vmul.f32 %v1136, %v1232
      %v1265 = vmul.f32 %v1137, %v1232
      %v1266 = vpack.c.bf16 %v1236, %v1234
      %v1267 = vpack.c.bf16 %v1240, %v1238
      %v1268 = vpack.c.bf16 %v1244, %v1242
      %v1269 = vpack.c.bf16 %v1248, %v1246
      %v1270 = vpack.c.bf16 %v1252, %v1250
      %v1271 = vpack.c.bf16 %v1256, %v1254
      %v1272 = vpack.c.bf16 %v1260, %v1258
      %v1273 = vpack.c.bf16 %v1264, %v1262
      %1274 = vst.msk [vmem:[#allocation2 + $0x18] sm:$0xff] %vm793, %v1266
      %1275 = vst.msk [vmem:[#allocation2 + $0x20] sm:$0xff] %vm793, %v1267
      %1276 = vst.msk [vmem:[#allocation2 + $0x28] sm:$0xff] %vm793, %v1268
      %1277 = vst.msk [vmem:[#allocation2 + $0x30] sm:$0xff] %vm793, %v1269
      %1278 = vst.msk [vmem:[#allocation2 + $0x38] sm:$0xff] %vm793, %v1270
      %1279 = vst.msk [vmem:[#allocation2 + $0x40] sm:$0xff] %vm793, %v1271
      %1280 = vst.msk [vmem:[#allocation2 + $0x48] sm:$0xff] %vm793, %v1272
      %1281 = vst.msk [vmem:[#allocation2 + $0x50] sm:$0xff] %vm793, %v1273
      %1290 = vrot.lane.b32.xlu0 %v1266, 120
      %v1291 = vpop.permute.xlu0 %1290
      %1292 = vrot.lane.b32.xlu0 %v1267, 120
      %v1293 = vpop.permute.xlu0 %1292
      %1294 = vrot.lane.b32.xlu0 %v1268, 120
      %v1295 = vpop.permute.xlu0 %1294
      %1296 = vrot.lane.b32.xlu0 %v1269, 120
      %v1297 = vpop.permute.xlu0 %1296
      %1298 = vrot.lane.b32.xlu0 %v1270, 120
      %v1299 = vpop.permute.xlu0 %1298
      %1300 = vrot.lane.b32.xlu0 %v1271, 120
      %v1301 = vpop.permute.xlu0 %1300
      %1302 = vrot.lane.b32.xlu0 %v1272, 120
      %v1303 = vpop.permute.xlu0 %1302
      %1304 = vrot.lane.b32.xlu0 %v1273, 120
      %v1305 = vpop.permute.xlu0 %1304
      %1314 = vst.msk [vmem:[#allocation4 + $0x18] sm:$0xff] %vm793, %v1291
      %1315 = vst.msk [vmem:[#allocation4 + $0x20] sm:$0xff] %vm793, %v1293
      %1316 = vst.msk [vmem:[#allocation4 + $0x28] sm:$0xff] %vm793, %v1295
      %1317 = vst.msk [vmem:[#allocation4 + $0x30] sm:$0xff] %vm793, %v1297
      %1318 = vst.msk [vmem:[#allocation4 + $0x38] sm:$0xff] %vm793, %v1299
      %1319 = vst.msk [vmem:[#allocation4 + $0x40] sm:$0xff] %vm793, %v1301
      %1320 = vst.msk [vmem:[#allocation4 + $0x48] sm:$0xff] %vm793, %v1303
      %1321 = vst.msk [vmem:[#allocation4 + $0x50] sm:$0xff] %vm793, %v1305
      %v1322 = vpack.c.bf16 %v1237, %v1235
      %v1323 = vpack.c.bf16 %v1241, %v1239
      %v1324 = vpack.c.bf16 %v1245, %v1243
      %v1325 = vpack.c.bf16 %v1249, %v1247
      %v1326 = vpack.c.bf16 %v1253, %v1251
      %v1327 = vpack.c.bf16 %v1257, %v1255
      %v1328 = vpack.c.bf16 %v1261, %v1259
      %v1329 = vpack.c.bf16 %v1265, %v1263
      %v1338 = vunpack.c.l.b16 %v1266
      %v1339 = vunpack.c.l.b16 %v1322
      %v1340 = vunpack.c.h.b16 %v1266
      %v1341 = vunpack.c.h.b16 %v1322
      %v1342 = vunpack.c.l.b16 %v1267
      %v1343 = vunpack.c.l.b16 %v1323
      %v1344 = vunpack.c.h.b16 %v1267
      %v1345 = vunpack.c.h.b16 %v1323
      %v1346 = vunpack.c.l.b16 %v1268
      %v1347 = vunpack.c.l.b16 %v1324
      %v1348 = vunpack.c.h.b16 %v1268
      %v1349 = vunpack.c.h.b16 %v1324
      %v1350 = vunpack.c.l.b16 %v1269
      %v1351 = vunpack.c.l.b16 %v1325
      %v1352 = vunpack.c.h.b16 %v1269
      %v1353 = vunpack.c.h.b16 %v1325
      %v1354 = vunpack.c.l.b16 %v1270
      %v1355 = vunpack.c.l.b16 %v1326
      %v1356 = vunpack.c.h.b16 %v1270
      %v1357 = vunpack.c.h.b16 %v1326
      %v1358 = vunpack.c.l.b16 %v1271
      %v1359 = vunpack.c.l.b16 %v1327
      %v1360 = vunpack.c.h.b16 %v1271
      %v1361 = vunpack.c.h.b16 %v1327
      %v1362 = vunpack.c.l.b16 %v1272
      %v1363 = vunpack.c.l.b16 %v1328
      %v1364 = vunpack.c.h.b16 %v1272
      %v1365 = vunpack.c.h.b16 %v1328
      %v1366 = vunpack.c.l.b16 %v1273
      %v1367 = vunpack.c.l.b16 %v1329
      %v1368 = vunpack.c.h.b16 %v1273
      %v1369 = vunpack.c.h.b16 %v1329
      %v1370 = vpack.c.b16 %v1339, %v1338
      %v1371 = vpack.c.b16 %v1341, %v1340
      %v1372 = vpack.c.b16 %v1343, %v1342
      %v1373 = vpack.c.b16 %v1345, %v1344
      %v1374 = vpack.c.b16 %v1347, %v1346
      %v1375 = vpack.c.b16 %v1349, %v1348
      %v1376 = vpack.c.b16 %v1351, %v1350
      %v1377 = vpack.c.b16 %v1353, %v1352
      %v1378 = vpack.c.b16 %v1355, %v1354
      %v1379 = vpack.c.b16 %v1357, %v1356
      %v1380 = vpack.c.b16 %v1359, %v1358
      %v1381 = vpack.c.b16 %v1361, %v1360
      %v1382 = vpack.c.b16 %v1363, %v1362
      %v1383 = vpack.c.b16 %v1365, %v1364
      %v1384 = vpack.c.b16 %v1367, %v1366
      %v1385 = vpack.c.b16 %v1369, %v1368
      %1386 = vrot.lane.b32.xlu0 %v1370, 112
      %v1387 = vpop.permute.xlu0 %1386
      %1388 = vrot.lane.b32.xlu0 %v1371, 112
      %v1389 = vpop.permute.xlu0 %1388
      %1390 = vrot.lane.b32.xlu0 %v1372, 112
      %v1391 = vpop.permute.xlu0 %1390
      %1392 = vrot.lane.b32.xlu0 %v1373, 112
      %v1393 = vpop.permute.xlu0 %1392
      %1394 = vrot.lane.b32.xlu0 %v1374, 112
      %v1395 = vpop.permute.xlu0 %1394
      %1396 = vrot.lane.b32.xlu0 %v1375, 112
      %v1397 = vpop.permute.xlu0 %1396
      %1398 = vrot.lane.b32.xlu0 %v1376, 112
      %v1399 = vpop.permute.xlu0 %1398
      %1400 = vrot.lane.b32.xlu0 %v1377, 112
      %v1401 = vpop.permute.xlu0 %1400
      %1402 = vrot.lane.b32.xlu0 %v1378, 112
      %v1403 = vpop.permute.xlu0 %1402
      %1404 = vrot.lane.b32.xlu0 %v1379, 112
      %v1405 = vpop.permute.xlu0 %1404
      %1406 = vrot.lane.b32.xlu0 %v1380, 112
      %v1407 = vpop.permute.xlu0 %1406
      %1408 = vrot.lane.b32.xlu0 %v1381, 112
      %v1409 = vpop.permute.xlu0 %1408
      %1410 = vrot.lane.b32.xlu0 %v1382, 112
      %v1411 = vpop.permute.xlu0 %1410
      %1412 = vrot.lane.b32.xlu0 %v1383, 112
      %v1413 = vpop.permute.xlu0 %1412
      %1414 = vrot.lane.b32.xlu0 %v1384, 112
      %v1415 = vpop.permute.xlu0 %1414
      %1416 = vrot.lane.b32.xlu0 %v1385, 112
      %v1417 = vpop.permute.xlu0 %1416
      %v1418 = vrot.slane %v1387, 4
      %v1419 = vrot.slane %v1389, 4
      %v1420 = vrot.slane %v1391, 4
      %v1421 = vrot.slane %v1393, 4
      %v1422 = vrot.slane %v1395, 4
      %v1423 = vrot.slane %v1397, 4
      %v1424 = vrot.slane %v1399, 4
      %v1425 = vrot.slane %v1401, 4
      %v1426 = vrot.slane %v1403, 4
      %v1427 = vrot.slane %v1405, 4
      %v1428 = vrot.slane %v1407, 4
      %v1429 = vrot.slane %v1409, 4
      %v1430 = vrot.slane %v1411, 4
      %v1431 = vrot.slane %v1413, 4
      %v1432 = vrot.slane %v1415, 4
      %v1433 = vrot.slane %v1417, 4
      %vm1434 = vcmask 916480
      %v1435 = vsel %vm1434, %v1387, %v1418
      %v1436 = vsel %vm1434, %v1389, %v1419
      %v1437 = vsel %vm1434, %v1391, %v1420
      %v1438 = vsel %vm1434, %v1393, %v1421
      %v1439 = vsel %vm1434, %v1395, %v1422
      %v1440 = vsel %vm1434, %v1397, %v1423
      %v1441 = vsel %vm1434, %v1399, %v1424
      %v1442 = vsel %vm1434, %v1401, %v1425
      %v1443 = vsel %vm1434, %v1403, %v1426
      %v1444 = vsel %vm1434, %v1405, %v1427
      %v1445 = vsel %vm1434, %v1407, %v1428
      %v1446 = vsel %vm1434, %v1409, %v1429
      %v1447 = vsel %vm1434, %v1411, %v1430
      %v1448 = vsel %vm1434, %v1413, %v1431
      %v1449 = vsel %vm1434, %v1415, %v1432
      %v1450 = vsel %vm1434, %v1417, %v1433
      %vm1467 = vcmask 523268
      %vm1468 = vmor %vm1467, %vm900
      %1469 = vst.msk [vmem:[%s791] sm:$0xff] %vm1468, %v1435
      %1470 = vst.msk [vmem:[%s791 + $0x8] sm:$0xff] %vm1468, %v1436
      %1471 = vst.msk [vmem:[%s791 + $0x10] sm:$0xff] %vm1468, %v1437
      %1472 = vst.msk [vmem:[%s791 + $0x18] sm:$0xff] %vm1468, %v1438
      %1473 = vst.msk [vmem:[%s791 + $0x20] sm:$0xff] %vm1468, %v1439
      %1474 = vst.msk [vmem:[%s791 + $0x28] sm:$0xff] %vm1468, %v1440
      %1475 = vst.msk [vmem:[%s791 + $0x30] sm:$0xff] %vm1468, %v1441
      %1476 = vst.msk [vmem:[%s791 + $0x38] sm:$0xff] %vm1468, %v1442
      %1477 = vst.msk [vmem:[%s791 + $0x40] sm:$0xff] %vm1468, %v1443
      %1478 = vst.msk [vmem:[%s791 + $0x48] sm:$0xff] %vm1468, %v1444
      %1479 = vst.msk [vmem:[%s791 + $0x50] sm:$0xff] %vm1468, %v1445
      %1480 = vst.msk [vmem:[%s791 + $0x58] sm:$0xff] %vm1468, %v1446
      %1481 = vst.msk [vmem:[%s791 + $0x60] sm:$0xff] %vm1468, %v1447
      %1482 = vst.msk [vmem:[%s791 + $0x68] sm:$0xff] %vm1468, %v1448
      %1483 = vst.msk [vmem:[%s791 + $0x70] sm:$0xff] %vm1468, %v1449
      %1484 = vst.msk [vmem:[%s791 + $0x78] sm:$0xff] %vm1468, %v1450
      %v1485 = vld [vmem:[%s6] sm:$0x1]
      %v1486 = vld [vmem:[%s7] sm:$0x1]
      %v1487 = vld [vmem:[#allocation2 + $0x10] sm:$0xc0]
      %v1488 = vld [vmem:[#allocation2 + $0x18] sm:$0xff]
      %v1489 = vld [vmem:[#allocation2 + $0x20] sm:$0xff]
      %v1490 = vld [vmem:[#allocation2 + $0x28] sm:$0xff]
      %v1491 = vld [vmem:[#allocation2 + $0x30] sm:$0xff]
      %v1492 = vld [vmem:[#allocation2 + $0x38] sm:$0xff]
      %v1493 = vld [vmem:[#allocation2 + $0x40] sm:$0xff]
      %v1494 = vld [vmem:[#allocation2 + $0x48] sm:$0xff]
      %v1495 = vld [vmem:[#allocation2 + $0x50] sm:$0x7f]
      %v1496 = vld [vmem:[%s5] sm:$0xf]
      %v1497 = vld [vmem:[#allocation2 + $0x10] sm:$0x80]
      %s1498 = scalar_lea.vmem %s5, 4
      %v1499 = vld [vmem:[%s1498] sm:$0xf]
      %vm1509 = vcmask 1040384
      %v1510 = vrot.slane %v1497, 7
      %v1511 = vrot.slane %v1488, 7
      %v1512 = vsel %vm1509, %v1510, %v1511
      %v1513 = vrot.slane %v1489, 7
      %v1514 = vsel %vm1509, %v1511, %v1513
      %v1515 = vrot.slane %v1490, 7
      %v1516 = vsel %vm1509, %v1513, %v1515
      %v1517 = vrot.slane %v1491, 7
      %v1518 = vsel %vm1509, %v1515, %v1517
      %v1519 = vrot.slane %v1492, 7
      %v1520 = vsel %vm1509, %v1517, %v1519
      %v1521 = vrot.slane %v1493, 7
      %v1522 = vsel %vm1509, %v1519, %v1521
      %v1523 = vrot.slane %v1494, 7
      %v1524 = vsel %vm1509, %v1521, %v1523
      %v1525 = vrot.slane %v1495, 7
      %v1526 = vsel %vm1509, %v1523, %v1525
      %v1528 = vsel %vm793, %v1512, 0
      %v1531 = vsel %vm793, %v1514, 0
      %v1534 = vsel %vm793, %v1516, 0
      %v1537 = vsel %vm793, %v1518, 0
      %v1540 = vsel %vm793, %v1520, 0
      %v1543 = vsel %vm793, %v1522, 0
      %v1546 = vsel %vm793, %v1524, 0
      %v1549 = vsel %vm793, %v1526, 0
      %v1552 = vsel %vm900, %v1499, 0
      %1554 = vmatprep.subr.bf16.mxu0 0
      %1555 = vmatpush1.bf16.msra.mxu0 %v1552
      %1556 = vmatprep.subr.bf16.mxu0 0
      %1557 = vmatpush1.bf16.msra.mxu0 0
      %1558 = vmatprep.subr.bf16.mxu0 0
      %1559 = vmatpush1.bf16.msra.mxu0 0
      %1560 = vmatprep.subr.bf16.mxu0 0
      %1561 = vmatpush1.bf16.msra.mxu0 0
      %1562 = vmatprep.subr.bf16.mxu0 0
      %1563 = vmatpush1.bf16.msra.mxu0 0
      %1564 = vmatprep.subr.bf16.mxu0 0
      %1565 = vmatpush1.bf16.msra.mxu0 0
      %1566 = vmatprep.subr.bf16.mxu0 0
      %1567 = vmatpush1.bf16.msra.mxu0 0
      %1568 = vmatprep.subr.bf16.mxu0 0
      %1569 = vmatpush1.bf16.msra.mxu0 0
      %1570 = vmatprep.subr.bf16.mxu0 0
      %1571 = vmatpush1.bf16.msra.mxu0 0
      %1572 = vmatprep.subr.bf16.mxu0 0
      %1573 = vmatpush1.bf16.msra.mxu0 0
      %1574 = vmatprep.subr.bf16.mxu0 0
      %1575 = vmatpush1.bf16.msra.mxu0 0
      %1576 = vmatprep.subr.bf16.mxu0 0
      %1577 = vmatpush1.bf16.msra.mxu0 0
      %1578 = vmatprep.subr.bf16.mxu0 0
      %1579 = vmatpush1.bf16.msra.mxu0 0
      %1580 = vmatprep.subr.bf16.mxu0 0
      %1581 = vmatpush1.bf16.msra.mxu0 0
      %1582 = vmatprep.subr.bf16.mxu0 0
      %1583 = vmatpush1.bf16.msra.mxu0 0
      %1584 = vmatprep.subr.bf16.mxu0 0
      %1585 = vmatpush1.bf16.msra.mxu0 0
      %1586 = vmatprep.mubr.bf16.mxu0 0
      %1587 = vmatmul.mubr.bf16.gmra.mrb[0].mxu0 %v1528
      %v1588 = vpop.f32.mrb[0].mxu0
      %v1589 = vadd.f32 0.0, %v1588
      %v1590 = vpop.f32.mrb[0].mxu0
      %v1591 = vpop.f32.mrb[0].mxu0
      %v1592 = vadd.f32 0.0, %v1591
      %v1593 = vpop.f32.mrb[0].mxu0
      %1594 = vmatprep.mubr.bf16.mxu0 0
      %1595 = vmatmul.mubr.bf16.gmra.mrb[0].mxu0 %v1531
      %v1596 = vpop.f32.mrb[0].mxu0
      %v1597 = vadd.f32 0.0, %v1596
      %v1598 = vpop.f32.mrb[0].mxu0
      %v1599 = vpop.f32.mrb[0].mxu0
      %v1600 = vadd.f32 0.0, %v1599
      %v1601 = vpop.f32.mrb[0].mxu0
      %1602 = vmatprep.mubr.bf16.mxu0 0
      %1603 = vmatmul.mubr.bf16.gmra.mrb[0].mxu0 %v1534
      %v1604 = vpop.f32.mrb[0].mxu0
      %v1605 = vadd.f32 0.0, %v1604
      %v1606 = vpop.f32.mrb[0].mxu0
      %v1607 = vpop.f32.mrb[0].mxu0
      %v1608 = vadd.f32 0.0, %v1607
      %v1609 = vpop.f32.mrb[0].mxu0
      %1610 = vmatprep.mubr.bf16.mxu0 0
      %1611 = vmatmul.mubr.bf16.gmra.mrb[0].mxu0 %v1537
      %v1612 = vpop.f32.mrb[0].mxu0
      %v1613 = vadd.f32 0.0, %v1612
      %v1614 = vpop.f32.mrb[0].mxu0
      %v1615 = vpop.f32.mrb[0].mxu0
      %v1616 = vadd.f32 0.0, %v1615
      %v1617 = vpop.f32.mrb[0].mxu0
      %1618 = vmatprep.mubr.bf16.mxu0 0
      %1619 = vmatmul.mubr.bf16.gmra.mrb[0].mxu0 %v1540
      %v1620 = vpop.f32.mrb[0].mxu0
      %v1621 = vadd.f32 0.0, %v1620
      %v1622 = vpop.f32.mrb[0].mxu0
      %v1623 = vpop.f32.mrb[0].mxu0
      %v1624 = vadd.f32 0.0, %v1623
      %v1625 = vpop.f32.mrb[0].mxu0
      %1626 = vmatprep.mubr.bf16.mxu0 0
      %1627 = vmatmul.mubr.bf16.gmra.mrb[0].mxu0 %v1543
      %v1628 = vpop.f32.mrb[0].mxu0
      %v1629 = vadd.f32 0.0, %v1628
      %v1630 = vpop.f32.mrb[0].mxu0
      %v1631 = vpop.f32.mrb[0].mxu0
      %v1632 = vadd.f32 0.0, %v1631
      %v1633 = vpop.f32.mrb[0].mxu0
      %1634 = vmatprep.mubr.bf16.mxu0 0
      %1635 = vmatmul.mubr.bf16.gmra.mrb[0].mxu0 %v1546
      %v1636 = vpop.f32.mrb[0].mxu0
      %v1637 = vadd.f32 0.0, %v1636
      %v1638 = vpop.f32.mrb[0].mxu0
      %v1639 = vpop.f32.mrb[0].mxu0
      %v1640 = vadd.f32 0.0, %v1639
      %v1641 = vpop.f32.mrb[0].mxu0
      %1642 = vmatprep.mubr.bf16.mxu0 0
      %1643 = vmatmul.mubr.bf16.gmra.mrb[0].mxu0 %v1549
      %v1644 = vpop.f32.mrb[0].mxu0
      %v1645 = vadd.f32 0.0, %v1644
      %v1646 = vpop.f32.mrb[0].mxu0
      %v1647 = vpop.f32.mrb[0].mxu0
      %v1648 = vadd.f32 0.0, %v1647
      %v1649 = vpop.f32.mrb[0].mxu0
      %1650 = vdwg.mxu0
      %vm1651 = vsmask.f32 1280
      %v1653 = vshrl.u32 %v1487, 16
      %v1655 = vrot.slane %v1653, 6
      %v1656 = vshll.u32 %v1487, 16
      %v1658 = vrot.slane %v1656, 7
      %v1659 = vor.u32 %v1655, %v1658
      %v1661 = vshrl.u32 %v1488, 16
      %v1663 = vrot.slane %v1661, 6
      %v1664 = vshll.u32 %v1488, 16
      %v1666 = vrot.slane %v1664, 7
      %v1667 = vor.u32 %v1663, %v1666
      %v1668 = vsel %vm1651, %v1659, %v1667
      %v1670 = vshrl.u32 %v1489, 16
      %v1672 = vrot.slane %v1670, 6
      %v1673 = vshll.u32 %v1489, 16
      %v1675 = vrot.slane %v1673, 7
      %v1676 = vor.u32 %v1672, %v1675
      %v1677 = vsel %vm1651, %v1667, %v1676
      %v1679 = vshrl.u32 %v1490, 16
      %v1681 = vrot.slane %v1679, 6
      %v1682 = vshll.u32 %v1490, 16
      %v1684 = vrot.slane %v1682, 7
      %v1685 = vor.u32 %v1681, %v1684
      %v1686 = vsel %vm1651, %v1676, %v1685
      %v1688 = vshrl.u32 %v1491, 16
      %v1690 = vrot.slane %v1688, 6
      %v1691 = vshll.u32 %v1491, 16
      %v1693 = vrot.slane %v1691, 7
      %v1694 = vor.u32 %v1690, %v1693
      %v1695 = vsel %vm1651, %v1685, %v1694
      %v1697 = vshrl.u32 %v1492, 16
      %v1699 = vrot.slane %v1697, 6
      %v1700 = vshll.u32 %v1492, 16
      %v1702 = vrot.slane %v1700, 7
      %v1703 = vor.u32 %v1699, %v1702
      %v1704 = vsel %vm1651, %v1694, %v1703
      %v1706 = vshrl.u32 %v1493, 16
      %v1708 = vrot.slane %v1706, 6
      %v1709 = vshll.u32 %v1493, 16
      %v1711 = vrot.slane %v1709, 7
      %v1712 = vor.u32 %v1708, %v1711
      %v1713 = vsel %vm1651, %v1703, %v1712
      %v1715 = vshrl.u32 %v1494, 16
      %v1717 = vrot.slane %v1715, 6
      %v1718 = vshll.u32 %v1494, 16
      %v1720 = vrot.slane %v1718, 7
      %v1721 = vor.u32 %v1717, %v1720
      %v1722 = vsel %vm1651, %v1712, %v1721
      %v1724 = vshrl.u32 %v1495, 16
      %v1726 = vrot.slane %v1724, 6
      %v1727 = vshll.u32 %v1495, 16
      %v1729 = vrot.slane %v1727, 7
      %v1730 = vor.u32 %v1726, %v1729
      %v1731 = vsel %vm1651, %v1721, %v1730
      %v1733 = vsel %vm793, %v1668, 0
      %v1736 = vsel %vm793, %v1677, 0
      %v1739 = vsel %vm793, %v1686, 0
      %v1742 = vsel %vm793, %v1695, 0
      %v1745 = vsel %vm793, %v1704, 0
      %v1748 = vsel %vm793, %v1713, 0
      %v1751 = vsel %vm793, %v1722, 0
      %v1754 = vsel %vm793, %v1731, 0
      %v1757 = vsel %vm900, %v1496, 0
      %1759 = vmatprep.subr.bf16.mxu0 0
      %1760 = vmatpush1.bf16.msra.mxu0 %v1757
      %1761 = vmatprep.subr.bf16.mxu0 0
      %1762 = vmatpush1.bf16.msra.mxu0 0
      %1763 = vmatprep.subr.bf16.mxu0 0
      %1764 = vmatpush1.bf16.msra.mxu0 0
      %1765 = vmatprep.subr.bf16.mxu0 0
      %1766 = vmatpush1.bf16.msra.mxu0 0
      %1767 = vmatprep.subr.bf16.mxu0 0
      %1768 = vmatpush1.bf16.msra.mxu0 0
      %1769 = vmatprep.subr.bf16.mxu0 0
      %1770 = vmatpush1.bf16.msra.mxu0 0
      %1771 = vmatprep.subr.bf16.mxu0 0
      %1772 = vmatpush1.bf16.msra.mxu0 0
      %1773 = vmatprep.subr.bf16.mxu0 0
      %1774 = vmatpush1.bf16.msra.mxu0 0
      %1775 = vmatprep.subr.bf16.mxu0 0
      %1776 = vmatpush1.bf16.msra.mxu0 0
      %1777 = vmatprep.subr.bf16.mxu0 0
      %1778 = vmatpush1.bf16.msra.mxu0 0
      %1779 = vmatprep.subr.bf16.mxu0 0
      %1780 = vmatpush1.bf16.msra.mxu0 0
      %1781 = vmatprep.subr.bf16.mxu0 0
      %1782 = vmatpush1.bf16.msra.mxu0 0
      %1783 = vmatprep.subr.bf16.mxu0 0
      %1784 = vmatpush1.bf16.msra.mxu0 0
      %1785 = vmatprep.subr.bf16.mxu0 0
      %1786 = vmatpush1.bf16.msra.mxu0 0
      %1787 = vmatprep.subr.bf16.mxu0 0
      %1788 = vmatpush1.bf16.msra.mxu0 0
      %1789 = vmatprep.subr.bf16.mxu0 0
      %1790 = vmatpush1.bf16.msra.mxu0 0
      %1791 = vmatprep.mubr.bf16.mxu0 0
      %1792 = vmatmul.mubr.bf16.gmra.mrb[0].mxu0 %v1733
      %v1793 = vpop.f32.mrb[0].mxu0
      %v1794 = vadd.f32 %v1589, %v1793
      %v1795 = vpop.f32.mrb[0].mxu0
      %v1796 = vpop.f32.mrb[0].mxu0
      %v1797 = vadd.f32 %v1592, %v1796
      %v1798 = vpop.f32.mrb[0].mxu0
      %1799 = vmatprep.mubr.bf16.mxu0 0
      %1800 = vmatmul.mubr.bf16.gmra.mrb[0].mxu0 %v1736
      %v1801 = vpop.f32.mrb[0].mxu0
      %v1802 = vadd.f32 %v1597, %v1801
      %v1803 = vpop.f32.mrb[0].mxu0
      %v1804 = vpop.f32.mrb[0].mxu0
      %v1805 = vadd.f32 %v1600, %v1804
      %v1806 = vpop.f32.mrb[0].mxu0
      %1807 = vmatprep.mubr.bf16.mxu0 0
      %1808 = vmatmul.mubr.bf16.gmra.mrb[0].mxu0 %v1739
      %v1809 = vpop.f32.mrb[0].mxu0
      %v1810 = vadd.f32 %v1605, %v1809
      %v1811 = vpop.f32.mrb[0].mxu0
      %v1812 = vpop.f32.mrb[0].mxu0
      %v1813 = vadd.f32 %v1608, %v1812
      %v1814 = vpop.f32.mrb[0].mxu0
      %1815 = vmatprep.mubr.bf16.mxu0 0
      %1816 = vmatmul.mubr.bf16.gmra.mrb[0].mxu0 %v1742
      %v1817 = vpop.f32.mrb[0].mxu0
      %v1818 = vadd.f32 %v1613, %v1817
      %v1819 = vpop.f32.mrb[0].mxu0
      %v1820 = vpop.f32.mrb[0].mxu0
      %v1821 = vadd.f32 %v1616, %v1820
      %v1822 = vpop.f32.mrb[0].mxu0
      %1823 = vmatprep.mubr.bf16.mxu0 0
      %1824 = vmatmul.mubr.bf16.gmra.mrb[0].mxu0 %v1745
      %v1825 = vpop.f32.mrb[0].mxu0
      %v1826 = vadd.f32 %v1621, %v1825
      %v1827 = vpop.f32.mrb[0].mxu0
      %v1828 = vpop.f32.mrb[0].mxu0
      %v1829 = vadd.f32 %v1624, %v1828
      %v1830 = vpop.f32.mrb[0].mxu0
      %1831 = vmatprep.mubr.bf16.mxu0 0
      %1832 = vmatmul.mubr.bf16.gmra.mrb[0].mxu0 %v1748
      %v1833 = vpop.f32.mrb[0].mxu0
      %v1834 = vadd.f32 %v1629, %v1833
      %v1835 = vpop.f32.mrb[0].mxu0
      %v1836 = vpop.f32.mrb[0].mxu0
      %v1837 = vadd.f32 %v1632, %v1836
      %v1838 = vpop.f32.mrb[0].mxu0
      %1839 = vmatprep.mubr.bf16.mxu0 0
      %1840 = vmatmul.mubr.bf16.gmra.mrb[0].mxu0 %v1751
      %v1841 = vpop.f32.mrb[0].mxu0
      %v1842 = vadd.f32 %v1637, %v1841
      %v1843 = vpop.f32.mrb[0].mxu0
      %v1844 = vpop.f32.mrb[0].mxu0
      %v1845 = vadd.f32 %v1640, %v1844
      %v1846 = vpop.f32.mrb[0].mxu0
      %1847 = vmatprep.mubr.bf16.mxu0 0
      %1848 = vmatmul.mubr.bf16.gmra.mrb[0].mxu0 %v1754
      %v1849 = vpop.f32.mrb[0].mxu0
      %v1850 = vadd.f32 %v1645, %v1849
      %v1851 = vpop.f32.mrb[0].mxu0
      %v1852 = vpop.f32.mrb[0].mxu0
      %v1853 = vadd.f32 %v1648, %v1852
      %v1854 = vpop.f32.mrb[0].mxu0
      %1855 = vdwg.mxu0
      %v1856 = vld [vmem:[#allocation2 + $0x50] sm:$0xff]
      %s1857 = scalar_lea.vmem %s5, 8
      %v1858 = vld [vmem:[%s1857] sm:$0xf]
      %vm1859 = vsmask.f32 256
      %v1861 = vshrl.u32 %v1497, 16
      %v1863 = vrot.slane %v1861, 7
      %v1864 = vrot.slane %v1661, 7
      %v1865 = vor.u32 %v1864, %v1664
      %v1866 = vsel %vm1859, %v1863, %v1865
      %v1867 = vrot.slane %v1670, 7
      %v1868 = vor.u32 %v1867, %v1673
      %v1869 = vsel %vm1859, %v1864, %v1868
      %v1870 = vrot.slane %v1679, 7
      %v1871 = vor.u32 %v1870, %v1682
      %v1872 = vsel %vm1859, %v1867, %v1871
      %v1873 = vrot.slane %v1688, 7
      %v1874 = vor.u32 %v1873, %v1691
      %v1875 = vsel %vm1859, %v1870, %v1874
      %v1876 = vrot.slane %v1697, 7
      %v1877 = vor.u32 %v1876, %v1700
      %v1878 = vsel %vm1859, %v1873, %v1877
      %v1879 = vrot.slane %v1706, 7
      %v1880 = vor.u32 %v1879, %v1709
      %v1881 = vsel %vm1859, %v1876, %v1880
      %v1882 = vrot.slane %v1715, 7
      %v1883 = vor.u32 %v1882, %v1718
      %v1884 = vsel %vm1859, %v1879, %v1883
      %v1886 = vshrl.u32 %v1856, 16
      %v1888 = vrot.slane %v1886, 7
      %v1889 = vshll.u32 %v1856, 16
      %v1891 = vor.u32 %v1888, %v1889
      %v1892 = vsel %vm1859, %v1882, %v1891
      %v1894 = vsel %vm793, %v1866, 0
      %v1897 = vsel %vm793, %v1869, 0
      %v1900 = vsel %vm793, %v1872, 0
      %v1903 = vsel %vm793, %v1875, 0
      %v1906 = vsel %vm793, %v1878, 0
      %v1909 = vsel %vm793, %v1881, 0
      %v1912 = vsel %vm793, %v1884, 0
      %v1915 = vsel %vm793, %v1892, 0
      %v1918 = vsel %vm900, %v1858, 0
      %1920 = vmatprep.subr.bf16.mxu0 0
      %1921 = vmatpush1.bf16.msra.mxu0 %v1918
      %1922 = vmatprep.subr.bf16.mxu0 0
      %1923 = vmatpush1.bf16.msra.mxu0 0
      %1924 = vmatprep.subr.bf16.mxu0 0
      %1925 = vmatpush1.bf16.msra.mxu0 0
      %1926 = vmatprep.subr.bf16.mxu0 0
      %1927 = vmatpush1.bf16.msra.mxu0 0
      %1928 = vmatprep.subr.bf16.mxu0 0
      %1929 = vmatpush1.bf16.msra.mxu0 0
      %1930 = vmatprep.subr.bf16.mxu0 0
      %1931 = vmatpush1.bf16.msra.mxu0 0
      %1932 = vmatprep.subr.bf16.mxu0 0
      %1933 = vmatpush1.bf16.msra.mxu0 0
      %1934 = vmatprep.subr.bf16.mxu0 0
      %1935 = vmatpush1.bf16.msra.mxu0 0
      %1936 = vmatprep.subr.bf16.mxu0 0
      %1937 = vmatpush1.bf16.msra.mxu0 0
      %1938 = vmatprep.subr.bf16.mxu0 0
      %1939 = vmatpush1.bf16.msra.mxu0 0
      %1940 = vmatprep.subr.bf16.mxu0 0
      %1941 = vmatpush1.bf16.msra.mxu0 0
      %1942 = vmatprep.subr.bf16.mxu0 0
      %1943 = vmatpush1.bf16.msra.mxu0 0
      %1944 = vmatprep.subr.bf16.mxu0 0
      %1945 = vmatpush1.bf16.msra.mxu0 0
      %1946 = vmatprep.subr.bf16.mxu0 0
      %1947 = vmatpush1.bf16.msra.mxu0 0
      %1948 = vmatprep.subr.bf16.mxu0 0
      %1949 = vmatpush1.bf16.msra.mxu0 0
      %1950 = vmatprep.subr.bf16.mxu0 0
      %1951 = vmatpush1.bf16.msra.mxu0 0
      %1952 = vmatprep.mubr.bf16.mxu0 0
      %1953 = vmatmul.mubr.bf16.gmra.mrb[0].mxu0 %v1894
      %v1954 = vpop.f32.mrb[0].mxu0
      %v1955 = vadd.f32 0.0, %v1954
      %v1956 = vpop.f32.mrb[0].mxu0
      %v1957 = vpop.f32.mrb[0].mxu0
      %v1958 = vadd.f32 0.0, %v1957
      %v1959 = vpop.f32.mrb[0].mxu0
      %1960 = vmatprep.mubr.bf16.mxu0 0
      %1961 = vmatmul.mubr.bf16.gmra.mrb[0].mxu0 %v1897
      %v1962 = vpop.f32.mrb[0].mxu0
      %v1963 = vadd.f32 0.0, %v1962
      %v1964 = vpop.f32.mrb[0].mxu0
      %v1965 = vpop.f32.mrb[0].mxu0
      %v1966 = vadd.f32 0.0, %v1965
      %v1967 = vpop.f32.mrb[0].mxu0
      %1968 = vmatprep.mubr.bf16.mxu0 0
      %1969 = vmatmul.mubr.bf16.gmra.mrb[0].mxu0 %v1900
      %v1970 = vpop.f32.mrb[0].mxu0
      %v1971 = vadd.f32 0.0, %v1970
      %v1972 = vpop.f32.mrb[0].mxu0
      %v1973 = vpop.f32.mrb[0].mxu0
      %v1974 = vadd.f32 0.0, %v1973
      %v1975 = vpop.f32.mrb[0].mxu0
      %1976 = vmatprep.mubr.bf16.mxu0 0
      %1977 = vmatmul.mubr.bf16.gmra.mrb[0].mxu0 %v1903
      %v1978 = vpop.f32.mrb[0].mxu0
      %v1979 = vadd.f32 0.0, %v1978
      %v1980 = vpop.f32.mrb[0].mxu0
      %v1981 = vpop.f32.mrb[0].mxu0
      %v1982 = vadd.f32 0.0, %v1981
      %v1983 = vpop.f32.mrb[0].mxu0
      %1984 = vmatprep.mubr.bf16.mxu0 0
      %1985 = vmatmul.mubr.bf16.gmra.mrb[0].mxu0 %v1906
      %v1986 = vpop.f32.mrb[0].mxu0
      %v1987 = vadd.f32 0.0, %v1986
      %v1988 = vpop.f32.mrb[0].mxu0
      %v1989 = vpop.f32.mrb[0].mxu0
      %v1990 = vadd.f32 0.0, %v1989
      %v1991 = vpop.f32.mrb[0].mxu0
      %1992 = vmatprep.mubr.bf16.mxu0 0
      %1993 = vmatmul.mubr.bf16.gmra.mrb[0].mxu0 %v1909
      %v1994 = vpop.f32.mrb[0].mxu0
      %v1995 = vadd.f32 0.0, %v1994
      %v1996 = vpop.f32.mrb[0].mxu0
      %v1997 = vpop.f32.mrb[0].mxu0
      %v1998 = vadd.f32 0.0, %v1997
      %v1999 = vpop.f32.mrb[0].mxu0
      %2000 = vmatprep.mubr.bf16.mxu0 0
      %2001 = vmatmul.mubr.bf16.gmra.mrb[0].mxu0 %v1912
      %v2002 = vpop.f32.mrb[0].mxu0
      %v2003 = vadd.f32 0.0, %v2002
      %v2004 = vpop.f32.mrb[0].mxu0
      %v2005 = vpop.f32.mrb[0].mxu0
      %v2006 = vadd.f32 0.0, %v2005
      %v2007 = vpop.f32.mrb[0].mxu0
      %2008 = vmatprep.mubr.bf16.mxu0 0
      %2009 = vmatmul.mubr.bf16.gmra.mrb[0].mxu0 %v1915
      %v2010 = vpop.f32.mrb[0].mxu0
      %v2011 = vadd.f32 0.0, %v2010
      %v2012 = vpop.f32.mrb[0].mxu0
      %v2013 = vpop.f32.mrb[0].mxu0
      %v2014 = vadd.f32 0.0, %v2013
      %v2015 = vpop.f32.mrb[0].mxu0
      %2016 = vdwg.mxu0
      %v2017 = vadd.f32 %v1794, %v1955
      %v2018 = vadd.f32 %v1797, %v1958
      %v2019 = vadd.f32 %v1802, %v1963
      %v2020 = vadd.f32 %v1805, %v1966
      %v2021 = vadd.f32 %v1810, %v1971
      %v2022 = vadd.f32 %v1813, %v1974
      %v2023 = vadd.f32 %v1818, %v1979
      %v2024 = vadd.f32 %v1821, %v1982
      %v2025 = vadd.f32 %v1826, %v1987
      %v2026 = vadd.f32 %v1829, %v1990
      %v2027 = vadd.f32 %v1834, %v1995
      %v2028 = vadd.f32 %v1837, %v1998
      %v2029 = vadd.f32 %v1842, %v2003
      %v2030 = vadd.f32 %v1845, %v2006
      %v2031 = vadd.f32 %v1850, %v2011
      %v2032 = vadd.f32 %v1853, %v2014
      %s2033 = scalar_lea.vmem %s5, 12
      %v2034 = vld [vmem:[%s2033] sm:$0xf]
      %v2035 = vsel %vm793, %v1488, 0
      %v2037 = vsel %vm793, %v1489, 0
      %v2039 = vsel %vm793, %v1490, 0
      %v2041 = vsel %vm793, %v1491, 0
      %v2043 = vsel %vm793, %v1492, 0
      %v2045 = vsel %vm793, %v1493, 0
      %v2047 = vsel %vm793, %v1494, 0
      %v2049 = vsel %vm793, %v1856, 0
      %v2052 = vsel %vm900, %v2034, 0
      %2054 = vmatprep.subr.bf16.mxu0 0
      %2055 = vmatpush1.bf16.msra.mxu0 %v2052
      %2056 = vmatprep.subr.bf16.mxu0 0
      %2057 = vmatpush1.bf16.msra.mxu0 0
      %2058 = vmatprep.subr.bf16.mxu0 0
      %2059 = vmatpush1.bf16.msra.mxu0 0
      %2060 = vmatprep.subr.bf16.mxu0 0
      %2061 = vmatpush1.bf16.msra.mxu0 0
      %2062 = vmatprep.subr.bf16.mxu0 0
      %2063 = vmatpush1.bf16.msra.mxu0 0
      %2064 = vmatprep.subr.bf16.mxu0 0
      %2065 = vmatpush1.bf16.msra.mxu0 0
      %2066 = vmatprep.subr.bf16.mxu0 0
      %2067 = vmatpush1.bf16.msra.mxu0 0
      %2068 = vmatprep.subr.bf16.mxu0 0
      %2069 = vmatpush1.bf16.msra.mxu0 0
      %2070 = vmatprep.subr.bf16.mxu0 0
      %2071 = vmatpush1.bf16.msra.mxu0 0
      %2072 = vmatprep.subr.bf16.mxu0 0
      %2073 = vmatpush1.bf16.msra.mxu0 0
      %2074 = vmatprep.subr.bf16.mxu0 0
      %2075 = vmatpush1.bf16.msra.mxu0 0
      %2076 = vmatprep.subr.bf16.mxu0 0
      %2077 = vmatpush1.bf16.msra.mxu0 0
      %2078 = vmatprep.subr.bf16.mxu0 0
      %2079 = vmatpush1.bf16.msra.mxu0 0
      %2080 = vmatprep.subr.bf16.mxu0 0
      %2081 = vmatpush1.bf16.msra.mxu0 0
      %2082 = vmatprep.subr.bf16.mxu0 0
      %2083 = vmatpush1.bf16.msra.mxu0 0
      %2084 = vmatprep.subr.bf16.mxu0 0
      %2085 = vmatpush1.bf16.msra.mxu0 0
      %2086 = vmatprep.mubr.bf16.mxu0 0
      %2087 = vmatmul.mubr.bf16.gmra.mrb[0].mxu0 %v2035
      %v2088 = vpop.f32.mrb[0].mxu0
      %v2089 = vadd.f32 0.0, %v2088
      %v2090 = vpop.f32.mrb[0].mxu0
      %v2091 = vpop.f32.mrb[0].mxu0
      %v2092 = vadd.f32 0.0, %v2091
      %v2093 = vpop.f32.mrb[0].mxu0
      %2094 = vmatprep.mubr.bf16.mxu0 0
      %2095 = vmatmul.mubr.bf16.gmra.mrb[0].mxu0 %v2037
      %v2096 = vpop.f32.mrb[0].mxu0
      %v2097 = vadd.f32 0.0, %v2096
      %v2098 = vpop.f32.mrb[0].mxu0
      %v2099 = vpop.f32.mrb[0].mxu0
      %v2100 = vadd.f32 0.0, %v2099
      %v2101 = vpop.f32.mrb[0].mxu0
      %2102 = vmatprep.mubr.bf16.mxu0 0
      %2103 = vmatmul.mubr.bf16.gmra.mrb[0].mxu0 %v2039
      %v2104 = vpop.f32.mrb[0].mxu0
      %v2105 = vadd.f32 0.0, %v2104
      %v2106 = vpop.f32.mrb[0].mxu0
      %v2107 = vpop.f32.mrb[0].mxu0
      %v2108 = vadd.f32 0.0, %v2107
      %v2109 = vpop.f32.mrb[0].mxu0
      %2110 = vmatprep.mubr.bf16.mxu0 0
      %2111 = vmatmul.mubr.bf16.gmra.mrb[0].mxu0 %v2041
      %v2112 = vpop.f32.mrb[0].mxu0
      %v2113 = vadd.f32 0.0, %v2112
      %v2114 = vpop.f32.mrb[0].mxu0
      %v2115 = vpop.f32.mrb[0].mxu0
      %v2116 = vadd.f32 0.0, %v2115
      %v2117 = vpop.f32.mrb[0].mxu0
      %2118 = vmatprep.mubr.bf16.mxu0 0
      %2119 = vmatmul.mubr.bf16.gmra.mrb[0].mxu0 %v2043
      %v2120 = vpop.f32.mrb[0].mxu0
      %v2121 = vadd.f32 0.0, %v2120
      %v2122 = vpop.f32.mrb[0].mxu0
      %v2123 = vpop.f32.mrb[0].mxu0
      %v2124 = vadd.f32 0.0, %v2123
      %v2125 = vpop.f32.mrb[0].mxu0
      %2126 = vmatprep.mubr.bf16.mxu0 0
      %2127 = vmatmul.mubr.bf16.gmra.mrb[0].mxu0 %v2045
      %v2128 = vpop.f32.mrb[0].mxu0
      %v2129 = vadd.f32 0.0, %v2128
      %v2130 = vpop.f32.mrb[0].mxu0
      %v2131 = vpop.f32.mrb[0].mxu0
      %v2132 = vadd.f32 0.0, %v2131
      %v2133 = vpop.f32.mrb[0].mxu0
      %2134 = vmatprep.mubr.bf16.mxu0 0
      %2135 = vmatmul.mubr.bf16.gmra.mrb[0].mxu0 %v2047
      %v2136 = vpop.f32.mrb[0].mxu0
      %v2137 = vadd.f32 0.0, %v2136
      %v2138 = vpop.f32.mrb[0].mxu0
      %v2139 = vpop.f32.mrb[0].mxu0
      %v2140 = vadd.f32 0.0, %v2139
      %v2141 = vpop.f32.mrb[0].mxu0
      %2142 = vmatprep.mubr.bf16.mxu0 0
      %2143 = vmatmul.mubr.bf16.gmra.mrb[0].mxu0 %v2049
      %v2144 = vpop.f32.mrb[0].mxu0
      %v2145 = vadd.f32 0.0, %v2144
      %v2146 = vpop.f32.mrb[0].mxu0
      %v2147 = vpop.f32.mrb[0].mxu0
      %v2148 = vadd.f32 0.0, %v2147
      %v2149 = vpop.f32.mrb[0].mxu0
      %2150 = vdwg.mxu0
      %v2151 = vadd.f32 %v2017, %v2089
      %v2152 = vadd.f32 %v2018, %v2092
      %v2153 = vadd.f32 %v2019, %v2097
      %v2154 = vadd.f32 %v2020, %v2100
      %v2155 = vadd.f32 %v2021, %v2105
      %v2156 = vadd.f32 %v2022, %v2108
      %v2157 = vadd.f32 %v2023, %v2113
      %v2158 = vadd.f32 %v2024, %v2116
      %v2159 = vadd.f32 %v2025, %v2121
      %v2160 = vadd.f32 %v2026, %v2124
      %v2161 = vadd.f32 %v2027, %v2129
      %v2162 = vadd.f32 %v2028, %v2132
      %v2163 = vadd.f32 %v2029, %v2137
      %v2164 = vadd.f32 %v2030, %v2140
      %v2165 = vadd.f32 %v2031, %v2145
      %v2166 = vadd.f32 %v2032, %v2148
      %v2167 = vld [vmem:[#allocation2 + $0x18] sm:$0xff]
      %v2168 = vld [vmem:[#allocation2 + $0x20] sm:$0xff]
      %v2169 = vld [vmem:[#allocation2 + $0x28] sm:$0xff]
      %v2170 = vld [vmem:[#allocation2 + $0x30] sm:$0xff]
      %v2171 = vld [vmem:[#allocation2 + $0x38] sm:$0xff]
      %v2172 = vld [vmem:[#allocation2 + $0x40] sm:$0xff]
      %v2173 = vld [vmem:[#allocation2 + $0x48] sm:$0xff]
      %v2174 = vld [vmem:[#allocation2 + $0x50] sm:$0xff]
      %v2175 = vld [vmem:[#allocation2 + $0x58] sm:$0x1]
      %s2176 = scalar_lea.vmem %s5, 16
      %v2177 = vld [vmem:[%s2176] sm:$0xf]
      %vm2178 = vsmask.f32 7424
      %v2180 = vshrl.u32 %v2167, 16
      %v2182 = vshll.u32 %v2167, 16
      %v2184 = vrot.slane %v2182, 1
      %v2185 = vor.u32 %v2180, %v2184
      %v2187 = vshll.u32 %v2168, 16
      %v2189 = vrot.slane %v2187, 1
      %v2190 = vsel %vm2178, %v2185, %v2189
      %v2191 = vshrl.u32 %v2168, 16
      %v2193 = vor.u32 %v2191, %v2189
      %v2195 = vshll.u32 %v2169, 16
      %v2197 = vrot.slane %v2195, 1
      %v2198 = vsel %vm2178, %v2193, %v2197
      %v2199 = vshrl.u32 %v2169, 16
      %v2201 = vor.u32 %v2199, %v2197
      %v2203 = vshll.u32 %v2170, 16
      %v2205 = vrot.slane %v2203, 1
      %v2206 = vsel %vm2178, %v2201, %v2205
      %v2207 = vshrl.u32 %v2170, 16
      %v2209 = vor.u32 %v2207, %v2205
      %v2211 = vshll.u32 %v2171, 16
      %v2213 = vrot.slane %v2211, 1
      %v2214 = vsel %vm2178, %v2209, %v2213
      %v2215 = vshrl.u32 %v2171, 16
      %v2217 = vor.u32 %v2215, %v2213
      %v2219 = vshll.u32 %v2172, 16
      %v2221 = vrot.slane %v2219, 1
      %v2222 = vsel %vm2178, %v2217, %v2221
      %v2223 = vshrl.u32 %v2172, 16
      %v2225 = vor.u32 %v2223, %v2221
      %v2227 = vshll.u32 %v2173, 16
      %v2229 = vrot.slane %v2227, 1
      %v2230 = vsel %vm2178, %v2225, %v2229
      %v2231 = vshrl.u32 %v2173, 16
      %v2233 = vor.u32 %v2231, %v2229
      %v2235 = vshll.u32 %v2174, 16
      %v2237 = vrot.slane %v2235, 1
      %v2238 = vsel %vm2178, %v2233, %v2237
      %v2239 = vshrl.u32 %v2174, 16
      %v2241 = vor.u32 %v2239, %v2237
      %v2243 = vshll.u32 %v2175, 16
      %v2245 = vrot.slane %v2243, 1
      %v2246 = vsel %vm2178, %v2241, %v2245
      %v2248 = vsel %vm793, %v2190, 0
      %v2251 = vsel %vm793, %v2198, 0
      %v2254 = vsel %vm793, %v2206, 0
      %v2257 = vsel %vm793, %v2214, 0
      %v2260 = vsel %vm793, %v2222, 0
      %v2263 = vsel %vm793, %v2230, 0
      %v2266 = vsel %vm793, %v2238, 0
      %v2269 = vsel %vm793, %v2246, 0
      %v2272 = vsel %vm900, %v2177, 0
      %2274 = vmatprep.subr.bf16.mxu0 0
      %2275 = vmatpush1.bf16.msra.mxu0 %v2272
      %2276 = vmatprep.subr.bf16.mxu0 0
      %2277 = vmatpush1.bf16.msra.mxu0 0
      %2278 = vmatprep.subr.bf16.mxu0 0
      %2279 = vmatpush1.bf16.msra.mxu0 0
      %2280 = vmatprep.subr.bf16.mxu0 0
      %2281 = vmatpush1.bf16.msra.mxu0 0
      %2282 = vmatprep.subr.bf16.mxu0 0
      %2283 = vmatpush1.bf16.msra.mxu0 0
      %2284 = vmatprep.subr.bf16.mxu0 0
      %2285 = vmatpush1.bf16.msra.mxu0 0
      %2286 = vmatprep.subr.bf16.mxu0 0
      %2287 = vmatpush1.bf16.msra.mxu0 0
      %2288 = vmatprep.subr.bf16.mxu0 0
      %2289 = vmatpush1.bf16.msra.mxu0 0
      %2290 = vmatprep.subr.bf16.mxu0 0
      %2291 = vmatpush1.bf16.msra.mxu0 0
      %2292 = vmatprep.subr.bf16.mxu0 0
      %2293 = vmatpush1.bf16.msra.mxu0 0
      %2294 = vmatprep.subr.bf16.mxu0 0
      %2295 = vmatpush1.bf16.msra.mxu0 0
      %2296 = vmatprep.subr.bf16.mxu0 0
      %2297 = vmatpush1.bf16.msra.mxu0 0
      %2298 = vmatprep.subr.bf16.mxu0 0
      %2299 = vmatpush1.bf16.msra.mxu0 0
      %2300 = vmatprep.subr.bf16.mxu0 0
      %2301 = vmatpush1.bf16.msra.mxu0 0
      %2302 = vmatprep.subr.bf16.mxu0 0
      %2303 = vmatpush1.bf16.msra.mxu0 0
      %2304 = vmatprep.subr.bf16.mxu0 0
      %2305 = vmatpush1.bf16.msra.mxu0 0
      %2306 = vmatprep.mubr.bf16.mxu0 0
      %2307 = vmatmul.mubr.bf16.gmra.mrb[0].mxu0 %v2248
      %v2308 = vpop.f32.mrb[0].mxu0
      %v2309 = vadd.f32 0.0, %v2308
      %v2310 = vpop.f32.mrb[0].mxu0
      %v2311 = vpop.f32.mrb[0].mxu0
      %v2312 = vadd.f32 0.0, %v2311
      %v2313 = vpop.f32.mrb[0].mxu0
      %2314 = vmatprep.mubr.bf16.mxu0 0
      %2315 = vmatmul.mubr.bf16.gmra.mrb[0].mxu0 %v2251
      %v2316 = vpop.f32.mrb[0].mxu0
      %v2317 = vadd.f32 0.0, %v2316
      %v2318 = vpop.f32.mrb[0].mxu0
      %v2319 = vpop.f32.mrb[0].mxu0
      %v2320 = vadd.f32 0.0, %v2319
      %v2321 = vpop.f32.mrb[0].mxu0
      %2322 = vmatprep.mubr.bf16.mxu0 0
      %2323 = vmatmul.mubr.bf16.gmra.mrb[0].mxu0 %v2254
      %v2324 = vpop.f32.mrb[0].mxu0
      %v2325 = vadd.f32 0.0, %v2324
      %v2326 = vpop.f32.mrb[0].mxu0
      %v2327 = vpop.f32.mrb[0].mxu0
      %v2328 = vadd.f32 0.0, %v2327
      %v2329 = vpop.f32.mrb[0].mxu0
      %2330 = vmatprep.mubr.bf16.mxu0 0
      %2331 = vmatmul.mubr.bf16.gmra.mrb[0].mxu0 %v2257
      %v2332 = vpop.f32.mrb[0].mxu0
      %v2333 = vadd.f32 0.0, %v2332
      %v2334 = vpop.f32.mrb[0].mxu0
      %v2335 = vpop.f32.mrb[0].mxu0
      %v2336 = vadd.f32 0.0, %v2335
      %v2337 = vpop.f32.mrb[0].mxu0
      %2338 = vmatprep.mubr.bf16.mxu0 0
      %2339 = vmatmul.mubr.bf16.gmra.mrb[0].mxu0 %v2260
      %v2340 = vpop.f32.mrb[0].mxu0
      %v2341 = vadd.f32 0.0, %v2340
      %v2342 = vpop.f32.mrb[0].mxu0
      %v2343 = vpop.f32.mrb[0].mxu0
      %v2344 = vadd.f32 0.0, %v2343
      %v2345 = vpop.f32.mrb[0].mxu0
      %2346 = vmatprep.mubr.bf16.mxu0 0
      %2347 = vmatmul.mubr.bf16.gmra.mrb[0].mxu0 %v2263
      %v2348 = vpop.f32.mrb[0].mxu0
      %v2349 = vadd.f32 0.0, %v2348
      %v2350 = vpop.f32.mrb[0].mxu0
      %v2351 = vpop.f32.mrb[0].mxu0
      %v2352 = vadd.f32 0.0, %v2351
      %v2353 = vpop.f32.mrb[0].mxu0
      %2354 = vmatprep.mubr.bf16.mxu0 0
      %2355 = vmatmul.mubr.bf16.gmra.mrb[0].mxu0 %v2266
      %v2356 = vpop.f32.mrb[0].mxu0
      %v2357 = vadd.f32 0.0, %v2356
      %v2358 = vpop.f32.mrb[0].mxu0
      %v2359 = vpop.f32.mrb[0].mxu0
      %v2360 = vadd.f32 0.0, %v2359
      %v2361 = vpop.f32.mrb[0].mxu0
      %2362 = vmatprep.mubr.bf16.mxu0 0
      %2363 = vmatmul.mubr.bf16.gmra.mrb[0].mxu0 %v2269
      %v2364 = vpop.f32.mrb[0].mxu0
      %v2365 = vadd.f32 0.0, %v2364
      %v2366 = vpop.f32.mrb[0].mxu0
      %v2367 = vpop.f32.mrb[0].mxu0
      %v2368 = vadd.f32 0.0, %v2367
      %v2369 = vpop.f32.mrb[0].mxu0
      %2370 = vdwg.mxu0
      %v2371 = vadd.f32 %v2151, %v2309
      %v2372 = vadd.f32 %v2152, %v2312
      %v2373 = vadd.f32 %v2153, %v2317
      %v2374 = vadd.f32 %v2154, %v2320
      %v2375 = vadd.f32 %v2155, %v2325
      %v2376 = vadd.f32 %v2156, %v2328
      %v2377 = vadd.f32 %v2157, %v2333
      %v2378 = vadd.f32 %v2158, %v2336
      %v2379 = vadd.f32 %v2159, %v2341
      %v2380 = vadd.f32 %v2160, %v2344
      %v2381 = vadd.f32 %v2161, %v2349
      %v2382 = vadd.f32 %v2162, %v2352
      %v2383 = vadd.f32 %v2163, %v2357
      %v2384 = vadd.f32 %v2164, %v2360
      %v2385 = vadd.f32 %v2165, %v2365
      %v2386 = vadd.f32 %v2166, %v2368
      %v2387 = vld [vmem:[#allocation2 + $0x18] sm:$0xfe]
      %s2388 = scalar_lea.vmem %s5, 20
      %v2389 = vld [vmem:[%s2388] sm:$0xf]
      %vm2399 = vcmask 1046528
      %v2400 = vrot.slane %v2387, 1
      %v2401 = vrot.slane %v2168, 1
      %v2402 = vsel %vm2399, %v2400, %v2401
      %v2403 = vrot.slane %v2169, 1
      %v2404 = vsel %vm2399, %v2401, %v2403
      %v2405 = vrot.slane %v2170, 1
      %v2406 = vsel %vm2399, %v2403, %v2405
      %v2407 = vrot.slane %v2171, 1
      %v2408 = vsel %vm2399, %v2405, %v2407
      %v2409 = vrot.slane %v2172, 1
      %v2410 = vsel %vm2399, %v2407, %v2409
      %v2411 = vrot.slane %v2173, 1
      %v2412 = vsel %vm2399, %v2409, %v2411
      %v2413 = vrot.slane %v2174, 1
      %v2414 = vsel %vm2399, %v2411, %v2413
      %v2415 = vrot.slane %v2175, 1
      %v2416 = vsel %vm2399, %v2413, %v2415
      %v2418 = vsel %vm793, %v2402, 0
      %v2421 = vsel %vm793, %v2404, 0
      %v2424 = vsel %vm793, %v2406, 0
      %v2427 = vsel %vm793, %v2408, 0
      %v2430 = vsel %vm793, %v2410, 0
      %v2433 = vsel %vm793, %v2412, 0
      %v2436 = vsel %vm793, %v2414, 0
      %v2439 = vsel %vm793, %v2416, 0
      %v2442 = vsel %vm900, %v2389, 0
      %2444 = vmatprep.subr.bf16.mxu0 0
      %2445 = vmatpush1.bf16.msra.mxu0 %v2442
      %2446 = vmatprep.subr.bf16.mxu0 0
      %2447 = vmatpush1.bf16.msra.mxu0 0
      %2448 = vmatprep.subr.bf16.mxu0 0
      %2449 = vmatpush1.bf16.msra.mxu0 0
      %2450 = vmatprep.subr.bf16.mxu0 0
      %2451 = vmatpush1.bf16.msra.mxu0 0
      %2452 = vmatprep.subr.bf16.mxu0 0
      %2453 = vmatpush1.bf16.msra.mxu0 0
      %2454 = vmatprep.subr.bf16.mxu0 0
      %2455 = vmatpush1.bf16.msra.mxu0 0
      %2456 = vmatprep.subr.bf16.mxu0 0
      %2457 = vmatpush1.bf16.msra.mxu0 0
      %2458 = vmatprep.subr.bf16.mxu0 0
      %2459 = vmatpush1.bf16.msra.mxu0 0
      %2460 = vmatprep.subr.bf16.mxu0 0
      %2461 = vmatpush1.bf16.msra.mxu0 0
      %2462 = vmatprep.subr.bf16.mxu0 0
      %2463 = vmatpush1.bf16.msra.mxu0 0
      %2464 = vmatprep.subr.bf16.mxu0 0
      %2465 = vmatpush1.bf16.msra.mxu0 0
      %2466 = vmatprep.subr.bf16.mxu0 0
      %2467 = vmatpush1.bf16.msra.mxu0 0
      %2468 = vmatprep.subr.bf16.mxu0 0
      %2469 = vmatpush1.bf16.msra.mxu0 0
      %2470 = vmatprep.subr.bf16.mxu0 0
      %2471 = vmatpush1.bf16.msra.mxu0 0
      %2472 = vmatprep.subr.bf16.mxu0 0
      %2473 = vmatpush1.bf16.msra.mxu0 0
      %2474 = vmatprep.subr.bf16.mxu0 0
      %2475 = vmatpush1.bf16.msra.mxu0 0
      %2476 = vmatprep.mubr.bf16.mxu0 0
      %2477 = vmatmul.mubr.bf16.gmra.mrb[0].mxu0 %v2418
      %v2478 = vpop.f32.mrb[0].mxu0
      %v2479 = vadd.f32 0.0, %v2478
      %v2480 = vpop.f32.mrb[0].mxu0
      %v2481 = vpop.f32.mrb[0].mxu0
      %v2482 = vadd.f32 0.0, %v2481
      %v2483 = vpop.f32.mrb[0].mxu0
      %2484 = vmatprep.mubr.bf16.mxu0 0
      %2485 = vmatmul.mubr.bf16.gmra.mrb[0].mxu0 %v2421
      %v2486 = vpop.f32.mrb[0].mxu0
      %v2487 = vadd.f32 0.0, %v2486
      %v2488 = vpop.f32.mrb[0].mxu0
      %v2489 = vpop.f32.mrb[0].mxu0
      %v2490 = vadd.f32 0.0, %v2489
      %v2491 = vpop.f32.mrb[0].mxu0
      %2492 = vmatprep.mubr.bf16.mxu0 0
      %2493 = vmatmul.mubr.bf16.gmra.mrb[0].mxu0 %v2424
      %v2494 = vpop.f32.mrb[0].mxu0
      %v2495 = vadd.f32 0.0, %v2494
      %v2496 = vpop.f32.mrb[0].mxu0
      %v2497 = vpop.f32.mrb[0].mxu0
      %v2498 = vadd.f32 0.0, %v2497
      %v2499 = vpop.f32.mrb[0].mxu0
      %2500 = vmatprep.mubr.bf16.mxu0 0
      %2501 = vmatmul.mubr.bf16.gmra.mrb[0].mxu0 %v2427
      %v2502 = vpop.f32.mrb[0].mxu0
      %v2503 = vadd.f32 0.0, %v2502
      %v2504 = vpop.f32.mrb[0].mxu0
      %v2505 = vpop.f32.mrb[0].mxu0
      %v2506 = vadd.f32 0.0, %v2505
      %v2507 = vpop.f32.mrb[0].mxu0
      %2508 = vmatprep.mubr.bf16.mxu0 0
      %2509 = vmatmul.mubr.bf16.gmra.mrb[0].mxu0 %v2430
      %v2510 = vpop.f32.mrb[0].mxu0
      %v2511 = vadd.f32 0.0, %v2510
      %v2512 = vpop.f32.mrb[0].mxu0
      %v2513 = vpop.f32.mrb[0].mxu0
      %v2514 = vadd.f32 0.0, %v2513
      %v2515 = vpop.f32.mrb[0].mxu0
      %2516 = vmatprep.mubr.bf16.mxu0 0
      %2517 = vmatmul.mubr.bf16.gmra.mrb[0].mxu0 %v2433
      %v2518 = vpop.f32.mrb[0].mxu0
      %v2519 = vadd.f32 0.0, %v2518
      %v2520 = vpop.f32.mrb[0].mxu0
      %v2521 = vpop.f32.mrb[0].mxu0
      %v2522 = vadd.f32 0.0, %v2521
      %v2523 = vpop.f32.mrb[0].mxu0
      %2524 = vmatprep.mubr.bf16.mxu0 0
      %2525 = vmatmul.mubr.bf16.gmra.mrb[0].mxu0 %v2436
      %v2526 = vpop.f32.mrb[0].mxu0
      %v2527 = vadd.f32 0.0, %v2526
      %v2528 = vpop.f32.mrb[0].mxu0
      %v2529 = vpop.f32.mrb[0].mxu0
      %v2530 = vadd.f32 0.0, %v2529
      %v2531 = vpop.f32.mrb[0].mxu0
      %2532 = vmatprep.mubr.bf16.mxu0 0
      %2533 = vmatmul.mubr.bf16.gmra.mrb[0].mxu0 %v2439
      %v2534 = vpop.f32.mrb[0].mxu0
      %v2535 = vadd.f32 0.0, %v2534
      %v2536 = vpop.f32.mrb[0].mxu0
      %v2537 = vpop.f32.mrb[0].mxu0
      %v2538 = vadd.f32 0.0, %v2537
      %v2539 = vpop.f32.mrb[0].mxu0
      %2540 = vdwg.mxu0
      %v2541 = vadd.f32 %v2371, %v2479
      %v2542 = vadd.f32 %v2372, %v2482
      %v2543 = vadd.f32 %v2373, %v2487
      %v2544 = vadd.f32 %v2374, %v2490
      %v2545 = vadd.f32 %v2375, %v2495
      %v2546 = vadd.f32 %v2376, %v2498
      %v2547 = vadd.f32 %v2377, %v2503
      %v2548 = vadd.f32 %v2378, %v2506
      %v2549 = vadd.f32 %v2379, %v2511
      %v2550 = vadd.f32 %v2380, %v2514
      %v2551 = vadd.f32 %v2381, %v2519
      %v2552 = vadd.f32 %v2382, %v2522
      %v2553 = vadd.f32 %v2383, %v2527
      %v2554 = vadd.f32 %v2384, %v2530
      %v2555 = vadd.f32 %v2385, %v2535
      %v2556 = vadd.f32 %v2386, %v2538
      %v2557 = vld [vmem:[#allocation2 + $0x58] sm:$0x3]
      %s2558 = scalar_lea.vmem %s5, 24
      %v2559 = vld [vmem:[%s2558] sm:$0xf]
      %vm2560 = vsmask.f32 6400
      %v2562 = vshrl.u32 %v2387, 16
      %v2564 = vrot.slane %v2562, 1
      %v2565 = vshll.u32 %v2387, 16
      %v2567 = vrot.slane %v2565, 2
      %v2568 = vor.u32 %v2564, %v2567
      %v2569 = vrot.slane %v2191, 1
      %v2570 = vrot.slane %v2187, 2
      %v2571 = vor.u32 %v2569, %v2570
      %v2572 = vsel %vm2560, %v2568, %v2571
      %v2573 = vrot.slane %v2199, 1
      %v2574 = vrot.slane %v2195, 2
      %v2575 = vor.u32 %v2573, %v2574
      %v2576 = vsel %vm2560, %v2571, %v2575
      %v2577 = vrot.slane %v2207, 1
      %v2578 = vrot.slane %v2203, 2
      %v2579 = vor.u32 %v2577, %v2578
      %v2580 = vsel %vm2560, %v2575, %v2579
      %v2581 = vrot.slane %v2215, 1
      %v2582 = vrot.slane %v2211, 2
      %v2583 = vor.u32 %v2581, %v2582
      %v2584 = vsel %vm2560, %v2579, %v2583
      %v2585 = vrot.slane %v2223, 1
      %v2586 = vrot.slane %v2219, 2
      %v2587 = vor.u32 %v2585, %v2586
      %v2588 = vsel %vm2560, %v2583, %v2587
      %v2589 = vrot.slane %v2231, 1
      %v2590 = vrot.slane %v2227, 2
      %v2591 = vor.u32 %v2589, %v2590
      %v2592 = vsel %vm2560, %v2587, %v2591
      %v2593 = vrot.slane %v2239, 1
      %v2594 = vrot.slane %v2235, 2
      %v2595 = vor.u32 %v2593, %v2594
      %v2596 = vsel %vm2560, %v2591, %v2595
      %v2598 = vshrl.u32 %v2557, 16
      %v2600 = vrot.slane %v2598, 1
      %v2601 = vshll.u32 %v2557, 16
      %v2603 = vrot.slane %v2601, 2
      %v2604 = vor.u32 %v2600, %v2603
      %v2605 = vsel %vm2560, %v2595, %v2604
      %v2607 = vsel %vm793, %v2572, 0
      %v2610 = vsel %vm793, %v2576, 0
      %v2613 = vsel %vm793, %v2580, 0
      %v2616 = vsel %vm793, %v2584, 0
      %v2619 = vsel %vm793, %v2588, 0
      %v2622 = vsel %vm793, %v2592, 0
      %v2625 = vsel %vm793, %v2596, 0
      %v2628 = vsel %vm793, %v2605, 0
      %v2631 = vsel %vm900, %v2559, 0
      %2633 = vmatprep.subr.bf16.mxu0 0
      %2634 = vmatpush1.bf16.msra.mxu0 %v2631
      %2635 = vmatprep.subr.bf16.mxu0 0
      %2636 = vmatpush1.bf16.msra.mxu0 0
      %2637 = vmatprep.subr.bf16.mxu0 0
      %2638 = vmatpush1.bf16.msra.mxu0 0
      %2639 = vmatprep.subr.bf16.mxu0 0
      %2640 = vmatpush1.bf16.msra.mxu0 0
      %2641 = vmatprep.subr.bf16.mxu0 0
      %2642 = vmatpush1.bf16.msra.mxu0 0
      %2643 = vmatprep.subr.bf16.mxu0 0
      %2644 = vmatpush1.bf16.msra.mxu0 0
      %2645 = vmatprep.subr.bf16.mxu0 0
      %2646 = vmatpush1.bf16.msra.mxu0 0
      %2647 = vmatprep.subr.bf16.mxu0 0
      %2648 = vmatpush1.bf16.msra.mxu0 0
      %2649 = vmatprep.subr.bf16.mxu0 0
      %2650 = vmatpush1.bf16.msra.mxu0 0
      %2651 = vmatprep.subr.bf16.mxu0 0
      %2652 = vmatpush1.bf16.msra.mxu0 0
      %2653 = vmatprep.subr.bf16.mxu0 0
      %2654 = vmatpush1.bf16.msra.mxu0 0
      %2655 = vmatprep.subr.bf16.mxu0 0
      %2656 = vmatpush1.bf16.msra.mxu0 0
      %2657 = vmatprep.subr.bf16.mxu0 0
      %2658 = vmatpush1.bf16.msra.mxu0 0
      %2659 = vmatprep.subr.bf16.mxu0 0
      %2660 = vmatpush1.bf16.msra.mxu0 0
      %2661 = vmatprep.subr.bf16.mxu0 0
      %2662 = vmatpush1.bf16.msra.mxu0 0
      %2663 = vmatprep.subr.bf16.mxu0 0
      %2664 = vmatpush1.bf16.msra.mxu0 0
      %2665 = vmatprep.mubr.bf16.mxu0 0
      %2666 = vmatmul.mubr.bf16.gmra.mrb[0].mxu0 %v2607
      %v2667 = vpop.f32.mrb[0].mxu0
      %v2668 = vadd.f32 0.0, %v2667
      %v2669 = vpop.f32.mrb[0].mxu0
      %v2670 = vpop.f32.mrb[0].mxu0
      %v2671 = vadd.f32 0.0, %v2670
      %v2672 = vpop.f32.mrb[0].mxu0
      %2673 = vmatprep.mubr.bf16.mxu0 0
      %2674 = vmatmul.mubr.bf16.gmra.mrb[0].mxu0 %v2610
      %v2675 = vpop.f32.mrb[0].mxu0
      %v2676 = vadd.f32 0.0, %v2675
      %v2677 = vpop.f32.mrb[0].mxu0
      %v2678 = vpop.f32.mrb[0].mxu0
      %v2679 = vadd.f32 0.0, %v2678
      %v2680 = vpop.f32.mrb[0].mxu0
      %2681 = vmatprep.mubr.bf16.mxu0 0
      %2682 = vmatmul.mubr.bf16.gmra.mrb[0].mxu0 %v2613
      %v2683 = vpop.f32.mrb[0].mxu0
      %v2684 = vadd.f32 0.0, %v2683
      %v2685 = vpop.f32.mrb[0].mxu0
      %v2686 = vpop.f32.mrb[0].mxu0
      %v2687 = vadd.f32 0.0, %v2686
      %v2688 = vpop.f32.mrb[0].mxu0
      %2689 = vmatprep.mubr.bf16.mxu0 0
      %2690 = vmatmul.mubr.bf16.gmra.mrb[0].mxu0 %v2616
      %v2691 = vpop.f32.mrb[0].mxu0
      %v2692 = vadd.f32 0.0, %v2691
      %v2693 = vpop.f32.mrb[0].mxu0
      %v2694 = vpop.f32.mrb[0].mxu0
      %v2695 = vadd.f32 0.0, %v2694
      %v2696 = vpop.f32.mrb[0].mxu0
      %2697 = vmatprep.mubr.bf16.mxu0 0
      %2698 = vmatmul.mubr.bf16.gmra.mrb[0].mxu0 %v2619
      %v2699 = vpop.f32.mrb[0].mxu0
      %v2700 = vadd.f32 0.0, %v2699
      %v2701 = vpop.f32.mrb[0].mxu0
      %v2702 = vpop.f32.mrb[0].mxu0
      %v2703 = vadd.f32 0.0, %v2702
      %v2704 = vpop.f32.mrb[0].mxu0
      %2705 = vmatprep.mubr.bf16.mxu0 0
      %2706 = vmatmul.mubr.bf16.gmra.mrb[0].mxu0 %v2622
      %v2707 = vpop.f32.mrb[0].mxu0
      %v2708 = vadd.f32 0.0, %v2707
      %v2709 = vpop.f32.mrb[0].mxu0
      %v2710 = vpop.f32.mrb[0].mxu0
      %v2711 = vadd.f32 0.0, %v2710
      %v2712 = vpop.f32.mrb[0].mxu0
      %2713 = vmatprep.mubr.bf16.mxu0 0
      %2714 = vmatmul.mubr.bf16.gmra.mrb[0].mxu0 %v2625
      %v2715 = vpop.f32.mrb[0].mxu0
      %v2716 = vadd.f32 0.0, %v2715
      %v2717 = vpop.f32.mrb[0].mxu0
      %v2718 = vpop.f32.mrb[0].mxu0
      %v2719 = vadd.f32 0.0, %v2718
      %v2720 = vpop.f32.mrb[0].mxu0
      %2721 = vmatprep.mubr.bf16.mxu0 0
      %2722 = vmatmul.mubr.bf16.gmra.mrb[0].mxu0 %v2628
      %v2723 = vpop.f32.mrb[0].mxu0
      %v2724 = vadd.f32 0.0, %v2723
      %v2725 = vpop.f32.mrb[0].mxu0
      %v2726 = vpop.f32.mrb[0].mxu0
      %v2727 = vadd.f32 0.0, %v2726
      %v2728 = vpop.f32.mrb[0].mxu0
      %2729 = vdwg.mxu0
      %v2730 = vadd.f32 %v2541, %v2668
      %v2731 = vadd.f32 %v2542, %v2671
      %v2732 = vadd.f32 %v2543, %v2676
      %v2733 = vadd.f32 %v2544, %v2679
      %v2734 = vadd.f32 %v2545, %v2684
      %v2735 = vadd.f32 %v2546, %v2687
      %v2736 = vadd.f32 %v2547, %v2692
      %v2737 = vadd.f32 %v2548, %v2695
      %v2738 = vadd.f32 %v2549, %v2700
      %v2739 = vadd.f32 %v2550, %v2703
      %v2740 = vadd.f32 %v2551, %v2708
      %v2741 = vadd.f32 %v2552, %v2711
      %v2742 = vadd.f32 %v2553, %v2716
      %v2743 = vadd.f32 %v2554, %v2719
      %v2744 = vadd.f32 %v2555, %v2724
      %v2745 = vadd.f32 %v2556, %v2727
      %v2747 = vlaneseq
      %v2748 = vshrl.u32 %v2747, 7
      %v2749 = vsub.s32 0, %v2748
      %v2750 = vrot.slane %v1485, %v2749
      %v2752 = vmul.f32 %v2730, %v2750
      %v2753 = vmul.f32 %v2731, %v2750
      %v2754 = vmul.f32 %v2732, %v2750
      %v2755 = vmul.f32 %v2733, %v2750
      %v2756 = vmul.f32 %v2734, %v2750
      %v2757 = vmul.f32 %v2735, %v2750
      %v2758 = vmul.f32 %v2736, %v2750
      %v2759 = vmul.f32 %v2737, %v2750
      %v2760 = vmul.f32 %v2738, %v2750
      %v2761 = vmul.f32 %v2739, %v2750
      %v2762 = vmul.f32 %v2740, %v2750
      %v2763 = vmul.f32 %v2741, %v2750
      %v2764 = vmul.f32 %v2742, %v2750
      %v2765 = vmul.f32 %v2743, %v2750
      %v2766 = vmul.f32 %v2744, %v2750
      %v2767 = vmul.f32 %v2745, %v2750
      %v2769 = vlaneseq
      %v2770 = vshrl.u32 %v2769, 7
      %v2771 = vsub.s32 0, %v2770
      %v2772 = vrot.slane %v1486, %v2771
      %v2774 = vadd.f32 %v2752, %v2772
      %v2775 = vadd.f32 %v2753, %v2772
      %v2776 = vadd.f32 %v2754, %v2772
      %v2777 = vadd.f32 %v2755, %v2772
      %v2778 = vadd.f32 %v2756, %v2772
      %v2779 = vadd.f32 %v2757, %v2772
      %v2780 = vadd.f32 %v2758, %v2772
      %v2781 = vadd.f32 %v2759, %v2772
      %v2782 = vadd.f32 %v2760, %v2772
      %v2783 = vadd.f32 %v2761, %v2772
      %v2784 = vadd.f32 %v2762, %v2772
      %v2785 = vadd.f32 %v2763, %v2772
      %v2786 = vadd.f32 %v2764, %v2772
      %v2787 = vadd.f32 %v2765, %v2772
      %v2788 = vadd.f32 %v2766, %v2772
      %v2789 = vadd.f32 %v2767, %v2772
      %v2790 = vmax.f32 %v2774, 0.0
      %v2791 = vmax.f32 %v2775, 0.0
      %v2792 = vmax.f32 %v2776, 0.0
      %v2793 = vmax.f32 %v2777, 0.0
      %v2794 = vmax.f32 %v2778, 0.0
      %v2795 = vmax.f32 %v2779, 0.0
      %v2796 = vmax.f32 %v2780, 0.0
      %v2797 = vmax.f32 %v2781, 0.0
      %v2798 = vmax.f32 %v2782, 0.0
      %v2799 = vmax.f32 %v2783, 0.0
      %v2800 = vmax.f32 %v2784, 0.0
      %v2801 = vmax.f32 %v2785, 0.0
      %v2802 = vmax.f32 %v2786, 0.0
      %v2803 = vmax.f32 %v2787, 0.0
      %v2804 = vmax.f32 %v2788, 0.0
      %v2805 = vmax.f32 %v2789, 0.0
      %v2806 = vld [vmem:[%s1] sm:$0xff]
      %v2807 = vld [vmem:[%s1 + $0x8] sm:$0xff]
      %v2808 = vld [vmem:[%s1 + $0x10] sm:$0xff]
      %v2809 = vld [vmem:[%s1 + $0x18] sm:$0xff]
      %v2810 = vld [vmem:[%s1 + $0x20] sm:$0xff]
      %v2811 = vld [vmem:[%s1 + $0x28] sm:$0xff]
      %v2812 = vld [vmem:[%s1 + $0x30] sm:$0xff]
      %v2813 = vld [vmem:[%s1 + $0x38] sm:$0xff]
      %v2814 = vld [vmem:[%s1 + $0x40] sm:$0xff]
      %v2815 = vld [vmem:[%s1 + $0x48] sm:$0xff]
      %v2816 = vld [vmem:[%s1 + $0x50] sm:$0xff]
      %v2817 = vld [vmem:[%s1 + $0x58] sm:$0xff]
      %v2818 = vld [vmem:[%s1 + $0x60] sm:$0xff]
      %v2819 = vld [vmem:[%s1 + $0x68] sm:$0xff]
      %v2820 = vld [vmem:[%s1 + $0x70] sm:$0xff]
      %v2821 = vld [vmem:[%s1 + $0x78] sm:$0xff]
      %2823 = vset.pattern.permute.xlu0 0
      %2824 = vperm.xlu0 %2823, %v2806
      %v2825 = vpop.permute.xlu0 %2824
      %2828 = vset.pattern.permute.xlu0 0
      %2829 = vperm.xlu0 %2828, %v2807
      %v2830 = vpop.permute.xlu0 %2829
      %2833 = vset.pattern.permute.xlu0 0
      %2834 = vperm.xlu0 %2833, %v2808
      %v2835 = vpop.permute.xlu0 %2834
      %2838 = vset.pattern.permute.xlu0 0
      %2839 = vperm.xlu0 %2838, %v2809
      %v2840 = vpop.permute.xlu0 %2839
      %2843 = vset.pattern.permute.xlu0 0
      %2844 = vperm.xlu0 %2843, %v2810
      %v2845 = vpop.permute.xlu0 %2844
      %2848 = vset.pattern.permute.xlu0 0
      %2849 = vperm.xlu0 %2848, %v2811
      %v2850 = vpop.permute.xlu0 %2849
      %2853 = vset.pattern.permute.xlu0 0
      %2854 = vperm.xlu0 %2853, %v2812
      %v2855 = vpop.permute.xlu0 %2854
      %2858 = vset.pattern.permute.xlu0 0
      %2859 = vperm.xlu0 %2858, %v2813
      %v2860 = vpop.permute.xlu0 %2859
      %2863 = vset.pattern.permute.xlu0 0
      %2864 = vperm.xlu0 %2863, %v2814
      %v2865 = vpop.permute.xlu0 %2864
      %2868 = vset.pattern.permute.xlu0 0
      %2869 = vperm.xlu0 %2868, %v2815
      %v2870 = vpop.permute.xlu0 %2869
      %2873 = vset.pattern.permute.xlu0 0
      %2874 = vperm.xlu0 %2873, %v2816
      %v2875 = vpop.permute.xlu0 %2874
      %2878 = vset.pattern.permute.xlu0 0
      %2879 = vperm.xlu0 %2878, %v2817
      %v2880 = vpop.permute.xlu0 %2879
      %2883 = vset.pattern.permute.xlu0 0
      %2884 = vperm.xlu0 %2883, %v2818
      %v2885 = vpop.permute.xlu0 %2884
      %2888 = vset.pattern.permute.xlu0 0
      %2889 = vperm.xlu0 %2888, %v2819
      %v2890 = vpop.permute.xlu0 %2889
      %2893 = vset.pattern.permute.xlu0 0
      %2894 = vperm.xlu0 %2893, %v2820
      %v2895 = vpop.permute.xlu0 %2894
      %2898 = vset.pattern.permute.xlu0 0
      %2899 = vperm.xlu0 %2898, %v2821
      %v2900 = vpop.permute.xlu0 %2899
      %v2902 = vmul.f32 %v2790, %v2825
      %v2903 = vmul.f32 %v2791, %v2830
      %v2904 = vmul.f32 %v2792, %v2835
      %v2905 = vmul.f32 %v2793, %v2840
      %v2906 = vmul.f32 %v2794, %v2845
      %v2907 = vmul.f32 %v2795, %v2850
      %v2908 = vmul.f32 %v2796, %v2855
      %v2909 = vmul.f32 %v2797, %v2860
      %v2910 = vmul.f32 %v2798, %v2865
      %v2911 = vmul.f32 %v2799, %v2870
      %v2912 = vmul.f32 %v2800, %v2875
      %v2913 = vmul.f32 %v2801, %v2880
      %v2914 = vmul.f32 %v2802, %v2885
      %v2915 = vmul.f32 %v2803, %v2890
      %v2916 = vmul.f32 %v2804, %v2895
      %v2917 = vmul.f32 %v2805, %v2900
      %v2918 = vpack.c.bf16 %v2903, %v2902
      %v2919 = vpack.c.bf16 %v2905, %v2904
      %v2920 = vpack.c.bf16 %v2907, %v2906
      %v2921 = vpack.c.bf16 %v2909, %v2908
      %v2922 = vpack.c.bf16 %v2911, %v2910
      %v2923 = vpack.c.bf16 %v2913, %v2912
      %v2924 = vpack.c.bf16 %v2915, %v2914
      %v2925 = vpack.c.bf16 %v2917, %v2916
      %2926 = vst.msk [vmem:[#allocation3 + $0x18] sm:$0xff] %vm793, %v2918
      %2927 = vst.msk [vmem:[#allocation3 + $0x20] sm:$0xff] %vm793, %v2919
      %2928 = vst.msk [vmem:[#allocation3 + $0x28] sm:$0xff] %vm793, %v2920
      %2929 = vst.msk [vmem:[#allocation3 + $0x30] sm:$0xff] %vm793, %v2921
      %2930 = vst.msk [vmem:[#allocation3 + $0x38] sm:$0xff] %vm793, %v2922
      %2931 = vst.msk [vmem:[#allocation3 + $0x40] sm:$0xff] %vm793, %v2923
      %2932 = vst.msk [vmem:[#allocation3 + $0x48] sm:$0xff] %vm793, %v2924
      %2933 = vst.msk [vmem:[#allocation3 + $0x50] sm:$0xff] %vm793, %v2925
      %v2934 = vld [vmem:[%s9] sm:$0x3]
      %v2935 = vld [vmem:[%s10] sm:$0x3]
      %v2936 = vld [vmem:[#allocation3] sm:$0xff]
      %v2937 = vld [vmem:[#allocation3 + $0x8] sm:$0xff]
      %v2938 = vld [vmem:[#allocation3 + $0x10] sm:$0xff]
      %v2939 = vld [vmem:[#allocation3 + $0x18] sm:$0xff]
      %v2940 = vld [vmem:[#allocation3 + $0x20] sm:$0xff]
      %v2941 = vld [vmem:[#allocation3 + $0x28] sm:$0xff]
      %v2942 = vld [vmem:[#allocation3 + $0x30] sm:$0xff]
      %v2943 = vld [vmem:[#allocation3 + $0x38] sm:$0xff]
      %v2944 = vld [vmem:[%s8] sm:$0xff]
      %v2945 = vld [vmem:[#allocation3 + $0x40] sm:$0xff]
      %s2946 = scalar_lea.vmem %s8, 8
      %v2947 = vld [vmem:[%s2946] sm:$0xff]
      %v2949 = vunpack.c.l.b16 %v2947
      %v2950 = vunpack.c.h.b16 %v2947
      %v2951 = vpack.c.b16 %v2949, %v2949
      %v2952 = vpack.c.b16 %v2950, %v2950
      %v2954 = vsel %vm793, %v2937, 0
      %v2957 = vsel %vm793, %v2938, 0
      %v2960 = vsel %vm793, %v2939, 0
      %v2963 = vsel %vm793, %v2940, 0
      %v2966 = vsel %vm793, %v2941, 0
      %v2969 = vsel %vm793, %v2942, 0
      %v2972 = vsel %vm793, %v2943, 0
      %v2975 = vsel %vm793, %v2945, 0
      %v2978 = vsel %vm900, %v2951, 0
      %v2981 = vsel %vm900, %v2952, 0
      %2983 = vmatprep.subr.bf16.mxu0 %v2981
      %2984 = vmatpush1.bf16.msra.mxu0 %v2978
      %2985 = vmatprep.subr.bf16.mxu0 0
      %2986 = vmatpush1.bf16.msra.mxu0 0
      %2987 = vmatprep.subr.bf16.mxu0 0
      %2988 = vmatpush1.bf16.msra.mxu0 0
      %2989 = vmatprep.subr.bf16.mxu0 0
      %2990 = vmatpush1.bf16.msra.mxu0 0
      %2991 = vmatprep.subr.bf16.mxu0 0
      %2992 = vmatpush1.bf16.msra.mxu0 0
      %2993 = vmatprep.subr.bf16.mxu0 0
      %2994 = vmatpush1.bf16.msra.mxu0 0
      %2995 = vmatprep.subr.bf16.mxu0 0
      %2996 = vmatpush1.bf16.msra.mxu0 0
      %2997 = vmatprep.subr.bf16.mxu0 0
      %2998 = vmatpush1.bf16.msra.mxu0 0
      %2999 = vmatprep.subr.bf16.mxu0 0
      %3000 = vmatpush1.bf16.msra.mxu0 0
      %3001 = vmatprep.subr.bf16.mxu0 0
      %3002 = vmatpush1.bf16.msra.mxu0 0
      %3003 = vmatprep.subr.bf16.mxu0 0
      %3004 = vmatpush1.bf16.msra.mxu0 0
      %3005 = vmatprep.subr.bf16.mxu0 0
      %3006 = vmatpush1.bf16.msra.mxu0 0
      %3007 = vmatprep.subr.bf16.mxu0 0
      %3008 = vmatpush1.bf16.msra.mxu0 0
      %3009 = vmatprep.subr.bf16.mxu0 0
      %3010 = vmatpush1.bf16.msra.mxu0 0
      %3011 = vmatprep.subr.bf16.mxu0 0
      %3012 = vmatpush1.bf16.msra.mxu0 0
      %3013 = vmatprep.subr.bf16.mxu0 0
      %3014 = vmatpush1.bf16.msra.mxu0 0
      %3015 = vmatprep.mubr.bf16.mxu0 0
      %3016 = vmatmul.mubr.bf16.gmra.mrb[0].mxu0 %v2954
      %v3017 = vpop.f32.mrb[0].mxu0
      %v3018 = vadd.f32 0.0, %v3017
      %v3019 = vpop.f32.mrb[0].mxu0
      %v3020 = vadd.f32 0.0, %v3019
      %v3021 = vpop.f32.mrb[0].mxu0
      %v3022 = vadd.f32 0.0, %v3021
      %v3023 = vpop.f32.mrb[0].mxu0
      %v3024 = vadd.f32 0.0, %v3023
      %3025 = vmatprep.mubr.bf16.mxu0 0
      %3026 = vmatmul.mubr.bf16.gmra.mrb[0].mxu0 %v2957
      %v3027 = vpop.f32.mrb[0].mxu0
      %v3028 = vadd.f32 0.0, %v3027
      %v3029 = vpop.f32.mrb[0].mxu0
      %v3030 = vadd.f32 0.0, %v3029
      %v3031 = vpop.f32.mrb[0].mxu0
      %v3032 = vadd.f32 0.0, %v3031
      %v3033 = vpop.f32.mrb[0].mxu0
      %v3034 = vadd.f32 0.0, %v3033
      %3035 = vmatprep.mubr.bf16.mxu0 0
      %3036 = vmatmul.mubr.bf16.gmra.mrb[0].mxu0 %v2960
      %v3037 = vpop.f32.mrb[0].mxu0
      %v3038 = vadd.f32 0.0, %v3037
      %v3039 = vpop.f32.mrb[0].mxu0
      %v3040 = vadd.f32 0.0, %v3039
      %v3041 = vpop.f32.mrb[0].mxu0
      %v3042 = vadd.f32 0.0, %v3041
      %v3043 = vpop.f32.mrb[0].mxu0
      %v3044 = vadd.f32 0.0, %v3043
      %3045 = vmatprep.mubr.bf16.mxu0 0
      %3046 = vmatmul.mubr.bf16.gmra.mrb[0].mxu0 %v2963
      %v3047 = vpop.f32.mrb[0].mxu0
      %v3048 = vadd.f32 0.0, %v3047
      %v3049 = vpop.f32.mrb[0].mxu0
      %v3050 = vadd.f32 0.0, %v3049
      %v3051 = vpop.f32.mrb[0].mxu0
      %v3052 = vadd.f32 0.0, %v3051
      %v3053 = vpop.f32.mrb[0].mxu0
      %v3054 = vadd.f32 0.0, %v3053
      %3055 = vmatprep.mubr.bf16.mxu0 0
      %3056 = vmatmul.mubr.bf16.gmra.mrb[0].mxu0 %v2966
      %v3057 = vpop.f32.mrb[0].mxu0
      %v3058 = vadd.f32 0.0, %v3057
      %v3059 = vpop.f32.mrb[0].mxu0
      %v3060 = vadd.f32 0.0, %v3059
      %v3061 = vpop.f32.mrb[0].mxu0
      %v3062 = vadd.f32 0.0, %v3061
      %v3063 = vpop.f32.mrb[0].mxu0
      %v3064 = vadd.f32 0.0, %v3063
      %3065 = vmatprep.mubr.bf16.mxu0 0
      %3066 = vmatmul.mubr.bf16.gmra.mrb[0].mxu0 %v2969
      %v3067 = vpop.f32.mrb[0].mxu0
      %v3068 = vadd.f32 0.0, %v3067
      %v3069 = vpop.f32.mrb[0].mxu0
      %v3070 = vadd.f32 0.0, %v3069
      %v3071 = vpop.f32.mrb[0].mxu0
      %v3072 = vadd.f32 0.0, %v3071
      %v3073 = vpop.f32.mrb[0].mxu0
      %v3074 = vadd.f32 0.0, %v3073
      %3075 = vmatprep.mubr.bf16.mxu0 0
      %3076 = vmatmul.mubr.bf16.gmra.mrb[0].mxu0 %v2972
      %v3077 = vpop.f32.mrb[0].mxu0
      %v3078 = vadd.f32 0.0, %v3077
      %v3079 = vpop.f32.mrb[0].mxu0
      %v3080 = vadd.f32 0.0, %v3079
      %v3081 = vpop.f32.mrb[0].mxu0
      %v3082 = vadd.f32 0.0, %v3081
      %v3083 = vpop.f32.mrb[0].mxu0
      %v3084 = vadd.f32 0.0, %v3083
      %3085 = vmatprep.mubr.bf16.mxu0 0
      %3086 = vmatmul.mubr.bf16.gmra.mrb[0].mxu0 %v2975
      %v3087 = vpop.f32.mrb[0].mxu0
      %v3088 = vadd.f32 0.0, %v3087
      %v3089 = vpop.f32.mrb[0].mxu0
      %v3090 = vadd.f32 0.0, %v3089
      %v3091 = vpop.f32.mrb[0].mxu0
      %v3092 = vadd.f32 0.0, %v3091
      %v3093 = vpop.f32.mrb[0].mxu0
      %v3094 = vadd.f32 0.0, %v3093
      %3095 = vdwg.mxu0
      %v3097 = vunpack.c.l.b16 %v2944
      %v3098 = vunpack.c.h.b16 %v2944
      %v3099 = vpack.c.b16 %v3097, %v3097
      %v3100 = vpack.c.b16 %v3098, %v3098
      %v3102 = vsel %vm793, %v2936, 0
      %v3105 = vsel %vm900, %v3099, 0
      %v3108 = vsel %vm900, %v3100, 0
      %3110 = vmatprep.subr.bf16.mxu0 %v3108
      %3111 = vmatpush1.bf16.msra.mxu0 %v3105
      %3112 = vmatprep.subr.bf16.mxu0 0
      %3113 = vmatpush1.bf16.msra.mxu0 0
      %3114 = vmatprep.subr.bf16.mxu0 0
      %3115 = vmatpush1.bf16.msra.mxu0 0
      %3116 = vmatprep.subr.bf16.mxu0 0
      %3117 = vmatpush1.bf16.msra.mxu0 0
      %3118 = vmatprep.subr.bf16.mxu0 0
      %3119 = vmatpush1.bf16.msra.mxu0 0
      %3120 = vmatprep.subr.bf16.mxu0 0
      %3121 = vmatpush1.bf16.msra.mxu0 0
      %3122 = vmatprep.subr.bf16.mxu0 0
      %3123 = vmatpush1.bf16.msra.mxu0 0
      %3124 = vmatprep.subr.bf16.mxu0 0
      %3125 = vmatpush1.bf16.msra.mxu0 0
      %3126 = vmatprep.subr.bf16.mxu0 0
      %3127 = vmatpush1.bf16.msra.mxu0 0
      %3128 = vmatprep.subr.bf16.mxu0 0
      %3129 = vmatpush1.bf16.msra.mxu0 0
      %3130 = vmatprep.subr.bf16.mxu0 0
      %3131 = vmatpush1.bf16.msra.mxu0 0
      %3132 = vmatprep.subr.bf16.mxu0 0
      %3133 = vmatpush1.bf16.msra.mxu0 0
      %3134 = vmatprep.subr.bf16.mxu0 0
      %3135 = vmatpush1.bf16.msra.mxu0 0
      %3136 = vmatprep.subr.bf16.mxu0 0
      %3137 = vmatpush1.bf16.msra.mxu0 0
      %3138 = vmatprep.subr.bf16.mxu0 0
      %3139 = vmatpush1.bf16.msra.mxu0 0
      %3140 = vmatprep.subr.bf16.mxu0 0
      %3141 = vmatpush1.bf16.msra.mxu0 0
      %3142 = vmatprep.mubr.bf16.mxu0 0
      %3143 = vmatmul.mubr.bf16.gmra.mrb[0].mxu0 %v3102
      %v3144 = vpop.f32.mrb[0].mxu0
      %v3145 = vadd.f32 %v3018, %v3144
      %v3146 = vpop.f32.mrb[0].mxu0
      %v3147 = vadd.f32 %v3020, %v3146
      %v3148 = vpop.f32.mrb[0].mxu0
      %v3149 = vadd.f32 %v3022, %v3148
      %v3150 = vpop.f32.mrb[0].mxu0
      %v3151 = vadd.f32 %v3024, %v3150
      %3152 = vmatprep.mubr.bf16.mxu0 0
      %3153 = vmatmul.mubr.bf16.gmra.mrb[0].mxu0 %v2954
      %v3154 = vpop.f32.mrb[0].mxu0
      %v3155 = vadd.f32 %v3028, %v3154
      %v3156 = vpop.f32.mrb[0].mxu0
      %v3157 = vadd.f32 %v3030, %v3156
      %v3158 = vpop.f32.mrb[0].mxu0
      %v3159 = vadd.f32 %v3032, %v3158
      %v3160 = vpop.f32.mrb[0].mxu0
      %v3161 = vadd.f32 %v3034, %v3160
      %3162 = vmatprep.mubr.bf16.mxu0 0
      %3163 = vmatmul.mubr.bf16.gmra.mrb[0].mxu0 %v2957
      %v3164 = vpop.f32.mrb[0].mxu0
      %v3165 = vadd.f32 %v3038, %v3164
      %v3166 = vpop.f32.mrb[0].mxu0
      %v3167 = vadd.f32 %v3040, %v3166
      %v3168 = vpop.f32.mrb[0].mxu0
      %v3169 = vadd.f32 %v3042, %v3168
      %v3170 = vpop.f32.mrb[0].mxu0
      %v3171 = vadd.f32 %v3044, %v3170
      %3172 = vmatprep.mubr.bf16.mxu0 0
      %3173 = vmatmul.mubr.bf16.gmra.mrb[0].mxu0 %v2960
      %v3174 = vpop.f32.mrb[0].mxu0
      %v3175 = vadd.f32 %v3048, %v3174
      %v3176 = vpop.f32.mrb[0].mxu0
      %v3177 = vadd.f32 %v3050, %v3176
      %v3178 = vpop.f32.mrb[0].mxu0
      %v3179 = vadd.f32 %v3052, %v3178
      %v3180 = vpop.f32.mrb[0].mxu0
      %v3181 = vadd.f32 %v3054, %v3180
      %3182 = vmatprep.mubr.bf16.mxu0 0
      %3183 = vmatmul.mubr.bf16.gmra.mrb[0].mxu0 %v2963
      %v3184 = vpop.f32.mrb[0].mxu0
      %v3185 = vadd.f32 %v3058, %v3184
      %v3186 = vpop.f32.mrb[0].mxu0
      %v3187 = vadd.f32 %v3060, %v3186
      %v3188 = vpop.f32.mrb[0].mxu0
      %v3189 = vadd.f32 %v3062, %v3188
      %v3190 = vpop.f32.mrb[0].mxu0
      %v3191 = vadd.f32 %v3064, %v3190
      %3192 = vmatprep.mubr.bf16.mxu0 0
      %3193 = vmatmul.mubr.bf16.gmra.mrb[0].mxu0 %v2966
      %v3194 = vpop.f32.mrb[0].mxu0
      %v3195 = vadd.f32 %v3068, %v3194
      %v3196 = vpop.f32.mrb[0].mxu0
      %v3197 = vadd.f32 %v3070, %v3196
      %v3198 = vpop.f32.mrb[0].mxu0
      %v3199 = vadd.f32 %v3072, %v3198
      %v3200 = vpop.f32.mrb[0].mxu0
      %v3201 = vadd.f32 %v3074, %v3200
      %3202 = vmatprep.mubr.bf16.mxu0 0
      %3203 = vmatmul.mubr.bf16.gmra.mrb[0].mxu0 %v2969
      %v3204 = vpop.f32.mrb[0].mxu0
      %v3205 = vadd.f32 %v3078, %v3204
      %v3206 = vpop.f32.mrb[0].mxu0
      %v3207 = vadd.f32 %v3080, %v3206
      %v3208 = vpop.f32.mrb[0].mxu0
      %v3209 = vadd.f32 %v3082, %v3208
      %v3210 = vpop.f32.mrb[0].mxu0
      %v3211 = vadd.f32 %v3084, %v3210
      %3212 = vmatprep.mubr.bf16.mxu0 0
      %3213 = vmatmul.mubr.bf16.gmra.mrb[0].mxu0 %v2972
      %v3214 = vpop.f32.mrb[0].mxu0
      %v3215 = vadd.f32 %v3088, %v3214
      %v3216 = vpop.f32.mrb[0].mxu0
      %v3217 = vadd.f32 %v3090, %v3216
      %v3218 = vpop.f32.mrb[0].mxu0
      %v3219 = vadd.f32 %v3092, %v3218
      %v3220 = vpop.f32.mrb[0].mxu0
      %v3221 = vadd.f32 %v3094, %v3220
      %3222 = vdwg.mxu0
      %v3223 = vld [vmem:[#allocation3 + $0x10] sm:$0xff]
      %v3224 = vld [vmem:[#allocation3 + $0x18] sm:$0xff]
      %v3225 = vld [vmem:[#allocation3 + $0x20] sm:$0xff]
      %v3226 = vld [vmem:[#allocation3 + $0x28] sm:$0xff]
      %v3227 = vld [vmem:[#allocation3 + $0x30] sm:$0xff]
      %v3228 = vld [vmem:[#allocation3 + $0x38] sm:$0xff]
      %v3229 = vld [vmem:[#allocation3 + $0x40] sm:$0xff]
      %v3230 = vld [vmem:[#allocation3 + $0x48] sm:$0xff]
      %s3231 = scalar_lea.vmem %s8, 16
      %v3232 = vld [vmem:[%s3231] sm:$0xff]
      %v3234 = vunpack.c.l.b16 %v3232
      %v3235 = vunpack.c.h.b16 %v3232
      %v3236 = vpack.c.b16 %v3234, %v3234
      %v3237 = vpack.c.b16 %v3235, %v3235
      %v3239 = vsel %vm793, %v3223, 0
      %v3242 = vsel %vm793, %v3224, 0
      %v3245 = vsel %vm793, %v3225, 0
      %v3248 = vsel %vm793, %v3226, 0
      %v3251 = vsel %vm793, %v3227, 0
      %v3254 = vsel %vm793, %v3228, 0
      %v3257 = vsel %vm793, %v3229, 0
      %v3260 = vsel %vm793, %v3230, 0
      %v3263 = vsel %vm900, %v3236, 0
      %v3266 = vsel %vm900, %v3237, 0
      %3268 = vmatprep.subr.bf16.mxu0 %v3266
      %3269 = vmatpush1.bf16.msra.mxu0 %v3263
      %3270 = vmatprep.subr.bf16.mxu0 0
      %3271 = vmatpush1.bf16.msra.mxu0 0
      %3272 = vmatprep.subr.bf16.mxu0 0
      %3273 = vmatpush1.bf16.msra.mxu0 0
      %3274 = vmatprep.subr.bf16.mxu0 0
      %3275 = vmatpush1.bf16.msra.mxu0 0
      %3276 = vmatprep.subr.bf16.mxu0 0
      %3277 = vmatpush1.bf16.msra.mxu0 0
      %3278 = vmatprep.subr.bf16.mxu0 0
      %3279 = vmatpush1.bf16.msra.mxu0 0
      %3280 = vmatprep.subr.bf16.mxu0 0
      %3281 = vmatpush1.bf16.msra.mxu0 0
      %3282 = vmatprep.subr.bf16.mxu0 0
      %3283 = vmatpush1.bf16.msra.mxu0 0
      %3284 = vmatprep.subr.bf16.mxu0 0
      %3285 = vmatpush1.bf16.msra.mxu0 0
      %3286 = vmatprep.subr.bf16.mxu0 0
      %3287 = vmatpush1.bf16.msra.mxu0 0
      %3288 = vmatprep.subr.bf16.mxu0 0
      %3289 = vmatpush1.bf16.msra.mxu0 0
      %3290 = vmatprep.subr.bf16.mxu0 0
      %3291 = vmatpush1.bf16.msra.mxu0 0
      %3292 = vmatprep.subr.bf16.mxu0 0
      %3293 = vmatpush1.bf16.msra.mxu0 0
      %3294 = vmatprep.subr.bf16.mxu0 0
      %3295 = vmatpush1.bf16.msra.mxu0 0
      %3296 = vmatprep.subr.bf16.mxu0 0
      %3297 = vmatpush1.bf16.msra.mxu0 0
      %3298 = vmatprep.subr.bf16.mxu0 0
      %3299 = vmatpush1.bf16.msra.mxu0 0
      %3300 = vmatprep.mubr.bf16.mxu0 0
      %3301 = vmatmul.mubr.bf16.gmra.mrb[0].mxu0 %v3239
      %v3302 = vpop.f32.mrb[0].mxu0
      %v3303 = vadd.f32 0.0, %v3302
      %v3304 = vpop.f32.mrb[0].mxu0
      %v3305 = vadd.f32 0.0, %v3304
      %v3306 = vpop.f32.mrb[0].mxu0
      %v3307 = vadd.f32 0.0, %v3306
      %v3308 = vpop.f32.mrb[0].mxu0
      %v3309 = vadd.f32 0.0, %v3308
      %3310 = vmatprep.mubr.bf16.mxu0 0
      %3311 = vmatmul.mubr.bf16.gmra.mrb[0].mxu0 %v3242
      %v3312 = vpop.f32.mrb[0].mxu0
      %v3313 = vadd.f32 0.0, %v3312
      %v3314 = vpop.f32.mrb[0].mxu0
      %v3315 = vadd.f32 0.0, %v3314
      %v3316 = vpop.f32.mrb[0].mxu0
      %v3317 = vadd.f32 0.0, %v3316
      %v3318 = vpop.f32.mrb[0].mxu0
      %v3319 = vadd.f32 0.0, %v3318
      %3320 = vmatprep.mubr.bf16.mxu0 0
      %3321 = vmatmul.mubr.bf16.gmra.mrb[0].mxu0 %v3245
      %v3322 = vpop.f32.mrb[0].mxu0
      %v3323 = vadd.f32 0.0, %v3322
      %v3324 = vpop.f32.mrb[0].mxu0
      %v3325 = vadd.f32 0.0, %v3324
      %v3326 = vpop.f32.mrb[0].mxu0
      %v3327 = vadd.f32 0.0, %v3326
      %v3328 = vpop.f32.mrb[0].mxu0
      %v3329 = vadd.f32 0.0, %v3328
      %3330 = vmatprep.mubr.bf16.mxu0 0
      %3331 = vmatmul.mubr.bf16.gmra.mrb[0].mxu0 %v3248
      %v3332 = vpop.f32.mrb[0].mxu0
      %v3333 = vadd.f32 0.0, %v3332
      %v3334 = vpop.f32.mrb[0].mxu0
      %v3335 = vadd.f32 0.0, %v3334
      %v3336 = vpop.f32.mrb[0].mxu0
      %v3337 = vadd.f32 0.0, %v3336
      %v3338 = vpop.f32.mrb[0].mxu0
      %v3339 = vadd.f32 0.0, %v3338
      %3340 = vmatprep.mubr.bf16.mxu0 0
      %3341 = vmatmul.mubr.bf16.gmra.mrb[0].mxu0 %v3251
      %v3342 = vpop.f32.mrb[0].mxu0
      %v3343 = vadd.f32 0.0, %v3342
      %v3344 = vpop.f32.mrb[0].mxu0
      %v3345 = vadd.f32 0.0, %v3344
      %v3346 = vpop.f32.mrb[0].mxu0
      %v3347 = vadd.f32 0.0, %v3346
      %v3348 = vpop.f32.mrb[0].mxu0
      %v3349 = vadd.f32 0.0, %v3348
      %3350 = vmatprep.mubr.bf16.mxu0 0
      %3351 = vmatmul.mubr.bf16.gmra.mrb[0].mxu0 %v3254
      %v3352 = vpop.f32.mrb[0].mxu0
      %v3353 = vadd.f32 0.0, %v3352
      %v3354 = vpop.f32.mrb[0].mxu0
      %v3355 = vadd.f32 0.0, %v3354
      %v3356 = vpop.f32.mrb[0].mxu0
      %v3357 = vadd.f32 0.0, %v3356
      %v3358 = vpop.f32.mrb[0].mxu0
      %v3359 = vadd.f32 0.0, %v3358
      %3360 = vmatprep.mubr.bf16.mxu0 0
      %3361 = vmatmul.mubr.bf16.gmra.mrb[0].mxu0 %v3257
      %v3362 = vpop.f32.mrb[0].mxu0
      %v3363 = vadd.f32 0.0, %v3362
      %v3364 = vpop.f32.mrb[0].mxu0
      %v3365 = vadd.f32 0.0, %v3364
      %v3366 = vpop.f32.mrb[0].mxu0
      %v3367 = vadd.f32 0.0, %v3366
      %v3368 = vpop.f32.mrb[0].mxu0
      %v3369 = vadd.f32 0.0, %v3368
      %3370 = vmatprep.mubr.bf16.mxu0 0
      %3371 = vmatmul.mubr.bf16.gmra.mrb[0].mxu0 %v3260
      %v3372 = vpop.f32.mrb[0].mxu0
      %v3373 = vadd.f32 0.0, %v3372
      %v3374 = vpop.f32.mrb[0].mxu0
      %v3375 = vadd.f32 0.0, %v3374
      %v3376 = vpop.f32.mrb[0].mxu0
      %v3377 = vadd.f32 0.0, %v3376
      %v3378 = vpop.f32.mrb[0].mxu0
      %v3379 = vadd.f32 0.0, %v3378
      %3380 = vdwg.mxu0
      %v3381 = vadd.f32 %v3145, %v3303
      %v3382 = vadd.f32 %v3147, %v3305
      %v3383 = vadd.f32 %v3149, %v3307
      %v3384 = vadd.f32 %v3151, %v3309
      %v3385 = vadd.f32 %v3155, %v3313
      %v3386 = vadd.f32 %v3157, %v3315
      %v3387 = vadd.f32 %v3159, %v3317
      %v3388 = vadd.f32 %v3161, %v3319
      %v3389 = vadd.f32 %v3165, %v3323
      %v3390 = vadd.f32 %v3167, %v3325
      %v3391 = vadd.f32 %v3169, %v3327
      %v3392 = vadd.f32 %v3171, %v3329
      %v3393 = vadd.f32 %v3175, %v3333
      %v3394 = vadd.f32 %v3177, %v3335
      %v3395 = vadd.f32 %v3179, %v3337
      %v3396 = vadd.f32 %v3181, %v3339
      %v3397 = vadd.f32 %v3185, %v3343
      %v3398 = vadd.f32 %v3187, %v3345
      %v3399 = vadd.f32 %v3189, %v3347
      %v3400 = vadd.f32 %v3191, %v3349
      %v3401 = vadd.f32 %v3195, %v3353
      %v3402 = vadd.f32 %v3197, %v3355
      %v3403 = vadd.f32 %v3199, %v3357
      %v3404 = vadd.f32 %v3201, %v3359
      %v3405 = vadd.f32 %v3205, %v3363
      %v3406 = vadd.f32 %v3207, %v3365
      %v3407 = vadd.f32 %v3209, %v3367
      %v3408 = vadd.f32 %v3211, %v3369
      %v3409 = vadd.f32 %v3215, %v3373
      %v3410 = vadd.f32 %v3217, %v3375
      %v3411 = vadd.f32 %v3219, %v3377
      %v3412 = vadd.f32 %v3221, %v3379
      %v3413 = vld [vmem:[#allocation3 + $0x18] sm:$0xff]
      %v3414 = vld [vmem:[#allocation3 + $0x20] sm:$0xff]
      %v3415 = vld [vmem:[#allocation3 + $0x28] sm:$0xff]
      %v3416 = vld [vmem:[#allocation3 + $0x30] sm:$0xff]
      %v3417 = vld [vmem:[#allocation3 + $0x38] sm:$0xff]
      %v3418 = vld [vmem:[#allocation3 + $0x40] sm:$0xff]
      %v3419 = vld [vmem:[#allocation3 + $0x48] sm:$0xff]
      %v3420 = vld [vmem:[#allocation3 + $0x50] sm:$0xff]
      %s3421 = scalar_lea.vmem %s8, 24
      %v3422 = vld [vmem:[%s3421] sm:$0xff]
      %v3424 = vunpack.c.l.b16 %v3422
      %v3425 = vunpack.c.h.b16 %v3422
      %v3426 = vpack.c.b16 %v3424, %v3424
      %v3427 = vpack.c.b16 %v3425, %v3425
      %v3429 = vsel %vm793, %v3413, 0
      %v3432 = vsel %vm793, %v3414, 0
      %v3435 = vsel %vm793, %v3415, 0
      %v3438 = vsel %vm793, %v3416, 0
      %v3441 = vsel %vm793, %v3417, 0
      %v3444 = vsel %vm793, %v3418, 0
      %v3447 = vsel %vm793, %v3419, 0
      %v3450 = vsel %vm793, %v3420, 0
      %v3453 = vsel %vm900, %v3426, 0
      %v3456 = vsel %vm900, %v3427, 0
      %3458 = vmatprep.subr.bf16.mxu0 %v3456
      %3459 = vmatpush1.bf16.msra.mxu0 %v3453
      %3460 = vmatprep.subr.bf16.mxu0 0
      %3461 = vmatpush1.bf16.msra.mxu0 0
      %3462 = vmatprep.subr.bf16.mxu0 0
      %3463 = vmatpush1.bf16.msra.mxu0 0
      %3464 = vmatprep.subr.bf16.mxu0 0
      %3465 = vmatpush1.bf16.msra.mxu0 0
      %3466 = vmatprep.subr.bf16.mxu0 0
      %3467 = vmatpush1.bf16.msra.mxu0 0
      %3468 = vmatprep.subr.bf16.mxu0 0
      %3469 = vmatpush1.bf16.msra.mxu0 0
      %3470 = vmatprep.subr.bf16.mxu0 0
      %3471 = vmatpush1.bf16.msra.mxu0 0
      %3472 = vmatprep.subr.bf16.mxu0 0
      %3473 = vmatpush1.bf16.msra.mxu0 0
      %3474 = vmatprep.subr.bf16.mxu0 0
      %3475 = vmatpush1.bf16.msra.mxu0 0
      %3476 = vmatprep.subr.bf16.mxu0 0
      %3477 = vmatpush1.bf16.msra.mxu0 0
      %3478 = vmatprep.subr.bf16.mxu0 0
      %3479 = vmatpush1.bf16.msra.mxu0 0
      %3480 = vmatprep.subr.bf16.mxu0 0
      %3481 = vmatpush1.bf16.msra.mxu0 0
      %3482 = vmatprep.subr.bf16.mxu0 0
      %3483 = vmatpush1.bf16.msra.mxu0 0
      %3484 = vmatprep.subr.bf16.mxu0 0
      %3485 = vmatpush1.bf16.msra.mxu0 0
      %3486 = vmatprep.subr.bf16.mxu0 0
      %3487 = vmatpush1.bf16.msra.mxu0 0
      %3488 = vmatprep.subr.bf16.mxu0 0
      %3489 = vmatpush1.bf16.msra.mxu0 0
      %3490 = vmatprep.mubr.bf16.mxu0 0
      %3491 = vmatmul.mubr.bf16.gmra.mrb[0].mxu0 %v3429
      %v3492 = vpop.f32.mrb[0].mxu0
      %v3493 = vadd.f32 0.0, %v3492
      %v3494 = vpop.f32.mrb[0].mxu0
      %v3495 = vadd.f32 0.0, %v3494
      %v3496 = vpop.f32.mrb[0].mxu0
      %v3497 = vadd.f32 0.0, %v3496
      %v3498 = vpop.f32.mrb[0].mxu0
      %v3499 = vadd.f32 0.0, %v3498
      %3500 = vmatprep.mubr.bf16.mxu0 0
      %3501 = vmatmul.mubr.bf16.gmra.mrb[0].mxu0 %v3432
      %v3502 = vpop.f32.mrb[0].mxu0
      %v3503 = vadd.f32 0.0, %v3502
      %v3504 = vpop.f32.mrb[0].mxu0
      %v3505 = vadd.f32 0.0, %v3504
      %v3506 = vpop.f32.mrb[0].mxu0
      %v3507 = vadd.f32 0.0, %v3506
      %v3508 = vpop.f32.mrb[0].mxu0
      %v3509 = vadd.f32 0.0, %v3508
      %3510 = vmatprep.mubr.bf16.mxu0 0
      %3511 = vmatmul.mubr.bf16.gmra.mrb[0].mxu0 %v3435
      %v3512 = vpop.f32.mrb[0].mxu0
      %v3513 = vadd.f32 0.0, %v3512
      %v3514 = vpop.f32.mrb[0].mxu0
      %v3515 = vadd.f32 0.0, %v3514
      %v3516 = vpop.f32.mrb[0].mxu0
      %v3517 = vadd.f32 0.0, %v3516
      %v3518 = vpop.f32.mrb[0].mxu0
      %v3519 = vadd.f32 0.0, %v3518
      %3520 = vmatprep.mubr.bf16.mxu0 0
      %3521 = vmatmul.mubr.bf16.gmra.mrb[0].mxu0 %v3438
      %v3522 = vpop.f32.mrb[0].mxu0
      %v3523 = vadd.f32 0.0, %v3522
      %v3524 = vpop.f32.mrb[0].mxu0
      %v3525 = vadd.f32 0.0, %v3524
      %v3526 = vpop.f32.mrb[0].mxu0
      %v3527 = vadd.f32 0.0, %v3526
      %v3528 = vpop.f32.mrb[0].mxu0
      %v3529 = vadd.f32 0.0, %v3528
      %3530 = vmatprep.mubr.bf16.mxu0 0
      %3531 = vmatmul.mubr.bf16.gmra.mrb[0].mxu0 %v3441
      %v3532 = vpop.f32.mrb[0].mxu0
      %v3533 = vadd.f32 0.0, %v3532
      %v3534 = vpop.f32.mrb[0].mxu0
      %v3535 = vadd.f32 0.0, %v3534
      %v3536 = vpop.f32.mrb[0].mxu0
      %v3537 = vadd.f32 0.0, %v3536
      %v3538 = vpop.f32.mrb[0].mxu0
      %v3539 = vadd.f32 0.0, %v3538
      %3540 = vmatprep.mubr.bf16.mxu0 0
      %3541 = vmatmul.mubr.bf16.gmra.mrb[0].mxu0 %v3444
      %v3542 = vpop.f32.mrb[0].mxu0
      %v3543 = vadd.f32 0.0, %v3542
      %v3544 = vpop.f32.mrb[0].mxu0
      %v3545 = vadd.f32 0.0, %v3544
      %v3546 = vpop.f32.mrb[0].mxu0
      %v3547 = vadd.f32 0.0, %v3546
      %v3548 = vpop.f32.mrb[0].mxu0
      %v3549 = vadd.f32 0.0, %v3548
      %3550 = vmatprep.mubr.bf16.mxu0 0
      %3551 = vmatmul.mubr.bf16.gmra.mrb[0].mxu0 %v3447
      %v3552 = vpop.f32.mrb[0].mxu0
      %v3553 = vadd.f32 0.0, %v3552
      %v3554 = vpop.f32.mrb[0].mxu0
      %v3555 = vadd.f32 0.0, %v3554
      %v3556 = vpop.f32.mrb[0].mxu0
      %v3557 = vadd.f32 0.0, %v3556
      %v3558 = vpop.f32.mrb[0].mxu0
      %v3559 = vadd.f32 0.0, %v3558
      %3560 = vmatprep.mubr.bf16.mxu0 0
      %3561 = vmatmul.mubr.bf16.gmra.mrb[0].mxu0 %v3450
      %v3562 = vpop.f32.mrb[0].mxu0
      %v3563 = vadd.f32 0.0, %v3562
      %v3564 = vpop.f32.mrb[0].mxu0
      %v3565 = vadd.f32 0.0, %v3564
      %v3566 = vpop.f32.mrb[0].mxu0
      %v3567 = vadd.f32 0.0, %v3566
      %v3568 = vpop.f32.mrb[0].mxu0
      %v3569 = vadd.f32 0.0, %v3568
      %3570 = vdwg.mxu0
      %v3571 = vadd.f32 %v3381, %v3493
      %v3572 = vadd.f32 %v3382, %v3495
      %v3573 = vadd.f32 %v3383, %v3497
      %v3574 = vadd.f32 %v3384, %v3499
      %v3575 = vadd.f32 %v3385, %v3503
      %v3576 = vadd.f32 %v3386, %v3505
      %v3577 = vadd.f32 %v3387, %v3507
      %v3578 = vadd.f32 %v3388, %v3509
      %v3579 = vadd.f32 %v3389, %v3513
      %v3580 = vadd.f32 %v3390, %v3515
      %v3581 = vadd.f32 %v3391, %v3517
      %v3582 = vadd.f32 %v3392, %v3519
      %v3583 = vadd.f32 %v3393, %v3523
      %v3584 = vadd.f32 %v3394, %v3525
      %v3585 = vadd.f32 %v3395, %v3527
      %v3586 = vadd.f32 %v3396, %v3529
      %v3587 = vadd.f32 %v3397, %v3533
      %v3588 = vadd.f32 %v3398, %v3535
      %v3589 = vadd.f32 %v3399, %v3537
      %v3590 = vadd.f32 %v3400, %v3539
      %v3591 = vadd.f32 %v3401, %v3543
      %v3592 = vadd.f32 %v3402, %v3545
      %v3593 = vadd.f32 %v3403, %v3547
      %v3594 = vadd.f32 %v3404, %v3549
      %v3595 = vadd.f32 %v3405, %v3553
      %v3596 = vadd.f32 %v3406, %v3555
      %v3597 = vadd.f32 %v3407, %v3557
      %v3598 = vadd.f32 %v3408, %v3559
      %v3599 = vadd.f32 %v3409, %v3563
      %v3600 = vadd.f32 %v3410, %v3565
      %v3601 = vadd.f32 %v3411, %v3567
      %v3602 = vadd.f32 %v3412, %v3569
      %v3603 = vld [vmem:[#allocation3 + $0x20] sm:$0xff]
      %v3604 = vld [vmem:[#allocation3 + $0x28] sm:$0xff]
      %v3605 = vld [vmem:[#allocation3 + $0x30] sm:$0xff]
      %v3606 = vld [vmem:[#allocation3 + $0x38] sm:$0xff]
      %v3607 = vld [vmem:[#allocation3 + $0x40] sm:$0xff]
      %v3608 = vld [vmem:[#allocation3 + $0x48] sm:$0xff]
      %v3609 = vld [vmem:[#allocation3 + $0x50] sm:$0xff]
      %v3610 = vld [vmem:[#allocation3 + $0x58] sm:$0xff]
      %s3611 = scalar_lea.vmem %s8, 32
      %v3612 = vld [vmem:[%s3611] sm:$0xff]
      %v3614 = vunpack.c.l.b16 %v3612
      %v3615 = vunpack.c.h.b16 %v3612
      %v3616 = vpack.c.b16 %v3614, %v3614
      %v3617 = vpack.c.b16 %v3615, %v3615
      %v3619 = vsel %vm793, %v3603, 0
      %v3622 = vsel %vm793, %v3604, 0
      %v3625 = vsel %vm793, %v3605, 0
      %v3628 = vsel %vm793, %v3606, 0
      %v3631 = vsel %vm793, %v3607, 0
      %v3634 = vsel %vm793, %v3608, 0
      %v3637 = vsel %vm793, %v3609, 0
      %v3640 = vsel %vm793, %v3610, 0
      %v3643 = vsel %vm900, %v3616, 0
      %v3646 = vsel %vm900, %v3617, 0
      %3648 = vmatprep.subr.bf16.mxu0 %v3646
      %3649 = vmatpush1.bf16.msra.mxu0 %v3643
      %3650 = vmatprep.subr.bf16.mxu0 0
      %3651 = vmatpush1.bf16.msra.mxu0 0
      %3652 = vmatprep.subr.bf16.mxu0 0
      %3653 = vmatpush1.bf16.msra.mxu0 0
      %3654 = vmatprep.subr.bf16.mxu0 0
      %3655 = vmatpush1.bf16.msra.mxu0 0
      %3656 = vmatprep.subr.bf16.mxu0 0
      %3657 = vmatpush1.bf16.msra.mxu0 0
      %3658 = vmatprep.subr.bf16.mxu0 0
      %3659 = vmatpush1.bf16.msra.mxu0 0
      %3660 = vmatprep.subr.bf16.mxu0 0
      %3661 = vmatpush1.bf16.msra.mxu0 0
      %3662 = vmatprep.subr.bf16.mxu0 0
      %3663 = vmatpush1.bf16.msra.mxu0 0
      %3664 = vmatprep.subr.bf16.mxu0 0
      %3665 = vmatpush1.bf16.msra.mxu0 0
      %3666 = vmatprep.subr.bf16.mxu0 0
      %3667 = vmatpush1.bf16.msra.mxu0 0
      %3668 = vmatprep.subr.bf16.mxu0 0
      %3669 = vmatpush1.bf16.msra.mxu0 0
      %3670 = vmatprep.subr.bf16.mxu0 0
      %3671 = vmatpush1.bf16.msra.mxu0 0
      %3672 = vmatprep.subr.bf16.mxu0 0
      %3673 = vmatpush1.bf16.msra.mxu0 0
      %3674 = vmatprep.subr.bf16.mxu0 0
      %3675 = vmatpush1.bf16.msra.mxu0 0
      %3676 = vmatprep.subr.bf16.mxu0 0
      %3677 = vmatpush1.bf16.msra.mxu0 0
      %3678 = vmatprep.subr.bf16.mxu0 0
      %3679 = vmatpush1.bf16.msra.mxu0 0
      %3680 = vmatprep.mubr.bf16.mxu0 0
      %3681 = vmatmul.mubr.bf16.gmra.mrb[0].mxu0 %v3619
      %v3682 = vpop.f32.mrb[0].mxu0
      %v3683 = vadd.f32 0.0, %v3682
      %v3684 = vpop.f32.mrb[0].mxu0
      %v3685 = vadd.f32 0.0, %v3684
      %v3686 = vpop.f32.mrb[0].mxu0
      %v3687 = vadd.f32 0.0, %v3686
      %v3688 = vpop.f32.mrb[0].mxu0
      %v3689 = vadd.f32 0.0, %v3688
      %3690 = vmatprep.mubr.bf16.mxu0 0
      %3691 = vmatmul.mubr.bf16.gmra.mrb[0].mxu0 %v3622
      %v3692 = vpop.f32.mrb[0].mxu0
      %v3693 = vadd.f32 0.0, %v3692
      %v3694 = vpop.f32.mrb[0].mxu0
      %v3695 = vadd.f32 0.0, %v3694
      %v3696 = vpop.f32.mrb[0].mxu0
      %v3697 = vadd.f32 0.0, %v3696
      %v3698 = vpop.f32.mrb[0].mxu0
      %v3699 = vadd.f32 0.0, %v3698
      %3700 = vmatprep.mubr.bf16.mxu0 0
      %3701 = vmatmul.mubr.bf16.gmra.mrb[0].mxu0 %v3625
      %v3702 = vpop.f32.mrb[0].mxu0
      %v3703 = vadd.f32 0.0, %v3702
      %v3704 = vpop.f32.mrb[0].mxu0
      %v3705 = vadd.f32 0.0, %v3704
      %v3706 = vpop.f32.mrb[0].mxu0
      %v3707 = vadd.f32 0.0, %v3706
      %v3708 = vpop.f32.mrb[0].mxu0
      %v3709 = vadd.f32 0.0, %v3708
      %3710 = vmatprep.mubr.bf16.mxu0 0
      %3711 = vmatmul.mubr.bf16.gmra.mrb[0].mxu0 %v3628
      %v3712 = vpop.f32.mrb[0].mxu0
      %v3713 = vadd.f32 0.0, %v3712
      %v3714 = vpop.f32.mrb[0].mxu0
      %v3715 = vadd.f32 0.0, %v3714
      %v3716 = vpop.f32.mrb[0].mxu0
      %v3717 = vadd.f32 0.0, %v3716
      %v3718 = vpop.f32.mrb[0].mxu0
      %v3719 = vadd.f32 0.0, %v3718
      %3720 = vmatprep.mubr.bf16.mxu0 0
      %3721 = vmatmul.mubr.bf16.gmra.mrb[0].mxu0 %v3631
      %v3722 = vpop.f32.mrb[0].mxu0
      %v3723 = vadd.f32 0.0, %v3722
      %v3724 = vpop.f32.mrb[0].mxu0
      %v3725 = vadd.f32 0.0, %v3724
      %v3726 = vpop.f32.mrb[0].mxu0
      %v3727 = vadd.f32 0.0, %v3726
      %v3728 = vpop.f32.mrb[0].mxu0
      %v3729 = vadd.f32 0.0, %v3728
      %3730 = vmatprep.mubr.bf16.mxu0 0
      %3731 = vmatmul.mubr.bf16.gmra.mrb[0].mxu0 %v3634
      %v3732 = vpop.f32.mrb[0].mxu0
      %v3733 = vadd.f32 0.0, %v3732
      %v3734 = vpop.f32.mrb[0].mxu0
      %v3735 = vadd.f32 0.0, %v3734
      %v3736 = vpop.f32.mrb[0].mxu0
      %v3737 = vadd.f32 0.0, %v3736
      %v3738 = vpop.f32.mrb[0].mxu0
      %v3739 = vadd.f32 0.0, %v3738
      %3740 = vmatprep.mubr.bf16.mxu0 0
      %3741 = vmatmul.mubr.bf16.gmra.mrb[0].mxu0 %v3637
      %v3742 = vpop.f32.mrb[0].mxu0
      %v3743 = vadd.f32 0.0, %v3742
      %v3744 = vpop.f32.mrb[0].mxu0
      %v3745 = vadd.f32 0.0, %v3744
      %v3746 = vpop.f32.mrb[0].mxu0
      %v3747 = vadd.f32 0.0, %v3746
      %v3748 = vpop.f32.mrb[0].mxu0
      %v3749 = vadd.f32 0.0, %v3748
      %3750 = vmatprep.mubr.bf16.mxu0 0
      %3751 = vmatmul.mubr.bf16.gmra.mrb[0].mxu0 %v3640
      %v3752 = vpop.f32.mrb[0].mxu0
      %v3753 = vadd.f32 0.0, %v3752
      %v3754 = vpop.f32.mrb[0].mxu0
      %v3755 = vadd.f32 0.0, %v3754
      %v3756 = vpop.f32.mrb[0].mxu0
      %v3757 = vadd.f32 0.0, %v3756
      %v3758 = vpop.f32.mrb[0].mxu0
      %v3759 = vadd.f32 0.0, %v3758
      %3760 = vdwg.mxu0
      %v3761 = vadd.f32 %v3571, %v3683
      %v3762 = vadd.f32 %v3572, %v3685
      %v3763 = vadd.f32 %v3573, %v3687
      %v3764 = vadd.f32 %v3574, %v3689
      %v3765 = vadd.f32 %v3575, %v3693
      %v3766 = vadd.f32 %v3576, %v3695
      %v3767 = vadd.f32 %v3577, %v3697
      %v3768 = vadd.f32 %v3578, %v3699
      %v3769 = vadd.f32 %v3579, %v3703
      %v3770 = vadd.f32 %v3580, %v3705
      %v3771 = vadd.f32 %v3581, %v3707
      %v3772 = vadd.f32 %v3582, %v3709
      %v3773 = vadd.f32 %v3583, %v3713
      %v3774 = vadd.f32 %v3584, %v3715
      %v3775 = vadd.f32 %v3585, %v3717
      %v3776 = vadd.f32 %v3586, %v3719
      %v3777 = vadd.f32 %v3587, %v3723
      %v3778 = vadd.f32 %v3588, %v3725
      %v3779 = vadd.f32 %v3589, %v3727
      %v3780 = vadd.f32 %v3590, %v3729
      %v3781 = vadd.f32 %v3591, %v3733
      %v3782 = vadd.f32 %v3592, %v3735
      %v3783 = vadd.f32 %v3593, %v3737
      %v3784 = vadd.f32 %v3594, %v3739
      %v3785 = vadd.f32 %v3595, %v3743
      %v3786 = vadd.f32 %v3596, %v3745
      %v3787 = vadd.f32 %v3597, %v3747
      %v3788 = vadd.f32 %v3598, %v3749
      %v3789 = vadd.f32 %v3599, %v3753
      %v3790 = vadd.f32 %v3600, %v3755
      %v3791 = vadd.f32 %v3601, %v3757
      %v3792 = vadd.f32 %v3602, %v3759
      %v3793 = vld [vmem:[#allocation3 + $0x28] sm:$0xff]
      %v3794 = vld [vmem:[#allocation3 + $0x30] sm:$0xff]
      %v3795 = vld [vmem:[#allocation3 + $0x38] sm:$0xff]
      %v3796 = vld [vmem:[#allocation3 + $0x40] sm:$0xff]
      %v3797 = vld [vmem:[#allocation3 + $0x48] sm:$0xff]
      %v3798 = vld [vmem:[#allocation3 + $0x50] sm:$0xff]
      %v3799 = vld [vmem:[#allocation3 + $0x58] sm:$0xff]
      %v3800 = vld [vmem:[#allocation3 + $0x60] sm:$0xff]
      %s3801 = scalar_lea.vmem %s8, 40
      %v3802 = vld [vmem:[%s3801] sm:$0xff]
      %v3804 = vunpack.c.l.b16 %v3802
      %v3805 = vunpack.c.h.b16 %v3802
      %v3806 = vpack.c.b16 %v3804, %v3804
      %v3807 = vpack.c.b16 %v3805, %v3805
      %v3809 = vsel %vm793, %v3793, 0
      %v3812 = vsel %vm793, %v3794, 0
      %v3815 = vsel %vm793, %v3795, 0
      %v3818 = vsel %vm793, %v3796, 0
      %v3821 = vsel %vm793, %v3797, 0
      %v3824 = vsel %vm793, %v3798, 0
      %v3827 = vsel %vm793, %v3799, 0
      %v3830 = vsel %vm793, %v3800, 0
      %v3833 = vsel %vm900, %v3806, 0
      %v3836 = vsel %vm900, %v3807, 0
      %3838 = vmatprep.subr.bf16.mxu0 %v3836
      %3839 = vmatpush1.bf16.msra.mxu0 %v3833
      %3840 = vmatprep.subr.bf16.mxu0 0
      %3841 = vmatpush1.bf16.msra.mxu0 0
      %3842 = vmatprep.subr.bf16.mxu0 0
      %3843 = vmatpush1.bf16.msra.mxu0 0
      %3844 = vmatprep.subr.bf16.mxu0 0
      %3845 = vmatpush1.bf16.msra.mxu0 0
      %3846 = vmatprep.subr.bf16.mxu0 0
      %3847 = vmatpush1.bf16.msra.mxu0 0
      %3848 = vmatprep.subr.bf16.mxu0 0
      %3849 = vmatpush1.bf16.msra.mxu0 0
      %3850 = vmatprep.subr.bf16.mxu0 0
      %3851 = vmatpush1.bf16.msra.mxu0 0
      %3852 = vmatprep.subr.bf16.mxu0 0
      %3853 = vmatpush1.bf16.msra.mxu0 0
      %3854 = vmatprep.subr.bf16.mxu0 0
      %3855 = vmatpush1.bf16.msra.mxu0 0
      %3856 = vmatprep.subr.bf16.mxu0 0
      %3857 = vmatpush1.bf16.msra.mxu0 0
      %3858 = vmatprep.subr.bf16.mxu0 0
      %3859 = vmatpush1.bf16.msra.mxu0 0
      %3860 = vmatprep.subr.bf16.mxu0 0
      %3861 = vmatpush1.bf16.msra.mxu0 0
      %3862 = vmatprep.subr.bf16.mxu0 0
      %3863 = vmatpush1.bf16.msra.mxu0 0
      %3864 = vmatprep.subr.bf16.mxu0 0
      %3865 = vmatpush1.bf16.msra.mxu0 0
      %3866 = vmatprep.subr.bf16.mxu0 0
      %3867 = vmatpush1.bf16.msra.mxu0 0
      %3868 = vmatprep.subr.bf16.mxu0 0
      %3869 = vmatpush1.bf16.msra.mxu0 0
      %3870 = vmatprep.mubr.bf16.mxu0 0
      %3871 = vmatmul.mubr.bf16.gmra.mrb[0].mxu0 %v3809
      %v3872 = vpop.f32.mrb[0].mxu0
      %v3873 = vadd.f32 0.0, %v3872
      %v3874 = vpop.f32.mrb[0].mxu0
      %v3875 = vadd.f32 0.0, %v3874
      %v3876 = vpop.f32.mrb[0].mxu0
      %v3877 = vadd.f32 0.0, %v3876
      %v3878 = vpop.f32.mrb[0].mxu0
      %v3879 = vadd.f32 0.0, %v3878
      %3880 = vmatprep.mubr.bf16.mxu0 0
      %3881 = vmatmul.mubr.bf16.gmra.mrb[0].mxu0 %v3812
      %v3882 = vpop.f32.mrb[0].mxu0
      %v3883 = vadd.f32 0.0, %v3882
      %v3884 = vpop.f32.mrb[0].mxu0
      %v3885 = vadd.f32 0.0, %v3884
      %v3886 = vpop.f32.mrb[0].mxu0
      %v3887 = vadd.f32 0.0, %v3886
      %v3888 = vpop.f32.mrb[0].mxu0
      %v3889 = vadd.f32 0.0, %v3888
      %3890 = vmatprep.mubr.bf16.mxu0 0
      %3891 = vmatmul.mubr.bf16.gmra.mrb[0].mxu0 %v3815
      %v3892 = vpop.f32.mrb[0].mxu0
      %v3893 = vadd.f32 0.0, %v3892
      %v3894 = vpop.f32.mrb[0].mxu0
      %v3895 = vadd.f32 0.0, %v3894
      %v3896 = vpop.f32.mrb[0].mxu0
      %v3897 = vadd.f32 0.0, %v3896
      %v3898 = vpop.f32.mrb[0].mxu0
      %v3899 = vadd.f32 0.0, %v3898
      %3900 = vmatprep.mubr.bf16.mxu0 0
      %3901 = vmatmul.mubr.bf16.gmra.mrb[0].mxu0 %v3818
      %v3902 = vpop.f32.mrb[0].mxu0
      %v3903 = vadd.f32 0.0, %v3902
      %v3904 = vpop.f32.mrb[0].mxu0
      %v3905 = vadd.f32 0.0, %v3904
      %v3906 = vpop.f32.mrb[0].mxu0
      %v3907 = vadd.f32 0.0, %v3906
      %v3908 = vpop.f32.mrb[0].mxu0
      %v3909 = vadd.f32 0.0, %v3908
      %3910 = vmatprep.mubr.bf16.mxu0 0
      %3911 = vmatmul.mubr.bf16.gmra.mrb[0].mxu0 %v3821
      %v3912 = vpop.f32.mrb[0].mxu0
      %v3913 = vadd.f32 0.0, %v3912
      %v3914 = vpop.f32.mrb[0].mxu0
      %v3915 = vadd.f32 0.0, %v3914
      %v3916 = vpop.f32.mrb[0].mxu0
      %v3917 = vadd.f32 0.0, %v3916
      %v3918 = vpop.f32.mrb[0].mxu0
      %v3919 = vadd.f32 0.0, %v3918
      %3920 = vmatprep.mubr.bf16.mxu0 0
      %3921 = vmatmul.mubr.bf16.gmra.mrb[0].mxu0 %v3824
      %v3922 = vpop.f32.mrb[0].mxu0
      %v3923 = vadd.f32 0.0, %v3922
      %v3924 = vpop.f32.mrb[0].mxu0
      %v3925 = vadd.f32 0.0, %v3924
      %v3926 = vpop.f32.mrb[0].mxu0
      %v3927 = vadd.f32 0.0, %v3926
      %v3928 = vpop.f32.mrb[0].mxu0
      %v3929 = vadd.f32 0.0, %v3928
      %3930 = vmatprep.mubr.bf16.mxu0 0
      %3931 = vmatmul.mubr.bf16.gmra.mrb[0].mxu0 %v3827
      %v3932 = vpop.f32.mrb[0].mxu0
      %v3933 = vadd.f32 0.0, %v3932
      %v3934 = vpop.f32.mrb[0].mxu0
      %v3935 = vadd.f32 0.0, %v3934
      %v3936 = vpop.f32.mrb[0].mxu0
      %v3937 = vadd.f32 0.0, %v3936
      %v3938 = vpop.f32.mrb[0].mxu0
      %v3939 = vadd.f32 0.0, %v3938
      %3940 = vmatprep.mubr.bf16.mxu0 0
      %3941 = vmatmul.mubr.bf16.gmra.mrb[0].mxu0 %v3830
      %v3942 = vpop.f32.mrb[0].mxu0
      %v3943 = vadd.f32 0.0, %v3942
      %v3944 = vpop.f32.mrb[0].mxu0
      %v3945 = vadd.f32 0.0, %v3944
      %v3946 = vpop.f32.mrb[0].mxu0
      %v3947 = vadd.f32 0.0, %v3946
      %v3948 = vpop.f32.mrb[0].mxu0
      %v3949 = vadd.f32 0.0, %v3948
      %3950 = vdwg.mxu0
      %v3951 = vadd.f32 %v3761, %v3873
      %v3952 = vadd.f32 %v3762, %v3875
      %v3953 = vadd.f32 %v3763, %v3877
      %v3954 = vadd.f32 %v3764, %v3879
      %v3955 = vadd.f32 %v3765, %v3883
      %v3956 = vadd.f32 %v3766, %v3885
      %v3957 = vadd.f32 %v3767, %v3887
      %v3958 = vadd.f32 %v3768, %v3889
      %v3959 = vadd.f32 %v3769, %v3893
      %v3960 = vadd.f32 %v3770, %v3895
      %v3961 = vadd.f32 %v3771, %v3897
      %v3962 = vadd.f32 %v3772, %v3899
      %v3963 = vadd.f32 %v3773, %v3903
      %v3964 = vadd.f32 %v3774, %v3905
      %v3965 = vadd.f32 %v3775, %v3907
      %v3966 = vadd.f32 %v3776, %v3909
      %v3967 = vadd.f32 %v3777, %v3913
      %v3968 = vadd.f32 %v3778, %v3915
      %v3969 = vadd.f32 %v3779, %v3917
      %v3970 = vadd.f32 %v3780, %v3919
      %v3971 = vadd.f32 %v3781, %v3923
      %v3972 = vadd.f32 %v3782, %v3925
      %v3973 = vadd.f32 %v3783, %v3927
      %v3974 = vadd.f32 %v3784, %v3929
      %v3975 = vadd.f32 %v3785, %v3933
      %v3976 = vadd.f32 %v3786, %v3935
      %v3977 = vadd.f32 %v3787, %v3937
      %v3978 = vadd.f32 %v3788, %v3939
      %v3979 = vadd.f32 %v3789, %v3943
      %v3980 = vadd.f32 %v3790, %v3945
      %v3981 = vadd.f32 %v3791, %v3947
      %v3982 = vadd.f32 %v3792, %v3949
      %v3983 = vld [vmem:[#allocation3 + $0x30] sm:$0xff]
      %v3984 = vld [vmem:[#allocation3 + $0x38] sm:$0xff]
      %v3985 = vld [vmem:[#allocation3 + $0x40] sm:$0xff]
      %v3986 = vld [vmem:[#allocation3 + $0x48] sm:$0xff]
      %v3987 = vld [vmem:[#allocation3 + $0x50] sm:$0xff]
      %v3988 = vld [vmem:[#allocation3 + $0x58] sm:$0xff]
      %v3989 = vld [vmem:[#allocation3 + $0x60] sm:$0xff]
      %v3990 = vld [vmem:[#allocation3 + $0x68] sm:$0xff]
      %s3991 = scalar_lea.vmem %s8, 48
      %v3992 = vld [vmem:[%s3991] sm:$0xff]
      %v3994 = vunpack.c.l.b16 %v3992
      %v3995 = vunpack.c.h.b16 %v3992
      %v3996 = vpack.c.b16 %v3994, %v3994
      %v3997 = vpack.c.b16 %v3995, %v3995
      %v3999 = vsel %vm793, %v3983, 0
      %v4002 = vsel %vm793, %v3984, 0
      %v4005 = vsel %vm793, %v3985, 0
      %v4008 = vsel %vm793, %v3986, 0
      %v4011 = vsel %vm793, %v3987, 0
      %v4014 = vsel %vm793, %v3988, 0
      %v4017 = vsel %vm793, %v3989, 0
      %v4020 = vsel %vm793, %v3990, 0
      %v4023 = vsel %vm900, %v3996, 0
      %v4026 = vsel %vm900, %v3997, 0
      %4028 = vmatprep.subr.bf16.mxu0 %v4026
      %4029 = vmatpush1.bf16.msra.mxu0 %v4023
      %4030 = vmatprep.subr.bf16.mxu0 0
      %4031 = vmatpush1.bf16.msra.mxu0 0
      %4032 = vmatprep.subr.bf16.mxu0 0
      %4033 = vmatpush1.bf16.msra.mxu0 0
      %4034 = vmatprep.subr.bf16.mxu0 0
      %4035 = vmatpush1.bf16.msra.mxu0 0
      %4036 = vmatprep.subr.bf16.mxu0 0
      %4037 = vmatpush1.bf16.msra.mxu0 0
      %4038 = vmatprep.subr.bf16.mxu0 0
      %4039 = vmatpush1.bf16.msra.mxu0 0
      %4040 = vmatprep.subr.bf16.mxu0 0
      %4041 = vmatpush1.bf16.msra.mxu0 0
      %4042 = vmatprep.subr.bf16.mxu0 0
      %4043 = vmatpush1.bf16.msra.mxu0 0
      %4044 = vmatprep.subr.bf16.mxu0 0
      %4045 = vmatpush1.bf16.msra.mxu0 0
      %4046 = vmatprep.subr.bf16.mxu0 0
      %4047 = vmatpush1.bf16.msra.mxu0 0
      %4048 = vmatprep.subr.bf16.mxu0 0
      %4049 = vmatpush1.bf16.msra.mxu0 0
      %4050 = vmatprep.subr.bf16.mxu0 0
      %4051 = vmatpush1.bf16.msra.mxu0 0
      %4052 = vmatprep.subr.bf16.mxu0 0
      %4053 = vmatpush1.bf16.msra.mxu0 0
      %4054 = vmatprep.subr.bf16.mxu0 0
      %4055 = vmatpush1.bf16.msra.mxu0 0
      %4056 = vmatprep.subr.bf16.mxu0 0
      %4057 = vmatpush1.bf16.msra.mxu0 0
      %4058 = vmatprep.subr.bf16.mxu0 0
      %4059 = vmatpush1.bf16.msra.mxu0 0
      %4060 = vmatprep.mubr.bf16.mxu0 0
      %4061 = vmatmul.mubr.bf16.gmra.mrb[0].mxu0 %v3999
      %v4062 = vpop.f32.mrb[0].mxu0
      %v4063 = vadd.f32 0.0, %v4062
      %v4064 = vpop.f32.mrb[0].mxu0
      %v4065 = vadd.f32 0.0, %v4064
      %v4066 = vpop.f32.mrb[0].mxu0
      %v4067 = vadd.f32 0.0, %v4066
      %v4068 = vpop.f32.mrb[0].mxu0
      %v4069 = vadd.f32 0.0, %v4068
      %4070 = vmatprep.mubr.bf16.mxu0 0
      %4071 = vmatmul.mubr.bf16.gmra.mrb[0].mxu0 %v4002
      %v4072 = vpop.f32.mrb[0].mxu0
      %v4073 = vadd.f32 0.0, %v4072
      %v4074 = vpop.f32.mrb[0].mxu0
      %v4075 = vadd.f32 0.0, %v4074
      %v4076 = vpop.f32.mrb[0].mxu0
      %v4077 = vadd.f32 0.0, %v4076
      %v4078 = vpop.f32.mrb[0].mxu0
      %v4079 = vadd.f32 0.0, %v4078
      %4080 = vmatprep.mubr.bf16.mxu0 0
      %4081 = vmatmul.mubr.bf16.gmra.mrb[0].mxu0 %v4005
      %v4082 = vpop.f32.mrb[0].mxu0
      %v4083 = vadd.f32 0.0, %v4082
      %v4084 = vpop.f32.mrb[0].mxu0
      %v4085 = vadd.f32 0.0, %v4084
      %v4086 = vpop.f32.mrb[0].mxu0
      %v4087 = vadd.f32 0.0, %v4086
      %v4088 = vpop.f32.mrb[0].mxu0
      %v4089 = vadd.f32 0.0, %v4088
      %4090 = vmatprep.mubr.bf16.mxu0 0
      %4091 = vmatmul.mubr.bf16.gmra.mrb[0].mxu0 %v4008
      %v4092 = vpop.f32.mrb[0].mxu0
      %v4093 = vadd.f32 0.0, %v4092
      %v4094 = vpop.f32.mrb[0].mxu0
      %v4095 = vadd.f32 0.0, %v4094
      %v4096 = vpop.f32.mrb[0].mxu0
      %v4097 = vadd.f32 0.0, %v4096
      %v4098 = vpop.f32.mrb[0].mxu0
      %v4099 = vadd.f32 0.0, %v4098
      %4100 = vmatprep.mubr.bf16.mxu0 0
      %4101 = vmatmul.mubr.bf16.gmra.mrb[0].mxu0 %v4011
      %v4102 = vpop.f32.mrb[0].mxu0
      %v4103 = vadd.f32 0.0, %v4102
      %v4104 = vpop.f32.mrb[0].mxu0
      %v4105 = vadd.f32 0.0, %v4104
      %v4106 = vpop.f32.mrb[0].mxu0
      %v4107 = vadd.f32 0.0, %v4106
      %v4108 = vpop.f32.mrb[0].mxu0
      %v4109 = vadd.f32 0.0, %v4108
      %4110 = vmatprep.mubr.bf16.mxu0 0
      %4111 = vmatmul.mubr.bf16.gmra.mrb[0].mxu0 %v4014
      %v4112 = vpop.f32.mrb[0].mxu0
      %v4113 = vadd.f32 0.0, %v4112
      %v4114 = vpop.f32.mrb[0].mxu0
      %v4115 = vadd.f32 0.0, %v4114
      %v4116 = vpop.f32.mrb[0].mxu0
      %v4117 = vadd.f32 0.0, %v4116
      %v4118 = vpop.f32.mrb[0].mxu0
      %v4119 = vadd.f32 0.0, %v4118
      %4120 = vmatprep.mubr.bf16.mxu0 0
      %4121 = vmatmul.mubr.bf16.gmra.mrb[0].mxu0 %v4017
      %v4122 = vpop.f32.mrb[0].mxu0
      %v4123 = vadd.f32 0.0, %v4122
      %v4124 = vpop.f32.mrb[0].mxu0
      %v4125 = vadd.f32 0.0, %v4124
      %v4126 = vpop.f32.mrb[0].mxu0
      %v4127 = vadd.f32 0.0, %v4126
      %v4128 = vpop.f32.mrb[0].mxu0
      %v4129 = vadd.f32 0.0, %v4128
      %4130 = vmatprep.mubr.bf16.mxu0 0
      %4131 = vmatmul.mubr.bf16.gmra.mrb[0].mxu0 %v4020
      %v4132 = vpop.f32.mrb[0].mxu0
      %v4133 = vadd.f32 0.0, %v4132
      %v4134 = vpop.f32.mrb[0].mxu0
      %v4135 = vadd.f32 0.0, %v4134
      %v4136 = vpop.f32.mrb[0].mxu0
      %v4137 = vadd.f32 0.0, %v4136
      %v4138 = vpop.f32.mrb[0].mxu0
      %v4139 = vadd.f32 0.0, %v4138
      %4140 = vdwg.mxu0
      %v4141 = vadd.f32 %v3951, %v4063
      %v4142 = vadd.f32 %v3952, %v4065
      %v4143 = vadd.f32 %v3953, %v4067
      %v4144 = vadd.f32 %v3954, %v4069
      %v4145 = vadd.f32 %v3955, %v4073
      %v4146 = vadd.f32 %v3956, %v4075
      %v4147 = vadd.f32 %v3957, %v4077
      %v4148 = vadd.f32 %v3958, %v4079
      %v4149 = vadd.f32 %v3959, %v4083
      %v4150 = vadd.f32 %v3960, %v4085
      %v4151 = vadd.f32 %v3961, %v4087
      %v4152 = vadd.f32 %v3962, %v4089
      %v4153 = vadd.f32 %v3963, %v4093
      %v4154 = vadd.f32 %v3964, %v4095
      %v4155 = vadd.f32 %v3965, %v4097
      %v4156 = vadd.f32 %v3966, %v4099
      %v4157 = vadd.f32 %v3967, %v4103
      %v4158 = vadd.f32 %v3968, %v4105
      %v4159 = vadd.f32 %v3969, %v4107
      %v4160 = vadd.f32 %v3970, %v4109
      %v4161 = vadd.f32 %v3971, %v4113
      %v4162 = vadd.f32 %v3972, %v4115
      %v4163 = vadd.f32 %v3973, %v4117
      %v4164 = vadd.f32 %v3974, %v4119
      %v4165 = vadd.f32 %v3975, %v4123
      %v4166 = vadd.f32 %v3976, %v4125
      %v4167 = vadd.f32 %v3977, %v4127
      %v4168 = vadd.f32 %v3978, %v4129
      %v4169 = vadd.f32 %v3979, %v4133
      %v4170 = vadd.f32 %v3980, %v4135
      %v4171 = vadd.f32 %v3981, %v4137
      %v4172 = vadd.f32 %v3982, %v4139
      %v4174 = vlaneseq
      %v4175 = vshrl.u32 %v4174, 7
      %v4176 = vsub.s32 0, %v4175
      %v4177 = vrot.slane %v2934, %v4176
      %v4178 = vlaneseq
      %v4179 = vshrl.u32 %v4178, 7
      %v4180 = vsub.s32 1, %v4179
      %v4181 = vrot.slane %v2934, %v4180
      %v4184 = vmul.f32 %v4141, %v4177
      %v4185 = vmul.f32 %v4142, %v4181
      %v4186 = vmul.f32 %v4143, %v4177
      %v4187 = vmul.f32 %v4144, %v4181
      %v4188 = vmul.f32 %v4145, %v4177
      %v4189 = vmul.f32 %v4146, %v4181
      %v4190 = vmul.f32 %v4147, %v4177
      %v4191 = vmul.f32 %v4148, %v4181
      %v4192 = vmul.f32 %v4149, %v4177
      %v4193 = vmul.f32 %v4150, %v4181
      %v4194 = vmul.f32 %v4151, %v4177
      %v4195 = vmul.f32 %v4152, %v4181
      %v4196 = vmul.f32 %v4153, %v4177
      %v4197 = vmul.f32 %v4154, %v4181
      %v4198 = vmul.f32 %v4155, %v4177
      %v4199 = vmul.f32 %v4156, %v4181
      %v4200 = vmul.f32 %v4157, %v4177
      %v4201 = vmul.f32 %v4158, %v4181
      %v4202 = vmul.f32 %v4159, %v4177
      %v4203 = vmul.f32 %v4160, %v4181
      %v4204 = vmul.f32 %v4161, %v4177
      %v4205 = vmul.f32 %v4162, %v4181
      %v4206 = vmul.f32 %v4163, %v4177
      %v4207 = vmul.f32 %v4164, %v4181
      %v4208 = vmul.f32 %v4165, %v4177
      %v4209 = vmul.f32 %v4166, %v4181
      %v4210 = vmul.f32 %v4167, %v4177
      %v4211 = vmul.f32 %v4168, %v4181
      %v4212 = vmul.f32 %v4169, %v4177
      %v4213 = vmul.f32 %v4170, %v4181
      %v4214 = vmul.f32 %v4171, %v4177
      %v4215 = vmul.f32 %v4172, %v4181
      %v4217 = vlaneseq
      %v4218 = vshrl.u32 %v4217, 7
      %v4219 = vsub.s32 0, %v4218
      %v4220 = vrot.slane %v2935, %v4219
      %v4221 = vlaneseq
      %v4222 = vshrl.u32 %v4221, 7
      %v4223 = vsub.s32 1, %v4222
      %v4224 = vrot.slane %v2935, %v4223
      %v4227 = vadd.f32 %v4184, %v4220
      %v4228 = vadd.f32 %v4185, %v4224
      %v4229 = vadd.f32 %v4186, %v4220
      %v4230 = vadd.f32 %v4187, %v4224
      %v4231 = vadd.f32 %v4188, %v4220
      %v4232 = vadd.f32 %v4189, %v4224
      %v4233 = vadd.f32 %v4190, %v4220
      %v4234 = vadd.f32 %v4191, %v4224
      %v4235 = vadd.f32 %v4192, %v4220
      %v4236 = vadd.f32 %v4193, %v4224
      %v4237 = vadd.f32 %v4194, %v4220
      %v4238 = vadd.f32 %v4195, %v4224
      %v4239 = vadd.f32 %v4196, %v4220
      %v4240 = vadd.f32 %v4197, %v4224
      %v4241 = vadd.f32 %v4198, %v4220
      %v4242 = vadd.f32 %v4199, %v4224
      %v4243 = vadd.f32 %v4200, %v4220
      %v4244 = vadd.f32 %v4201, %v4224
      %v4245 = vadd.f32 %v4202, %v4220
      %v4246 = vadd.f32 %v4203, %v4224
      %v4247 = vadd.f32 %v4204, %v4220
      %v4248 = vadd.f32 %v4205, %v4224
      %v4249 = vadd.f32 %v4206, %v4220
      %v4250 = vadd.f32 %v4207, %v4224
      %v4251 = vadd.f32 %v4208, %v4220
      %v4252 = vadd.f32 %v4209, %v4224
      %v4253 = vadd.f32 %v4210, %v4220
      %v4254 = vadd.f32 %v4211, %v4224
      %v4255 = vadd.f32 %v4212, %v4220
      %v4256 = vadd.f32 %v4213, %v4224
      %v4257 = vadd.f32 %v4214, %v4220
      %v4258 = vadd.f32 %v4215, %v4224
      %v4259 = vmax.f32 %v4227, 0.0
      %v4260 = vmax.f32 %v4228, 0.0
      %v4261 = vmax.f32 %v4229, 0.0
      %v4262 = vmax.f32 %v4230, 0.0
      %v4263 = vmax.f32 %v4231, 0.0
      %v4264 = vmax.f32 %v4232, 0.0
      %v4265 = vmax.f32 %v4233, 0.0
      %v4266 = vmax.f32 %v4234, 0.0
      %v4267 = vmax.f32 %v4235, 0.0
      %v4268 = vmax.f32 %v4236, 0.0
      %v4269 = vmax.f32 %v4237, 0.0
      %v4270 = vmax.f32 %v4238, 0.0
      %v4271 = vmax.f32 %v4239, 0.0
      %v4272 = vmax.f32 %v4240, 0.0
      %v4273 = vmax.f32 %v4241, 0.0
      %v4274 = vmax.f32 %v4242, 0.0
      %v4275 = vmax.f32 %v4243, 0.0
      %v4276 = vmax.f32 %v4244, 0.0
      %v4277 = vmax.f32 %v4245, 0.0
      %v4278 = vmax.f32 %v4246, 0.0
      %v4279 = vmax.f32 %v4247, 0.0
      %v4280 = vmax.f32 %v4248, 0.0
      %v4281 = vmax.f32 %v4249, 0.0
      %v4282 = vmax.f32 %v4250, 0.0
      %v4283 = vmax.f32 %v4251, 0.0
      %v4284 = vmax.f32 %v4252, 0.0
      %v4285 = vmax.f32 %v4253, 0.0
      %v4286 = vmax.f32 %v4254, 0.0
      %v4287 = vmax.f32 %v4255, 0.0
      %v4288 = vmax.f32 %v4256, 0.0
      %v4289 = vmax.f32 %v4257, 0.0
      %v4290 = vmax.f32 %v4258, 0.0
      %v4291 = vpack.c.bf16 %v4261, %v4259
      %v4292 = vpack.c.bf16 %v4262, %v4260
      %v4293 = vpack.c.bf16 %v4265, %v4263
      %v4294 = vpack.c.bf16 %v4266, %v4264
      %v4295 = vpack.c.bf16 %v4269, %v4267
      %v4296 = vpack.c.bf16 %v4270, %v4268
      %v4297 = vpack.c.bf16 %v4273, %v4271
      %v4298 = vpack.c.bf16 %v4274, %v4272
      %v4299 = vpack.c.bf16 %v4277, %v4275
      %v4300 = vpack.c.bf16 %v4278, %v4276
      %v4301 = vpack.c.bf16 %v4281, %v4279
      %v4302 = vpack.c.bf16 %v4282, %v4280
      %v4303 = vpack.c.bf16 %v4285, %v4283
      %v4304 = vpack.c.bf16 %v4286, %v4284
      %v4305 = vpack.c.bf16 %v4289, %v4287
      %v4306 = vpack.c.bf16 %v4290, %v4288
      %v4323 = vunpack.c.l.b16 %v4291
      %v4324 = vunpack.c.l.b16 %v4292
      %v4325 = vunpack.c.h.b16 %v4291
      %v4326 = vunpack.c.h.b16 %v4292
      %v4327 = vunpack.c.l.b16 %v4293
      %v4328 = vunpack.c.l.b16 %v4294
      %v4329 = vunpack.c.h.b16 %v4293
      %v4330 = vunpack.c.h.b16 %v4294
      %v4331 = vunpack.c.l.b16 %v4295
      %v4332 = vunpack.c.l.b16 %v4296
      %v4333 = vunpack.c.h.b16 %v4295
      %v4334 = vunpack.c.h.b16 %v4296
      %v4335 = vunpack.c.l.b16 %v4297
      %v4336 = vunpack.c.l.b16 %v4298
      %v4337 = vunpack.c.h.b16 %v4297
      %v4338 = vunpack.c.h.b16 %v4298
      %v4339 = vunpack.c.l.b16 %v4299
      %v4340 = vunpack.c.l.b16 %v4300
      %v4341 = vunpack.c.h.b16 %v4299
      %v4342 = vunpack.c.h.b16 %v4300
      %v4343 = vunpack.c.l.b16 %v4301
      %v4344 = vunpack.c.l.b16 %v4302
      %v4345 = vunpack.c.h.b16 %v4301
      %v4346 = vunpack.c.h.b16 %v4302
      %v4347 = vunpack.c.l.b16 %v4303
      %v4348 = vunpack.c.l.b16 %v4304
      %v4349 = vunpack.c.h.b16 %v4303
      %v4350 = vunpack.c.h.b16 %v4304
      %v4351 = vunpack.c.l.b16 %v4305
      %v4352 = vunpack.c.l.b16 %v4306
      %v4353 = vunpack.c.h.b16 %v4305
      %v4354 = vunpack.c.h.b16 %v4306
      %v4355 = vpack.c.b16 %v4324, %v4323
      %v4356 = vpack.c.b16 %v4326, %v4325
      %v4357 = vpack.c.b16 %v4328, %v4327
      %v4358 = vpack.c.b16 %v4330, %v4329
      %v4359 = vpack.c.b16 %v4332, %v4331
      %v4360 = vpack.c.b16 %v4334, %v4333
      %v4361 = vpack.c.b16 %v4336, %v4335
      %v4362 = vpack.c.b16 %v4338, %v4337
      %v4363 = vpack.c.b16 %v4340, %v4339
      %v4364 = vpack.c.b16 %v4342, %v4341
      %v4365 = vpack.c.b16 %v4344, %v4343
      %v4366 = vpack.c.b16 %v4346, %v4345
      %v4367 = vpack.c.b16 %v4348, %v4347
      %v4368 = vpack.c.b16 %v4350, %v4349
      %v4369 = vpack.c.b16 %v4352, %v4351
      %v4370 = vpack.c.b16 %v4354, %v4353
      %s4387 = scalar_lea.vmem %s791, 128
      %4388 = vst.msk [vmem:[%s4387] sm:$0xff] %vm1468, %v4355
      %4389 = vst.msk [vmem:[%s4387 + $0x8] sm:$0xff] %vm1468, %v4356
      %4390 = vst.msk [vmem:[%s4387 + $0x10] sm:$0xff] %vm1468, %v4357
      %4391 = vst.msk [vmem:[%s4387 + $0x18] sm:$0xff] %vm1468, %v4358
      %4392 = vst.msk [vmem:[%s4387 + $0x20] sm:$0xff] %vm1468, %v4359
      %4393 = vst.msk [vmem:[%s4387 + $0x28] sm:$0xff] %vm1468, %v4360
      %4394 = vst.msk [vmem:[%s4387 + $0x30] sm:$0xff] %vm1468, %v4361
      %4395 = vst.msk [vmem:[%s4387 + $0x38] sm:$0xff] %vm1468, %v4362
      %4396 = vst.msk [vmem:[%s4387 + $0x40] sm:$0xff] %vm1468, %v4363
      %4397 = vst.msk [vmem:[%s4387 + $0x48] sm:$0xff] %vm1468, %v4364
      %4398 = vst.msk [vmem:[%s4387 + $0x50] sm:$0xff] %vm1468, %v4365
      %4399 = vst.msk [vmem:[%s4387 + $0x58] sm:$0xff] %vm1468, %v4366
      %4400 = vst.msk [vmem:[%s4387 + $0x60] sm:$0xff] %vm1468, %v4367
      %4401 = vst.msk [vmem:[%s4387 + $0x68] sm:$0xff] %vm1468, %v4368
      %4402 = vst.msk [vmem:[%s4387 + $0x70] sm:$0xff] %vm1468, %v4369
      %4403 = vst.msk [vmem:[%s4387 + $0x78] sm:$0xff] %vm1468, %v4370
      %v4404 = vld [vmem:[%s12] sm:$0x1]
      %v4405 = vld [vmem:[%s13] sm:$0x1]
      %v4406 = vld [vmem:[#allocation4] sm:$0xff]
      %v4407 = vld [vmem:[#allocation4 + $0x8] sm:$0xff]
      %v4408 = vld [vmem:[#allocation4 + $0x10] sm:$0xff]
      %v4409 = vld [vmem:[#allocation4 + $0x18] sm:$0xff]
      %v4410 = vld [vmem:[#allocation4 + $0x20] sm:$0xff]
      %v4411 = vld [vmem:[#allocation4 + $0x28] sm:$0xff]
      %v4412 = vld [vmem:[#allocation4 + $0x30] sm:$0xff]
      %v4413 = vld [vmem:[#allocation4 + $0x38] sm:$0xff]
      %v4414 = vld [vmem:[%s11] sm:$0xf]
      %v4415 = vld [vmem:[#allocation4 + $0x40] sm:$0xff]
      %s4416 = scalar_lea.vmem %s11, 4
      %v4417 = vld [vmem:[%s4416] sm:$0xf]
      %v4419 = vsel %vm793, %v4407, 0
      %v4422 = vsel %vm793, %v4408, 0
      %v4425 = vsel %vm793, %v4409, 0
      %v4428 = vsel %vm793, %v4410, 0
      %v4431 = vsel %vm793, %v4411, 0
      %v4434 = vsel %vm793, %v4412, 0
      %v4437 = vsel %vm793, %v4413, 0
      %v4440 = vsel %vm793, %v4415, 0
      %v4443 = vsel %vm900, %v4417, 0
      %4445 = vmatprep.subr.bf16.mxu0 0
      %4446 = vmatpush1.bf16.msra.mxu0 %v4443
      %4447 = vmatprep.subr.bf16.mxu0 0
      %4448 = vmatpush1.bf16.msra.mxu0 0
      %4449 = vmatprep.subr.bf16.mxu0 0
      %4450 = vmatpush1.bf16.msra.mxu0 0
      %4451 = vmatprep.subr.bf16.mxu0 0
      %4452 = vmatpush1.bf16.msra.mxu0 0
      %4453 = vmatprep.subr.bf16.mxu0 0
      %4454 = vmatpush1.bf16.msra.mxu0 0
      %4455 = vmatprep.subr.bf16.mxu0 0
      %4456 = vmatpush1.bf16.msra.mxu0 0
      %4457 = vmatprep.subr.bf16.mxu0 0
      %4458 = vmatpush1.bf16.msra.mxu0 0
      %4459 = vmatprep.subr.bf16.mxu0 0
      %4460 = vmatpush1.bf16.msra.mxu0 0
      %4461 = vmatprep.subr.bf16.mxu0 0
      %4462 = vmatpush1.bf16.msra.mxu0 0
      %4463 = vmatprep.subr.bf16.mxu0 0
      %4464 = vmatpush1.bf16.msra.mxu0 0
      %4465 = vmatprep.subr.bf16.mxu0 0
      %4466 = vmatpush1.bf16.msra.mxu0 0
      %4467 = vmatprep.subr.bf16.mxu0 0
      %4468 = vmatpush1.bf16.msra.mxu0 0
      %4469 = vmatprep.subr.bf16.mxu0 0
      %4470 = vmatpush1.bf16.msra.mxu0 0
      %4471 = vmatprep.subr.bf16.mxu0 0
      %4472 = vmatpush1.bf16.msra.mxu0 0
      %4473 = vmatprep.subr.bf16.mxu0 0
      %4474 = vmatpush1.bf16.msra.mxu0 0
      %4475 = vmatprep.subr.bf16.mxu0 0
      %4476 = vmatpush1.bf16.msra.mxu0 0
      %4477 = vmatprep.mubr.bf16.mxu0 0
      %4478 = vmatmul.mubr.bf16.gmra.mrb[0].mxu0 %v4419
      %v4479 = vpop.f32.mrb[0].mxu0
      %v4480 = vadd.f32 0.0, %v4479
      %v4481 = vpop.f32.mrb[0].mxu0
      %v4482 = vpop.f32.mrb[0].mxu0
      %v4483 = vadd.f32 0.0, %v4482
      %v4484 = vpop.f32.mrb[0].mxu0
      %4485 = vmatprep.mubr.bf16.mxu0 0
      %4486 = vmatmul.mubr.bf16.gmra.mrb[0].mxu0 %v4422
      %v4487 = vpop.f32.mrb[0].mxu0
      %v4488 = vadd.f32 0.0, %v4487
      %v4489 = vpop.f32.mrb[0].mxu0
      %v4490 = vpop.f32.mrb[0].mxu0
      %v4491 = vadd.f32 0.0, %v4490
      %v4492 = vpop.f32.mrb[0].mxu0
      %4493 = vmatprep.mubr.bf16.mxu0 0
      %4494 = vmatmul.mubr.bf16.gmra.mrb[0].mxu0 %v4425
      %v4495 = vpop.f32.mrb[0].mxu0
      %v4496 = vadd.f32 0.0, %v4495
      %v4497 = vpop.f32.mrb[0].mxu0
      %v4498 = vpop.f32.mrb[0].mxu0
      %v4499 = vadd.f32 0.0, %v4498
      %v4500 = vpop.f32.mrb[0].mxu0
      %4501 = vmatprep.mubr.bf16.mxu0 0
      %4502 = vmatmul.mubr.bf16.gmra.mrb[0].mxu0 %v4428
      %v4503 = vpop.f32.mrb[0].mxu0
      %v4504 = vadd.f32 0.0, %v4503
      %v4505 = vpop.f32.mrb[0].mxu0
      %v4506 = vpop.f32.mrb[0].mxu0
      %v4507 = vadd.f32 0.0, %v4506
      %v4508 = vpop.f32.mrb[0].mxu0
      %4509 = vmatprep.mubr.bf16.mxu0 0
      %4510 = vmatmul.mubr.bf16.gmra.mrb[0].mxu0 %v4431
      %v4511 = vpop.f32.mrb[0].mxu0
      %v4512 = vadd.f32 0.0, %v4511
      %v4513 = vpop.f32.mrb[0].mxu0
      %v4514 = vpop.f32.mrb[0].mxu0
      %v4515 = vadd.f32 0.0, %v4514
      %v4516 = vpop.f32.mrb[0].mxu0
      %4517 = vmatprep.mubr.bf16.mxu0 0
      %4518 = vmatmul.mubr.bf16.gmra.mrb[0].mxu0 %v4434
      %v4519 = vpop.f32.mrb[0].mxu0
      %v4520 = vadd.f32 0.0, %v4519
      %v4521 = vpop.f32.mrb[0].mxu0
      %v4522 = vpop.f32.mrb[0].mxu0
      %v4523 = vadd.f32 0.0, %v4522
      %v4524 = vpop.f32.mrb[0].mxu0
      %4525 = vmatprep.mubr.bf16.mxu0 0
      %4526 = vmatmul.mubr.bf16.gmra.mrb[0].mxu0 %v4437
      %v4527 = vpop.f32.mrb[0].mxu0
      %v4528 = vadd.f32 0.0, %v4527
      %v4529 = vpop.f32.mrb[0].mxu0
      %v4530 = vpop.f32.mrb[0].mxu0
      %v4531 = vadd.f32 0.0, %v4530
      %v4532 = vpop.f32.mrb[0].mxu0
      %4533 = vmatprep.mubr.bf16.mxu0 0
      %4534 = vmatmul.mubr.bf16.gmra.mrb[0].mxu0 %v4440
      %v4535 = vpop.f32.mrb[0].mxu0
      %v4536 = vadd.f32 0.0, %v4535
      %v4537 = vpop.f32.mrb[0].mxu0
      %v4538 = vpop.f32.mrb[0].mxu0
      %v4539 = vadd.f32 0.0, %v4538
      %v4540 = vpop.f32.mrb[0].mxu0
      %4541 = vdwg.mxu0
      %v4543 = vsel %vm793, %v4406, 0
      %v4546 = vsel %vm900, %v4414, 0
      %4548 = vmatprep.subr.bf16.mxu0 0
      %4549 = vmatpush1.bf16.msra.mxu0 %v4546
      %4550 = vmatprep.subr.bf16.mxu0 0
      %4551 = vmatpush1.bf16.msra.mxu0 0
      %4552 = vmatprep.subr.bf16.mxu0 0
      %4553 = vmatpush1.bf16.msra.mxu0 0
      %4554 = vmatprep.subr.bf16.mxu0 0
      %4555 = vmatpush1.bf16.msra.mxu0 0
      %4556 = vmatprep.subr.bf16.mxu0 0
      %4557 = vmatpush1.bf16.msra.mxu0 0
      %4558 = vmatprep.subr.bf16.mxu0 0
      %4559 = vmatpush1.bf16.msra.mxu0 0
      %4560 = vmatprep.subr.bf16.mxu0 0
      %4561 = vmatpush1.bf16.msra.mxu0 0
      %4562 = vmatprep.subr.bf16.mxu0 0
      %4563 = vmatpush1.bf16.msra.mxu0 0
      %4564 = vmatprep.subr.bf16.mxu0 0
      %4565 = vmatpush1.bf16.msra.mxu0 0
      %4566 = vmatprep.subr.bf16.mxu0 0
      %4567 = vmatpush1.bf16.msra.mxu0 0
      %4568 = vmatprep.subr.bf16.mxu0 0
      %4569 = vmatpush1.bf16.msra.mxu0 0
      %4570 = vmatprep.subr.bf16.mxu0 0
      %4571 = vmatpush1.bf16.msra.mxu0 0
      %4572 = vmatprep.subr.bf16.mxu0 0
      %4573 = vmatpush1.bf16.msra.mxu0 0
      %4574 = vmatprep.subr.bf16.mxu0 0
      %4575 = vmatpush1.bf16.msra.mxu0 0
      %4576 = vmatprep.subr.bf16.mxu0 0
      %4577 = vmatpush1.bf16.msra.mxu0 0
      %4578 = vmatprep.subr.bf16.mxu0 0
      %4579 = vmatpush1.bf16.msra.mxu0 0
      %4580 = vmatprep.mubr.bf16.mxu0 0
      %4581 = vmatmul.mubr.bf16.gmra.mrb[0].mxu0 %v4543
      %v4582 = vpop.f32.mrb[0].mxu0
      %v4583 = vadd.f32 %v4480, %v4582
      %v4584 = vpop.f32.mrb[0].mxu0
      %v4585 = vpop.f32.mrb[0].mxu0
      %v4586 = vadd.f32 %v4483, %v4585
      %v4587 = vpop.f32.mrb[0].mxu0
      %4588 = vmatprep.mubr.bf16.mxu0 0
      %4589 = vmatmul.mubr.bf16.gmra.mrb[0].mxu0 %v4419
      %v4590 = vpop.f32.mrb[0].mxu0
      %v4591 = vadd.f32 %v4488, %v4590
      %v4592 = vpop.f32.mrb[0].mxu0
      %v4593 = vpop.f32.mrb[0].mxu0
      %v4594 = vadd.f32 %v4491, %v4593
      %v4595 = vpop.f32.mrb[0].mxu0
      %4596 = vmatprep.mubr.bf16.mxu0 0
      %4597 = vmatmul.mubr.bf16.gmra.mrb[0].mxu0 %v4422
      %v4598 = vpop.f32.mrb[0].mxu0
      %v4599 = vadd.f32 %v4496, %v4598
      %v4600 = vpop.f32.mrb[0].mxu0
      %v4601 = vpop.f32.mrb[0].mxu0
      %v4602 = vadd.f32 %v4499, %v4601
      %v4603 = vpop.f32.mrb[0].mxu0
      %4604 = vmatprep.mubr.bf16.mxu0 0
      %4605 = vmatmul.mubr.bf16.gmra.mrb[0].mxu0 %v4425
      %v4606 = vpop.f32.mrb[0].mxu0
      %v4607 = vadd.f32 %v4504, %v4606
      %v4608 = vpop.f32.mrb[0].mxu0
      %v4609 = vpop.f32.mrb[0].mxu0
      %v4610 = vadd.f32 %v4507, %v4609
      %v4611 = vpop.f32.mrb[0].mxu0
      %4612 = vmatprep.mubr.bf16.mxu0 0
      %4613 = vmatmul.mubr.bf16.gmra.mrb[0].mxu0 %v4428
      %v4614 = vpop.f32.mrb[0].mxu0
      %v4615 = vadd.f32 %v4512, %v4614
      %v4616 = vpop.f32.mrb[0].mxu0
      %v4617 = vpop.f32.mrb[0].mxu0
      %v4618 = vadd.f32 %v4515, %v4617
      %v4619 = vpop.f32.mrb[0].mxu0
      %4620 = vmatprep.mubr.bf16.mxu0 0
      %4621 = vmatmul.mubr.bf16.gmra.mrb[0].mxu0 %v4431
      %v4622 = vpop.f32.mrb[0].mxu0
      %v4623 = vadd.f32 %v4520, %v4622
      %v4624 = vpop.f32.mrb[0].mxu0
      %v4625 = vpop.f32.mrb[0].mxu0
      %v4626 = vadd.f32 %v4523, %v4625
      %v4627 = vpop.f32.mrb[0].mxu0
      %4628 = vmatprep.mubr.bf16.mxu0 0
      %4629 = vmatmul.mubr.bf16.gmra.mrb[0].mxu0 %v4434
      %v4630 = vpop.f32.mrb[0].mxu0
      %v4631 = vadd.f32 %v4528, %v4630
      %v4632 = vpop.f32.mrb[0].mxu0
      %v4633 = vpop.f32.mrb[0].mxu0
      %v4634 = vadd.f32 %v4531, %v4633
      %v4635 = vpop.f32.mrb[0].mxu0
      %4636 = vmatprep.mubr.bf16.mxu0 0
      %4637 = vmatmul.mubr.bf16.gmra.mrb[0].mxu0 %v4437
      %v4638 = vpop.f32.mrb[0].mxu0
      %v4639 = vadd.f32 %v4536, %v4638
      %v4640 = vpop.f32.mrb[0].mxu0
      %v4641 = vpop.f32.mrb[0].mxu0
      %v4642 = vadd.f32 %v4539, %v4641
      %v4643 = vpop.f32.mrb[0].mxu0
      %4644 = vdwg.mxu0
      %v4645 = vld [vmem:[#allocation4 + $0x10] sm:$0xff]
      %v4646 = vld [vmem:[#allocation4 + $0x18] sm:$0xff]
      %v4647 = vld [vmem:[#allocation4 + $0x20] sm:$0xff]
      %v4648 = vld [vmem:[#allocation4 + $0x28] sm:$0xff]
      %v4649 = vld [vmem:[#allocation4 + $0x30] sm:$0xff]
      %v4650 = vld [vmem:[#allocation4 + $0x38] sm:$0xff]
      %v4651 = vld [vmem:[#allocation4 + $0x40] sm:$0xff]
      %v4652 = vld [vmem:[#allocation4 + $0x48] sm:$0xff]
      %s4653 = scalar_lea.vmem %s11, 8
      %v4654 = vld [vmem:[%s4653] sm:$0xf]
      %v4656 = vsel %vm793, %v4645, 0
      %v4659 = vsel %vm793, %v4646, 0
      %v4662 = vsel %vm793, %v4647, 0
      %v4665 = vsel %vm793, %v4648, 0
      %v4668 = vsel %vm793, %v4649, 0
      %v4671 = vsel %vm793, %v4650, 0
      %v4674 = vsel %vm793, %v4651, 0
      %v4677 = vsel %vm793, %v4652, 0
      %v4680 = vsel %vm900, %v4654, 0
      %4682 = vmatprep.subr.bf16.mxu0 0
      %4683 = vmatpush1.bf16.msra.mxu0 %v4680
      %4684 = vmatprep.subr.bf16.mxu0 0
      %4685 = vmatpush1.bf16.msra.mxu0 0
      %4686 = vmatprep.subr.bf16.mxu0 0
      %4687 = vmatpush1.bf16.msra.mxu0 0
      %4688 = vmatprep.subr.bf16.mxu0 0
      %4689 = vmatpush1.bf16.msra.mxu0 0
      %4690 = vmatprep.subr.bf16.mxu0 0
      %4691 = vmatpush1.bf16.msra.mxu0 0
      %4692 = vmatprep.subr.bf16.mxu0 0
      %4693 = vmatpush1.bf16.msra.mxu0 0
      %4694 = vmatprep.subr.bf16.mxu0 0
      %4695 = vmatpush1.bf16.msra.mxu0 0
      %4696 = vmatprep.subr.bf16.mxu0 0
      %4697 = vmatpush1.bf16.msra.mxu0 0
      %4698 = vmatprep.subr.bf16.mxu0 0
      %4699 = vmatpush1.bf16.msra.mxu0 0
      %4700 = vmatprep.subr.bf16.mxu0 0
      %4701 = vmatpush1.bf16.msra.mxu0 0
      %4702 = vmatprep.subr.bf16.mxu0 0
      %4703 = vmatpush1.bf16.msra.mxu0 0
      %4704 = vmatprep.subr.bf16.mxu0 0
      %4705 = vmatpush1.bf16.msra.mxu0 0
      %4706 = vmatprep.subr.bf16.mxu0 0
      %4707 = vmatpush1.bf16.msra.mxu0 0
      %4708 = vmatprep.subr.bf16.mxu0 0
      %4709 = vmatpush1.bf16.msra.mxu0 0
      %4710 = vmatprep.subr.bf16.mxu0 0
      %4711 = vmatpush1.bf16.msra.mxu0 0
      %4712 = vmatprep.subr.bf16.mxu0 0
      %4713 = vmatpush1.bf16.msra.mxu0 0
      %4714 = vmatprep.mubr.bf16.mxu0 0
      %4715 = vmatmul.mubr.bf16.gmra.mrb[0].mxu0 %v4656
      %v4716 = vpop.f32.mrb[0].mxu0
      %v4717 = vadd.f32 0.0, %v4716
      %v4718 = vpop.f32.mrb[0].mxu0
      %v4719 = vpop.f32.mrb[0].mxu0
      %v4720 = vadd.f32 0.0, %v4719
      %v4721 = vpop.f32.mrb[0].mxu0
      %4722 = vmatprep.mubr.bf16.mxu0 0
      %4723 = vmatmul.mubr.bf16.gmra.mrb[0].mxu0 %v4659
      %v4724 = vpop.f32.mrb[0].mxu0
      %v4725 = vadd.f32 0.0, %v4724
      %v4726 = vpop.f32.mrb[0].mxu0
      %v4727 = vpop.f32.mrb[0].mxu0
      %v4728 = vadd.f32 0.0, %v4727
      %v4729 = vpop.f32.mrb[0].mxu0
      %4730 = vmatprep.mubr.bf16.mxu0 0
      %4731 = vmatmul.mubr.bf16.gmra.mrb[0].mxu0 %v4662
      %v4732 = vpop.f32.mrb[0].mxu0
      %v4733 = vadd.f32 0.0, %v4732
      %v4734 = vpop.f32.mrb[0].mxu0
      %v4735 = vpop.f32.mrb[0].mxu0
      %v4736 = vadd.f32 0.0, %v4735
      %v4737 = vpop.f32.mrb[0].mxu0
      %4738 = vmatprep.mubr.bf16.mxu0 0
      %4739 = vmatmul.mubr.bf16.gmra.mrb[0].mxu0 %v4665
      %v4740 = vpop.f32.mrb[0].mxu0
      %v4741 = vadd.f32 0.0, %v4740
      %v4742 = vpop.f32.mrb[0].mxu0
      %v4743 = vpop.f32.mrb[0].mxu0
      %v4744 = vadd.f32 0.0, %v4743
      %v4745 = vpop.f32.mrb[0].mxu0
      %4746 = vmatprep.mubr.bf16.mxu0 0
      %4747 = vmatmul.mubr.bf16.gmra.mrb[0].mxu0 %v4668
      %v4748 = vpop.f32.mrb[0].mxu0
      %v4749 = vadd.f32 0.0, %v4748
      %v4750 = vpop.f32.mrb[0].mxu0
      %v4751 = vpop.f32.mrb[0].mxu0
      %v4752 = vadd.f32 0.0, %v4751
      %v4753 = vpop.f32.mrb[0].mxu0
      %4754 = vmatprep.mubr.bf16.mxu0 0
      %4755 = vmatmul.mubr.bf16.gmra.mrb[0].mxu0 %v4671
      %v4756 = vpop.f32.mrb[0].mxu0
      %v4757 = vadd.f32 0.0, %v4756
      %v4758 = vpop.f32.mrb[0].mxu0
      %v4759 = vpop.f32.mrb[0].mxu0
      %v4760 = vadd.f32 0.0, %v4759
      %v4761 = vpop.f32.mrb[0].mxu0
      %4762 = vmatprep.mubr.bf16.mxu0 0
      %4763 = vmatmul.mubr.bf16.gmra.mrb[0].mxu0 %v4674
      %v4764 = vpop.f32.mrb[0].mxu0
      %v4765 = vadd.f32 0.0, %v4764
      %v4766 = vpop.f32.mrb[0].mxu0
      %v4767 = vpop.f32.mrb[0].mxu0
      %v4768 = vadd.f32 0.0, %v4767
      %v4769 = vpop.f32.mrb[0].mxu0
      %4770 = vmatprep.mubr.bf16.mxu0 0
      %4771 = vmatmul.mubr.bf16.gmra.mrb[0].mxu0 %v4677
      %v4772 = vpop.f32.mrb[0].mxu0
      %v4773 = vadd.f32 0.0, %v4772
      %v4774 = vpop.f32.mrb[0].mxu0
      %v4775 = vpop.f32.mrb[0].mxu0
      %v4776 = vadd.f32 0.0, %v4775
      %v4777 = vpop.f32.mrb[0].mxu0
      %4778 = vdwg.mxu0
      %v4779 = vadd.f32 %v4583, %v4717
      %v4780 = vadd.f32 %v4586, %v4720
      %v4781 = vadd.f32 %v4591, %v4725
      %v4782 = vadd.f32 %v4594, %v4728
      %v4783 = vadd.f32 %v4599, %v4733
      %v4784 = vadd.f32 %v4602, %v4736
      %v4785 = vadd.f32 %v4607, %v4741
      %v4786 = vadd.f32 %v4610, %v4744
      %v4787 = vadd.f32 %v4615, %v4749
      %v4788 = vadd.f32 %v4618, %v4752
      %v4789 = vadd.f32 %v4623, %v4757
      %v4790 = vadd.f32 %v4626, %v4760
      %v4791 = vadd.f32 %v4631, %v4765
      %v4792 = vadd.f32 %v4634, %v4768
      %v4793 = vadd.f32 %v4639, %v4773
      %v4794 = vadd.f32 %v4642, %v4776
      %v4795 = vld [vmem:[#allocation4 + $0x18] sm:$0xff]
      %v4796 = vld [vmem:[#allocation4 + $0x20] sm:$0xff]
      %v4797 = vld [vmem:[#allocation4 + $0x28] sm:$0xff]
      %v4798 = vld [vmem:[#allocation4 + $0x30] sm:$0xff]
      %v4799 = vld [vmem:[#allocation4 + $0x38] sm:$0xff]
      %v4800 = vld [vmem:[#allocation4 + $0x40] sm:$0xff]
      %v4801 = vld [vmem:[#allocation4 + $0x48] sm:$0xff]
      %v4802 = vld [vmem:[#allocation4 + $0x50] sm:$0xff]
      %s4803 = scalar_lea.vmem %s11, 12
      %v4804 = vld [vmem:[%s4803] sm:$0xf]
      %v4806 = vsel %vm793, %v4795, 0
      %v4809 = vsel %vm793, %v4796, 0
      %v4812 = vsel %vm793, %v4797, 0
      %v4815 = vsel %vm793, %v4798, 0
      %v4818 = vsel %vm793, %v4799, 0
      %v4821 = vsel %vm793, %v4800, 0
      %v4824 = vsel %vm793, %v4801, 0
      %v4827 = vsel %vm793, %v4802, 0
      %v4830 = vsel %vm900, %v4804, 0
      %4832 = vmatprep.subr.bf16.mxu0 0
      %4833 = vmatpush1.bf16.msra.mxu0 %v4830
      %4834 = vmatprep.subr.bf16.mxu0 0
      %4835 = vmatpush1.bf16.msra.mxu0 0
      %4836 = vmatprep.subr.bf16.mxu0 0
      %4837 = vmatpush1.bf16.msra.mxu0 0
      %4838 = vmatprep.subr.bf16.mxu0 0
      %4839 = vmatpush1.bf16.msra.mxu0 0
      %4840 = vmatprep.subr.bf16.mxu0 0
      %4841 = vmatpush1.bf16.msra.mxu0 0
      %4842 = vmatprep.subr.bf16.mxu0 0
      %4843 = vmatpush1.bf16.msra.mxu0 0
      %4844 = vmatprep.subr.bf16.mxu0 0
      %4845 = vmatpush1.bf16.msra.mxu0 0
      %4846 = vmatprep.subr.bf16.mxu0 0
      %4847 = vmatpush1.bf16.msra.mxu0 0
      %4848 = vmatprep.subr.bf16.mxu0 0
      %4849 = vmatpush1.bf16.msra.mxu0 0
      %4850 = vmatprep.subr.bf16.mxu0 0
      %4851 = vmatpush1.bf16.msra.mxu0 0
      %4852 = vmatprep.subr.bf16.mxu0 0
      %4853 = vmatpush1.bf16.msra.mxu0 0
      %4854 = vmatprep.subr.bf16.mxu0 0
      %4855 = vmatpush1.bf16.msra.mxu0 0
      %4856 = vmatprep.subr.bf16.mxu0 0
      %4857 = vmatpush1.bf16.msra.mxu0 0
      %4858 = vmatprep.subr.bf16.mxu0 0
      %4859 = vmatpush1.bf16.msra.mxu0 0
      %4860 = vmatprep.subr.bf16.mxu0 0
      %4861 = vmatpush1.bf16.msra.mxu0 0
      %4862 = vmatprep.subr.bf16.mxu0 0
      %4863 = vmatpush1.bf16.msra.mxu0 0
      %4864 = vmatprep.mubr.bf16.mxu0 0
      %4865 = vmatmul.mubr.bf16.gmra.mrb[0].mxu0 %v4806
      %v4866 = vpop.f32.mrb[0].mxu0
      %v4867 = vadd.f32 0.0, %v4866
      %v4868 = vpop.f32.mrb[0].mxu0
      %v4869 = vpop.f32.mrb[0].mxu0
      %v4870 = vadd.f32 0.0, %v4869
      %v4871 = vpop.f32.mrb[0].mxu0
      %4872 = vmatprep.mubr.bf16.mxu0 0
      %4873 = vmatmul.mubr.bf16.gmra.mrb[0].mxu0 %v4809
      %v4874 = vpop.f32.mrb[0].mxu0
      %v4875 = vadd.f32 0.0, %v4874
      %v4876 = vpop.f32.mrb[0].mxu0
      %v4877 = vpop.f32.mrb[0].mxu0
      %v4878 = vadd.f32 0.0, %v4877
      %v4879 = vpop.f32.mrb[0].mxu0
      %4880 = vmatprep.mubr.bf16.mxu0 0
      %4881 = vmatmul.mubr.bf16.gmra.mrb[0].mxu0 %v4812
      %v4882 = vpop.f32.mrb[0].mxu0
      %v4883 = vadd.f32 0.0, %v4882
      %v4884 = vpop.f32.mrb[0].mxu0
      %v4885 = vpop.f32.mrb[0].mxu0
      %v4886 = vadd.f32 0.0, %v4885
      %v4887 = vpop.f32.mrb[0].mxu0
      %4888 = vmatprep.mubr.bf16.mxu0 0
      %4889 = vmatmul.mubr.bf16.gmra.mrb[0].mxu0 %v4815
      %v4890 = vpop.f32.mrb[0].mxu0
      %v4891 = vadd.f32 0.0, %v4890
      %v4892 = vpop.f32.mrb[0].mxu0
      %v4893 = vpop.f32.mrb[0].mxu0
      %v4894 = vadd.f32 0.0, %v4893
      %v4895 = vpop.f32.mrb[0].mxu0
      %4896 = vmatprep.mubr.bf16.mxu0 0
      %4897 = vmatmul.mubr.bf16.gmra.mrb[0].mxu0 %v4818
      %v4898 = vpop.f32.mrb[0].mxu0
      %v4899 = vadd.f32 0.0, %v4898
      %v4900 = vpop.f32.mrb[0].mxu0
      %v4901 = vpop.f32.mrb[0].mxu0
      %v4902 = vadd.f32 0.0, %v4901
      %v4903 = vpop.f32.mrb[0].mxu0
      %4904 = vmatprep.mubr.bf16.mxu0 0
      %4905 = vmatmul.mubr.bf16.gmra.mrb[0].mxu0 %v4821
      %v4906 = vpop.f32.mrb[0].mxu0
      %v4907 = vadd.f32 0.0, %v4906
      %v4908 = vpop.f32.mrb[0].mxu0
      %v4909 = vpop.f32.mrb[0].mxu0
      %v4910 = vadd.f32 0.0, %v4909
      %v4911 = vpop.f32.mrb[0].mxu0
      %4912 = vmatprep.mubr.bf16.mxu0 0
      %4913 = vmatmul.mubr.bf16.gmra.mrb[0].mxu0 %v4824
      %v4914 = vpop.f32.mrb[0].mxu0
      %v4915 = vadd.f32 0.0, %v4914
      %v4916 = vpop.f32.mrb[0].mxu0
      %v4917 = vpop.f32.mrb[0].mxu0
      %v4918 = vadd.f32 0.0, %v4917
      %v4919 = vpop.f32.mrb[0].mxu0
      %4920 = vmatprep.mubr.bf16.mxu0 0
      %4921 = vmatmul.mubr.bf16.gmra.mrb[0].mxu0 %v4827
      %v4922 = vpop.f32.mrb[0].mxu0
      %v4923 = vadd.f32 0.0, %v4922
      %v4924 = vpop.f32.mrb[0].mxu0
      %v4925 = vpop.f32.mrb[0].mxu0
      %v4926 = vadd.f32 0.0, %v4925
      %v4927 = vpop.f32.mrb[0].mxu0
      %4928 = vdwg.mxu0
      %v4929 = vadd.f32 %v4779, %v4867
      %v4930 = vadd.f32 %v4780, %v4870
      %v4931 = vadd.f32 %v4781, %v4875
      %v4932 = vadd.f32 %v4782, %v4878
      %v4933 = vadd.f32 %v4783, %v4883
      %v4934 = vadd.f32 %v4784, %v4886
      %v4935 = vadd.f32 %v4785, %v4891
      %v4936 = vadd.f32 %v4786, %v4894
      %v4937 = vadd.f32 %v4787, %v4899
      %v4938 = vadd.f32 %v4788, %v4902
      %v4939 = vadd.f32 %v4789, %v4907
      %v4940 = vadd.f32 %v4790, %v4910
      %v4941 = vadd.f32 %v4791, %v4915
      %v4942 = vadd.f32 %v4792, %v4918
      %v4943 = vadd.f32 %v4793, %v4923
      %v4944 = vadd.f32 %v4794, %v4926
      %v4945 = vld [vmem:[#allocation4 + $0x20] sm:$0xff]
      %v4946 = vld [vmem:[#allocation4 + $0x28] sm:$0xff]
      %v4947 = vld [vmem:[#allocation4 + $0x30] sm:$0xff]
      %v4948 = vld [vmem:[#allocation4 + $0x38] sm:$0xff]
      %v4949 = vld [vmem:[#allocation4 + $0x40] sm:$0xff]
      %v4950 = vld [vmem:[#allocation4 + $0x48] sm:$0xff]
      %v4951 = vld [vmem:[#allocation4 + $0x50] sm:$0xff]
      %v4952 = vld [vmem:[#allocation4 + $0x58] sm:$0xff]
      %s4953 = scalar_lea.vmem %s11, 16
      %v4954 = vld [vmem:[%s4953] sm:$0xf]
      %v4956 = vsel %vm793, %v4945, 0
      %v4959 = vsel %vm793, %v4946, 0
      %v4962 = vsel %vm793, %v4947, 0
      %v4965 = vsel %vm793, %v4948, 0
      %v4968 = vsel %vm793, %v4949, 0
      %v4971 = vsel %vm793, %v4950, 0
      %v4974 = vsel %vm793, %v4951, 0
      %v4977 = vsel %vm793, %v4952, 0
      %v4980 = vsel %vm900, %v4954, 0
      %4982 = vmatprep.subr.bf16.mxu0 0
      %4983 = vmatpush1.bf16.msra.mxu0 %v4980
      %4984 = vmatprep.subr.bf16.mxu0 0
      %4985 = vmatpush1.bf16.msra.mxu0 0
      %4986 = vmatprep.subr.bf16.mxu0 0
      %4987 = vmatpush1.bf16.msra.mxu0 0
      %4988 = vmatprep.subr.bf16.mxu0 0
      %4989 = vmatpush1.bf16.msra.mxu0 0
      %4990 = vmatprep.subr.bf16.mxu0 0
      %4991 = vmatpush1.bf16.msra.mxu0 0
      %4992 = vmatprep.subr.bf16.mxu0 0
      %4993 = vmatpush1.bf16.msra.mxu0 0
      %4994 = vmatprep.subr.bf16.mxu0 0
      %4995 = vmatpush1.bf16.msra.mxu0 0
      %4996 = vmatprep.subr.bf16.mxu0 0
      %4997 = vmatpush1.bf16.msra.mxu0 0
      %4998 = vmatprep.subr.bf16.mxu0 0
      %4999 = vmatpush1.bf16.msra.mxu0 0
      %5000 = vmatprep.subr.bf16.mxu0 0
      %5001 = vmatpush1.bf16.msra.mxu0 0
      %5002 = vmatprep.subr.bf16.mxu0 0
      %5003 = vmatpush1.bf16.msra.mxu0 0
      %5004 = vmatprep.subr.bf16.mxu0 0
      %5005 = vmatpush1.bf16.msra.mxu0 0
      %5006 = vmatprep.subr.bf16.mxu0 0
      %5007 = vmatpush1.bf16.msra.mxu0 0
      %5008 = vmatprep.subr.bf16.mxu0 0
      %5009 = vmatpush1.bf16.msra.mxu0 0
      %5010 = vmatprep.subr.bf16.mxu0 0
      %5011 = vmatpush1.bf16.msra.mxu0 0
      %5012 = vmatprep.subr.bf16.mxu0 0
      %5013 = vmatpush1.bf16.msra.mxu0 0
      %5014 = vmatprep.mubr.bf16.mxu0 0
      %5015 = vmatmul.mubr.bf16.gmra.mrb[0].mxu0 %v4956
      %v5016 = vpop.f32.mrb[0].mxu0
      %v5017 = vadd.f32 0.0, %v5016
      %v5018 = vpop.f32.mrb[0].mxu0
      %v5019 = vpop.f32.mrb[0].mxu0
      %v5020 = vadd.f32 0.0, %v5019
      %v5021 = vpop.f32.mrb[0].mxu0
      %5022 = vmatprep.mubr.bf16.mxu0 0
      %5023 = vmatmul.mubr.bf16.gmra.mrb[0].mxu0 %v4959
      %v5024 = vpop.f32.mrb[0].mxu0
      %v5025 = vadd.f32 0.0, %v5024
      %v5026 = vpop.f32.mrb[0].mxu0
      %v5027 = vpop.f32.mrb[0].mxu0
      %v5028 = vadd.f32 0.0, %v5027
      %v5029 = vpop.f32.mrb[0].mxu0
      %5030 = vmatprep.mubr.bf16.mxu0 0
      %5031 = vmatmul.mubr.bf16.gmra.mrb[0].mxu0 %v4962
      %v5032 = vpop.f32.mrb[0].mxu0
      %v5033 = vadd.f32 0.0, %v5032
      %v5034 = vpop.f32.mrb[0].mxu0
      %v5035 = vpop.f32.mrb[0].mxu0
      %v5036 = vadd.f32 0.0, %v5035
      %v5037 = vpop.f32.mrb[0].mxu0
      %5038 = vmatprep.mubr.bf16.mxu0 0
      %5039 = vmatmul.mubr.bf16.gmra.mrb[0].mxu0 %v4965
      %v5040 = vpop.f32.mrb[0].mxu0
      %v5041 = vadd.f32 0.0, %v5040
      %v5042 = vpop.f32.mrb[0].mxu0
      %v5043 = vpop.f32.mrb[0].mxu0
      %v5044 = vadd.f32 0.0, %v5043
      %v5045 = vpop.f32.mrb[0].mxu0
      %5046 = vmatprep.mubr.bf16.mxu0 0
      %5047 = vmatmul.mubr.bf16.gmra.mrb[0].mxu0 %v4968
      %v5048 = vpop.f32.mrb[0].mxu0
      %v5049 = vadd.f32 0.0, %v5048
      %v5050 = vpop.f32.mrb[0].mxu0
      %v5051 = vpop.f32.mrb[0].mxu0
      %v5052 = vadd.f32 0.0, %v5051
      %v5053 = vpop.f32.mrb[0].mxu0
      %5054 = vmatprep.mubr.bf16.mxu0 0
      %5055 = vmatmul.mubr.bf16.gmra.mrb[0].mxu0 %v4971
      %v5056 = vpop.f32.mrb[0].mxu0
      %v5057 = vadd.f32 0.0, %v5056
      %v5058 = vpop.f32.mrb[0].mxu0
      %v5059 = vpop.f32.mrb[0].mxu0
      %v5060 = vadd.f32 0.0, %v5059
      %v5061 = vpop.f32.mrb[0].mxu0
      %5062 = vmatprep.mubr.bf16.mxu0 0
      %5063 = vmatmul.mubr.bf16.gmra.mrb[0].mxu0 %v4974
      %v5064 = vpop.f32.mrb[0].mxu0
      %v5065 = vadd.f32 0.0, %v5064
      %v5066 = vpop.f32.mrb[0].mxu0
      %v5067 = vpop.f32.mrb[0].mxu0
      %v5068 = vadd.f32 0.0, %v5067
      %v5069 = vpop.f32.mrb[0].mxu0
      %5070 = vmatprep.mubr.bf16.mxu0 0
      %5071 = vmatmul.mubr.bf16.gmra.mrb[0].mxu0 %v4977
      %v5072 = vpop.f32.mrb[0].mxu0
      %v5073 = vadd.f32 0.0, %v5072
      %v5074 = vpop.f32.mrb[0].mxu0
      %v5075 = vpop.f32.mrb[0].mxu0
      %v5076 = vadd.f32 0.0, %v5075
      %v5077 = vpop.f32.mrb[0].mxu0
      %5078 = vdwg.mxu0
      %v5079 = vadd.f32 %v4929, %v5017
      %v5080 = vadd.f32 %v4930, %v5020
      %v5081 = vadd.f32 %v4931, %v5025
      %v5082 = vadd.f32 %v4932, %v5028
      %v5083 = vadd.f32 %v4933, %v5033
      %v5084 = vadd.f32 %v4934, %v5036
      %v5085 = vadd.f32 %v4935, %v5041
      %v5086 = vadd.f32 %v4936, %v5044
      %v5087 = vadd.f32 %v4937, %v5049
      %v5088 = vadd.f32 %v4938, %v5052
      %v5089 = vadd.f32 %v4939, %v5057
      %v5090 = vadd.f32 %v4940, %v5060
      %v5091 = vadd.f32 %v4941, %v5065
      %v5092 = vadd.f32 %v4942, %v5068
      %v5093 = vadd.f32 %v4943, %v5073
      %v5094 = vadd.f32 %v4944, %v5076
      %v5095 = vld [vmem:[#allocation4 + $0x28] sm:$0xff]
      %v5096 = vld [vmem:[#allocation4 + $0x30] sm:$0xff]
      %v5097 = vld [vmem:[#allocation4 + $0x38] sm:$0xff]
      %v5098 = vld [vmem:[#allocation4 + $0x40] sm:$0xff]
      %v5099 = vld [vmem:[#allocation4 + $0x48] sm:$0xff]
      %v5100 = vld [vmem:[#allocation4 + $0x50] sm:$0xff]
      %v5101 = vld [vmem:[#allocation4 + $0x58] sm:$0xff]
      %v5102 = vld [vmem:[#allocation4 + $0x60] sm:$0xff]
      %s5103 = scalar_lea.vmem %s11, 20
      %v5104 = vld [vmem:[%s5103] sm:$0xf]
      %v5106 = vsel %vm793, %v5095, 0
      %v5109 = vsel %vm793, %v5096, 0
      %v5112 = vsel %vm793, %v5097, 0
      %v5115 = vsel %vm793, %v5098, 0
      %v5118 = vsel %vm793, %v5099, 0
      %v5121 = vsel %vm793, %v5100, 0
      %v5124 = vsel %vm793, %v5101, 0
      %v5127 = vsel %vm793, %v5102, 0
      %v5130 = vsel %vm900, %v5104, 0
      %5132 = vmatprep.subr.bf16.mxu0 0
      %5133 = vmatpush1.bf16.msra.mxu0 %v5130
      %5134 = vmatprep.subr.bf16.mxu0 0
      %5135 = vmatpush1.bf16.msra.mxu0 0
      %5136 = vmatprep.subr.bf16.mxu0 0
      %5137 = vmatpush1.bf16.msra.mxu0 0
      %5138 = vmatprep.subr.bf16.mxu0 0
      %5139 = vmatpush1.bf16.msra.mxu0 0
      %5140 = vmatprep.subr.bf16.mxu0 0
      %5141 = vmatpush1.bf16.msra.mxu0 0
      %5142 = vmatprep.subr.bf16.mxu0 0
      %5143 = vmatpush1.bf16.msra.mxu0 0
      %5144 = vmatprep.subr.bf16.mxu0 0
      %5145 = vmatpush1.bf16.msra.mxu0 0
      %5146 = vmatprep.subr.bf16.mxu0 0
      %5147 = vmatpush1.bf16.msra.mxu0 0
      %5148 = vmatprep.subr.bf16.mxu0 0
      %5149 = vmatpush1.bf16.msra.mxu0 0
      %5150 = vmatprep.subr.bf16.mxu0 0
      %5151 = vmatpush1.bf16.msra.mxu0 0
      %5152 = vmatprep.subr.bf16.mxu0 0
      %5153 = vmatpush1.bf16.msra.mxu0 0
      %5154 = vmatprep.subr.bf16.mxu0 0
      %5155 = vmatpush1.bf16.msra.mxu0 0
      %5156 = vmatprep.subr.bf16.mxu0 0
      %5157 = vmatpush1.bf16.msra.mxu0 0
      %5158 = vmatprep.subr.bf16.mxu0 0
      %5159 = vmatpush1.bf16.msra.mxu0 0
      %5160 = vmatprep.subr.bf16.mxu0 0
      %5161 = vmatpush1.bf16.msra.mxu0 0
      %5162 = vmatprep.subr.bf16.mxu0 0
      %5163 = vmatpush1.bf16.msra.mxu0 0
      %5164 = vmatprep.mubr.bf16.mxu0 0
      %5165 = vmatmul.mubr.bf16.gmra.mrb[0].mxu0 %v5106
      %v5166 = vpop.f32.mrb[0].mxu0
      %v5167 = vadd.f32 0.0, %v5166
      %v5168 = vpop.f32.mrb[0].mxu0
      %v5169 = vpop.f32.mrb[0].mxu0
      %v5170 = vadd.f32 0.0, %v5169
      %v5171 = vpop.f32.mrb[0].mxu0
      %5172 = vmatprep.mubr.bf16.mxu0 0
      %5173 = vmatmul.mubr.bf16.gmra.mrb[0].mxu0 %v5109
      %v5174 = vpop.f32.mrb[0].mxu0
      %v5175 = vadd.f32 0.0, %v5174
      %v5176 = vpop.f32.mrb[0].mxu0
      %v5177 = vpop.f32.mrb[0].mxu0
      %v5178 = vadd.f32 0.0, %v5177
      %v5179 = vpop.f32.mrb[0].mxu0
      %5180 = vmatprep.mubr.bf16.mxu0 0
      %5181 = vmatmul.mubr.bf16.gmra.mrb[0].mxu0 %v5112
      %v5182 = vpop.f32.mrb[0].mxu0
      %v5183 = vadd.f32 0.0, %v5182
      %v5184 = vpop.f32.mrb[0].mxu0
      %v5185 = vpop.f32.mrb[0].mxu0
      %v5186 = vadd.f32 0.0, %v5185
      %v5187 = vpop.f32.mrb[0].mxu0
      %5188 = vmatprep.mubr.bf16.mxu0 0
      %5189 = vmatmul.mubr.bf16.gmra.mrb[0].mxu0 %v5115
      %v5190 = vpop.f32.mrb[0].mxu0
      %v5191 = vadd.f32 0.0, %v5190
      %v5192 = vpop.f32.mrb[0].mxu0
      %v5193 = vpop.f32.mrb[0].mxu0
      %v5194 = vadd.f32 0.0, %v5193
      %v5195 = vpop.f32.mrb[0].mxu0
      %5196 = vmatprep.mubr.bf16.mxu0 0
      %5197 = vmatmul.mubr.bf16.gmra.mrb[0].mxu0 %v5118
      %v5198 = vpop.f32.mrb[0].mxu0
      %v5199 = vadd.f32 0.0, %v5198
      %v5200 = vpop.f32.mrb[0].mxu0
      %v5201 = vpop.f32.mrb[0].mxu0
      %v5202 = vadd.f32 0.0, %v5201
      %v5203 = vpop.f32.mrb[0].mxu0
      %5204 = vmatprep.mubr.bf16.mxu0 0
      %5205 = vmatmul.mubr.bf16.gmra.mrb[0].mxu0 %v5121
      %v5206 = vpop.f32.mrb[0].mxu0
      %v5207 = vadd.f32 0.0, %v5206
      %v5208 = vpop.f32.mrb[0].mxu0
      %v5209 = vpop.f32.mrb[0].mxu0
      %v5210 = vadd.f32 0.0, %v5209
      %v5211 = vpop.f32.mrb[0].mxu0
      %5212 = vmatprep.mubr.bf16.mxu0 0
      %5213 = vmatmul.mubr.bf16.gmra.mrb[0].mxu0 %v5124
      %v5214 = vpop.f32.mrb[0].mxu0
      %v5215 = vadd.f32 0.0, %v5214
      %v5216 = vpop.f32.mrb[0].mxu0
      %v5217 = vpop.f32.mrb[0].mxu0
      %v5218 = vadd.f32 0.0, %v5217
      %v5219 = vpop.f32.mrb[0].mxu0
      %5220 = vmatprep.mubr.bf16.mxu0 0
      %5221 = vmatmul.mubr.bf16.gmra.mrb[0].mxu0 %v5127
      %v5222 = vpop.f32.mrb[0].mxu0
      %v5223 = vadd.f32 0.0, %v5222
      %v5224 = vpop.f32.mrb[0].mxu0
      %v5225 = vpop.f32.mrb[0].mxu0
      %v5226 = vadd.f32 0.0, %v5225
      %v5227 = vpop.f32.mrb[0].mxu0
      %5228 = vdwg.mxu0
      %v5229 = vadd.f32 %v5079, %v5167
      %v5230 = vadd.f32 %v5080, %v5170
      %v5231 = vadd.f32 %v5081, %v5175
      %v5232 = vadd.f32 %v5082, %v5178
      %v5233 = vadd.f32 %v5083, %v5183
      %v5234 = vadd.f32 %v5084, %v5186
      %v5235 = vadd.f32 %v5085, %v5191
      %v5236 = vadd.f32 %v5086, %v5194
      %v5237 = vadd.f32 %v5087, %v5199
      %v5238 = vadd.f32 %v5088, %v5202
      %v5239 = vadd.f32 %v5089, %v5207
      %v5240 = vadd.f32 %v5090, %v5210
      %v5241 = vadd.f32 %v5091, %v5215
      %v5242 = vadd.f32 %v5092, %v5218
      %v5243 = vadd.f32 %v5093, %v5223
      %v5244 = vadd.f32 %v5094, %v5226
      %v5245 = vld [vmem:[#allocation4 + $0x30] sm:$0xff]
      %v5246 = vld [vmem:[#allocation4 + $0x38] sm:$0xff]
      %v5247 = vld [vmem:[#allocation4 + $0x40] sm:$0xff]
      %v5248 = vld [vmem:[#allocation4 + $0x48] sm:$0xff]
      %v5249 = vld [vmem:[#allocation4 + $0x50] sm:$0xff]
      %v5250 = vld [vmem:[#allocation4 + $0x58] sm:$0xff]
      %v5251 = vld [vmem:[#allocation4 + $0x60] sm:$0xff]
      %v5252 = vld [vmem:[#allocation4 + $0x68] sm:$0xff]
      %s5253 = scalar_lea.vmem %s11, 24
      %v5254 = vld [vmem:[%s5253] sm:$0xf]
      %v5256 = vsel %vm793, %v5245, 0
      %v5259 = vsel %vm793, %v5246, 0
      %v5262 = vsel %vm793, %v5247, 0
      %v5265 = vsel %vm793, %v5248, 0
      %v5268 = vsel %vm793, %v5249, 0
      %v5271 = vsel %vm793, %v5250, 0
      %v5274 = vsel %vm793, %v5251, 0
      %v5277 = vsel %vm793, %v5252, 0
      %v5280 = vsel %vm900, %v5254, 0
      %5282 = vmatprep.subr.bf16.mxu0 0
      %5283 = vmatpush1.bf16.msra.mxu0 %v5280
      %5284 = vmatprep.subr.bf16.mxu0 0
      %5285 = vmatpush1.bf16.msra.mxu0 0
      %5286 = vmatprep.subr.bf16.mxu0 0
      %5287 = vmatpush1.bf16.msra.mxu0 0
      %5288 = vmatprep.subr.bf16.mxu0 0
      %5289 = vmatpush1.bf16.msra.mxu0 0
      %5290 = vmatprep.subr.bf16.mxu0 0
      %5291 = vmatpush1.bf16.msra.mxu0 0
      %5292 = vmatprep.subr.bf16.mxu0 0
      %5293 = vmatpush1.bf16.msra.mxu0 0
      %5294 = vmatprep.subr.bf16.mxu0 0
      %5295 = vmatpush1.bf16.msra.mxu0 0
      %5296 = vmatprep.subr.bf16.mxu0 0
      %5297 = vmatpush1.bf16.msra.mxu0 0
      %5298 = vmatprep.subr.bf16.mxu0 0
      %5299 = vmatpush1.bf16.msra.mxu0 0
      %5300 = vmatprep.subr.bf16.mxu0 0
      %5301 = vmatpush1.bf16.msra.mxu0 0
      %5302 = vmatprep.subr.bf16.mxu0 0
      %5303 = vmatpush1.bf16.msra.mxu0 0
      %5304 = vmatprep.subr.bf16.mxu0 0
      %5305 = vmatpush1.bf16.msra.mxu0 0
      %5306 = vmatprep.subr.bf16.mxu0 0
      %5307 = vmatpush1.bf16.msra.mxu0 0
      %5308 = vmatprep.subr.bf16.mxu0 0
      %5309 = vmatpush1.bf16.msra.mxu0 0
      %5310 = vmatprep.subr.bf16.mxu0 0
      %5311 = vmatpush1.bf16.msra.mxu0 0
      %5312 = vmatprep.subr.bf16.mxu0 0
      %5313 = vmatpush1.bf16.msra.mxu0 0
      %5314 = vmatprep.mubr.bf16.mxu0 0
      %5315 = vmatmul.mubr.bf16.gmra.mrb[0].mxu0 %v5256
      %v5316 = vpop.f32.mrb[0].mxu0
      %v5317 = vadd.f32 0.0, %v5316
      %v5318 = vpop.f32.mrb[0].mxu0
      %v5319 = vpop.f32.mrb[0].mxu0
      %v5320 = vadd.f32 0.0, %v5319
      %v5321 = vpop.f32.mrb[0].mxu0
      %5322 = vmatprep.mubr.bf16.mxu0 0
      %5323 = vmatmul.mubr.bf16.gmra.mrb[0].mxu0 %v5259
      %v5324 = vpop.f32.mrb[0].mxu0
      %v5325 = vadd.f32 0.0, %v5324
      %v5326 = vpop.f32.mrb[0].mxu0
      %v5327 = vpop.f32.mrb[0].mxu0
      %v5328 = vadd.f32 0.0, %v5327
      %v5329 = vpop.f32.mrb[0].mxu0
      %5330 = vmatprep.mubr.bf16.mxu0 0
      %5331 = vmatmul.mubr.bf16.gmra.mrb[0].mxu0 %v5262
      %v5332 = vpop.f32.mrb[0].mxu0
      %v5333 = vadd.f32 0.0, %v5332
      %v5334 = vpop.f32.mrb[0].mxu0
      %v5335 = vpop.f32.mrb[0].mxu0
      %v5336 = vadd.f32 0.0, %v5335
      %v5337 = vpop.f32.mrb[0].mxu0
      %5338 = vmatprep.mubr.bf16.mxu0 0
      %5339 = vmatmul.mubr.bf16.gmra.mrb[0].mxu0 %v5265
      %v5340 = vpop.f32.mrb[0].mxu0
      %v5341 = vadd.f32 0.0, %v5340
      %v5342 = vpop.f32.mrb[0].mxu0
      %v5343 = vpop.f32.mrb[0].mxu0
      %v5344 = vadd.f32 0.0, %v5343
      %v5345 = vpop.f32.mrb[0].mxu0
      %5346 = vmatprep.mubr.bf16.mxu0 0
      %5347 = vmatmul.mubr.bf16.gmra.mrb[0].mxu0 %v5268
      %v5348 = vpop.f32.mrb[0].mxu0
      %v5349 = vadd.f32 0.0, %v5348
      %v5350 = vpop.f32.mrb[0].mxu0
      %v5351 = vpop.f32.mrb[0].mxu0
      %v5352 = vadd.f32 0.0, %v5351
      %v5353 = vpop.f32.mrb[0].mxu0
      %5354 = vmatprep.mubr.bf16.mxu0 0
      %5355 = vmatmul.mubr.bf16.gmra.mrb[0].mxu0 %v5271
      %v5356 = vpop.f32.mrb[0].mxu0
      %v5357 = vadd.f32 0.0, %v5356
      %v5358 = vpop.f32.mrb[0].mxu0
      %v5359 = vpop.f32.mrb[0].mxu0
      %v5360 = vadd.f32 0.0, %v5359
      %v5361 = vpop.f32.mrb[0].mxu0
      %5362 = vmatprep.mubr.bf16.mxu0 0
      %5363 = vmatmul.mubr.bf16.gmra.mrb[0].mxu0 %v5274
      %v5364 = vpop.f32.mrb[0].mxu0
      %v5365 = vadd.f32 0.0, %v5364
      %v5366 = vpop.f32.mrb[0].mxu0
      %v5367 = vpop.f32.mrb[0].mxu0
      %v5368 = vadd.f32 0.0, %v5367
      %v5369 = vpop.f32.mrb[0].mxu0
      %5370 = vmatprep.mubr.bf16.mxu0 0
      %5371 = vmatmul.mubr.bf16.gmra.mrb[0].mxu0 %v5277
      %v5372 = vpop.f32.mrb[0].mxu0
      %v5373 = vadd.f32 0.0, %v5372
      %v5374 = vpop.f32.mrb[0].mxu0
      %v5375 = vpop.f32.mrb[0].mxu0
      %v5376 = vadd.f32 0.0, %v5375
      %v5377 = vpop.f32.mrb[0].mxu0
      %5378 = vdwg.mxu0
      %v5379 = vadd.f32 %v5229, %v5317
      %v5380 = vadd.f32 %v5230, %v5320
      %v5381 = vadd.f32 %v5231, %v5325
      %v5382 = vadd.f32 %v5232, %v5328
      %v5383 = vadd.f32 %v5233, %v5333
      %v5384 = vadd.f32 %v5234, %v5336
      %v5385 = vadd.f32 %v5235, %v5341
      %v5386 = vadd.f32 %v5236, %v5344
      %v5387 = vadd.f32 %v5237, %v5349
      %v5388 = vadd.f32 %v5238, %v5352
      %v5389 = vadd.f32 %v5239, %v5357
      %v5390 = vadd.f32 %v5240, %v5360
      %v5391 = vadd.f32 %v5241, %v5365
      %v5392 = vadd.f32 %v5242, %v5368
      %v5393 = vadd.f32 %v5243, %v5373
      %v5394 = vadd.f32 %v5244, %v5376
      %v5396 = vlaneseq
      %v5397 = vshrl.u32 %v5396, 7
      %v5398 = vsub.s32 0, %v5397
      %v5399 = vrot.slane %v4404, %v5398
      %v5401 = vmul.f32 %v5379, %v5399
      %v5402 = vmul.f32 %v5380, %v5399
      %v5403 = vmul.f32 %v5381, %v5399
      %v5404 = vmul.f32 %v5382, %v5399
      %v5405 = vmul.f32 %v5383, %v5399
      %v5406 = vmul.f32 %v5384, %v5399
      %v5407 = vmul.f32 %v5385, %v5399
      %v5408 = vmul.f32 %v5386, %v5399
      %v5409 = vmul.f32 %v5387, %v5399
      %v5410 = vmul.f32 %v5388, %v5399
      %v5411 = vmul.f32 %v5389, %v5399
      %v5412 = vmul.f32 %v5390, %v5399
      %v5413 = vmul.f32 %v5391, %v5399
      %v5414 = vmul.f32 %v5392, %v5399
      %v5415 = vmul.f32 %v5393, %v5399
      %v5416 = vmul.f32 %v5394, %v5399
      %v5418 = vlaneseq
      %v5419 = vshrl.u32 %v5418, 7
      %v5420 = vsub.s32 0, %v5419
      %v5421 = vrot.slane %v4405, %v5420
      %v5423 = vadd.f32 %v5401, %v5421
      %v5424 = vadd.f32 %v5402, %v5421
      %v5425 = vadd.f32 %v5403, %v5421
      %v5426 = vadd.f32 %v5404, %v5421
      %v5427 = vadd.f32 %v5405, %v5421
      %v5428 = vadd.f32 %v5406, %v5421
      %v5429 = vadd.f32 %v5407, %v5421
      %v5430 = vadd.f32 %v5408, %v5421
      %v5431 = vadd.f32 %v5409, %v5421
      %v5432 = vadd.f32 %v5410, %v5421
      %v5433 = vadd.f32 %v5411, %v5421
      %v5434 = vadd.f32 %v5412, %v5421
      %v5435 = vadd.f32 %v5413, %v5421
      %v5436 = vadd.f32 %v5414, %v5421
      %v5437 = vadd.f32 %v5415, %v5421
      %v5438 = vadd.f32 %v5416, %v5421
      %v5439 = vmax.f32 %v5423, 0.0
      %v5440 = vmax.f32 %v5424, 0.0
      %v5441 = vmax.f32 %v5425, 0.0
      %v5442 = vmax.f32 %v5426, 0.0
      %v5443 = vmax.f32 %v5427, 0.0
      %v5444 = vmax.f32 %v5428, 0.0
      %v5445 = vmax.f32 %v5429, 0.0
      %v5446 = vmax.f32 %v5430, 0.0
      %v5447 = vmax.f32 %v5431, 0.0
      %v5448 = vmax.f32 %v5432, 0.0
      %v5449 = vmax.f32 %v5433, 0.0
      %v5450 = vmax.f32 %v5434, 0.0
      %v5451 = vmax.f32 %v5435, 0.0
      %v5452 = vmax.f32 %v5436, 0.0
      %v5453 = vmax.f32 %v5437, 0.0
      %v5454 = vmax.f32 %v5438, 0.0
      %v5455 = vld [vmem:[%s1] sm:$0xff]
      %v5456 = vld [vmem:[%s1 + $0x8] sm:$0xff]
      %v5457 = vld [vmem:[%s1 + $0x10] sm:$0xff]
      %v5458 = vld [vmem:[%s1 + $0x18] sm:$0xff]
      %v5459 = vld [vmem:[%s1 + $0x20] sm:$0xff]
      %v5460 = vld [vmem:[%s1 + $0x28] sm:$0xff]
      %v5461 = vld [vmem:[%s1 + $0x30] sm:$0xff]
      %v5462 = vld [vmem:[%s1 + $0x38] sm:$0xff]
      %v5463 = vld [vmem:[%s1 + $0x40] sm:$0xff]
      %v5464 = vld [vmem:[%s1 + $0x48] sm:$0xff]
      %v5465 = vld [vmem:[%s1 + $0x50] sm:$0xff]
      %v5466 = vld [vmem:[%s1 + $0x58] sm:$0xff]
      %v5467 = vld [vmem:[%s1 + $0x60] sm:$0xff]
      %v5468 = vld [vmem:[%s1 + $0x68] sm:$0xff]
      %v5469 = vld [vmem:[%s1 + $0x70] sm:$0xff]
      %v5470 = vld [vmem:[%s1 + $0x78] sm:$0xff]
      %5472 = vset.pattern.permute.xlu0 0
      %5473 = vperm.xlu0 %5472, %v5455
      %v5474 = vpop.permute.xlu0 %5473
      %5477 = vset.pattern.permute.xlu0 0
      %5478 = vperm.xlu0 %5477, %v5456
      %v5479 = vpop.permute.xlu0 %5478
      %5482 = vset.pattern.permute.xlu0 0
      %5483 = vperm.xlu0 %5482, %v5457
      %v5484 = vpop.permute.xlu0 %5483
      %5487 = vset.pattern.permute.xlu0 0
      %5488 = vperm.xlu0 %5487, %v5458
      %v5489 = vpop.permute.xlu0 %5488
      %5492 = vset.pattern.permute.xlu0 0
      %5493 = vperm.xlu0 %5492, %v5459
      %v5494 = vpop.permute.xlu0 %5493
      %5497 = vset.pattern.permute.xlu0 0
      %5498 = vperm.xlu0 %5497, %v5460
      %v5499 = vpop.permute.xlu0 %5498
      %5502 = vset.pattern.permute.xlu0 0
      %5503 = vperm.xlu0 %5502, %v5461
      %v5504 = vpop.permute.xlu0 %5503
      %5507 = vset.pattern.permute.xlu0 0
      %5508 = vperm.xlu0 %5507, %v5462
      %v5509 = vpop.permute.xlu0 %5508
      %5512 = vset.pattern.permute.xlu0 0
      %5513 = vperm.xlu0 %5512, %v5463
      %v5514 = vpop.permute.xlu0 %5513
      %5517 = vset.pattern.permute.xlu0 0
      %5518 = vperm.xlu0 %5517, %v5464
      %v5519 = vpop.permute.xlu0 %5518
      %5522 = vset.pattern.permute.xlu0 0
      %5523 = vperm.xlu0 %5522, %v5465
      %v5524 = vpop.permute.xlu0 %5523
      %5527 = vset.pattern.permute.xlu0 0
      %5528 = vperm.xlu0 %5527, %v5466
      %v5529 = vpop.permute.xlu0 %5528
      %5532 = vset.pattern.permute.xlu0 0
      %5533 = vperm.xlu0 %5532, %v5467
      %v5534 = vpop.permute.xlu0 %5533
      %5537 = vset.pattern.permute.xlu0 0
      %5538 = vperm.xlu0 %5537, %v5468
      %v5539 = vpop.permute.xlu0 %5538
      %5542 = vset.pattern.permute.xlu0 0
      %5543 = vperm.xlu0 %5542, %v5469
      %v5544 = vpop.permute.xlu0 %5543
      %5547 = vset.pattern.permute.xlu0 0
      %5548 = vperm.xlu0 %5547, %v5470
      %v5549 = vpop.permute.xlu0 %5548
      %v5551 = vmul.f32 %v5439, %v5474
      %v5552 = vmul.f32 %v5440, %v5479
      %v5553 = vmul.f32 %v5441, %v5484
      %v5554 = vmul.f32 %v5442, %v5489
      %v5555 = vmul.f32 %v5443, %v5494
      %v5556 = vmul.f32 %v5444, %v5499
      %v5557 = vmul.f32 %v5445, %v5504
      %v5558 = vmul.f32 %v5446, %v5509
      %v5559 = vmul.f32 %v5447, %v5514
      %v5560 = vmul.f32 %v5448, %v5519
      %v5561 = vmul.f32 %v5449, %v5524
      %v5562 = vmul.f32 %v5450, %v5529
      %v5563 = vmul.f32 %v5451, %v5534
      %v5564 = vmul.f32 %v5452, %v5539
      %v5565 = vmul.f32 %v5453, %v5544
      %v5566 = vmul.f32 %v5454, %v5549
      %v5567 = vpack.c.bf16 %v5552, %v5551
      %v5568 = vpack.c.bf16 %v5554, %v5553
      %v5569 = vpack.c.bf16 %v5556, %v5555
      %v5570 = vpack.c.bf16 %v5558, %v5557
      %v5571 = vpack.c.bf16 %v5560, %v5559
      %v5572 = vpack.c.bf16 %v5562, %v5561
      %v5573 = vpack.c.bf16 %v5564, %v5563
      %v5574 = vpack.c.bf16 %v5566, %v5565
      %5575 = vst.msk [vmem:[#allocation2 + $0x18] sm:$0xff] %vm793, %v5567
      %5576 = vst.msk [vmem:[#allocation2 + $0x20] sm:$0xff] %vm793, %v5568
      %5577 = vst.msk [vmem:[#allocation2 + $0x28] sm:$0xff] %vm793, %v5569
      %5578 = vst.msk [vmem:[#allocation2 + $0x30] sm:$0xff] %vm793, %v5570
      %5579 = vst.msk [vmem:[#allocation2 + $0x38] sm:$0xff] %vm793, %v5571
      %5580 = vst.msk [vmem:[#allocation2 + $0x40] sm:$0xff] %vm793, %v5572
      %5581 = vst.msk [vmem:[#allocation2 + $0x48] sm:$0xff] %vm793, %v5573
      %5582 = vst.msk [vmem:[#allocation2 + $0x50] sm:$0xff] %vm793, %v5574
      %v5583 = vld [vmem:[%s15] sm:$0x1]
      %v5584 = vld [vmem:[%s16] sm:$0x1]
      %v5585 = vld [vmem:[#allocation2 + $0x10] sm:$0xc0]
      %v5586 = vld [vmem:[#allocation2 + $0x18] sm:$0xff]
      %v5587 = vld [vmem:[#allocation2 + $0x20] sm:$0xff]
      %v5588 = vld [vmem:[#allocation2 + $0x28] sm:$0xff]
      %v5589 = vld [vmem:[#allocation2 + $0x30] sm:$0xff]
      %v5590 = vld [vmem:[#allocation2 + $0x38] sm:$0xff]
      %v5591 = vld [vmem:[#allocation2 + $0x40] sm:$0xff]
      %v5592 = vld [vmem:[#allocation2 + $0x48] sm:$0xff]
      %v5593 = vld [vmem:[#allocation2 + $0x50] sm:$0x7f]
      %v5594 = vld [vmem:[%s14] sm:$0xf]
      %v5595 = vld [vmem:[#allocation2 + $0x10] sm:$0x80]
      %s5596 = scalar_lea.vmem %s14, 4
      %v5597 = vld [vmem:[%s5596] sm:$0xf]
      %v5607 = vrot.slane %v5595, 7
      %v5608 = vrot.slane %v5586, 7
      %v5609 = vsel %vm1509, %v5607, %v5608
      %v5610 = vrot.slane %v5587, 7
      %v5611 = vsel %vm1509, %v5608, %v5610
      %v5612 = vrot.slane %v5588, 7
      %v5613 = vsel %vm1509, %v5610, %v5612
      %v5614 = vrot.slane %v5589, 7
      %v5615 = vsel %vm1509, %v5612, %v5614
      %v5616 = vrot.slane %v5590, 7
      %v5617 = vsel %vm1509, %v5614, %v5616
      %v5618 = vrot.slane %v5591, 7
      %v5619 = vsel %vm1509, %v5616, %v5618
      %v5620 = vrot.slane %v5592, 7
      %v5621 = vsel %vm1509, %v5618, %v5620
      %v5622 = vrot.slane %v5593, 7
      %v5623 = vsel %vm1509, %v5620, %v5622
      %v5625 = vsel %vm793, %v5609, 0
      %v5628 = vsel %vm793, %v5611, 0
      %v5631 = vsel %vm793, %v5613, 0
      %v5634 = vsel %vm793, %v5615, 0
      %v5637 = vsel %vm793, %v5617, 0
      %v5640 = vsel %vm793, %v5619, 0
      %v5643 = vsel %vm793, %v5621, 0
      %v5646 = vsel %vm793, %v5623, 0
      %v5649 = vsel %vm900, %v5597, 0
      %5651 = vmatprep.subr.bf16.mxu0 0
      %5652 = vmatpush1.bf16.msra.mxu0 %v5649
      %5653 = vmatprep.subr.bf16.mxu0 0
      %5654 = vmatpush1.bf16.msra.mxu0 0
      %5655 = vmatprep.subr.bf16.mxu0 0
      %5656 = vmatpush1.bf16.msra.mxu0 0
      %5657 = vmatprep.subr.bf16.mxu0 0
      %5658 = vmatpush1.bf16.msra.mxu0 0
      %5659 = vmatprep.subr.bf16.mxu0 0
      %5660 = vmatpush1.bf16.msra.mxu0 0
      %5661 = vmatprep.subr.bf16.mxu0 0
      %5662 = vmatpush1.bf16.msra.mxu0 0
      %5663 = vmatprep.subr.bf16.mxu0 0
      %5664 = vmatpush1.bf16.msra.mxu0 0
      %5665 = vmatprep.subr.bf16.mxu0 0
      %5666 = vmatpush1.bf16.msra.mxu0 0
      %5667 = vmatprep.subr.bf16.mxu0 0
      %5668 = vmatpush1.bf16.msra.mxu0 0
      %5669 = vmatprep.subr.bf16.mxu0 0
      %5670 = vmatpush1.bf16.msra.mxu0 0
      %5671 = vmatprep.subr.bf16.mxu0 0
      %5672 = vmatpush1.bf16.msra.mxu0 0
      %5673 = vmatprep.subr.bf16.mxu0 0
      %5674 = vmatpush1.bf16.msra.mxu0 0
      %5675 = vmatprep.subr.bf16.mxu0 0
      %5676 = vmatpush1.bf16.msra.mxu0 0
      %5677 = vmatprep.subr.bf16.mxu0 0
      %5678 = vmatpush1.bf16.msra.mxu0 0
      %5679 = vmatprep.subr.bf16.mxu0 0
      %5680 = vmatpush1.bf16.msra.mxu0 0
      %5681 = vmatprep.subr.bf16.mxu0 0
      %5682 = vmatpush1.bf16.msra.mxu0 0
      %5683 = vmatprep.mubr.bf16.mxu0 0
      %5684 = vmatmul.mubr.bf16.gmra.mrb[0].mxu0 %v5625
      %v5685 = vpop.f32.mrb[0].mxu0
      %v5686 = vadd.f32 0.0, %v5685
      %v5687 = vpop.f32.mrb[0].mxu0
      %v5688 = vpop.f32.mrb[0].mxu0
      %v5689 = vadd.f32 0.0, %v5688
      %v5690 = vpop.f32.mrb[0].mxu0
      %5691 = vmatprep.mubr.bf16.mxu0 0
      %5692 = vmatmul.mubr.bf16.gmra.mrb[0].mxu0 %v5628
      %v5693 = vpop.f32.mrb[0].mxu0
      %v5694 = vadd.f32 0.0, %v5693
      %v5695 = vpop.f32.mrb[0].mxu0
      %v5696 = vpop.f32.mrb[0].mxu0
      %v5697 = vadd.f32 0.0, %v5696
      %v5698 = vpop.f32.mrb[0].mxu0
      %5699 = vmatprep.mubr.bf16.mxu0 0
      %5700 = vmatmul.mubr.bf16.gmra.mrb[0].mxu0 %v5631
      %v5701 = vpop.f32.mrb[0].mxu0
      %v5702 = vadd.f32 0.0, %v5701
      %v5703 = vpop.f32.mrb[0].mxu0
      %v5704 = vpop.f32.mrb[0].mxu0
      %v5705 = vadd.f32 0.0, %v5704
      %v5706 = vpop.f32.mrb[0].mxu0
      %5707 = vmatprep.mubr.bf16.mxu0 0
      %5708 = vmatmul.mubr.bf16.gmra.mrb[0].mxu0 %v5634
      %v5709 = vpop.f32.mrb[0].mxu0
      %v5710 = vadd.f32 0.0, %v5709
      %v5711 = vpop.f32.mrb[0].mxu0
      %v5712 = vpop.f32.mrb[0].mxu0
      %v5713 = vadd.f32 0.0, %v5712
      %v5714 = vpop.f32.mrb[0].mxu0
      %5715 = vmatprep.mubr.bf16.mxu0 0
      %5716 = vmatmul.mubr.bf16.gmra.mrb[0].mxu0 %v5637
      %v5717 = vpop.f32.mrb[0].mxu0
      %v5718 = vadd.f32 0.0, %v5717
      %v5719 = vpop.f32.mrb[0].mxu0
      %v5720 = vpop.f32.mrb[0].mxu0
      %v5721 = vadd.f32 0.0, %v5720
      %v5722 = vpop.f32.mrb[0].mxu0
      %5723 = vmatprep.mubr.bf16.mxu0 0
      %5724 = vmatmul.mubr.bf16.gmra.mrb[0].mxu0 %v5640
      %v5725 = vpop.f32.mrb[0].mxu0
      %v5726 = vadd.f32 0.0, %v5725
      %v5727 = vpop.f32.mrb[0].mxu0
      %v5728 = vpop.f32.mrb[0].mxu0
      %v5729 = vadd.f32 0.0, %v5728
      %v5730 = vpop.f32.mrb[0].mxu0
      %5731 = vmatprep.mubr.bf16.mxu0 0
      %5732 = vmatmul.mubr.bf16.gmra.mrb[0].mxu0 %v5643
      %v5733 = vpop.f32.mrb[0].mxu0
      %v5734 = vadd.f32 0.0, %v5733
      %v5735 = vpop.f32.mrb[0].mxu0
      %v5736 = vpop.f32.mrb[0].mxu0
      %v5737 = vadd.f32 0.0, %v5736
      %v5738 = vpop.f32.mrb[0].mxu0
      %5739 = vmatprep.mubr.bf16.mxu0 0
      %5740 = vmatmul.mubr.bf16.gmra.mrb[0].mxu0 %v5646
      %v5741 = vpop.f32.mrb[0].mxu0
      %v5742 = vadd.f32 0.0, %v5741
      %v5743 = vpop.f32.mrb[0].mxu0
      %v5744 = vpop.f32.mrb[0].mxu0
      %v5745 = vadd.f32 0.0, %v5744
      %v5746 = vpop.f32.mrb[0].mxu0
      %5747 = vdwg.mxu0
      %v5749 = vshrl.u32 %v5585, 16
      %v5751 = vrot.slane %v5749, 6
      %v5752 = vshll.u32 %v5585, 16
      %v5754 = vrot.slane %v5752, 7
      %v5755 = vor.u32 %v5751, %v5754
      %v5757 = vshrl.u32 %v5586, 16
      %v5759 = vrot.slane %v5757, 6
      %v5760 = vshll.u32 %v5586, 16
      %v5762 = vrot.slane %v5760, 7
      %v5763 = vor.u32 %v5759, %v5762
      %v5764 = vsel %vm1651, %v5755, %v5763
      %v5766 = vshrl.u32 %v5587, 16
      %v5768 = vrot.slane %v5766, 6
      %v5769 = vshll.u32 %v5587, 16
      %v5771 = vrot.slane %v5769, 7
      %v5772 = vor.u32 %v5768, %v5771
      %v5773 = vsel %vm1651, %v5763, %v5772
      %v5775 = vshrl.u32 %v5588, 16
      %v5777 = vrot.slane %v5775, 6
      %v5778 = vshll.u32 %v5588, 16
      %v5780 = vrot.slane %v5778, 7
      %v5781 = vor.u32 %v5777, %v5780
      %v5782 = vsel %vm1651, %v5772, %v5781
      %v5784 = vshrl.u32 %v5589, 16
      %v5786 = vrot.slane %v5784, 6
      %v5787 = vshll.u32 %v5589, 16
      %v5789 = vrot.slane %v5787, 7
      %v5790 = vor.u32 %v5786, %v5789
      %v5791 = vsel %vm1651, %v5781, %v5790
      %v5793 = vshrl.u32 %v5590, 16
      %v5795 = vrot.slane %v5793, 6
      %v5796 = vshll.u32 %v5590, 16
      %v5798 = vrot.slane %v5796, 7
      %v5799 = vor.u32 %v5795, %v5798
      %v5800 = vsel %vm1651, %v5790, %v5799
      %v5802 = vshrl.u32 %v5591, 16
      %v5804 = vrot.slane %v5802, 6
      %v5805 = vshll.u32 %v5591, 16
      %v5807 = vrot.slane %v5805, 7
      %v5808 = vor.u32 %v5804, %v5807
      %v5809 = vsel %vm1651, %v5799, %v5808
      %v5811 = vshrl.u32 %v5592, 16
      %v5813 = vrot.slane %v5811, 6
      %v5814 = vshll.u32 %v5592, 16
      %v5816 = vrot.slane %v5814, 7
      %v5817 = vor.u32 %v5813, %v5816
      %v5818 = vsel %vm1651, %v5808, %v5817
      %v5820 = vshrl.u32 %v5593, 16
      %v5822 = vrot.slane %v5820, 6
      %v5823 = vshll.u32 %v5593, 16
      %v5825 = vrot.slane %v5823, 7
      %v5826 = vor.u32 %v5822, %v5825
      %v5827 = vsel %vm1651, %v5817, %v5826
      %v5829 = vsel %vm793, %v5764, 0
      %v5832 = vsel %vm793, %v5773, 0
      %v5835 = vsel %vm793, %v5782, 0
      %v5838 = vsel %vm793, %v5791, 0
      %v5841 = vsel %vm793, %v5800, 0
      %v5844 = vsel %vm793, %v5809, 0
      %v5847 = vsel %vm793, %v5818, 0
      %v5850 = vsel %vm793, %v5827, 0
      %v5853 = vsel %vm900, %v5594, 0
      %5855 = vmatprep.subr.bf16.mxu0 0
      %5856 = vmatpush1.bf16.msra.mxu0 %v5853
      %5857 = vmatprep.subr.bf16.mxu0 0
      %5858 = vmatpush1.bf16.msra.mxu0 0
      %5859 = vmatprep.subr.bf16.mxu0 0
      %5860 = vmatpush1.bf16.msra.mxu0 0
      %5861 = vmatprep.subr.bf16.mxu0 0
      %5862 = vmatpush1.bf16.msra.mxu0 0
      %5863 = vmatprep.subr.bf16.mxu0 0
      %5864 = vmatpush1.bf16.msra.mxu0 0
      %5865 = vmatprep.subr.bf16.mxu0 0
      %5866 = vmatpush1.bf16.msra.mxu0 0
      %5867 = vmatprep.subr.bf16.mxu0 0
      %5868 = vmatpush1.bf16.msra.mxu0 0
      %5869 = vmatprep.subr.bf16.mxu0 0
      %5870 = vmatpush1.bf16.msra.mxu0 0
      %5871 = vmatprep.subr.bf16.mxu0 0
      %5872 = vmatpush1.bf16.msra.mxu0 0
      %5873 = vmatprep.subr.bf16.mxu0 0
      %5874 = vmatpush1.bf16.msra.mxu0 0
      %5875 = vmatprep.subr.bf16.mxu0 0
      %5876 = vmatpush1.bf16.msra.mxu0 0
      %5877 = vmatprep.subr.bf16.mxu0 0
      %5878 = vmatpush1.bf16.msra.mxu0 0
      %5879 = vmatprep.subr.bf16.mxu0 0
      %5880 = vmatpush1.bf16.msra.mxu0 0
      %5881 = vmatprep.subr.bf16.mxu0 0
      %5882 = vmatpush1.bf16.msra.mxu0 0
      %5883 = vmatprep.subr.bf16.mxu0 0
      %5884 = vmatpush1.bf16.msra.mxu0 0
      %5885 = vmatprep.subr.bf16.mxu0 0
      %5886 = vmatpush1.bf16.msra.mxu0 0
      %5887 = vmatprep.mubr.bf16.mxu0 0
      %5888 = vmatmul.mubr.bf16.gmra.mrb[0].mxu0 %v5829
      %v5889 = vpop.f32.mrb[0].mxu0
      %v5890 = vadd.f32 %v5686, %v5889
      %v5891 = vpop.f32.mrb[0].mxu0
      %v5892 = vpop.f32.mrb[0].mxu0
      %v5893 = vadd.f32 %v5689, %v5892
      %v5894 = vpop.f32.mrb[0].mxu0
      %5895 = vmatprep.mubr.bf16.mxu0 0
      %5896 = vmatmul.mubr.bf16.gmra.mrb[0].mxu0 %v5832
      %v5897 = vpop.f32.mrb[0].mxu0
      %v5898 = vadd.f32 %v5694, %v5897
      %v5899 = vpop.f32.mrb[0].mxu0
      %v5900 = vpop.f32.mrb[0].mxu0
      %v5901 = vadd.f32 %v5697, %v5900
      %v5902 = vpop.f32.mrb[0].mxu0
      %5903 = vmatprep.mubr.bf16.mxu0 0
      %5904 = vmatmul.mubr.bf16.gmra.mrb[0].mxu0 %v5835
      %v5905 = vpop.f32.mrb[0].mxu0
      %v5906 = vadd.f32 %v5702, %v5905
      %v5907 = vpop.f32.mrb[0].mxu0
      %v5908 = vpop.f32.mrb[0].mxu0
      %v5909 = vadd.f32 %v5705, %v5908
      %v5910 = vpop.f32.mrb[0].mxu0
      %5911 = vmatprep.mubr.bf16.mxu0 0
      %5912 = vmatmul.mubr.bf16.gmra.mrb[0].mxu0 %v5838
      %v5913 = vpop.f32.mrb[0].mxu0
      %v5914 = vadd.f32 %v5710, %v5913
      %v5915 = vpop.f32.mrb[0].mxu0
      %v5916 = vpop.f32.mrb[0].mxu0
      %v5917 = vadd.f32 %v5713, %v5916
      %v5918 = vpop.f32.mrb[0].mxu0
      %5919 = vmatprep.mubr.bf16.mxu0 0
      %5920 = vmatmul.mubr.bf16.gmra.mrb[0].mxu0 %v5841
      %v5921 = vpop.f32.mrb[0].mxu0
      %v5922 = vadd.f32 %v5718, %v5921
      %v5923 = vpop.f32.mrb[0].mxu0
      %v5924 = vpop.f32.mrb[0].mxu0
      %v5925 = vadd.f32 %v5721, %v5924
      %v5926 = vpop.f32.mrb[0].mxu0
      %5927 = vmatprep.mubr.bf16.mxu0 0
      %5928 = vmatmul.mubr.bf16.gmra.mrb[0].mxu0 %v5844
      %v5929 = vpop.f32.mrb[0].mxu0
      %v5930 = vadd.f32 %v5726, %v5929
      %v5931 = vpop.f32.mrb[0].mxu0
      %v5932 = vpop.f32.mrb[0].mxu0
      %v5933 = vadd.f32 %v5729, %v5932
      %v5934 = vpop.f32.mrb[0].mxu0
      %5935 = vmatprep.mubr.bf16.mxu0 0
      %5936 = vmatmul.mubr.bf16.gmra.mrb[0].mxu0 %v5847
      %v5937 = vpop.f32.mrb[0].mxu0
      %v5938 = vadd.f32 %v5734, %v5937
      %v5939 = vpop.f32.mrb[0].mxu0
      %v5940 = vpop.f32.mrb[0].mxu0
      %v5941 = vadd.f32 %v5737, %v5940
      %v5942 = vpop.f32.mrb[0].mxu0
      %5943 = vmatprep.mubr.bf16.mxu0 0
      %5944 = vmatmul.mubr.bf16.gmra.mrb[0].mxu0 %v5850
      %v5945 = vpop.f32.mrb[0].mxu0
      %v5946 = vadd.f32 %v5742, %v5945
      %v5947 = vpop.f32.mrb[0].mxu0
      %v5948 = vpop.f32.mrb[0].mxu0
      %v5949 = vadd.f32 %v5745, %v5948
      %v5950 = vpop.f32.mrb[0].mxu0
      %5951 = vdwg.mxu0
      %v5952 = vld [vmem:[#allocation2 + $0x50] sm:$0xff]
      %s5953 = scalar_lea.vmem %s14, 8
      %v5954 = vld [vmem:[%s5953] sm:$0xf]
      %v5956 = vshrl.u32 %v5595, 16
      %v5958 = vrot.slane %v5956, 7
      %v5959 = vrot.slane %v5757, 7
      %v5960 = vor.u32 %v5959, %v5760
      %v5961 = vsel %vm1859, %v5958, %v5960
      %v5962 = vrot.slane %v5766, 7
      %v5963 = vor.u32 %v5962, %v5769
      %v5964 = vsel %vm1859, %v5959, %v5963
      %v5965 = vrot.slane %v5775, 7
      %v5966 = vor.u32 %v5965, %v5778
      %v5967 = vsel %vm1859, %v5962, %v5966
      %v5968 = vrot.slane %v5784, 7
      %v5969 = vor.u32 %v5968, %v5787
      %v5970 = vsel %vm1859, %v5965, %v5969
      %v5971 = vrot.slane %v5793, 7
      %v5972 = vor.u32 %v5971, %v5796
      %v5973 = vsel %vm1859, %v5968, %v5972
      %v5974 = vrot.slane %v5802, 7
      %v5975 = vor.u32 %v5974, %v5805
      %v5976 = vsel %vm1859, %v5971, %v5975
      %v5977 = vrot.slane %v5811, 7
      %v5978 = vor.u32 %v5977, %v5814
      %v5979 = vsel %vm1859, %v5974, %v5978
      %v5981 = vshrl.u32 %v5952, 16
      %v5983 = vrot.slane %v5981, 7
      %v5984 = vshll.u32 %v5952, 16
      %v5986 = vor.u32 %v5983, %v5984
      %v5987 = vsel %vm1859, %v5977, %v5986
      %v5989 = vsel %vm793, %v5961, 0
      %v5992 = vsel %vm793, %v5964, 0
      %v5995 = vsel %vm793, %v5967, 0
      %v5998 = vsel %vm793, %v5970, 0
      %v6001 = vsel %vm793, %v5973, 0
      %v6004 = vsel %vm793, %v5976, 0
      %v6007 = vsel %vm793, %v5979, 0
      %v6010 = vsel %vm793, %v5987, 0
      %v6013 = vsel %vm900, %v5954, 0
      %6015 = vmatprep.subr.bf16.mxu0 0
      %6016 = vmatpush1.bf16.msra.mxu0 %v6013
      %6017 = vmatprep.subr.bf16.mxu0 0
      %6018 = vmatpush1.bf16.msra.mxu0 0
      %6019 = vmatprep.subr.bf16.mxu0 0
      %6020 = vmatpush1.bf16.msra.mxu0 0
      %6021 = vmatprep.subr.bf16.mxu0 0
      %6022 = vmatpush1.bf16.msra.mxu0 0
      %6023 = vmatprep.subr.bf16.mxu0 0
      %6024 = vmatpush1.bf16.msra.mxu0 0
      %6025 = vmatprep.subr.bf16.mxu0 0
      %6026 = vmatpush1.bf16.msra.mxu0 0
      %6027 = vmatprep.subr.bf16.mxu0 0
      %6028 = vmatpush1.bf16.msra.mxu0 0
      %6029 = vmatprep.subr.bf16.mxu0 0
      %6030 = vmatpush1.bf16.msra.mxu0 0
      %6031 = vmatprep.subr.bf16.mxu0 0
      %6032 = vmatpush1.bf16.msra.mxu0 0
      %6033 = vmatprep.subr.bf16.mxu0 0
      %6034 = vmatpush1.bf16.msra.mxu0 0
      %6035 = vmatprep.subr.bf16.mxu0 0
      %6036 = vmatpush1.bf16.msra.mxu0 0
      %6037 = vmatprep.subr.bf16.mxu0 0
      %6038 = vmatpush1.bf16.msra.mxu0 0
      %6039 = vmatprep.subr.bf16.mxu0 0
      %6040 = vmatpush1.bf16.msra.mxu0 0
      %6041 = vmatprep.subr.bf16.mxu0 0
      %6042 = vmatpush1.bf16.msra.mxu0 0
      %6043 = vmatprep.subr.bf16.mxu0 0
      %6044 = vmatpush1.bf16.msra.mxu0 0
      %6045 = vmatprep.subr.bf16.mxu0 0
      %6046 = vmatpush1.bf16.msra.mxu0 0
      %6047 = vmatprep.mubr.bf16.mxu0 0
      %6048 = vmatmul.mubr.bf16.gmra.mrb[0].mxu0 %v5989
      %v6049 = vpop.f32.mrb[0].mxu0
      %v6050 = vadd.f32 0.0, %v6049
      %v6051 = vpop.f32.mrb[0].mxu0
      %v6052 = vpop.f32.mrb[0].mxu0
      %v6053 = vadd.f32 0.0, %v6052
      %v6054 = vpop.f32.mrb[0].mxu0
      %6055 = vmatprep.mubr.bf16.mxu0 0
      %6056 = vmatmul.mubr.bf16.gmra.mrb[0].mxu0 %v5992
      %v6057 = vpop.f32.mrb[0].mxu0
      %v6058 = vadd.f32 0.0, %v6057
      %v6059 = vpop.f32.mrb[0].mxu0
      %v6060 = vpop.f32.mrb[0].mxu0
      %v6061 = vadd.f32 0.0, %v6060
      %v6062 = vpop.f32.mrb[0].mxu0
      %6063 = vmatprep.mubr.bf16.mxu0 0
      %6064 = vmatmul.mubr.bf16.gmra.mrb[0].mxu0 %v5995
      %v6065 = vpop.f32.mrb[0].mxu0
      %v6066 = vadd.f32 0.0, %v6065
      %v6067 = vpop.f32.mrb[0].mxu0
      %v6068 = vpop.f32.mrb[0].mxu0
      %v6069 = vadd.f32 0.0, %v6068
      %v6070 = vpop.f32.mrb[0].mxu0
      %6071 = vmatprep.mubr.bf16.mxu0 0
      %6072 = vmatmul.mubr.bf16.gmra.mrb[0].mxu0 %v5998
      %v6073 = vpop.f32.mrb[0].mxu0
      %v6074 = vadd.f32 0.0, %v6073
      %v6075 = vpop.f32.mrb[0].mxu0
      %v6076 = vpop.f32.mrb[0].mxu0
      %v6077 = vadd.f32 0.0, %v6076
      %v6078 = vpop.f32.mrb[0].mxu0
      %6079 = vmatprep.mubr.bf16.mxu0 0
      %6080 = vmatmul.mubr.bf16.gmra.mrb[0].mxu0 %v6001
      %v6081 = vpop.f32.mrb[0].mxu0
      %v6082 = vadd.f32 0.0, %v6081
      %v6083 = vpop.f32.mrb[0].mxu0
      %v6084 = vpop.f32.mrb[0].mxu0
      %v6085 = vadd.f32 0.0, %v6084
      %v6086 = vpop.f32.mrb[0].mxu0
      %6087 = vmatprep.mubr.bf16.mxu0 0
      %6088 = vmatmul.mubr.bf16.gmra.mrb[0].mxu0 %v6004
      %v6089 = vpop.f32.mrb[0].mxu0
      %v6090 = vadd.f32 0.0, %v6089
      %v6091 = vpop.f32.mrb[0].mxu0
      %v6092 = vpop.f32.mrb[0].mxu0
      %v6093 = vadd.f32 0.0, %v6092
      %v6094 = vpop.f32.mrb[0].mxu0
      %6095 = vmatprep.mubr.bf16.mxu0 0
      %6096 = vmatmul.mubr.bf16.gmra.mrb[0].mxu0 %v6007
      %v6097 = vpop.f32.mrb[0].mxu0
      %v6098 = vadd.f32 0.0, %v6097
      %v6099 = vpop.f32.mrb[0].mxu0
      %v6100 = vpop.f32.mrb[0].mxu0
      %v6101 = vadd.f32 0.0, %v6100
      %v6102 = vpop.f32.mrb[0].mxu0
      %6103 = vmatprep.mubr.bf16.mxu0 0
      %6104 = vmatmul.mubr.bf16.gmra.mrb[0].mxu0 %v6010
      %v6105 = vpop.f32.mrb[0].mxu0
      %v6106 = vadd.f32 0.0, %v6105
      %v6107 = vpop.f32.mrb[0].mxu0
      %v6108 = vpop.f32.mrb[0].mxu0
      %v6109 = vadd.f32 0.0, %v6108
      %v6110 = vpop.f32.mrb[0].mxu0
      %6111 = vdwg.mxu0
      %v6112 = vadd.f32 %v5890, %v6050
      %v6113 = vadd.f32 %v5893, %v6053
      %v6114 = vadd.f32 %v5898, %v6058
      %v6115 = vadd.f32 %v5901, %v6061
      %v6116 = vadd.f32 %v5906, %v6066
      %v6117 = vadd.f32 %v5909, %v6069
      %v6118 = vadd.f32 %v5914, %v6074
      %v6119 = vadd.f32 %v5917, %v6077
      %v6120 = vadd.f32 %v5922, %v6082
      %v6121 = vadd.f32 %v5925, %v6085
      %v6122 = vadd.f32 %v5930, %v6090
      %v6123 = vadd.f32 %v5933, %v6093
      %v6124 = vadd.f32 %v5938, %v6098
      %v6125 = vadd.f32 %v5941, %v6101
      %v6126 = vadd.f32 %v5946, %v6106
      %v6127 = vadd.f32 %v5949, %v6109
      %s6128 = scalar_lea.vmem %s14, 12
      %v6129 = vld [vmem:[%s6128] sm:$0xf]
      %v6130 = vsel %vm793, %v5586, 0
      %v6132 = vsel %vm793, %v5587, 0
      %v6134 = vsel %vm793, %v5588, 0
      %v6136 = vsel %vm793, %v5589, 0
      %v6138 = vsel %vm793, %v5590, 0
      %v6140 = vsel %vm793, %v5591, 0
      %v6142 = vsel %vm793, %v5592, 0
      %v6144 = vsel %vm793, %v5952, 0
      %v6147 = vsel %vm900, %v6129, 0
      %6149 = vmatprep.subr.bf16.mxu0 0
      %6150 = vmatpush1.bf16.msra.mxu0 %v6147
      %6151 = vmatprep.subr.bf16.mxu0 0
      %6152 = vmatpush1.bf16.msra.mxu0 0
      %6153 = vmatprep.subr.bf16.mxu0 0
      %6154 = vmatpush1.bf16.msra.mxu0 0
      %6155 = vmatprep.subr.bf16.mxu0 0
      %6156 = vmatpush1.bf16.msra.mxu0 0
      %6157 = vmatprep.subr.bf16.mxu0 0
      %6158 = vmatpush1.bf16.msra.mxu0 0
      %6159 = vmatprep.subr.bf16.mxu0 0
      %6160 = vmatpush1.bf16.msra.mxu0 0
      %6161 = vmatprep.subr.bf16.mxu0 0
      %6162 = vmatpush1.bf16.msra.mxu0 0
      %6163 = vmatprep.subr.bf16.mxu0 0
      %6164 = vmatpush1.bf16.msra.mxu0 0
      %6165 = vmatprep.subr.bf16.mxu0 0
      %6166 = vmatpush1.bf16.msra.mxu0 0
      %6167 = vmatprep.subr.bf16.mxu0 0
      %6168 = vmatpush1.bf16.msra.mxu0 0
      %6169 = vmatprep.subr.bf16.mxu0 0
      %6170 = vmatpush1.bf16.msra.mxu0 0
      %6171 = vmatprep.subr.bf16.mxu0 0
      %6172 = vmatpush1.bf16.msra.mxu0 0
      %6173 = vmatprep.subr.bf16.mxu0 0
      %6174 = vmatpush1.bf16.msra.mxu0 0
      %6175 = vmatprep.subr.bf16.mxu0 0
      %6176 = vmatpush1.bf16.msra.mxu0 0
      %6177 = vmatprep.subr.bf16.mxu0 0
      %6178 = vmatpush1.bf16.msra.mxu0 0
      %6179 = vmatprep.subr.bf16.mxu0 0
      %6180 = vmatpush1.bf16.msra.mxu0 0
      %6181 = vmatprep.mubr.bf16.mxu0 0
      %6182 = vmatmul.mubr.bf16.gmra.mrb[0].mxu0 %v6130
      %v6183 = vpop.f32.mrb[0].mxu0
      %v6184 = vadd.f32 0.0, %v6183
      %v6185 = vpop.f32.mrb[0].mxu0
      %v6186 = vpop.f32.mrb[0].mxu0
      %v6187 = vadd.f32 0.0, %v6186
      %v6188 = vpop.f32.mrb[0].mxu0
      %6189 = vmatprep.mubr.bf16.mxu0 0
      %6190 = vmatmul.mubr.bf16.gmra.mrb[0].mxu0 %v6132
      %v6191 = vpop.f32.mrb[0].mxu0
      %v6192 = vadd.f32 0.0, %v6191
      %v6193 = vpop.f32.mrb[0].mxu0
      %v6194 = vpop.f32.mrb[0].mxu0
      %v6195 = vadd.f32 0.0, %v6194
      %v6196 = vpop.f32.mrb[0].mxu0
      %6197 = vmatprep.mubr.bf16.mxu0 0
      %6198 = vmatmul.mubr.bf16.gmra.mrb[0].mxu0 %v6134
      %v6199 = vpop.f32.mrb[0].mxu0
      %v6200 = vadd.f32 0.0, %v6199
      %v6201 = vpop.f32.mrb[0].mxu0
      %v6202 = vpop.f32.mrb[0].mxu0
      %v6203 = vadd.f32 0.0, %v6202
      %v6204 = vpop.f32.mrb[0].mxu0
      %6205 = vmatprep.mubr.bf16.mxu0 0
      %6206 = vmatmul.mubr.bf16.gmra.mrb[0].mxu0 %v6136
      %v6207 = vpop.f32.mrb[0].mxu0
      %v6208 = vadd.f32 0.0, %v6207
      %v6209 = vpop.f32.mrb[0].mxu0
      %v6210 = vpop.f32.mrb[0].mxu0
      %v6211 = vadd.f32 0.0, %v6210
      %v6212 = vpop.f32.mrb[0].mxu0
      %6213 = vmatprep.mubr.bf16.mxu0 0
      %6214 = vmatmul.mubr.bf16.gmra.mrb[0].mxu0 %v6138
      %v6215 = vpop.f32.mrb[0].mxu0
      %v6216 = vadd.f32 0.0, %v6215
      %v6217 = vpop.f32.mrb[0].mxu0
      %v6218 = vpop.f32.mrb[0].mxu0
      %v6219 = vadd.f32 0.0, %v6218
      %v6220 = vpop.f32.mrb[0].mxu0
      %6221 = vmatprep.mubr.bf16.mxu0 0
      %6222 = vmatmul.mubr.bf16.gmra.mrb[0].mxu0 %v6140
      %v6223 = vpop.f32.mrb[0].mxu0
      %v6224 = vadd.f32 0.0, %v6223
      %v6225 = vpop.f32.mrb[0].mxu0
      %v6226 = vpop.f32.mrb[0].mxu0
      %v6227 = vadd.f32 0.0, %v6226
      %v6228 = vpop.f32.mrb[0].mxu0
      %6229 = vmatprep.mubr.bf16.mxu0 0
      %6230 = vmatmul.mubr.bf16.gmra.mrb[0].mxu0 %v6142
      %v6231 = vpop.f32.mrb[0].mxu0
      %v6232 = vadd.f32 0.0, %v6231
      %v6233 = vpop.f32.mrb[0].mxu0
      %v6234 = vpop.f32.mrb[0].mxu0
      %v6235 = vadd.f32 0.0, %v6234
      %v6236 = vpop.f32.mrb[0].mxu0
      %6237 = vmatprep.mubr.bf16.mxu0 0
      %6238 = vmatmul.mubr.bf16.gmra.mrb[0].mxu0 %v6144
      %v6239 = vpop.f32.mrb[0].mxu0
      %v6240 = vadd.f32 0.0, %v6239
      %v6241 = vpop.f32.mrb[0].mxu0
      %v6242 = vpop.f32.mrb[0].mxu0
      %v6243 = vadd.f32 0.0, %v6242
      %v6244 = vpop.f32.mrb[0].mxu0
      %6245 = vdwg.mxu0
      %v6246 = vadd.f32 %v6112, %v6184
      %v6247 = vadd.f32 %v6113, %v6187
      %v6248 = vadd.f32 %v6114, %v6192
      %v6249 = vadd.f32 %v6115, %v6195
      %v6250 = vadd.f32 %v6116, %v6200
      %v6251 = vadd.f32 %v6117, %v6203
      %v6252 = vadd.f32 %v6118, %v6208
      %v6253 = vadd.f32 %v6119, %v6211
      %v6254 = vadd.f32 %v6120, %v6216
      %v6255 = vadd.f32 %v6121, %v6219
      %v6256 = vadd.f32 %v6122, %v6224
      %v6257 = vadd.f32 %v6123, %v6227
      %v6258 = vadd.f32 %v6124, %v6232
      %v6259 = vadd.f32 %v6125, %v6235
      %v6260 = vadd.f32 %v6126, %v6240
      %v6261 = vadd.f32 %v6127, %v6243
      %v6262 = vld [vmem:[#allocation2 + $0x18] sm:$0xff]
      %v6263 = vld [vmem:[#allocation2 + $0x20] sm:$0xff]
      %v6264 = vld [vmem:[#allocation2 + $0x28] sm:$0xff]
      %v6265 = vld [vmem:[#allocation2 + $0x30] sm:$0xff]
      %v6266 = vld [vmem:[#allocation2 + $0x38] sm:$0xff]
      %v6267 = vld [vmem:[#allocation2 + $0x40] sm:$0xff]
      %v6268 = vld [vmem:[#allocation2 + $0x48] sm:$0xff]
      %v6269 = vld [vmem:[#allocation2 + $0x50] sm:$0xff]
      %v6270 = vld [vmem:[#allocation2 + $0x58] sm:$0x1]
      %s6271 = scalar_lea.vmem %s14, 16
      %v6272 = vld [vmem:[%s6271] sm:$0xf]
      %v6274 = vshrl.u32 %v6262, 16
      %v6276 = vshll.u32 %v6262, 16
      %v6278 = vrot.slane %v6276, 1
      %v6279 = vor.u32 %v6274, %v6278
      %v6281 = vshll.u32 %v6263, 16
      %v6283 = vrot.slane %v6281, 1
      %v6284 = vsel %vm2178, %v6279, %v6283
      %v6285 = vshrl.u32 %v6263, 16
      %v6287 = vor.u32 %v6285, %v6283
      %v6289 = vshll.u32 %v6264, 16
      %v6291 = vrot.slane %v6289, 1
      %v6292 = vsel %vm2178, %v6287, %v6291
      %v6293 = vshrl.u32 %v6264, 16
      %v6295 = vor.u32 %v6293, %v6291
      %v6297 = vshll.u32 %v6265, 16
      %v6299 = vrot.slane %v6297, 1
      %v6300 = vsel %vm2178, %v6295, %v6299
      %v6301 = vshrl.u32 %v6265, 16
      %v6303 = vor.u32 %v6301, %v6299
      %v6305 = vshll.u32 %v6266, 16
      %v6307 = vrot.slane %v6305, 1
      %v6308 = vsel %vm2178, %v6303, %v6307
      %v6309 = vshrl.u32 %v6266, 16
      %v6311 = vor.u32 %v6309, %v6307
      %v6313 = vshll.u32 %v6267, 16
      %v6315 = vrot.slane %v6313, 1
      %v6316 = vsel %vm2178, %v6311, %v6315
      %v6317 = vshrl.u32 %v6267, 16
      %v6319 = vor.u32 %v6317, %v6315
      %v6321 = vshll.u32 %v6268, 16
      %v6323 = vrot.slane %v6321, 1
      %v6324 = vsel %vm2178, %v6319, %v6323
      %v6325 = vshrl.u32 %v6268, 16
      %v6327 = vor.u32 %v6325, %v6323
      %v6329 = vshll.u32 %v6269, 16
      %v6331 = vrot.slane %v6329, 1
      %v6332 = vsel %vm2178, %v6327, %v6331
      %v6333 = vshrl.u32 %v6269, 16
      %v6335 = vor.u32 %v6333, %v6331
      %v6337 = vshll.u32 %v6270, 16
      %v6339 = vrot.slane %v6337, 1
      %v6340 = vsel %vm2178, %v6335, %v6339
      %v6342 = vsel %vm793, %v6284, 0
      %v6345 = vsel %vm793, %v6292, 0
      %v6348 = vsel %vm793, %v6300, 0
      %v6351 = vsel %vm793, %v6308, 0
      %v6354 = vsel %vm793, %v6316, 0
      %v6357 = vsel %vm793, %v6324, 0
      %v6360 = vsel %vm793, %v6332, 0
      %v6363 = vsel %vm793, %v6340, 0
      %v6366 = vsel %vm900, %v6272, 0
      %6368 = vmatprep.subr.bf16.mxu0 0
      %6369 = vmatpush1.bf16.msra.mxu0 %v6366
      %6370 = vmatprep.subr.bf16.mxu0 0
      %6371 = vmatpush1.bf16.msra.mxu0 0
      %6372 = vmatprep.subr.bf16.mxu0 0
      %6373 = vmatpush1.bf16.msra.mxu0 0
      %6374 = vmatprep.subr.bf16.mxu0 0
      %6375 = vmatpush1.bf16.msra.mxu0 0
      %6376 = vmatprep.subr.bf16.mxu0 0
      %6377 = vmatpush1.bf16.msra.mxu0 0
      %6378 = vmatprep.subr.bf16.mxu0 0
      %6379 = vmatpush1.bf16.msra.mxu0 0
      %6380 = vmatprep.subr.bf16.mxu0 0
      %6381 = vmatpush1.bf16.msra.mxu0 0
      %6382 = vmatprep.subr.bf16.mxu0 0
      %6383 = vmatpush1.bf16.msra.mxu0 0
      %6384 = vmatprep.subr.bf16.mxu0 0
      %6385 = vmatpush1.bf16.msra.mxu0 0
      %6386 = vmatprep.subr.bf16.mxu0 0
      %6387 = vmatpush1.bf16.msra.mxu0 0
      %6388 = vmatprep.subr.bf16.mxu0 0
      %6389 = vmatpush1.bf16.msra.mxu0 0
      %6390 = vmatprep.subr.bf16.mxu0 0
      %6391 = vmatpush1.bf16.msra.mxu0 0
      %6392 = vmatprep.subr.bf16.mxu0 0
      %6393 = vmatpush1.bf16.msra.mxu0 0
      %6394 = vmatprep.subr.bf16.mxu0 0
      %6395 = vmatpush1.bf16.msra.mxu0 0
      %6396 = vmatprep.subr.bf16.mxu0 0
      %6397 = vmatpush1.bf16.msra.mxu0 0
      %6398 = vmatprep.subr.bf16.mxu0 0
      %6399 = vmatpush1.bf16.msra.mxu0 0
      %6400 = vmatprep.mubr.bf16.mxu0 0
      %6401 = vmatmul.mubr.bf16.gmra.mrb[0].mxu0 %v6342
      %v6402 = vpop.f32.mrb[0].mxu0
      %v6403 = vadd.f32 0.0, %v6402
      %v6404 = vpop.f32.mrb[0].mxu0
      %v6405 = vpop.f32.mrb[0].mxu0
      %v6406 = vadd.f32 0.0, %v6405
      %v6407 = vpop.f32.mrb[0].mxu0
      %6408 = vmatprep.mubr.bf16.mxu0 0
      %6409 = vmatmul.mubr.bf16.gmra.mrb[0].mxu0 %v6345
      %v6410 = vpop.f32.mrb[0].mxu0
      %v6411 = vadd.f32 0.0, %v6410
      %v6412 = vpop.f32.mrb[0].mxu0
      %v6413 = vpop.f32.mrb[0].mxu0
      %v6414 = vadd.f32 0.0, %v6413
      %v6415 = vpop.f32.mrb[0].mxu0
      %6416 = vmatprep.mubr.bf16.mxu0 0
      %6417 = vmatmul.mubr.bf16.gmra.mrb[0].mxu0 %v6348
      %v6418 = vpop.f32.mrb[0].mxu0
      %v6419 = vadd.f32 0.0, %v6418
      %v6420 = vpop.f32.mrb[0].mxu0
      %v6421 = vpop.f32.mrb[0].mxu0
      %v6422 = vadd.f32 0.0, %v6421
      %v6423 = vpop.f32.mrb[0].mxu0
      %6424 = vmatprep.mubr.bf16.mxu0 0
      %6425 = vmatmul.mubr.bf16.gmra.mrb[0].mxu0 %v6351
      %v6426 = vpop.f32.mrb[0].mxu0
      %v6427 = vadd.f32 0.0, %v6426
      %v6428 = vpop.f32.mrb[0].mxu0
      %v6429 = vpop.f32.mrb[0].mxu0
      %v6430 = vadd.f32 0.0, %v6429
      %v6431 = vpop.f32.mrb[0].mxu0
      %6432 = vmatprep.mubr.bf16.mxu0 0
      %6433 = vmatmul.mubr.bf16.gmra.mrb[0].mxu0 %v6354
      %v6434 = vpop.f32.mrb[0].mxu0
      %v6435 = vadd.f32 0.0, %v6434
      %v6436 = vpop.f32.mrb[0].mxu0
      %v6437 = vpop.f32.mrb[0].mxu0
      %v6438 = vadd.f32 0.0, %v6437
      %v6439 = vpop.f32.mrb[0].mxu0
      %6440 = vmatprep.mubr.bf16.mxu0 0
      %6441 = vmatmul.mubr.bf16.gmra.mrb[0].mxu0 %v6357
      %v6442 = vpop.f32.mrb[0].mxu0
      %v6443 = vadd.f32 0.0, %v6442
      %v6444 = vpop.f32.mrb[0].mxu0
      %v6445 = vpop.f32.mrb[0].mxu0
      %v6446 = vadd.f32 0.0, %v6445
      %v6447 = vpop.f32.mrb[0].mxu0
      %6448 = vmatprep.mubr.bf16.mxu0 0
      %6449 = vmatmul.mubr.bf16.gmra.mrb[0].mxu0 %v6360
      %v6450 = vpop.f32.mrb[0].mxu0
      %v6451 = vadd.f32 0.0, %v6450
      %v6452 = vpop.f32.mrb[0].mxu0
      %v6453 = vpop.f32.mrb[0].mxu0
      %v6454 = vadd.f32 0.0, %v6453
      %v6455 = vpop.f32.mrb[0].mxu0
      %6456 = vmatprep.mubr.bf16.mxu0 0
      %6457 = vmatmul.mubr.bf16.gmra.mrb[0].mxu0 %v6363
      %v6458 = vpop.f32.mrb[0].mxu0
      %v6459 = vadd.f32 0.0, %v6458
      %v6460 = vpop.f32.mrb[0].mxu0
      %v6461 = vpop.f32.mrb[0].mxu0
      %v6462 = vadd.f32 0.0, %v6461
      %v6463 = vpop.f32.mrb[0].mxu0
      %6464 = vdwg.mxu0
      %v6465 = vadd.f32 %v6246, %v6403
      %v6466 = vadd.f32 %v6247, %v6406
      %v6467 = vadd.f32 %v6248, %v6411
      %v6468 = vadd.f32 %v6249, %v6414
      %v6469 = vadd.f32 %v6250, %v6419
      %v6470 = vadd.f32 %v6251, %v6422
      %v6471 = vadd.f32 %v6252, %v6427
      %v6472 = vadd.f32 %v6253, %v6430
      %v6473 = vadd.f32 %v6254, %v6435
      %v6474 = vadd.f32 %v6255, %v6438
      %v6475 = vadd.f32 %v6256, %v6443
      %v6476 = vadd.f32 %v6257, %v6446
      %v6477 = vadd.f32 %v6258, %v6451
      %v6478 = vadd.f32 %v6259, %v6454
      %v6479 = vadd.f32 %v6260, %v6459
      %v6480 = vadd.f32 %v6261, %v6462
      %v6481 = vld [vmem:[#allocation2 + $0x18] sm:$0xfe]
      %s6482 = scalar_lea.vmem %s14, 20
      %v6483 = vld [vmem:[%s6482] sm:$0xf]
      %v6493 = vrot.slane %v6481, 1
      %v6494 = vrot.slane %v6263, 1
      %v6495 = vsel %vm2399, %v6493, %v6494
      %v6496 = vrot.slane %v6264, 1
      %v6497 = vsel %vm2399, %v6494, %v6496
      %v6498 = vrot.slane %v6265, 1
      %v6499 = vsel %vm2399, %v6496, %v6498
      %v6500 = vrot.slane %v6266, 1
      %v6501 = vsel %vm2399, %v6498, %v6500
      %v6502 = vrot.slane %v6267, 1
      %v6503 = vsel %vm2399, %v6500, %v6502
      %v6504 = vrot.slane %v6268, 1
      %v6505 = vsel %vm2399, %v6502, %v6504
      %v6506 = vrot.slane %v6269, 1
      %v6507 = vsel %vm2399, %v6504, %v6506
      %v6508 = vrot.slane %v6270, 1
      %v6509 = vsel %vm2399, %v6506, %v6508
      %v6511 = vsel %vm793, %v6495, 0
      %v6514 = vsel %vm793, %v6497, 0
      %v6517 = vsel %vm793, %v6499, 0
      %v6520 = vsel %vm793, %v6501, 0
      %v6523 = vsel %vm793, %v6503, 0
      %v6526 = vsel %vm793, %v6505, 0
      %v6529 = vsel %vm793, %v6507, 0
      %v6532 = vsel %vm793, %v6509, 0
      %v6535 = vsel %vm900, %v6483, 0
      %6537 = vmatprep.subr.bf16.mxu0 0
      %6538 = vmatpush1.bf16.msra.mxu0 %v6535
      %6539 = vmatprep.subr.bf16.mxu0 0
      %6540 = vmatpush1.bf16.msra.mxu0 0
      %6541 = vmatprep.subr.bf16.mxu0 0
      %6542 = vmatpush1.bf16.msra.mxu0 0
      %6543 = vmatprep.subr.bf16.mxu0 0
      %6544 = vmatpush1.bf16.msra.mxu0 0
      %6545 = vmatprep.subr.bf16.mxu0 0
      %6546 = vmatpush1.bf16.msra.mxu0 0
      %6547 = vmatprep.subr.bf16.mxu0 0
      %6548 = vmatpush1.bf16.msra.mxu0 0
      %6549 = vmatprep.subr.bf16.mxu0 0
      %6550 = vmatpush1.bf16.msra.mxu0 0
      %6551 = vmatprep.subr.bf16.mxu0 0
      %6552 = vmatpush1.bf16.msra.mxu0 0
      %6553 = vmatprep.subr.bf16.mxu0 0
      %6554 = vmatpush1.bf16.msra.mxu0 0
      %6555 = vmatprep.subr.bf16.mxu0 0
      %6556 = vmatpush1.bf16.msra.mxu0 0
      %6557 = vmatprep.subr.bf16.mxu0 0
      %6558 = vmatpush1.bf16.msra.mxu0 0
      %6559 = vmatprep.subr.bf16.mxu0 0
      %6560 = vmatpush1.bf16.msra.mxu0 0
      %6561 = vmatprep.subr.bf16.mxu0 0
      %6562 = vmatpush1.bf16.msra.mxu0 0
      %6563 = vmatprep.subr.bf16.mxu0 0
      %6564 = vmatpush1.bf16.msra.mxu0 0
      %6565 = vmatprep.subr.bf16.mxu0 0
      %6566 = vmatpush1.bf16.msra.mxu0 0
      %6567 = vmatprep.subr.bf16.mxu0 0
      %6568 = vmatpush1.bf16.msra.mxu0 0
      %6569 = vmatprep.mubr.bf16.mxu0 0
      %6570 = vmatmul.mubr.bf16.gmra.mrb[0].mxu0 %v6511
      %v6571 = vpop.f32.mrb[0].mxu0
      %v6572 = vadd.f32 0.0, %v6571
      %v6573 = vpop.f32.mrb[0].mxu0
      %v6574 = vpop.f32.mrb[0].mxu0
      %v6575 = vadd.f32 0.0, %v6574
      %v6576 = vpop.f32.mrb[0].mxu0
      %6577 = vmatprep.mubr.bf16.mxu0 0
      %6578 = vmatmul.mubr.bf16.gmra.mrb[0].mxu0 %v6514
      %v6579 = vpop.f32.mrb[0].mxu0
      %v6580 = vadd.f32 0.0, %v6579
      %v6581 = vpop.f32.mrb[0].mxu0
      %v6582 = vpop.f32.mrb[0].mxu0
      %v6583 = vadd.f32 0.0, %v6582
      %v6584 = vpop.f32.mrb[0].mxu0
      %6585 = vmatprep.mubr.bf16.mxu0 0
      %6586 = vmatmul.mubr.bf16.gmra.mrb[0].mxu0 %v6517
      %v6587 = vpop.f32.mrb[0].mxu0
      %v6588 = vadd.f32 0.0, %v6587
      %v6589 = vpop.f32.mrb[0].mxu0
      %v6590 = vpop.f32.mrb[0].mxu0
      %v6591 = vadd.f32 0.0, %v6590
      %v6592 = vpop.f32.mrb[0].mxu0
      %6593 = vmatprep.mubr.bf16.mxu0 0
      %6594 = vmatmul.mubr.bf16.gmra.mrb[0].mxu0 %v6520
      %v6595 = vpop.f32.mrb[0].mxu0
      %v6596 = vadd.f32 0.0, %v6595
      %v6597 = vpop.f32.mrb[0].mxu0
      %v6598 = vpop.f32.mrb[0].mxu0
      %v6599 = vadd.f32 0.0, %v6598
      %v6600 = vpop.f32.mrb[0].mxu0
      %6601 = vmatprep.mubr.bf16.mxu0 0
      %6602 = vmatmul.mubr.bf16.gmra.mrb[0].mxu0 %v6523
      %v6603 = vpop.f32.mrb[0].mxu0
      %v6604 = vadd.f32 0.0, %v6603
      %v6605 = vpop.f32.mrb[0].mxu0
      %v6606 = vpop.f32.mrb[0].mxu0
      %v6607 = vadd.f32 0.0, %v6606
      %v6608 = vpop.f32.mrb[0].mxu0
      %6609 = vmatprep.mubr.bf16.mxu0 0
      %6610 = vmatmul.mubr.bf16.gmra.mrb[0].mxu0 %v6526
      %v6611 = vpop.f32.mrb[0].mxu0
      %v6612 = vadd.f32 0.0, %v6611
      %v6613 = vpop.f32.mrb[0].mxu0
      %v6614 = vpop.f32.mrb[0].mxu0
      %v6615 = vadd.f32 0.0, %v6614
      %v6616 = vpop.f32.mrb[0].mxu0
      %6617 = vmatprep.mubr.bf16.mxu0 0
      %6618 = vmatmul.mubr.bf16.gmra.mrb[0].mxu0 %v6529
      %v6619 = vpop.f32.mrb[0].mxu0
      %v6620 = vadd.f32 0.0, %v6619
      %v6621 = vpop.f32.mrb[0].mxu0
      %v6622 = vpop.f32.mrb[0].mxu0
      %v6623 = vadd.f32 0.0, %v6622
      %v6624 = vpop.f32.mrb[0].mxu0
      %6625 = vmatprep.mubr.bf16.mxu0 0
      %6626 = vmatmul.mubr.bf16.gmra.mrb[0].mxu0 %v6532
      %v6627 = vpop.f32.mrb[0].mxu0
      %v6628 = vadd.f32 0.0, %v6627
      %v6629 = vpop.f32.mrb[0].mxu0
      %v6630 = vpop.f32.mrb[0].mxu0
      %v6631 = vadd.f32 0.0, %v6630
      %v6632 = vpop.f32.mrb[0].mxu0
      %6633 = vdwg.mxu0
      %v6634 = vadd.f32 %v6465, %v6572
      %v6635 = vadd.f32 %v6466, %v6575
      %v6636 = vadd.f32 %v6467, %v6580
      %v6637 = vadd.f32 %v6468, %v6583
      %v6638 = vadd.f32 %v6469, %v6588
      %v6639 = vadd.f32 %v6470, %v6591
      %v6640 = vadd.f32 %v6471, %v6596
      %v6641 = vadd.f32 %v6472, %v6599
      %v6642 = vadd.f32 %v6473, %v6604
      %v6643 = vadd.f32 %v6474, %v6607
      %v6644 = vadd.f32 %v6475, %v6612
      %v6645 = vadd.f32 %v6476, %v6615
      %v6646 = vadd.f32 %v6477, %v6620
      %v6647 = vadd.f32 %v6478, %v6623
      %v6648 = vadd.f32 %v6479, %v6628
      %v6649 = vadd.f32 %v6480, %v6631
      %v6650 = vld [vmem:[#allocation2 + $0x58] sm:$0x3]
      %s6651 = scalar_lea.vmem %s14, 24
      %v6652 = vld [vmem:[%s6651] sm:$0xf]
      %v6654 = vshrl.u32 %v6481, 16
      %v6656 = vrot.slane %v6654, 1
      %v6657 = vshll.u32 %v6481, 16
      %v6659 = vrot.slane %v6657, 2
      %v6660 = vor.u32 %v6656, %v6659
      %v6661 = vrot.slane %v6285, 1
      %v6662 = vrot.slane %v6281, 2
      %v6663 = vor.u32 %v6661, %v6662
      %v6664 = vsel %vm2560, %v6660, %v6663
      %v6665 = vrot.slane %v6293, 1
      %v6666 = vrot.slane %v6289, 2
      %v6667 = vor.u32 %v6665, %v6666
      %v6668 = vsel %vm2560, %v6663, %v6667
      %v6669 = vrot.slane %v6301, 1
      %v6670 = vrot.slane %v6297, 2
      %v6671 = vor.u32 %v6669, %v6670
      %v6672 = vsel %vm2560, %v6667, %v6671
      %v6673 = vrot.slane %v6309, 1
      %v6674 = vrot.slane %v6305, 2
      %v6675 = vor.u32 %v6673, %v6674
      %v6676 = vsel %vm2560, %v6671, %v6675
      %v6677 = vrot.slane %v6317, 1
      %v6678 = vrot.slane %v6313, 2
      %v6679 = vor.u32 %v6677, %v6678
      %v6680 = vsel %vm2560, %v6675, %v6679
      %v6681 = vrot.slane %v6325, 1
      %v6682 = vrot.slane %v6321, 2
      %v6683 = vor.u32 %v6681, %v6682
      %v6684 = vsel %vm2560, %v6679, %v6683
      %v6685 = vrot.slane %v6333, 1
      %v6686 = vrot.slane %v6329, 2
      %v6687 = vor.u32 %v6685, %v6686
      %v6688 = vsel %vm2560, %v6683, %v6687
      %v6690 = vshrl.u32 %v6650, 16
      %v6692 = vrot.slane %v6690, 1
      %v6693 = vshll.u32 %v6650, 16
      %v6695 = vrot.slane %v6693, 2
      %v6696 = vor.u32 %v6692, %v6695
      %v6697 = vsel %vm2560, %v6687, %v6696
      %v6699 = vsel %vm793, %v6664, 0
      %v6702 = vsel %vm793, %v6668, 0
      %v6705 = vsel %vm793, %v6672, 0
      %v6708 = vsel %vm793, %v6676, 0
      %v6711 = vsel %vm793, %v6680, 0
      %v6714 = vsel %vm793, %v6684, 0
      %v6717 = vsel %vm793, %v6688, 0
      %v6720 = vsel %vm793, %v6697, 0
      %v6723 = vsel %vm900, %v6652, 0
      %6725 = vmatprep.subr.bf16.mxu0 0
      %6726 = vmatpush1.bf16.msra.mxu0 %v6723
      %6727 = vmatprep.subr.bf16.mxu0 0
      %6728 = vmatpush1.bf16.msra.mxu0 0
      %6729 = vmatprep.subr.bf16.mxu0 0
      %6730 = vmatpush1.bf16.msra.mxu0 0
      %6731 = vmatprep.subr.bf16.mxu0 0
      %6732 = vmatpush1.bf16.msra.mxu0 0
      %6733 = vmatprep.subr.bf16.mxu0 0
      %6734 = vmatpush1.bf16.msra.mxu0 0
      %6735 = vmatprep.subr.bf16.mxu0 0
      %6736 = vmatpush1.bf16.msra.mxu0 0
      %6737 = vmatprep.subr.bf16.mxu0 0
      %6738 = vmatpush1.bf16.msra.mxu0 0
      %6739 = vmatprep.subr.bf16.mxu0 0
      %6740 = vmatpush1.bf16.msra.mxu0 0
      %6741 = vmatprep.subr.bf16.mxu0 0
      %6742 = vmatpush1.bf16.msra.mxu0 0
      %6743 = vmatprep.subr.bf16.mxu0 0
      %6744 = vmatpush1.bf16.msra.mxu0 0
      %6745 = vmatprep.subr.bf16.mxu0 0
      %6746 = vmatpush1.bf16.msra.mxu0 0
      %6747 = vmatprep.subr.bf16.mxu0 0
      %6748 = vmatpush1.bf16.msra.mxu0 0
      %6749 = vmatprep.subr.bf16.mxu0 0
      %6750 = vmatpush1.bf16.msra.mxu0 0
      %6751 = vmatprep.subr.bf16.mxu0 0
      %6752 = vmatpush1.bf16.msra.mxu0 0
      %6753 = vmatprep.subr.bf16.mxu0 0
      %6754 = vmatpush1.bf16.msra.mxu0 0
      %6755 = vmatprep.subr.bf16.mxu0 0
      %6756 = vmatpush1.bf16.msra.mxu0 0
      %6757 = vmatprep.mubr.bf16.mxu0 0
      %6758 = vmatmul.mubr.bf16.gmra.mrb[0].mxu0 %v6699
      %v6759 = vpop.f32.mrb[0].mxu0
      %v6760 = vadd.f32 0.0, %v6759
      %v6761 = vpop.f32.mrb[0].mxu0
      %v6762 = vpop.f32.mrb[0].mxu0
      %v6763 = vadd.f32 0.0, %v6762
      %v6764 = vpop.f32.mrb[0].mxu0
      %6765 = vmatprep.mubr.bf16.mxu0 0
      %6766 = vmatmul.mubr.bf16.gmra.mrb[0].mxu0 %v6702
      %v6767 = vpop.f32.mrb[0].mxu0
      %v6768 = vadd.f32 0.0, %v6767
      %v6769 = vpop.f32.mrb[0].mxu0
      %v6770 = vpop.f32.mrb[0].mxu0
      %v6771 = vadd.f32 0.0, %v6770
      %v6772 = vpop.f32.mrb[0].mxu0
      %6773 = vmatprep.mubr.bf16.mxu0 0
      %6774 = vmatmul.mubr.bf16.gmra.mrb[0].mxu0 %v6705
      %v6775 = vpop.f32.mrb[0].mxu0
      %v6776 = vadd.f32 0.0, %v6775
      %v6777 = vpop.f32.mrb[0].mxu0
      %v6778 = vpop.f32.mrb[0].mxu0
      %v6779 = vadd.f32 0.0, %v6778
      %v6780 = vpop.f32.mrb[0].mxu0
      %6781 = vmatprep.mubr.bf16.mxu0 0
      %6782 = vmatmul.mubr.bf16.gmra.mrb[0].mxu0 %v6708
      %v6783 = vpop.f32.mrb[0].mxu0
      %v6784 = vadd.f32 0.0, %v6783
      %v6785 = vpop.f32.mrb[0].mxu0
      %v6786 = vpop.f32.mrb[0].mxu0
      %v6787 = vadd.f32 0.0, %v6786
      %v6788 = vpop.f32.mrb[0].mxu0
      %6789 = vmatprep.mubr.bf16.mxu0 0
      %6790 = vmatmul.mubr.bf16.gmra.mrb[0].mxu0 %v6711
      %v6791 = vpop.f32.mrb[0].mxu0
      %v6792 = vadd.f32 0.0, %v6791
      %v6793 = vpop.f32.mrb[0].mxu0
      %v6794 = vpop.f32.mrb[0].mxu0
      %v6795 = vadd.f32 0.0, %v6794
      %v6796 = vpop.f32.mrb[0].mxu0
      %6797 = vmatprep.mubr.bf16.mxu0 0
      %6798 = vmatmul.mubr.bf16.gmra.mrb[0].mxu0 %v6714
      %v6799 = vpop.f32.mrb[0].mxu0
      %v6800 = vadd.f32 0.0, %v6799
      %v6801 = vpop.f32.mrb[0].mxu0
      %v6802 = vpop.f32.mrb[0].mxu0
      %v6803 = vadd.f32 0.0, %v6802
      %v6804 = vpop.f32.mrb[0].mxu0
      %6805 = vmatprep.mubr.bf16.mxu0 0
      %6806 = vmatmul.mubr.bf16.gmra.mrb[0].mxu0 %v6717
      %v6807 = vpop.f32.mrb[0].mxu0
      %v6808 = vadd.f32 0.0, %v6807
      %v6809 = vpop.f32.mrb[0].mxu0
      %v6810 = vpop.f32.mrb[0].mxu0
      %v6811 = vadd.f32 0.0, %v6810
      %v6812 = vpop.f32.mrb[0].mxu0
      %6813 = vmatprep.mubr.bf16.mxu0 0
      %6814 = vmatmul.mubr.bf16.gmra.mrb[0].mxu0 %v6720
      %v6815 = vpop.f32.mrb[0].mxu0
      %v6816 = vadd.f32 0.0, %v6815
      %v6817 = vpop.f32.mrb[0].mxu0
      %v6818 = vpop.f32.mrb[0].mxu0
      %v6819 = vadd.f32 0.0, %v6818
      %v6820 = vpop.f32.mrb[0].mxu0
      %6821 = vdwg.mxu0
      %v6822 = vadd.f32 %v6634, %v6760
      %v6823 = vadd.f32 %v6635, %v6763
      %v6824 = vadd.f32 %v6636, %v6768
      %v6825 = vadd.f32 %v6637, %v6771
      %v6826 = vadd.f32 %v6638, %v6776
      %v6827 = vadd.f32 %v6639, %v6779
      %v6828 = vadd.f32 %v6640, %v6784
      %v6829 = vadd.f32 %v6641, %v6787
      %v6830 = vadd.f32 %v6642, %v6792
      %v6831 = vadd.f32 %v6643, %v6795
      %v6832 = vadd.f32 %v6644, %v6800
      %v6833 = vadd.f32 %v6645, %v6803
      %v6834 = vadd.f32 %v6646, %v6808
      %v6835 = vadd.f32 %v6647, %v6811
      %v6836 = vadd.f32 %v6648, %v6816
      %v6837 = vadd.f32 %v6649, %v6819
      %v6839 = vlaneseq
      %v6840 = vshrl.u32 %v6839, 7
      %v6841 = vsub.s32 0, %v6840
      %v6842 = vrot.slane %v5583, %v6841
      %v6844 = vmul.f32 %v6822, %v6842
      %v6845 = vmul.f32 %v6823, %v6842
      %v6846 = vmul.f32 %v6824, %v6842
      %v6847 = vmul.f32 %v6825, %v6842
      %v6848 = vmul.f32 %v6826, %v6842
      %v6849 = vmul.f32 %v6827, %v6842
      %v6850 = vmul.f32 %v6828, %v6842
      %v6851 = vmul.f32 %v6829, %v6842
      %v6852 = vmul.f32 %v6830, %v6842
      %v6853 = vmul.f32 %v6831, %v6842
      %v6854 = vmul.f32 %v6832, %v6842
      %v6855 = vmul.f32 %v6833, %v6842
      %v6856 = vmul.f32 %v6834, %v6842
      %v6857 = vmul.f32 %v6835, %v6842
      %v6858 = vmul.f32 %v6836, %v6842
      %v6859 = vmul.f32 %v6837, %v6842
      %v6861 = vlaneseq
      %v6862 = vshrl.u32 %v6861, 7
      %v6863 = vsub.s32 0, %v6862
      %v6864 = vrot.slane %v5584, %v6863
      %v6866 = vadd.f32 %v6844, %v6864
      %v6867 = vadd.f32 %v6845, %v6864
      %v6868 = vadd.f32 %v6846, %v6864
      %v6869 = vadd.f32 %v6847, %v6864
      %v6870 = vadd.f32 %v6848, %v6864
      %v6871 = vadd.f32 %v6849, %v6864
      %v6872 = vadd.f32 %v6850, %v6864
      %v6873 = vadd.f32 %v6851, %v6864
      %v6874 = vadd.f32 %v6852, %v6864
      %v6875 = vadd.f32 %v6853, %v6864
      %v6876 = vadd.f32 %v6854, %v6864
      %v6877 = vadd.f32 %v6855, %v6864
      %v6878 = vadd.f32 %v6856, %v6864
      %v6879 = vadd.f32 %v6857, %v6864
      %v6880 = vadd.f32 %v6858, %v6864
      %v6881 = vadd.f32 %v6859, %v6864
      %v6882 = vmax.f32 %v6866, 0.0
      %v6883 = vmax.f32 %v6867, 0.0
      %v6884 = vmax.f32 %v6868, 0.0
      %v6885 = vmax.f32 %v6869, 0.0
      %v6886 = vmax.f32 %v6870, 0.0
      %v6887 = vmax.f32 %v6871, 0.0
      %v6888 = vmax.f32 %v6872, 0.0
      %v6889 = vmax.f32 %v6873, 0.0
      %v6890 = vmax.f32 %v6874, 0.0
      %v6891 = vmax.f32 %v6875, 0.0
      %v6892 = vmax.f32 %v6876, 0.0
      %v6893 = vmax.f32 %v6877, 0.0
      %v6894 = vmax.f32 %v6878, 0.0
      %v6895 = vmax.f32 %v6879, 0.0
      %v6896 = vmax.f32 %v6880, 0.0
      %v6897 = vmax.f32 %v6881, 0.0
      %v6898 = vld [vmem:[%s1] sm:$0xff]
      %v6899 = vld [vmem:[%s1 + $0x8] sm:$0xff]
      %v6900 = vld [vmem:[%s1 + $0x10] sm:$0xff]
      %v6901 = vld [vmem:[%s1 + $0x18] sm:$0xff]
      %v6902 = vld [vmem:[%s1 + $0x20] sm:$0xff]
      %v6903 = vld [vmem:[%s1 + $0x28] sm:$0xff]
      %v6904 = vld [vmem:[%s1 + $0x30] sm:$0xff]
      %v6905 = vld [vmem:[%s1 + $0x38] sm:$0xff]
      %v6906 = vld [vmem:[%s1 + $0x40] sm:$0xff]
      %v6907 = vld [vmem:[%s1 + $0x48] sm:$0xff]
      %v6908 = vld [vmem:[%s1 + $0x50] sm:$0xff]
      %v6909 = vld [vmem:[%s1 + $0x58] sm:$0xff]
      %v6910 = vld [vmem:[%s1 + $0x60] sm:$0xff]
      %v6911 = vld [vmem:[%s1 + $0x68] sm:$0xff]
      %v6912 = vld [vmem:[%s1 + $0x70] sm:$0xff]
      %v6913 = vld [vmem:[%s1 + $0x78] sm:$0xff]
      %6915 = vset.pattern.permute.xlu0 0
      %6916 = vperm.xlu0 %6915, %v6898
      %v6917 = vpop.permute.xlu0 %6916
      %6920 = vset.pattern.permute.xlu0 0
      %6921 = vperm.xlu0 %6920, %v6899
      %v6922 = vpop.permute.xlu0 %6921
      %6925 = vset.pattern.permute.xlu0 0
      %6926 = vperm.xlu0 %6925, %v6900
      %v6927 = vpop.permute.xlu0 %6926
      %6930 = vset.pattern.permute.xlu0 0
      %6931 = vperm.xlu0 %6930, %v6901
      %v6932 = vpop.permute.xlu0 %6931
      %6935 = vset.pattern.permute.xlu0 0
      %6936 = vperm.xlu0 %6935, %v6902
      %v6937 = vpop.permute.xlu0 %6936
      %6940 = vset.pattern.permute.xlu0 0
      %6941 = vperm.xlu0 %6940, %v6903
      %v6942 = vpop.permute.xlu0 %6941
      %6945 = vset.pattern.permute.xlu0 0
      %6946 = vperm.xlu0 %6945, %v6904
      %v6947 = vpop.permute.xlu0 %6946
      %6950 = vset.pattern.permute.xlu0 0
      %6951 = vperm.xlu0 %6950, %v6905
      %v6952 = vpop.permute.xlu0 %6951
      %6955 = vset.pattern.permute.xlu0 0
      %6956 = vperm.xlu0 %6955, %v6906
      %v6957 = vpop.permute.xlu0 %6956
      %6960 = vset.pattern.permute.xlu0 0
      %6961 = vperm.xlu0 %6960, %v6907
      %v6962 = vpop.permute.xlu0 %6961
      %6965 = vset.pattern.permute.xlu0 0
      %6966 = vperm.xlu0 %6965, %v6908
      %v6967 = vpop.permute.xlu0 %6966
      %6970 = vset.pattern.permute.xlu0 0
      %6971 = vperm.xlu0 %6970, %v6909
      %v6972 = vpop.permute.xlu0 %6971
      %6975 = vset.pattern.permute.xlu0 0
      %6976 = vperm.xlu0 %6975, %v6910
      %v6977 = vpop.permute.xlu0 %6976
      %6980 = vset.pattern.permute.xlu0 0
      %6981 = vperm.xlu0 %6980, %v6911
      %v6982 = vpop.permute.xlu0 %6981
      %6985 = vset.pattern.permute.xlu0 0
      %6986 = vperm.xlu0 %6985, %v6912
      %v6987 = vpop.permute.xlu0 %6986
      %6990 = vset.pattern.permute.xlu0 0
      %6991 = vperm.xlu0 %6990, %v6913
      %v6992 = vpop.permute.xlu0 %6991
      %v6994 = vmul.f32 %v6882, %v6917
      %v6995 = vmul.f32 %v6883, %v6922
      %v6996 = vmul.f32 %v6884, %v6927
      %v6997 = vmul.f32 %v6885, %v6932
      %v6998 = vmul.f32 %v6886, %v6937
      %v6999 = vmul.f32 %v6887, %v6942
      %v7000 = vmul.f32 %v6888, %v6947
      %v7001 = vmul.f32 %v6889, %v6952
      %v7002 = vmul.f32 %v6890, %v6957
      %v7003 = vmul.f32 %v6891, %v6962
      %v7004 = vmul.f32 %v6892, %v6967
      %v7005 = vmul.f32 %v6893, %v6972
      %v7006 = vmul.f32 %v6894, %v6977
      %v7007 = vmul.f32 %v6895, %v6982
      %v7008 = vmul.f32 %v6896, %v6987
      %v7009 = vmul.f32 %v6897, %v6992
      %v7010 = vpack.c.bf16 %v6995, %v6994
      %v7011 = vpack.c.bf16 %v6997, %v6996
      %v7012 = vpack.c.bf16 %v6999, %v6998
      %v7013 = vpack.c.bf16 %v7001, %v7000
      %v7014 = vpack.c.bf16 %v7003, %v7002
      %v7015 = vpack.c.bf16 %v7005, %v7004
      %v7016 = vpack.c.bf16 %v7007, %v7006
      %v7017 = vpack.c.bf16 %v7009, %v7008
      %7018 = vst.msk [vmem:[#allocation3 + $0x18] sm:$0xff] %vm793, %v7010
      %7019 = vst.msk [vmem:[#allocation3 + $0x20] sm:$0xff] %vm793, %v7011
      %7020 = vst.msk [vmem:[#allocation3 + $0x28] sm:$0xff] %vm793, %v7012
      %7021 = vst.msk [vmem:[#allocation3 + $0x30] sm:$0xff] %vm793, %v7013
      %7022 = vst.msk [vmem:[#allocation3 + $0x38] sm:$0xff] %vm793, %v7014
      %7023 = vst.msk [vmem:[#allocation3 + $0x40] sm:$0xff] %vm793, %v7015
      %7024 = vst.msk [vmem:[#allocation3 + $0x48] sm:$0xff] %vm793, %v7016
      %7025 = vst.msk [vmem:[#allocation3 + $0x50] sm:$0xff] %vm793, %v7017
      %v7026 = vld [vmem:[%s18] sm:$0x1]
      %v7027 = vld [vmem:[%s19] sm:$0x1]
      %v7028 = vld [vmem:[#allocation3] sm:$0xff]
      %v7029 = vld [vmem:[#allocation3 + $0x8] sm:$0xff]
      %v7030 = vld [vmem:[#allocation3 + $0x10] sm:$0xff]
      %v7031 = vld [vmem:[#allocation3 + $0x18] sm:$0xff]
      %v7032 = vld [vmem:[#allocation3 + $0x20] sm:$0xff]
      %v7033 = vld [vmem:[#allocation3 + $0x28] sm:$0xff]
      %v7034 = vld [vmem:[#allocation3 + $0x30] sm:$0xff]
      %v7035 = vld [vmem:[#allocation3 + $0x38] sm:$0xff]
      %v7036 = vld [vmem:[%s17] sm:$0xf]
      %v7037 = vld [vmem:[#allocation3 + $0x40] sm:$0xff]
      %s7038 = scalar_lea.vmem %s17, 4
      %v7039 = vld [vmem:[%s7038] sm:$0xf]
      %v7041 = vsel %vm793, %v7029, 0
      %v7044 = vsel %vm793, %v7030, 0
      %v7047 = vsel %vm793, %v7031, 0
      %v7050 = vsel %vm793, %v7032, 0
      %v7053 = vsel %vm793, %v7033, 0
      %v7056 = vsel %vm793, %v7034, 0
      %v7059 = vsel %vm793, %v7035, 0
      %v7062 = vsel %vm793, %v7037, 0
      %v7065 = vsel %vm900, %v7039, 0
      %7067 = vmatprep.subr.bf16.mxu0 0
      %7068 = vmatpush1.bf16.msra.mxu0 %v7065
      %7069 = vmatprep.subr.bf16.mxu0 0
      %7070 = vmatpush1.bf16.msra.mxu0 0
      %7071 = vmatprep.subr.bf16.mxu0 0
      %7072 = vmatpush1.bf16.msra.mxu0 0
      %7073 = vmatprep.subr.bf16.mxu0 0
      %7074 = vmatpush1.bf16.msra.mxu0 0
      %7075 = vmatprep.subr.bf16.mxu0 0
      %7076 = vmatpush1.bf16.msra.mxu0 0
      %7077 = vmatprep.subr.bf16.mxu0 0
      %7078 = vmatpush1.bf16.msra.mxu0 0
      %7079 = vmatprep.subr.bf16.mxu0 0
      %7080 = vmatpush1.bf16.msra.mxu0 0
      %7081 = vmatprep.subr.bf16.mxu0 0
      %7082 = vmatpush1.bf16.msra.mxu0 0
      %7083 = vmatprep.subr.bf16.mxu0 0
      %7084 = vmatpush1.bf16.msra.mxu0 0
      %7085 = vmatprep.subr.bf16.mxu0 0
      %7086 = vmatpush1.bf16.msra.mxu0 0
      %7087 = vmatprep.subr.bf16.mxu0 0
      %7088 = vmatpush1.bf16.msra.mxu0 0
      %7089 = vmatprep.subr.bf16.mxu0 0
      %7090 = vmatpush1.bf16.msra.mxu0 0
      %7091 = vmatprep.subr.bf16.mxu0 0
      %7092 = vmatpush1.bf16.msra.mxu0 0
      %7093 = vmatprep.subr.bf16.mxu0 0
      %7094 = vmatpush1.bf16.msra.mxu0 0
      %7095 = vmatprep.subr.bf16.mxu0 0
      %7096 = vmatpush1.bf16.msra.mxu0 0
      %7097 = vmatprep.subr.bf16.mxu0 0
      %7098 = vmatpush1.bf16.msra.mxu0 0
      %7099 = vmatprep.mubr.bf16.mxu0 0
      %7100 = vmatmul.mubr.bf16.gmra.mrb[0].mxu0 %v7041
      %v7101 = vpop.f32.mrb[0].mxu0
      %v7102 = vadd.f32 0.0, %v7101
      %v7103 = vpop.f32.mrb[0].mxu0
      %v7104 = vpop.f32.mrb[0].mxu0
      %v7105 = vadd.f32 0.0, %v7104
      %v7106 = vpop.f32.mrb[0].mxu0
      %7107 = vmatprep.mubr.bf16.mxu0 0
      %7108 = vmatmul.mubr.bf16.gmra.mrb[0].mxu0 %v7044
      %v7109 = vpop.f32.mrb[0].mxu0
      %v7110 = vadd.f32 0.0, %v7109
      %v7111 = vpop.f32.mrb[0].mxu0
      %v7112 = vpop.f32.mrb[0].mxu0
      %v7113 = vadd.f32 0.0, %v7112
      %v7114 = vpop.f32.mrb[0].mxu0
      %7115 = vmatprep.mubr.bf16.mxu0 0
      %7116 = vmatmul.mubr.bf16.gmra.mrb[0].mxu0 %v7047
      %v7117 = vpop.f32.mrb[0].mxu0
      %v7118 = vadd.f32 0.0, %v7117
      %v7119 = vpop.f32.mrb[0].mxu0
      %v7120 = vpop.f32.mrb[0].mxu0
      %v7121 = vadd.f32 0.0, %v7120
      %v7122 = vpop.f32.mrb[0].mxu0
      %7123 = vmatprep.mubr.bf16.mxu0 0
      %7124 = vmatmul.mubr.bf16.gmra.mrb[0].mxu0 %v7050
      %v7125 = vpop.f32.mrb[0].mxu0
      %v7126 = vadd.f32 0.0, %v7125
      %v7127 = vpop.f32.mrb[0].mxu0
      %v7128 = vpop.f32.mrb[0].mxu0
      %v7129 = vadd.f32 0.0, %v7128
      %v7130 = vpop.f32.mrb[0].mxu0
      %7131 = vmatprep.mubr.bf16.mxu0 0
      %7132 = vmatmul.mubr.bf16.gmra.mrb[0].mxu0 %v7053
      %v7133 = vpop.f32.mrb[0].mxu0
      %v7134 = vadd.f32 0.0, %v7133
      %v7135 = vpop.f32.mrb[0].mxu0
      %v7136 = vpop.f32.mrb[0].mxu0
      %v7137 = vadd.f32 0.0, %v7136
      %v7138 = vpop.f32.mrb[0].mxu0
      %7139 = vmatprep.mubr.bf16.mxu0 0
      %7140 = vmatmul.mubr.bf16.gmra.mrb[0].mxu0 %v7056
      %v7141 = vpop.f32.mrb[0].mxu0
      %v7142 = vadd.f32 0.0, %v7141
      %v7143 = vpop.f32.mrb[0].mxu0
      %v7144 = vpop.f32.mrb[0].mxu0
      %v7145 = vadd.f32 0.0, %v7144
      %v7146 = vpop.f32.mrb[0].mxu0
      %7147 = vmatprep.mubr.bf16.mxu0 0
      %7148 = vmatmul.mubr.bf16.gmra.mrb[0].mxu0 %v7059
      %v7149 = vpop.f32.mrb[0].mxu0
      %v7150 = vadd.f32 0.0, %v7149
      %v7151 = vpop.f32.mrb[0].mxu0
      %v7152 = vpop.f32.mrb[0].mxu0
      %v7153 = vadd.f32 0.0, %v7152
      %v7154 = vpop.f32.mrb[0].mxu0
      %7155 = vmatprep.mubr.bf16.mxu0 0
      %7156 = vmatmul.mubr.bf16.gmra.mrb[0].mxu0 %v7062
      %v7157 = vpop.f32.mrb[0].mxu0
      %v7158 = vadd.f32 0.0, %v7157
      %v7159 = vpop.f32.mrb[0].mxu0
      %v7160 = vpop.f32.mrb[0].mxu0
      %v7161 = vadd.f32 0.0, %v7160
      %v7162 = vpop.f32.mrb[0].mxu0
      %7163 = vdwg.mxu0
      %v7165 = vsel %vm793, %v7028, 0
      %v7168 = vsel %vm900, %v7036, 0
      %7170 = vmatprep.subr.bf16.mxu0 0
      %7171 = vmatpush1.bf16.msra.mxu0 %v7168
      %7172 = vmatprep.subr.bf16.mxu0 0
      %7173 = vmatpush1.bf16.msra.mxu0 0
      %7174 = vmatprep.subr.bf16.mxu0 0
      %7175 = vmatpush1.bf16.msra.mxu0 0
      %7176 = vmatprep.subr.bf16.mxu0 0
      %7177 = vmatpush1.bf16.msra.mxu0 0
      %7178 = vmatprep.subr.bf16.mxu0 0
      %7179 = vmatpush1.bf16.msra.mxu0 0
      %7180 = vmatprep.subr.bf16.mxu0 0
      %7181 = vmatpush1.bf16.msra.mxu0 0
      %7182 = vmatprep.subr.bf16.mxu0 0
      %7183 = vmatpush1.bf16.msra.mxu0 0
      %7184 = vmatprep.subr.bf16.mxu0 0
      %7185 = vmatpush1.bf16.msra.mxu0 0
      %7186 = vmatprep.subr.bf16.mxu0 0
      %7187 = vmatpush1.bf16.msra.mxu0 0
      %7188 = vmatprep.subr.bf16.mxu0 0
      %7189 = vmatpush1.bf16.msra.mxu0 0
      %7190 = vmatprep.subr.bf16.mxu0 0
      %7191 = vmatpush1.bf16.msra.mxu0 0
      %7192 = vmatprep.subr.bf16.mxu0 0
      %7193 = vmatpush1.bf16.msra.mxu0 0
      %7194 = vmatprep.subr.bf16.mxu0 0
      %7195 = vmatpush1.bf16.msra.mxu0 0
      %7196 = vmatprep.subr.bf16.mxu0 0
      %7197 = vmatpush1.bf16.msra.mxu0 0
      %7198 = vmatprep.subr.bf16.mxu0 0
      %7199 = vmatpush1.bf16.msra.mxu0 0
      %7200 = vmatprep.subr.bf16.mxu0 0
      %7201 = vmatpush1.bf16.msra.mxu0 0
      %7202 = vmatprep.mubr.bf16.mxu0 0
      %7203 = vmatmul.mubr.bf16.gmra.mrb[0].mxu0 %v7165
      %v7204 = vpop.f32.mrb[0].mxu0
      %v7205 = vadd.f32 %v7102, %v7204
      %v7206 = vpop.f32.mrb[0].mxu0
      %v7207 = vpop.f32.mrb[0].mxu0
      %v7208 = vadd.f32 %v7105, %v7207
      %v7209 = vpop.f32.mrb[0].mxu0
      %7210 = vmatprep.mubr.bf16.mxu0 0
      %7211 = vmatmul.mubr.bf16.gmra.mrb[0].mxu0 %v7041
      %v7212 = vpop.f32.mrb[0].mxu0
      %v7213 = vadd.f32 %v7110, %v7212
      %v7214 = vpop.f32.mrb[0].mxu0
      %v7215 = vpop.f32.mrb[0].mxu0
      %v7216 = vadd.f32 %v7113, %v7215
      %v7217 = vpop.f32.mrb[0].mxu0
      %7218 = vmatprep.mubr.bf16.mxu0 0
      %7219 = vmatmul.mubr.bf16.gmra.mrb[0].mxu0 %v7044
      %v7220 = vpop.f32.mrb[0].mxu0
      %v7221 = vadd.f32 %v7118, %v7220
      %v7222 = vpop.f32.mrb[0].mxu0
      %v7223 = vpop.f32.mrb[0].mxu0
      %v7224 = vadd.f32 %v7121, %v7223
      %v7225 = vpop.f32.mrb[0].mxu0
      %7226 = vmatprep.mubr.bf16.mxu0 0
      %7227 = vmatmul.mubr.bf16.gmra.mrb[0].mxu0 %v7047
      %v7228 = vpop.f32.mrb[0].mxu0
      %v7229 = vadd.f32 %v7126, %v7228
      %v7230 = vpop.f32.mrb[0].mxu0
      %v7231 = vpop.f32.mrb[0].mxu0
      %v7232 = vadd.f32 %v7129, %v7231
      %v7233 = vpop.f32.mrb[0].mxu0
      %7234 = vmatprep.mubr.bf16.mxu0 0
      %7235 = vmatmul.mubr.bf16.gmra.mrb[0].mxu0 %v7050
      %v7236 = vpop.f32.mrb[0].mxu0
      %v7237 = vadd.f32 %v7134, %v7236
      %v7238 = vpop.f32.mrb[0].mxu0
      %v7239 = vpop.f32.mrb[0].mxu0
      %v7240 = vadd.f32 %v7137, %v7239
      %v7241 = vpop.f32.mrb[0].mxu0
      %7242 = vmatprep.mubr.bf16.mxu0 0
      %7243 = vmatmul.mubr.bf16.gmra.mrb[0].mxu0 %v7053
      %v7244 = vpop.f32.mrb[0].mxu0
      %v7245 = vadd.f32 %v7142, %v7244
      %v7246 = vpop.f32.mrb[0].mxu0
      %v7247 = vpop.f32.mrb[0].mxu0
      %v7248 = vadd.f32 %v7145, %v7247
      %v7249 = vpop.f32.mrb[0].mxu0
      %7250 = vmatprep.mubr.bf16.mxu0 0
      %7251 = vmatmul.mubr.bf16.gmra.mrb[0].mxu0 %v7056
      %v7252 = vpop.f32.mrb[0].mxu0
      %v7253 = vadd.f32 %v7150, %v7252
      %v7254 = vpop.f32.mrb[0].mxu0
      %v7255 = vpop.f32.mrb[0].mxu0
      %v7256 = vadd.f32 %v7153, %v7255
      %v7257 = vpop.f32.mrb[0].mxu0
      %7258 = vmatprep.mubr.bf16.mxu0 0
      %7259 = vmatmul.mubr.bf16.gmra.mrb[0].mxu0 %v7059
      %v7260 = vpop.f32.mrb[0].mxu0
      %v7261 = vadd.f32 %v7158, %v7260
      %v7262 = vpop.f32.mrb[0].mxu0
      %v7263 = vpop.f32.mrb[0].mxu0
      %v7264 = vadd.f32 %v7161, %v7263
      %v7265 = vpop.f32.mrb[0].mxu0
      %7266 = vdwg.mxu0
      %v7267 = vld [vmem:[#allocation3 + $0x10] sm:$0xff]
      %v7268 = vld [vmem:[#allocation3 + $0x18] sm:$0xff]
      %v7269 = vld [vmem:[#allocation3 + $0x20] sm:$0xff]
      %v7270 = vld [vmem:[#allocation3 + $0x28] sm:$0xff]
      %v7271 = vld [vmem:[#allocation3 + $0x30] sm:$0xff]
      %v7272 = vld [vmem:[#allocation3 + $0x38] sm:$0xff]
      %v7273 = vld [vmem:[#allocation3 + $0x40] sm:$0xff]
      %v7274 = vld [vmem:[#allocation3 + $0x48] sm:$0xff]
      %s7275 = scalar_lea.vmem %s17, 8
      %v7276 = vld [vmem:[%s7275] sm:$0xf]
      %v7278 = vsel %vm793, %v7267, 0
      %v7281 = vsel %vm793, %v7268, 0
      %v7284 = vsel %vm793, %v7269, 0
      %v7287 = vsel %vm793, %v7270, 0
      %v7290 = vsel %vm793, %v7271, 0
      %v7293 = vsel %vm793, %v7272, 0
      %v7296 = vsel %vm793, %v7273, 0
      %v7299 = vsel %vm793, %v7274, 0
      %v7302 = vsel %vm900, %v7276, 0
      %7304 = vmatprep.subr.bf16.mxu0 0
      %7305 = vmatpush1.bf16.msra.mxu0 %v7302
      %7306 = vmatprep.subr.bf16.mxu0 0
      %7307 = vmatpush1.bf16.msra.mxu0 0
      %7308 = vmatprep.subr.bf16.mxu0 0
      %7309 = vmatpush1.bf16.msra.mxu0 0
      %7310 = vmatprep.subr.bf16.mxu0 0
      %7311 = vmatpush1.bf16.msra.mxu0 0
      %7312 = vmatprep.subr.bf16.mxu0 0
      %7313 = vmatpush1.bf16.msra.mxu0 0
      %7314 = vmatprep.subr.bf16.mxu0 0
      %7315 = vmatpush1.bf16.msra.mxu0 0
      %7316 = vmatprep.subr.bf16.mxu0 0
      %7317 = vmatpush1.bf16.msra.mxu0 0
      %7318 = vmatprep.subr.bf16.mxu0 0
      %7319 = vmatpush1.bf16.msra.mxu0 0
      %7320 = vmatprep.subr.bf16.mxu0 0
      %7321 = vmatpush1.bf16.msra.mxu0 0
      %7322 = vmatprep.subr.bf16.mxu0 0
      %7323 = vmatpush1.bf16.msra.mxu0 0
      %7324 = vmatprep.subr.bf16.mxu0 0
      %7325 = vmatpush1.bf16.msra.mxu0 0
      %7326 = vmatprep.subr.bf16.mxu0 0
      %7327 = vmatpush1.bf16.msra.mxu0 0
      %7328 = vmatprep.subr.bf16.mxu0 0
      %7329 = vmatpush1.bf16.msra.mxu0 0
      %7330 = vmatprep.subr.bf16.mxu0 0
      %7331 = vmatpush1.bf16.msra.mxu0 0
      %7332 = vmatprep.subr.bf16.mxu0 0
      %7333 = vmatpush1.bf16.msra.mxu0 0
      %7334 = vmatprep.subr.bf16.mxu0 0
      %7335 = vmatpush1.bf16.msra.mxu0 0
      %7336 = vmatprep.mubr.bf16.mxu0 0
      %7337 = vmatmul.mubr.bf16.gmra.mrb[0].mxu0 %v7278
      %v7338 = vpop.f32.mrb[0].mxu0
      %v7339 = vadd.f32 0.0, %v7338
      %v7340 = vpop.f32.mrb[0].mxu0
      %v7341 = vpop.f32.mrb[0].mxu0
      %v7342 = vadd.f32 0.0, %v7341
      %v7343 = vpop.f32.mrb[0].mxu0
      %7344 = vmatprep.mubr.bf16.mxu0 0
      %7345 = vmatmul.mubr.bf16.gmra.mrb[0].mxu0 %v7281
      %v7346 = vpop.f32.mrb[0].mxu0
      %v7347 = vadd.f32 0.0, %v7346
      %v7348 = vpop.f32.mrb[0].mxu0
      %v7349 = vpop.f32.mrb[0].mxu0
      %v7350 = vadd.f32 0.0, %v7349
      %v7351 = vpop.f32.mrb[0].mxu0
      %7352 = vmatprep.mubr.bf16.mxu0 0
      %7353 = vmatmul.mubr.bf16.gmra.mrb[0].mxu0 %v7284
      %v7354 = vpop.f32.mrb[0].mxu0
      %v7355 = vadd.f32 0.0, %v7354
      %v7356 = vpop.f32.mrb[0].mxu0
      %v7357 = vpop.f32.mrb[0].mxu0
      %v7358 = vadd.f32 0.0, %v7357
      %v7359 = vpop.f32.mrb[0].mxu0
      %7360 = vmatprep.mubr.bf16.mxu0 0
      %7361 = vmatmul.mubr.bf16.gmra.mrb[0].mxu0 %v7287
      %v7362 = vpop.f32.mrb[0].mxu0
      %v7363 = vadd.f32 0.0, %v7362
      %v7364 = vpop.f32.mrb[0].mxu0
      %v7365 = vpop.f32.mrb[0].mxu0
      %v7366 = vadd.f32 0.0, %v7365
      %v7367 = vpop.f32.mrb[0].mxu0
      %7368 = vmatprep.mubr.bf16.mxu0 0
      %7369 = vmatmul.mubr.bf16.gmra.mrb[0].mxu0 %v7290
      %v7370 = vpop.f32.mrb[0].mxu0
      %v7371 = vadd.f32 0.0, %v7370
      %v7372 = vpop.f32.mrb[0].mxu0
      %v7373 = vpop.f32.mrb[0].mxu0
      %v7374 = vadd.f32 0.0, %v7373
      %v7375 = vpop.f32.mrb[0].mxu0
      %7376 = vmatprep.mubr.bf16.mxu0 0
      %7377 = vmatmul.mubr.bf16.gmra.mrb[0].mxu0 %v7293
      %v7378 = vpop.f32.mrb[0].mxu0
      %v7379 = vadd.f32 0.0, %v7378
      %v7380 = vpop.f32.mrb[0].mxu0
      %v7381 = vpop.f32.mrb[0].mxu0
      %v7382 = vadd.f32 0.0, %v7381
      %v7383 = vpop.f32.mrb[0].mxu0
      %7384 = vmatprep.mubr.bf16.mxu0 0
      %7385 = vmatmul.mubr.bf16.gmra.mrb[0].mxu0 %v7296
      %v7386 = vpop.f32.mrb[0].mxu0
      %v7387 = vadd.f32 0.0, %v7386
      %v7388 = vpop.f32.mrb[0].mxu0
      %v7389 = vpop.f32.mrb[0].mxu0
      %v7390 = vadd.f32 0.0, %v7389
      %v7391 = vpop.f32.mrb[0].mxu0
      %7392 = vmatprep.mubr.bf16.mxu0 0
      %7393 = vmatmul.mubr.bf16.gmra.mrb[0].mxu0 %v7299
      %v7394 = vpop.f32.mrb[0].mxu0
      %v7395 = vadd.f32 0.0, %v7394
      %v7396 = vpop.f32.mrb[0].mxu0
      %v7397 = vpop.f32.mrb[0].mxu0
      %v7398 = vadd.f32 0.0, %v7397
      %v7399 = vpop.f32.mrb[0].mxu0
      %7400 = vdwg.mxu0
      %v7401 = vadd.f32 %v7205, %v7339
      %v7402 = vadd.f32 %v7208, %v7342
      %v7403 = vadd.f32 %v7213, %v7347
      %v7404 = vadd.f32 %v7216, %v7350
      %v7405 = vadd.f32 %v7221, %v7355
      %v7406 = vadd.f32 %v7224, %v7358
      %v7407 = vadd.f32 %v7229, %v7363
      %v7408 = vadd.f32 %v7232, %v7366
      %v7409 = vadd.f32 %v7237, %v7371
      %v7410 = vadd.f32 %v7240, %v7374
      %v7411 = vadd.f32 %v7245, %v7379
      %v7412 = vadd.f32 %v7248, %v7382
      %v7413 = vadd.f32 %v7253, %v7387
      %v7414 = vadd.f32 %v7256, %v7390
      %v7415 = vadd.f32 %v7261, %v7395
      %v7416 = vadd.f32 %v7264, %v7398
      %v7417 = vld [vmem:[#allocation3 + $0x18] sm:$0xff]
      %v7418 = vld [vmem:[#allocation3 + $0x20] sm:$0xff]
      %v7419 = vld [vmem:[#allocation3 + $0x28] sm:$0xff]
      %v7420 = vld [vmem:[#allocation3 + $0x30] sm:$0xff]
      %v7421 = vld [vmem:[#allocation3 + $0x38] sm:$0xff]
      %v7422 = vld [vmem:[#allocation3 + $0x40] sm:$0xff]
      %v7423 = vld [vmem:[#allocation3 + $0x48] sm:$0xff]
      %v7424 = vld [vmem:[#allocation3 + $0x50] sm:$0xff]
      %s7425 = scalar_lea.vmem %s17, 12
      %v7426 = vld [vmem:[%s7425] sm:$0xf]
      %v7428 = vsel %vm793, %v7417, 0
      %v7431 = vsel %vm793, %v7418, 0
      %v7434 = vsel %vm793, %v7419, 0
      %v7437 = vsel %vm793, %v7420, 0
      %v7440 = vsel %vm793, %v7421, 0
      %v7443 = vsel %vm793, %v7422, 0
      %v7446 = vsel %vm793, %v7423, 0
      %v7449 = vsel %vm793, %v7424, 0
      %v7452 = vsel %vm900, %v7426, 0
      %7454 = vmatprep.subr.bf16.mxu0 0
      %7455 = vmatpush1.bf16.msra.mxu0 %v7452
      %7456 = vmatprep.subr.bf16.mxu0 0
      %7457 = vmatpush1.bf16.msra.mxu0 0
      %7458 = vmatprep.subr.bf16.mxu0 0
      %7459 = vmatpush1.bf16.msra.mxu0 0
      %7460 = vmatprep.subr.bf16.mxu0 0
      %7461 = vmatpush1.bf16.msra.mxu0 0
      %7462 = vmatprep.subr.bf16.mxu0 0
      %7463 = vmatpush1.bf16.msra.mxu0 0
      %7464 = vmatprep.subr.bf16.mxu0 0
      %7465 = vmatpush1.bf16.msra.mxu0 0
      %7466 = vmatprep.subr.bf16.mxu0 0
      %7467 = vmatpush1.bf16.msra.mxu0 0
      %7468 = vmatprep.subr.bf16.mxu0 0
      %7469 = vmatpush1.bf16.msra.mxu0 0
      %7470 = vmatprep.subr.bf16.mxu0 0
      %7471 = vmatpush1.bf16.msra.mxu0 0
      %7472 = vmatprep.subr.bf16.mxu0 0
      %7473 = vmatpush1.bf16.msra.mxu0 0
      %7474 = vmatprep.subr.bf16.mxu0 0
      %7475 = vmatpush1.bf16.msra.mxu0 0
      %7476 = vmatprep.subr.bf16.mxu0 0
      %7477 = vmatpush1.bf16.msra.mxu0 0
      %7478 = vmatprep.subr.bf16.mxu0 0
      %7479 = vmatpush1.bf16.msra.mxu0 0
      %7480 = vmatprep.subr.bf16.mxu0 0
      %7481 = vmatpush1.bf16.msra.mxu0 0
      %7482 = vmatprep.subr.bf16.mxu0 0
      %7483 = vmatpush1.bf16.msra.mxu0 0
      %7484 = vmatprep.subr.bf16.mxu0 0
      %7485 = vmatpush1.bf16.msra.mxu0 0
      %7486 = vmatprep.mubr.bf16.mxu0 0
      %7487 = vmatmul.mubr.bf16.gmra.mrb[0].mxu0 %v7428
      %v7488 = vpop.f32.mrb[0].mxu0
      %v7489 = vadd.f32 0.0, %v7488
      %v7490 = vpop.f32.mrb[0].mxu0
      %v7491 = vpop.f32.mrb[0].mxu0
      %v7492 = vadd.f32 0.0, %v7491
      %v7493 = vpop.f32.mrb[0].mxu0
      %7494 = vmatprep.mubr.bf16.mxu0 0
      %7495 = vmatmul.mubr.bf16.gmra.mrb[0].mxu0 %v7431
      %v7496 = vpop.f32.mrb[0].mxu0
      %v7497 = vadd.f32 0.0, %v7496
      %v7498 = vpop.f32.mrb[0].mxu0
      %v7499 = vpop.f32.mrb[0].mxu0
      %v7500 = vadd.f32 0.0, %v7499
      %v7501 = vpop.f32.mrb[0].mxu0
      %7502 = vmatprep.mubr.bf16.mxu0 0
      %7503 = vmatmul.mubr.bf16.gmra.mrb[0].mxu0 %v7434
      %v7504 = vpop.f32.mrb[0].mxu0
      %v7505 = vadd.f32 0.0, %v7504
      %v7506 = vpop.f32.mrb[0].mxu0
      %v7507 = vpop.f32.mrb[0].mxu0
      %v7508 = vadd.f32 0.0, %v7507
      %v7509 = vpop.f32.mrb[0].mxu0
      %7510 = vmatprep.mubr.bf16.mxu0 0
      %7511 = vmatmul.mubr.bf16.gmra.mrb[0].mxu0 %v7437
      %v7512 = vpop.f32.mrb[0].mxu0
      %v7513 = vadd.f32 0.0, %v7512
      %v7514 = vpop.f32.mrb[0].mxu0
      %v7515 = vpop.f32.mrb[0].mxu0
      %v7516 = vadd.f32 0.0, %v7515
      %v7517 = vpop.f32.mrb[0].mxu0
      %7518 = vmatprep.mubr.bf16.mxu0 0
      %7519 = vmatmul.mubr.bf16.gmra.mrb[0].mxu0 %v7440
      %v7520 = vpop.f32.mrb[0].mxu0
      %v7521 = vadd.f32 0.0, %v7520
      %v7522 = vpop.f32.mrb[0].mxu0
      %v7523 = vpop.f32.mrb[0].mxu0
      %v7524 = vadd.f32 0.0, %v7523
      %v7525 = vpop.f32.mrb[0].mxu0
      %7526 = vmatprep.mubr.bf16.mxu0 0
      %7527 = vmatmul.mubr.bf16.gmra.mrb[0].mxu0 %v7443
      %v7528 = vpop.f32.mrb[0].mxu0
      %v7529 = vadd.f32 0.0, %v7528
      %v7530 = vpop.f32.mrb[0].mxu0
      %v7531 = vpop.f32.mrb[0].mxu0
      %v7532 = vadd.f32 0.0, %v7531
      %v7533 = vpop.f32.mrb[0].mxu0
      %7534 = vmatprep.mubr.bf16.mxu0 0
      %7535 = vmatmul.mubr.bf16.gmra.mrb[0].mxu0 %v7446
      %v7536 = vpop.f32.mrb[0].mxu0
      %v7537 = vadd.f32 0.0, %v7536
      %v7538 = vpop.f32.mrb[0].mxu0
      %v7539 = vpop.f32.mrb[0].mxu0
      %v7540 = vadd.f32 0.0, %v7539
      %v7541 = vpop.f32.mrb[0].mxu0
      %7542 = vmatprep.mubr.bf16.mxu0 0
      %7543 = vmatmul.mubr.bf16.gmra.mrb[0].mxu0 %v7449
      %v7544 = vpop.f32.mrb[0].mxu0
      %v7545 = vadd.f32 0.0, %v7544
      %v7546 = vpop.f32.mrb[0].mxu0
      %v7547 = vpop.f32.mrb[0].mxu0
      %v7548 = vadd.f32 0.0, %v7547
      %v7549 = vpop.f32.mrb[0].mxu0
      %7550 = vdwg.mxu0
      %v7551 = vadd.f32 %v7401, %v7489
      %v7552 = vadd.f32 %v7402, %v7492
      %v7553 = vadd.f32 %v7403, %v7497
      %v7554 = vadd.f32 %v7404, %v7500
      %v7555 = vadd.f32 %v7405, %v7505
      %v7556 = vadd.f32 %v7406, %v7508
      %v7557 = vadd.f32 %v7407, %v7513
      %v7558 = vadd.f32 %v7408, %v7516
      %v7559 = vadd.f32 %v7409, %v7521
      %v7560 = vadd.f32 %v7410, %v7524
      %v7561 = vadd.f32 %v7411, %v7529
      %v7562 = vadd.f32 %v7412, %v7532
      %v7563 = vadd.f32 %v7413, %v7537
      %v7564 = vadd.f32 %v7414, %v7540
      %v7565 = vadd.f32 %v7415, %v7545
      %v7566 = vadd.f32 %v7416, %v7548
      %v7567 = vld [vmem:[#allocation3 + $0x20] sm:$0xff]
      %v7568 = vld [vmem:[#allocation3 + $0x28] sm:$0xff]
      %v7569 = vld [vmem:[#allocation3 + $0x30] sm:$0xff]
      %v7570 = vld [vmem:[#allocation3 + $0x38] sm:$0xff]
      %v7571 = vld [vmem:[#allocation3 + $0x40] sm:$0xff]
      %v7572 = vld [vmem:[#allocation3 + $0x48] sm:$0xff]
      %v7573 = vld [vmem:[#allocation3 + $0x50] sm:$0xff]
      %v7574 = vld [vmem:[#allocation3 + $0x58] sm:$0xff]
      %s7575 = scalar_lea.vmem %s17, 16
      %v7576 = vld [vmem:[%s7575] sm:$0xf]
      %v7578 = vsel %vm793, %v7567, 0
      %v7581 = vsel %vm793, %v7568, 0
      %v7584 = vsel %vm793, %v7569, 0
      %v7587 = vsel %vm793, %v7570, 0
      %v7590 = vsel %vm793, %v7571, 0
      %v7593 = vsel %vm793, %v7572, 0
      %v7596 = vsel %vm793, %v7573, 0
      %v7599 = vsel %vm793, %v7574, 0
      %v7602 = vsel %vm900, %v7576, 0
      %7604 = vmatprep.subr.bf16.mxu0 0
      %7605 = vmatpush1.bf16.msra.mxu0 %v7602
      %7606 = vmatprep.subr.bf16.mxu0 0
      %7607 = vmatpush1.bf16.msra.mxu0 0
      %7608 = vmatprep.subr.bf16.mxu0 0
      %7609 = vmatpush1.bf16.msra.mxu0 0
      %7610 = vmatprep.subr.bf16.mxu0 0
      %7611 = vmatpush1.bf16.msra.mxu0 0
      %7612 = vmatprep.subr.bf16.mxu0 0
      %7613 = vmatpush1.bf16.msra.mxu0 0
      %7614 = vmatprep.subr.bf16.mxu0 0
      %7615 = vmatpush1.bf16.msra.mxu0 0
      %7616 = vmatprep.subr.bf16.mxu0 0
      %7617 = vmatpush1.bf16.msra.mxu0 0
      %7618 = vmatprep.subr.bf16.mxu0 0
      %7619 = vmatpush1.bf16.msra.mxu0 0
      %7620 = vmatprep.subr.bf16.mxu0 0
      %7621 = vmatpush1.bf16.msra.mxu0 0
      %7622 = vmatprep.subr.bf16.mxu0 0
      %7623 = vmatpush1.bf16.msra.mxu0 0
      %7624 = vmatprep.subr.bf16.mxu0 0
      %7625 = vmatpush1.bf16.msra.mxu0 0
      %7626 = vmatprep.subr.bf16.mxu0 0
      %7627 = vmatpush1.bf16.msra.mxu0 0
      %7628 = vmatprep.subr.bf16.mxu0 0
      %7629 = vmatpush1.bf16.msra.mxu0 0
      %7630 = vmatprep.subr.bf16.mxu0 0
      %7631 = vmatpush1.bf16.msra.mxu0 0
      %7632 = vmatprep.subr.bf16.mxu0 0
      %7633 = vmatpush1.bf16.msra.mxu0 0
      %7634 = vmatprep.subr.bf16.mxu0 0
      %7635 = vmatpush1.bf16.msra.mxu0 0
      %7636 = vmatprep.mubr.bf16.mxu0 0
      %7637 = vmatmul.mubr.bf16.gmra.mrb[0].mxu0 %v7578
      %v7638 = vpop.f32.mrb[0].mxu0
      %v7639 = vadd.f32 0.0, %v7638
      %v7640 = vpop.f32.mrb[0].mxu0
      %v7641 = vpop.f32.mrb[0].mxu0
      %v7642 = vadd.f32 0.0, %v7641
      %v7643 = vpop.f32.mrb[0].mxu0
      %7644 = vmatprep.mubr.bf16.mxu0 0
      %7645 = vmatmul.mubr.bf16.gmra.mrb[0].mxu0 %v7581
      %v7646 = vpop.f32.mrb[0].mxu0
      %v7647 = vadd.f32 0.0, %v7646
      %v7648 = vpop.f32.mrb[0].mxu0
      %v7649 = vpop.f32.mrb[0].mxu0
      %v7650 = vadd.f32 0.0, %v7649
      %v7651 = vpop.f32.mrb[0].mxu0
      %7652 = vmatprep.mubr.bf16.mxu0 0
      %7653 = vmatmul.mubr.bf16.gmra.mrb[0].mxu0 %v7584
      %v7654 = vpop.f32.mrb[0].mxu0
      %v7655 = vadd.f32 0.0, %v7654
      %v7656 = vpop.f32.mrb[0].mxu0
      %v7657 = vpop.f32.mrb[0].mxu0
      %v7658 = vadd.f32 0.0, %v7657
      %v7659 = vpop.f32.mrb[0].mxu0
      %7660 = vmatprep.mubr.bf16.mxu0 0
      %7661 = vmatmul.mubr.bf16.gmra.mrb[0].mxu0 %v7587
      %v7662 = vpop.f32.mrb[0].mxu0
      %v7663 = vadd.f32 0.0, %v7662
      %v7664 = vpop.f32.mrb[0].mxu0
      %v7665 = vpop.f32.mrb[0].mxu0
      %v7666 = vadd.f32 0.0, %v7665
      %v7667 = vpop.f32.mrb[0].mxu0
      %7668 = vmatprep.mubr.bf16.mxu0 0
      %7669 = vmatmul.mubr.bf16.gmra.mrb[0].mxu0 %v7590
      %v7670 = vpop.f32.mrb[0].mxu0
      %v7671 = vadd.f32 0.0, %v7670
      %v7672 = vpop.f32.mrb[0].mxu0
      %v7673 = vpop.f32.mrb[0].mxu0
      %v7674 = vadd.f32 0.0, %v7673
      %v7675 = vpop.f32.mrb[0].mxu0
      %7676 = vmatprep.mubr.bf16.mxu0 0
      %7677 = vmatmul.mubr.bf16.gmra.mrb[0].mxu0 %v7593
      %v7678 = vpop.f32.mrb[0].mxu0
      %v7679 = vadd.f32 0.0, %v7678
      %v7680 = vpop.f32.mrb[0].mxu0
      %v7681 = vpop.f32.mrb[0].mxu0
      %v7682 = vadd.f32 0.0, %v7681
      %v7683 = vpop.f32.mrb[0].mxu0
      %7684 = vmatprep.mubr.bf16.mxu0 0
      %7685 = vmatmul.mubr.bf16.gmra.mrb[0].mxu0 %v7596
      %v7686 = vpop.f32.mrb[0].mxu0
      %v7687 = vadd.f32 0.0, %v7686
      %v7688 = vpop.f32.mrb[0].mxu0
      %v7689 = vpop.f32.mrb[0].mxu0
      %v7690 = vadd.f32 0.0, %v7689
      %v7691 = vpop.f32.mrb[0].mxu0
      %7692 = vmatprep.mubr.bf16.mxu0 0
      %7693 = vmatmul.mubr.bf16.gmra.mrb[0].mxu0 %v7599
      %v7694 = vpop.f32.mrb[0].mxu0
      %v7695 = vadd.f32 0.0, %v7694
      %v7696 = vpop.f32.mrb[0].mxu0
      %v7697 = vpop.f32.mrb[0].mxu0
      %v7698 = vadd.f32 0.0, %v7697
      %v7699 = vpop.f32.mrb[0].mxu0
      %7700 = vdwg.mxu0
      %v7701 = vadd.f32 %v7551, %v7639
      %v7702 = vadd.f32 %v7552, %v7642
      %v7703 = vadd.f32 %v7553, %v7647
      %v7704 = vadd.f32 %v7554, %v7650
      %v7705 = vadd.f32 %v7555, %v7655
      %v7706 = vadd.f32 %v7556, %v7658
      %v7707 = vadd.f32 %v7557, %v7663
      %v7708 = vadd.f32 %v7558, %v7666
      %v7709 = vadd.f32 %v7559, %v7671
      %v7710 = vadd.f32 %v7560, %v7674
      %v7711 = vadd.f32 %v7561, %v7679
      %v7712 = vadd.f32 %v7562, %v7682
      %v7713 = vadd.f32 %v7563, %v7687
      %v7714 = vadd.f32 %v7564, %v7690
      %v7715 = vadd.f32 %v7565, %v7695
      %v7716 = vadd.f32 %v7566, %v7698
      %v7717 = vld [vmem:[#allocation3 + $0x28] sm:$0xff]
      %v7718 = vld [vmem:[#allocation3 + $0x30] sm:$0xff]
      %v7719 = vld [vmem:[#allocation3 + $0x38] sm:$0xff]
      %v7720 = vld [vmem:[#allocation3 + $0x40] sm:$0xff]
      %v7721 = vld [vmem:[#allocation3 + $0x48] sm:$0xff]
      %v7722 = vld [vmem:[#allocation3 + $0x50] sm:$0xff]
      %v7723 = vld [vmem:[#allocation3 + $0x58] sm:$0xff]
      %v7724 = vld [vmem:[#allocation3 + $0x60] sm:$0xff]
      %s7725 = scalar_lea.vmem %s17, 20
      %v7726 = vld [vmem:[%s7725] sm:$0xf]
      %v7728 = vsel %vm793, %v7717, 0
      %v7731 = vsel %vm793, %v7718, 0
      %v7734 = vsel %vm793, %v7719, 0
      %v7737 = vsel %vm793, %v7720, 0
      %v7740 = vsel %vm793, %v7721, 0
      %v7743 = vsel %vm793, %v7722, 0
      %v7746 = vsel %vm793, %v7723, 0
      %v7749 = vsel %vm793, %v7724, 0
      %v7752 = vsel %vm900, %v7726, 0
      %7754 = vmatprep.subr.bf16.mxu0 0
      %7755 = vmatpush1.bf16.msra.mxu0 %v7752
      %7756 = vmatprep.subr.bf16.mxu0 0
      %7757 = vmatpush1.bf16.msra.mxu0 0
      %7758 = vmatprep.subr.bf16.mxu0 0
      %7759 = vmatpush1.bf16.msra.mxu0 0
      %7760 = vmatprep.subr.bf16.mxu0 0
      %7761 = vmatpush1.bf16.msra.mxu0 0
      %7762 = vmatprep.subr.bf16.mxu0 0
      %7763 = vmatpush1.bf16.msra.mxu0 0
      %7764 = vmatprep.subr.bf16.mxu0 0
      %7765 = vmatpush1.bf16.msra.mxu0 0
      %7766 = vmatprep.subr.bf16.mxu0 0
      %7767 = vmatpush1.bf16.msra.mxu0 0
      %7768 = vmatprep.subr.bf16.mxu0 0
      %7769 = vmatpush1.bf16.msra.mxu0 0
      %7770 = vmatprep.subr.bf16.mxu0 0
      %7771 = vmatpush1.bf16.msra.mxu0 0
      %7772 = vmatprep.subr.bf16.mxu0 0
      %7773 = vmatpush1.bf16.msra.mxu0 0
      %7774 = vmatprep.subr.bf16.mxu0 0
      %7775 = vmatpush1.bf16.msra.mxu0 0
      %7776 = vmatprep.subr.bf16.mxu0 0
      %7777 = vmatpush1.bf16.msra.mxu0 0
      %7778 = vmatprep.subr.bf16.mxu0 0
      %7779 = vmatpush1.bf16.msra.mxu0 0
      %7780 = vmatprep.subr.bf16.mxu0 0
      %7781 = vmatpush1.bf16.msra.mxu0 0
      %7782 = vmatprep.subr.bf16.mxu0 0
      %7783 = vmatpush1.bf16.msra.mxu0 0
      %7784 = vmatprep.subr.bf16.mxu0 0
      %7785 = vmatpush1.bf16.msra.mxu0 0
      %7786 = vmatprep.mubr.bf16.mxu0 0
      %7787 = vmatmul.mubr.bf16.gmra.mrb[0].mxu0 %v7728
      %v7788 = vpop.f32.mrb[0].mxu0
      %v7789 = vadd.f32 0.0, %v7788
      %v7790 = vpop.f32.mrb[0].mxu0
      %v7791 = vpop.f32.mrb[0].mxu0
      %v7792 = vadd.f32 0.0, %v7791
      %v7793 = vpop.f32.mrb[0].mxu0
      %7794 = vmatprep.mubr.bf16.mxu0 0
      %7795 = vmatmul.mubr.bf16.gmra.mrb[0].mxu0 %v7731
      %v7796 = vpop.f32.mrb[0].mxu0
      %v7797 = vadd.f32 0.0, %v7796
      %v7798 = vpop.f32.mrb[0].mxu0
      %v7799 = vpop.f32.mrb[0].mxu0
      %v7800 = vadd.f32 0.0, %v7799
      %v7801 = vpop.f32.mrb[0].mxu0
      %7802 = vmatprep.mubr.bf16.mxu0 0
      %7803 = vmatmul.mubr.bf16.gmra.mrb[0].mxu0 %v7734
      %v7804 = vpop.f32.mrb[0].mxu0
      %v7805 = vadd.f32 0.0, %v7804
      %v7806 = vpop.f32.mrb[0].mxu0
      %v7807 = vpop.f32.mrb[0].mxu0
      %v7808 = vadd.f32 0.0, %v7807
      %v7809 = vpop.f32.mrb[0].mxu0
      %7810 = vmatprep.mubr.bf16.mxu0 0
      %7811 = vmatmul.mubr.bf16.gmra.mrb[0].mxu0 %v7737
      %v7812 = vpop.f32.mrb[0].mxu0
      %v7813 = vadd.f32 0.0, %v7812
      %v7814 = vpop.f32.mrb[0].mxu0
      %v7815 = vpop.f32.mrb[0].mxu0
      %v7816 = vadd.f32 0.0, %v7815
      %v7817 = vpop.f32.mrb[0].mxu0
      %7818 = vmatprep.mubr.bf16.mxu0 0
      %7819 = vmatmul.mubr.bf16.gmra.mrb[0].mxu0 %v7740
      %v7820 = vpop.f32.mrb[0].mxu0
      %v7821 = vadd.f32 0.0, %v7820
      %v7822 = vpop.f32.mrb[0].mxu0
      %v7823 = vpop.f32.mrb[0].mxu0
      %v7824 = vadd.f32 0.0, %v7823
      %v7825 = vpop.f32.mrb[0].mxu0
      %7826 = vmatprep.mubr.bf16.mxu0 0
      %7827 = vmatmul.mubr.bf16.gmra.mrb[0].mxu0 %v7743
      %v7828 = vpop.f32.mrb[0].mxu0
      %v7829 = vadd.f32 0.0, %v7828
      %v7830 = vpop.f32.mrb[0].mxu0
      %v7831 = vpop.f32.mrb[0].mxu0
      %v7832 = vadd.f32 0.0, %v7831
      %v7833 = vpop.f32.mrb[0].mxu0
      %7834 = vmatprep.mubr.bf16.mxu0 0
      %7835 = vmatmul.mubr.bf16.gmra.mrb[0].mxu0 %v7746
      %v7836 = vpop.f32.mrb[0].mxu0
      %v7837 = vadd.f32 0.0, %v7836
      %v7838 = vpop.f32.mrb[0].mxu0
      %v7839 = vpop.f32.mrb[0].mxu0
      %v7840 = vadd.f32 0.0, %v7839
      %v7841 = vpop.f32.mrb[0].mxu0
      %7842 = vmatprep.mubr.bf16.mxu0 0
      %7843 = vmatmul.mubr.bf16.gmra.mrb[0].mxu0 %v7749
      %v7844 = vpop.f32.mrb[0].mxu0
      %v7845 = vadd.f32 0.0, %v7844
      %v7846 = vpop.f32.mrb[0].mxu0
      %v7847 = vpop.f32.mrb[0].mxu0
      %v7848 = vadd.f32 0.0, %v7847
      %v7849 = vpop.f32.mrb[0].mxu0
      %7850 = vdwg.mxu0
      %v7851 = vadd.f32 %v7701, %v7789
      %v7852 = vadd.f32 %v7702, %v7792
      %v7853 = vadd.f32 %v7703, %v7797
      %v7854 = vadd.f32 %v7704, %v7800
      %v7855 = vadd.f32 %v7705, %v7805
      %v7856 = vadd.f32 %v7706, %v7808
      %v7857 = vadd.f32 %v7707, %v7813
      %v7858 = vadd.f32 %v7708, %v7816
      %v7859 = vadd.f32 %v7709, %v7821
      %v7860 = vadd.f32 %v7710, %v7824
      %v7861 = vadd.f32 %v7711, %v7829
      %v7862 = vadd.f32 %v7712, %v7832
      %v7863 = vadd.f32 %v7713, %v7837
      %v7864 = vadd.f32 %v7714, %v7840
      %v7865 = vadd.f32 %v7715, %v7845
      %v7866 = vadd.f32 %v7716, %v7848
      %v7867 = vld [vmem:[#allocation3 + $0x30] sm:$0xff]
      %v7868 = vld [vmem:[#allocation3 + $0x38] sm:$0xff]
      %v7869 = vld [vmem:[#allocation3 + $0x40] sm:$0xff]
      %v7870 = vld [vmem:[#allocation3 + $0x48] sm:$0xff]
      %v7871 = vld [vmem:[#allocation3 + $0x50] sm:$0xff]
      %v7872 = vld [vmem:[#allocation3 + $0x58] sm:$0xff]
      %v7873 = vld [vmem:[#allocation3 + $0x60] sm:$0xff]
      %v7874 = vld [vmem:[#allocation3 + $0x68] sm:$0xff]
      %s7875 = scalar_lea.vmem %s17, 24
      %v7876 = vld [vmem:[%s7875] sm:$0xf]
      %v7878 = vsel %vm793, %v7867, 0
      %v7881 = vsel %vm793, %v7868, 0
      %v7884 = vsel %vm793, %v7869, 0
      %v7887 = vsel %vm793, %v7870, 0
      %v7890 = vsel %vm793, %v7871, 0
      %v7893 = vsel %vm793, %v7872, 0
      %v7896 = vsel %vm793, %v7873, 0
      %v7899 = vsel %vm793, %v7874, 0
      %v7902 = vsel %vm900, %v7876, 0
      %7904 = vmatprep.subr.bf16.mxu0 0
      %7905 = vmatpush1.bf16.msra.mxu0 %v7902
      %7906 = vmatprep.subr.bf16.mxu0 0
      %7907 = vmatpush1.bf16.msra.mxu0 0
      %7908 = vmatprep.subr.bf16.mxu0 0
      %7909 = vmatpush1.bf16.msra.mxu0 0
      %7910 = vmatprep.subr.bf16.mxu0 0
      %7911 = vmatpush1.bf16.msra.mxu0 0
      %7912 = vmatprep.subr.bf16.mxu0 0
      %7913 = vmatpush1.bf16.msra.mxu0 0
      %7914 = vmatprep.subr.bf16.mxu0 0
      %7915 = vmatpush1.bf16.msra.mxu0 0
      %7916 = vmatprep.subr.bf16.mxu0 0
      %7917 = vmatpush1.bf16.msra.mxu0 0
      %7918 = vmatprep.subr.bf16.mxu0 0
      %7919 = vmatpush1.bf16.msra.mxu0 0
      %7920 = vmatprep.subr.bf16.mxu0 0
      %7921 = vmatpush1.bf16.msra.mxu0 0
      %7922 = vmatprep.subr.bf16.mxu0 0
      %7923 = vmatpush1.bf16.msra.mxu0 0
      %7924 = vmatprep.subr.bf16.mxu0 0
      %7925 = vmatpush1.bf16.msra.mxu0 0
      %7926 = vmatprep.subr.bf16.mxu0 0
      %7927 = vmatpush1.bf16.msra.mxu0 0
      %7928 = vmatprep.subr.bf16.mxu0 0
      %7929 = vmatpush1.bf16.msra.mxu0 0
      %7930 = vmatprep.subr.bf16.mxu0 0
      %7931 = vmatpush1.bf16.msra.mxu0 0
      %7932 = vmatprep.subr.bf16.mxu0 0
      %7933 = vmatpush1.bf16.msra.mxu0 0
      %7934 = vmatprep.subr.bf16.mxu0 0
      %7935 = vmatpush1.bf16.msra.mxu0 0
      %7936 = vmatprep.mubr.bf16.mxu0 0
      %7937 = vmatmul.mubr.bf16.gmra.mrb[0].mxu0 %v7878
      %v7938 = vpop.f32.mrb[0].mxu0
      %v7939 = vadd.f32 0.0, %v7938
      %v7940 = vpop.f32.mrb[0].mxu0
      %v7941 = vpop.f32.mrb[0].mxu0
      %v7942 = vadd.f32 0.0, %v7941
      %v7943 = vpop.f32.mrb[0].mxu0
      %7944 = vmatprep.mubr.bf16.mxu0 0
      %7945 = vmatmul.mubr.bf16.gmra.mrb[0].mxu0 %v7881
      %v7946 = vpop.f32.mrb[0].mxu0
      %v7947 = vadd.f32 0.0, %v7946
      %v7948 = vpop.f32.mrb[0].mxu0
      %v7949 = vpop.f32.mrb[0].mxu0
      %v7950 = vadd.f32 0.0, %v7949
      %v7951 = vpop.f32.mrb[0].mxu0
      %7952 = vmatprep.mubr.bf16.mxu0 0
      %7953 = vmatmul.mubr.bf16.gmra.mrb[0].mxu0 %v7884
      %v7954 = vpop.f32.mrb[0].mxu0
      %v7955 = vadd.f32 0.0, %v7954
      %v7956 = vpop.f32.mrb[0].mxu0
      %v7957 = vpop.f32.mrb[0].mxu0
      %v7958 = vadd.f32 0.0, %v7957
      %v7959 = vpop.f32.mrb[0].mxu0
      %7960 = vmatprep.mubr.bf16.mxu0 0
      %7961 = vmatmul.mubr.bf16.gmra.mrb[0].mxu0 %v7887
      %v7962 = vpop.f32.mrb[0].mxu0
      %v7963 = vadd.f32 0.0, %v7962
      %v7964 = vpop.f32.mrb[0].mxu0
      %v7965 = vpop.f32.mrb[0].mxu0
      %v7966 = vadd.f32 0.0, %v7965
      %v7967 = vpop.f32.mrb[0].mxu0
      %7968 = vmatprep.mubr.bf16.mxu0 0
      %7969 = vmatmul.mubr.bf16.gmra.mrb[0].mxu0 %v7890
      %v7970 = vpop.f32.mrb[0].mxu0
      %v7971 = vadd.f32 0.0, %v7970
      %v7972 = vpop.f32.mrb[0].mxu0
      %v7973 = vpop.f32.mrb[0].mxu0
      %v7974 = vadd.f32 0.0, %v7973
      %v7975 = vpop.f32.mrb[0].mxu0
      %7976 = vmatprep.mubr.bf16.mxu0 0
      %7977 = vmatmul.mubr.bf16.gmra.mrb[0].mxu0 %v7893
      %v7978 = vpop.f32.mrb[0].mxu0
      %v7979 = vadd.f32 0.0, %v7978
      %v7980 = vpop.f32.mrb[0].mxu0
      %v7981 = vpop.f32.mrb[0].mxu0
      %v7982 = vadd.f32 0.0, %v7981
      %v7983 = vpop.f32.mrb[0].mxu0
      %7984 = vmatprep.mubr.bf16.mxu0 0
      %7985 = vmatmul.mubr.bf16.gmra.mrb[0].mxu0 %v7896
      %v7986 = vpop.f32.mrb[0].mxu0
      %v7987 = vadd.f32 0.0, %v7986
      %v7988 = vpop.f32.mrb[0].mxu0
      %v7989 = vpop.f32.mrb[0].mxu0
      %v7990 = vadd.f32 0.0, %v7989
      %v7991 = vpop.f32.mrb[0].mxu0
      %7992 = vmatprep.mubr.bf16.mxu0 0
      %7993 = vmatmul.mubr.bf16.gmra.mrb[0].mxu0 %v7899
      %v7994 = vpop.f32.mrb[0].mxu0
      %v7995 = vadd.f32 0.0, %v7994
      %v7996 = vpop.f32.mrb[0].mxu0
      %v7997 = vpop.f32.mrb[0].mxu0
      %v7998 = vadd.f32 0.0, %v7997
      %v7999 = vpop.f32.mrb[0].mxu0
      %8000 = vdwg.mxu0
      %v8001 = vadd.f32 %v7851, %v7939
      %v8002 = vadd.f32 %v7852, %v7942
      %v8003 = vadd.f32 %v7853, %v7947
      %v8004 = vadd.f32 %v7854, %v7950
      %v8005 = vadd.f32 %v7855, %v7955
      %v8006 = vadd.f32 %v7856, %v7958
      %v8007 = vadd.f32 %v7857, %v7963
      %v8008 = vadd.f32 %v7858, %v7966
      %v8009 = vadd.f32 %v7859, %v7971
      %v8010 = vadd.f32 %v7860, %v7974
      %v8011 = vadd.f32 %v7861, %v7979
      %v8012 = vadd.f32 %v7862, %v7982
      %v8013 = vadd.f32 %v7863, %v7987
      %v8014 = vadd.f32 %v7864, %v7990
      %v8015 = vadd.f32 %v7865, %v7995
      %v8016 = vadd.f32 %v7866, %v7998
      %v8018 = vlaneseq
      %v8019 = vshrl.u32 %v8018, 7
      %v8020 = vsub.s32 0, %v8019
      %v8021 = vrot.slane %v7026, %v8020
      %v8023 = vmul.f32 %v8001, %v8021
      %v8024 = vmul.f32 %v8002, %v8021
      %v8025 = vmul.f32 %v8003, %v8021
      %v8026 = vmul.f32 %v8004, %v8021
      %v8027 = vmul.f32 %v8005, %v8021
      %v8028 = vmul.f32 %v8006, %v8021
      %v8029 = vmul.f32 %v8007, %v8021
      %v8030 = vmul.f32 %v8008, %v8021
      %v8031 = vmul.f32 %v8009, %v8021
      %v8032 = vmul.f32 %v8010, %v8021
      %v8033 = vmul.f32 %v8011, %v8021
      %v8034 = vmul.f32 %v8012, %v8021
      %v8035 = vmul.f32 %v8013, %v8021
      %v8036 = vmul.f32 %v8014, %v8021
      %v8037 = vmul.f32 %v8015, %v8021
      %v8038 = vmul.f32 %v8016, %v8021
      %v8040 = vlaneseq
      %v8041 = vshrl.u32 %v8040, 7
      %v8042 = vsub.s32 0, %v8041
      %v8043 = vrot.slane %v7027, %v8042
      %v8045 = vadd.f32 %v8023, %v8043
      %v8046 = vadd.f32 %v8024, %v8043
      %v8047 = vadd.f32 %v8025, %v8043
      %v8048 = vadd.f32 %v8026, %v8043
      %v8049 = vadd.f32 %v8027, %v8043
      %v8050 = vadd.f32 %v8028, %v8043
      %v8051 = vadd.f32 %v8029, %v8043
      %v8052 = vadd.f32 %v8030, %v8043
      %v8053 = vadd.f32 %v8031, %v8043
      %v8054 = vadd.f32 %v8032, %v8043
      %v8055 = vadd.f32 %v8033, %v8043
      %v8056 = vadd.f32 %v8034, %v8043
      %v8057 = vadd.f32 %v8035, %v8043
      %v8058 = vadd.f32 %v8036, %v8043
      %v8059 = vadd.f32 %v8037, %v8043
      %v8060 = vadd.f32 %v8038, %v8043
      %v8061 = vmax.f32 %v8045, 0.0
      %v8062 = vmax.f32 %v8046, 0.0
      %v8063 = vmax.f32 %v8047, 0.0
      %v8064 = vmax.f32 %v8048, 0.0
      %v8065 = vmax.f32 %v8049, 0.0
      %v8066 = vmax.f32 %v8050, 0.0
      %v8067 = vmax.f32 %v8051, 0.0
      %v8068 = vmax.f32 %v8052, 0.0
      %v8069 = vmax.f32 %v8053, 0.0
      %v8070 = vmax.f32 %v8054, 0.0
      %v8071 = vmax.f32 %v8055, 0.0
      %v8072 = vmax.f32 %v8056, 0.0
      %v8073 = vmax.f32 %v8057, 0.0
      %v8074 = vmax.f32 %v8058, 0.0
      %v8075 = vmax.f32 %v8059, 0.0
      %v8076 = vmax.f32 %v8060, 0.0
      %v8077 = vld [vmem:[%s1] sm:$0xff]
      %v8078 = vld [vmem:[%s1 + $0x8] sm:$0xff]
      %v8079 = vld [vmem:[%s1 + $0x10] sm:$0xff]
      %v8080 = vld [vmem:[%s1 + $0x18] sm:$0xff]
      %v8081 = vld [vmem:[%s1 + $0x20] sm:$0xff]
      %v8082 = vld [vmem:[%s1 + $0x28] sm:$0xff]
      %v8083 = vld [vmem:[%s1 + $0x30] sm:$0xff]
      %v8084 = vld [vmem:[%s1 + $0x38] sm:$0xff]
      %v8085 = vld [vmem:[%s1 + $0x40] sm:$0xff]
      %v8086 = vld [vmem:[%s1 + $0x48] sm:$0xff]
      %v8087 = vld [vmem:[%s1 + $0x50] sm:$0xff]
      %v8088 = vld [vmem:[%s1 + $0x58] sm:$0xff]
      %v8089 = vld [vmem:[%s1 + $0x60] sm:$0xff]
      %v8090 = vld [vmem:[%s1 + $0x68] sm:$0xff]
      %v8091 = vld [vmem:[%s1 + $0x70] sm:$0xff]
      %v8092 = vld [vmem:[%s1 + $0x78] sm:$0xff]
      %8094 = vset.pattern.permute.xlu0 0
      %8095 = vperm.xlu0 %8094, %v8077
      %v8096 = vpop.permute.xlu0 %8095
      %8099 = vset.pattern.permute.xlu0 0
      %8100 = vperm.xlu0 %8099, %v8078
      %v8101 = vpop.permute.xlu0 %8100
      %8104 = vset.pattern.permute.xlu0 0
      %8105 = vperm.xlu0 %8104, %v8079
      %v8106 = vpop.permute.xlu0 %8105
      %8109 = vset.pattern.permute.xlu0 0
      %8110 = vperm.xlu0 %8109, %v8080
      %v8111 = vpop.permute.xlu0 %8110
      %8114 = vset.pattern.permute.xlu0 0
      %8115 = vperm.xlu0 %8114, %v8081
      %v8116 = vpop.permute.xlu0 %8115
      %8119 = vset.pattern.permute.xlu0 0
      %8120 = vperm.xlu0 %8119, %v8082
      %v8121 = vpop.permute.xlu0 %8120
      %8124 = vset.pattern.permute.xlu0 0
      %8125 = vperm.xlu0 %8124, %v8083
      %v8126 = vpop.permute.xlu0 %8125
      %8129 = vset.pattern.permute.xlu0 0
      %8130 = vperm.xlu0 %8129, %v8084
      %v8131 = vpop.permute.xlu0 %8130
      %8134 = vset.pattern.permute.xlu0 0
      %8135 = vperm.xlu0 %8134, %v8085
      %v8136 = vpop.permute.xlu0 %8135
      %8139 = vset.pattern.permute.xlu0 0
      %8140 = vperm.xlu0 %8139, %v8086
      %v8141 = vpop.permute.xlu0 %8140
      %8144 = vset.pattern.permute.xlu0 0
      %8145 = vperm.xlu0 %8144, %v8087
      %v8146 = vpop.permute.xlu0 %8145
      %8149 = vset.pattern.permute.xlu0 0
      %8150 = vperm.xlu0 %8149, %v8088
      %v8151 = vpop.permute.xlu0 %8150
      %8154 = vset.pattern.permute.xlu0 0
      %8155 = vperm.xlu0 %8154, %v8089
      %v8156 = vpop.permute.xlu0 %8155
      %8159 = vset.pattern.permute.xlu0 0
      %8160 = vperm.xlu0 %8159, %v8090
      %v8161 = vpop.permute.xlu0 %8160
      %8164 = vset.pattern.permute.xlu0 0
      %8165 = vperm.xlu0 %8164, %v8091
      %v8166 = vpop.permute.xlu0 %8165
      %8169 = vset.pattern.permute.xlu0 0
      %8170 = vperm.xlu0 %8169, %v8092
      %v8171 = vpop.permute.xlu0 %8170
      %v8173 = vmul.f32 %v8061, %v8096
      %v8174 = vmul.f32 %v8062, %v8101
      %v8175 = vmul.f32 %v8063, %v8106
      %v8176 = vmul.f32 %v8064, %v8111
      %v8177 = vmul.f32 %v8065, %v8116
      %v8178 = vmul.f32 %v8066, %v8121
      %v8179 = vmul.f32 %v8067, %v8126
      %v8180 = vmul.f32 %v8068, %v8131
      %v8181 = vmul.f32 %v8069, %v8136
      %v8182 = vmul.f32 %v8070, %v8141
      %v8183 = vmul.f32 %v8071, %v8146
      %v8184 = vmul.f32 %v8072, %v8151
      %v8185 = vmul.f32 %v8073, %v8156
      %v8186 = vmul.f32 %v8074, %v8161
      %v8187 = vmul.f32 %v8075, %v8166
      %v8188 = vmul.f32 %v8076, %v8171
      %v8189 = vpack.c.bf16 %v8174, %v8173
      %v8190 = vpack.c.bf16 %v8176, %v8175
      %v8191 = vpack.c.bf16 %v8178, %v8177
      %v8192 = vpack.c.bf16 %v8180, %v8179
      %v8193 = vpack.c.bf16 %v8182, %v8181
      %v8194 = vpack.c.bf16 %v8184, %v8183
      %v8195 = vpack.c.bf16 %v8186, %v8185
      %v8196 = vpack.c.bf16 %v8188, %v8187
      %8197 = vst.msk [vmem:[#allocation2 + $0x18] sm:$0xff] %vm793, %v8189
      %8198 = vst.msk [vmem:[#allocation2 + $0x20] sm:$0xff] %vm793, %v8190
      %8199 = vst.msk [vmem:[#allocation2 + $0x28] sm:$0xff] %vm793, %v8191
      %8200 = vst.msk [vmem:[#allocation2 + $0x30] sm:$0xff] %vm793, %v8192
      %8201 = vst.msk [vmem:[#allocation2 + $0x38] sm:$0xff] %vm793, %v8193
      %8202 = vst.msk [vmem:[#allocation2 + $0x40] sm:$0xff] %vm793, %v8194
      %8203 = vst.msk [vmem:[#allocation2 + $0x48] sm:$0xff] %vm793, %v8195
      %8204 = vst.msk [vmem:[#allocation2 + $0x50] sm:$0xff] %vm793, %v8196
      %v8205 = vld [vmem:[%s21] sm:$0x3]
      %v8206 = vld [vmem:[%s22] sm:$0x3]
      %v8207 = vld [vmem:[#allocation2 + $0x10] sm:$0xc0]
      %v8208 = vld [vmem:[#allocation2 + $0x18] sm:$0xff]
      %v8209 = vld [vmem:[#allocation2 + $0x20] sm:$0xff]
      %v8210 = vld [vmem:[#allocation2 + $0x28] sm:$0xff]
      %v8211 = vld [vmem:[#allocation2 + $0x30] sm:$0xff]
      %v8212 = vld [vmem:[#allocation2 + $0x38] sm:$0xff]
      %v8213 = vld [vmem:[#allocation2 + $0x40] sm:$0xff]
      %v8214 = vld [vmem:[#allocation2 + $0x48] sm:$0xff]
      %v8215 = vld [vmem:[#allocation2 + $0x50] sm:$0x7f]
      %v8216 = vld [vmem:[%s20] sm:$0xff]
      %v8217 = vld [vmem:[#allocation2 + $0x10] sm:$0x80]
      %s8218 = scalar_lea.vmem %s20, 8
      %v8219 = vld [vmem:[%s8218] sm:$0xff]
      %v8229 = vrot.slane %v8217, 7
      %v8230 = vrot.slane %v8208, 7
      %v8231 = vsel %vm1509, %v8229, %v8230
      %v8232 = vrot.slane %v8209, 7
      %v8233 = vsel %vm1509, %v8230, %v8232
      %v8234 = vrot.slane %v8210, 7
      %v8235 = vsel %vm1509, %v8232, %v8234
      %v8236 = vrot.slane %v8211, 7
      %v8237 = vsel %vm1509, %v8234, %v8236
      %v8238 = vrot.slane %v8212, 7
      %v8239 = vsel %vm1509, %v8236, %v8238
      %v8240 = vrot.slane %v8213, 7
      %v8241 = vsel %vm1509, %v8238, %v8240
      %v8242 = vrot.slane %v8214, 7
      %v8243 = vsel %vm1509, %v8240, %v8242
      %v8244 = vrot.slane %v8215, 7
      %v8245 = vsel %vm1509, %v8242, %v8244
      %v8247 = vunpack.c.l.b16 %v8219
      %v8248 = vunpack.c.h.b16 %v8219
      %v8249 = vpack.c.b16 %v8247, %v8247
      %v8250 = vpack.c.b16 %v8248, %v8248
      %v8252 = vsel %vm793, %v8231, 0
      %v8255 = vsel %vm793, %v8233, 0
      %v8258 = vsel %vm793, %v8235, 0
      %v8261 = vsel %vm793, %v8237, 0
      %v8264 = vsel %vm793, %v8239, 0
      %v8267 = vsel %vm793, %v8241, 0
      %v8270 = vsel %vm793, %v8243, 0
      %v8273 = vsel %vm793, %v8245, 0
      %v8276 = vsel %vm900, %v8249, 0
      %v8279 = vsel %vm900, %v8250, 0
      %8281 = vmatprep.subr.bf16.mxu0 %v8279
      %8282 = vmatpush1.bf16.msra.mxu0 %v8276
      %8283 = vmatprep.subr.bf16.mxu0 0
      %8284 = vmatpush1.bf16.msra.mxu0 0
      %8285 = vmatprep.subr.bf16.mxu0 0
      %8286 = vmatpush1.bf16.msra.mxu0 0
      %8287 = vmatprep.subr.bf16.mxu0 0
      %8288 = vmatpush1.bf16.msra.mxu0 0
      %8289 = vmatprep.subr.bf16.mxu0 0
      %8290 = vmatpush1.bf16.msra.mxu0 0
      %8291 = vmatprep.subr.bf16.mxu0 0
      %8292 = vmatpush1.bf16.msra.mxu0 0
      %8293 = vmatprep.subr.bf16.mxu0 0
      %8294 = vmatpush1.bf16.msra.mxu0 0
      %8295 = vmatprep.subr.bf16.mxu0 0
      %8296 = vmatpush1.bf16.msra.mxu0 0
      %8297 = vmatprep.subr.bf16.mxu0 0
      %8298 = vmatpush1.bf16.msra.mxu0 0
      %8299 = vmatprep.subr.bf16.mxu0 0
      %8300 = vmatpush1.bf16.msra.mxu0 0
      %8301 = vmatprep.subr.bf16.mxu0 0
      %8302 = vmatpush1.bf16.msra.mxu0 0
      %8303 = vmatprep.subr.bf16.mxu0 0
      %8304 = vmatpush1.bf16.msra.mxu0 0
      %8305 = vmatprep.subr.bf16.mxu0 0
      %8306 = vmatpush1.bf16.msra.mxu0 0
      %8307 = vmatprep.subr.bf16.mxu0 0
      %8308 = vmatpush1.bf16.msra.mxu0 0
      %8309 = vmatprep.subr.bf16.mxu0 0
      %8310 = vmatpush1.bf16.msra.mxu0 0
      %8311 = vmatprep.subr.bf16.mxu0 0
      %8312 = vmatpush1.bf16.msra.mxu0 0
      %8313 = vmatprep.mubr.bf16.mxu0 0
      %8314 = vmatmul.mubr.bf16.gmra.mrb[0].mxu0 %v8252
      %v8315 = vpop.f32.mrb[0].mxu0
      %v8316 = vadd.f32 0.0, %v8315
      %v8317 = vpop.f32.mrb[0].mxu0
      %v8318 = vadd.f32 0.0, %v8317
      %v8319 = vpop.f32.mrb[0].mxu0
      %v8320 = vadd.f32 0.0, %v8319
      %v8321 = vpop.f32.mrb[0].mxu0
      %v8322 = vadd.f32 0.0, %v8321
      %8323 = vmatprep.mubr.bf16.mxu0 0
      %8324 = vmatmul.mubr.bf16.gmra.mrb[0].mxu0 %v8255
      %v8325 = vpop.f32.mrb[0].mxu0
      %v8326 = vadd.f32 0.0, %v8325
      %v8327 = vpop.f32.mrb[0].mxu0
      %v8328 = vadd.f32 0.0, %v8327
      %v8329 = vpop.f32.mrb[0].mxu0
      %v8330 = vadd.f32 0.0, %v8329
      %v8331 = vpop.f32.mrb[0].mxu0
      %v8332 = vadd.f32 0.0, %v8331
      %8333 = vmatprep.mubr.bf16.mxu0 0
      %8334 = vmatmul.mubr.bf16.gmra.mrb[0].mxu0 %v8258
      %v8335 = vpop.f32.mrb[0].mxu0
      %v8336 = vadd.f32 0.0, %v8335
      %v8337 = vpop.f32.mrb[0].mxu0
      %v8338 = vadd.f32 0.0, %v8337
      %v8339 = vpop.f32.mrb[0].mxu0
      %v8340 = vadd.f32 0.0, %v8339
      %v8341 = vpop.f32.mrb[0].mxu0
      %v8342 = vadd.f32 0.0, %v8341
      %8343 = vmatprep.mubr.bf16.mxu0 0
      %8344 = vmatmul.mubr.bf16.gmra.mrb[0].mxu0 %v8261
      %v8345 = vpop.f32.mrb[0].mxu0
      %v8346 = vadd.f32 0.0, %v8345
      %v8347 = vpop.f32.mrb[0].mxu0
      %v8348 = vadd.f32 0.0, %v8347
      %v8349 = vpop.f32.mrb[0].mxu0
      %v8350 = vadd.f32 0.0, %v8349
      %v8351 = vpop.f32.mrb[0].mxu0
      %v8352 = vadd.f32 0.0, %v8351
      %8353 = vmatprep.mubr.bf16.mxu0 0
      %8354 = vmatmul.mubr.bf16.gmra.mrb[0].mxu0 %v8264
      %v8355 = vpop.f32.mrb[0].mxu0
      %v8356 = vadd.f32 0.0, %v8355
      %v8357 = vpop.f32.mrb[0].mxu0
      %v8358 = vadd.f32 0.0, %v8357
      %v8359 = vpop.f32.mrb[0].mxu0
      %v8360 = vadd.f32 0.0, %v8359
      %v8361 = vpop.f32.mrb[0].mxu0
      %v8362 = vadd.f32 0.0, %v8361
      %8363 = vmatprep.mubr.bf16.mxu0 0
      %8364 = vmatmul.mubr.bf16.gmra.mrb[0].mxu0 %v8267
      %v8365 = vpop.f32.mrb[0].mxu0
      %v8366 = vadd.f32 0.0, %v8365
      %v8367 = vpop.f32.mrb[0].mxu0
      %v8368 = vadd.f32 0.0, %v8367
      %v8369 = vpop.f32.mrb[0].mxu0
      %v8370 = vadd.f32 0.0, %v8369
      %v8371 = vpop.f32.mrb[0].mxu0
      %v8372 = vadd.f32 0.0, %v8371
      %8373 = vmatprep.mubr.bf16.mxu0 0
      %8374 = vmatmul.mubr.bf16.gmra.mrb[0].mxu0 %v8270
      %v8375 = vpop.f32.mrb[0].mxu0
      %v8376 = vadd.f32 0.0, %v8375
      %v8377 = vpop.f32.mrb[0].mxu0
      %v8378 = vadd.f32 0.0, %v8377
      %v8379 = vpop.f32.mrb[0].mxu0
      %v8380 = vadd.f32 0.0, %v8379
      %v8381 = vpop.f32.mrb[0].mxu0
      %v8382 = vadd.f32 0.0, %v8381
      %8383 = vmatprep.mubr.bf16.mxu0 0
      %8384 = vmatmul.mubr.bf16.gmra.mrb[0].mxu0 %v8273
      %v8385 = vpop.f32.mrb[0].mxu0
      %v8386 = vadd.f32 0.0, %v8385
      %v8387 = vpop.f32.mrb[0].mxu0
      %v8388 = vadd.f32 0.0, %v8387
      %v8389 = vpop.f32.mrb[0].mxu0
      %v8390 = vadd.f32 0.0, %v8389
      %v8391 = vpop.f32.mrb[0].mxu0
      %v8392 = vadd.f32 0.0, %v8391
      %8393 = vdwg.mxu0
      %v8395 = vshrl.u32 %v8207, 16
      %v8397 = vrot.slane %v8395, 6
      %v8398 = vshll.u32 %v8207, 16
      %v8400 = vrot.slane %v8398, 7
      %v8401 = vor.u32 %v8397, %v8400
      %v8403 = vshrl.u32 %v8208, 16
      %v8405 = vrot.slane %v8403, 6
      %v8406 = vshll.u32 %v8208, 16
      %v8408 = vrot.slane %v8406, 7
      %v8409 = vor.u32 %v8405, %v8408
      %v8410 = vsel %vm1651, %v8401, %v8409
      %v8412 = vshrl.u32 %v8209, 16
      %v8414 = vrot.slane %v8412, 6
      %v8415 = vshll.u32 %v8209, 16
      %v8417 = vrot.slane %v8415, 7
      %v8418 = vor.u32 %v8414, %v8417
      %v8419 = vsel %vm1651, %v8409, %v8418
      %v8421 = vshrl.u32 %v8210, 16
      %v8423 = vrot.slane %v8421, 6
      %v8424 = vshll.u32 %v8210, 16
      %v8426 = vrot.slane %v8424, 7
      %v8427 = vor.u32 %v8423, %v8426
      %v8428 = vsel %vm1651, %v8418, %v8427
      %v8430 = vshrl.u32 %v8211, 16
      %v8432 = vrot.slane %v8430, 6
      %v8433 = vshll.u32 %v8211, 16
      %v8435 = vrot.slane %v8433, 7
      %v8436 = vor.u32 %v8432, %v8435
      %v8437 = vsel %vm1651, %v8427, %v8436
      %v8439 = vshrl.u32 %v8212, 16
      %v8441 = vrot.slane %v8439, 6
      %v8442 = vshll.u32 %v8212, 16
      %v8444 = vrot.slane %v8442, 7
      %v8445 = vor.u32 %v8441, %v8444
      %v8446 = vsel %vm1651, %v8436, %v8445
      %v8448 = vshrl.u32 %v8213, 16
      %v8450 = vrot.slane %v8448, 6
      %v8451 = vshll.u32 %v8213, 16
      %v8453 = vrot.slane %v8451, 7
      %v8454 = vor.u32 %v8450, %v8453
      %v8455 = vsel %vm1651, %v8445, %v8454
      %v8457 = vshrl.u32 %v8214, 16
      %v8459 = vrot.slane %v8457, 6
      %v8460 = vshll.u32 %v8214, 16
      %v8462 = vrot.slane %v8460, 7
      %v8463 = vor.u32 %v8459, %v8462
      %v8464 = vsel %vm1651, %v8454, %v8463
      %v8466 = vshrl.u32 %v8215, 16
      %v8468 = vrot.slane %v8466, 6
      %v8469 = vshll.u32 %v8215, 16
      %v8471 = vrot.slane %v8469, 7
      %v8472 = vor.u32 %v8468, %v8471
      %v8473 = vsel %vm1651, %v8463, %v8472
      %v8475 = vunpack.c.l.b16 %v8216
      %v8476 = vunpack.c.h.b16 %v8216
      %v8477 = vpack.c.b16 %v8475, %v8475
      %v8478 = vpack.c.b16 %v8476, %v8476
      %v8480 = vsel %vm793, %v8410, 0
      %v8483 = vsel %vm793, %v8419, 0
      %v8486 = vsel %vm793, %v8428, 0
      %v8489 = vsel %vm793, %v8437, 0
      %v8492 = vsel %vm793, %v8446, 0
      %v8495 = vsel %vm793, %v8455, 0
      %v8498 = vsel %vm793, %v8464, 0
      %v8501 = vsel %vm793, %v8473, 0
      %v8504 = vsel %vm900, %v8477, 0
      %v8507 = vsel %vm900, %v8478, 0
      %8509 = vmatprep.subr.bf16.mxu0 %v8507
      %8510 = vmatpush1.bf16.msra.mxu0 %v8504
      %8511 = vmatprep.subr.bf16.mxu0 0
      %8512 = vmatpush1.bf16.msra.mxu0 0
      %8513 = vmatprep.subr.bf16.mxu0 0
      %8514 = vmatpush1.bf16.msra.mxu0 0
      %8515 = vmatprep.subr.bf16.mxu0 0
      %8516 = vmatpush1.bf16.msra.mxu0 0
      %8517 = vmatprep.subr.bf16.mxu0 0
      %8518 = vmatpush1.bf16.msra.mxu0 0
      %8519 = vmatprep.subr.bf16.mxu0 0
      %8520 = vmatpush1.bf16.msra.mxu0 0
      %8521 = vmatprep.subr.bf16.mxu0 0
      %8522 = vmatpush1.bf16.msra.mxu0 0
      %8523 = vmatprep.subr.bf16.mxu0 0
      %8524 = vmatpush1.bf16.msra.mxu0 0
      %8525 = vmatprep.subr.bf16.mxu0 0
      %8526 = vmatpush1.bf16.msra.mxu0 0
      %8527 = vmatprep.subr.bf16.mxu0 0
      %8528 = vmatpush1.bf16.msra.mxu0 0
      %8529 = vmatprep.subr.bf16.mxu0 0
      %8530 = vmatpush1.bf16.msra.mxu0 0
      %8531 = vmatprep.subr.bf16.mxu0 0
      %8532 = vmatpush1.bf16.msra.mxu0 0
      %8533 = vmatprep.subr.bf16.mxu0 0
      %8534 = vmatpush1.bf16.msra.mxu0 0
      %8535 = vmatprep.subr.bf16.mxu0 0
      %8536 = vmatpush1.bf16.msra.mxu0 0
      %8537 = vmatprep.subr.bf16.mxu0 0
      %8538 = vmatpush1.bf16.msra.mxu0 0
      %8539 = vmatprep.subr.bf16.mxu0 0
      %8540 = vmatpush1.bf16.msra.mxu0 0
      %8541 = vmatprep.mubr.bf16.mxu0 0
      %8542 = vmatmul.mubr.bf16.gmra.mrb[0].mxu0 %v8480
      %v8543 = vpop.f32.mrb[0].mxu0
      %v8544 = vadd.f32 %v8316, %v8543
      %v8545 = vpop.f32.mrb[0].mxu0
      %v8546 = vadd.f32 %v8318, %v8545
      %v8547 = vpop.f32.mrb[0].mxu0
      %v8548 = vadd.f32 %v8320, %v8547
      %v8549 = vpop.f32.mrb[0].mxu0
      %v8550 = vadd.f32 %v8322, %v8549
      %8551 = vmatprep.mubr.bf16.mxu0 0
      %8552 = vmatmul.mubr.bf16.gmra.mrb[0].mxu0 %v8483
      %v8553 = vpop.f32.mrb[0].mxu0
      %v8554 = vadd.f32 %v8326, %v8553
      %v8555 = vpop.f32.mrb[0].mxu0
      %v8556 = vadd.f32 %v8328, %v8555
      %v8557 = vpop.f32.mrb[0].mxu0
      %v8558 = vadd.f32 %v8330, %v8557
      %v8559 = vpop.f32.mrb[0].mxu0
      %v8560 = vadd.f32 %v8332, %v8559
      %8561 = vmatprep.mubr.bf16.mxu0 0
      %8562 = vmatmul.mubr.bf16.gmra.mrb[0].mxu0 %v8486
      %v8563 = vpop.f32.mrb[0].mxu0
      %v8564 = vadd.f32 %v8336, %v8563
      %v8565 = vpop.f32.mrb[0].mxu0
      %v8566 = vadd.f32 %v8338, %v8565
      %v8567 = vpop.f32.mrb[0].mxu0
      %v8568 = vadd.f32 %v8340, %v8567
      %v8569 = vpop.f32.mrb[0].mxu0
      %v8570 = vadd.f32 %v8342, %v8569
      %8571 = vmatprep.mubr.bf16.mxu0 0
      %8572 = vmatmul.mubr.bf16.gmra.mrb[0].mxu0 %v8489
      %v8573 = vpop.f32.mrb[0].mxu0
      %v8574 = vadd.f32 %v8346, %v8573
      %v8575 = vpop.f32.mrb[0].mxu0
      %v8576 = vadd.f32 %v8348, %v8575
      %v8577 = vpop.f32.mrb[0].mxu0
      %v8578 = vadd.f32 %v8350, %v8577
      %v8579 = vpop.f32.mrb[0].mxu0
      %v8580 = vadd.f32 %v8352, %v8579
      %8581 = vmatprep.mubr.bf16.mxu0 0
      %8582 = vmatmul.mubr.bf16.gmra.mrb[0].mxu0 %v8492
      %v8583 = vpop.f32.mrb[0].mxu0
      %v8584 = vadd.f32 %v8356, %v8583
      %v8585 = vpop.f32.mrb[0].mxu0
      %v8586 = vadd.f32 %v8358, %v8585
      %v8587 = vpop.f32.mrb[0].mxu0
      %v8588 = vadd.f32 %v8360, %v8587
      %v8589 = vpop.f32.mrb[0].mxu0
      %v8590 = vadd.f32 %v8362, %v8589
      %8591 = vmatprep.mubr.bf16.mxu0 0
      %8592 = vmatmul.mubr.bf16.gmra.mrb[0].mxu0 %v8495
      %v8593 = vpop.f32.mrb[0].mxu0
      %v8594 = vadd.f32 %v8366, %v8593
      %v8595 = vpop.f32.mrb[0].mxu0
      %v8596 = vadd.f32 %v8368, %v8595
      %v8597 = vpop.f32.mrb[0].mxu0
      %v8598 = vadd.f32 %v8370, %v8597
      %v8599 = vpop.f32.mrb[0].mxu0
      %v8600 = vadd.f32 %v8372, %v8599
      %8601 = vmatprep.mubr.bf16.mxu0 0
      %8602 = vmatmul.mubr.bf16.gmra.mrb[0].mxu0 %v8498
      %v8603 = vpop.f32.mrb[0].mxu0
      %v8604 = vadd.f32 %v8376, %v8603
      %v8605 = vpop.f32.mrb[0].mxu0
      %v8606 = vadd.f32 %v8378, %v8605
      %v8607 = vpop.f32.mrb[0].mxu0
      %v8608 = vadd.f32 %v8380, %v8607
      %v8609 = vpop.f32.mrb[0].mxu0
      %v8610 = vadd.f32 %v8382, %v8609
      %8611 = vmatprep.mubr.bf16.mxu0 0
      %8612 = vmatmul.mubr.bf16.gmra.mrb[0].mxu0 %v8501
      %v8613 = vpop.f32.mrb[0].mxu0
      %v8614 = vadd.f32 %v8386, %v8613
      %v8615 = vpop.f32.mrb[0].mxu0
      %v8616 = vadd.f32 %v8388, %v8615
      %v8617 = vpop.f32.mrb[0].mxu0
      %v8618 = vadd.f32 %v8390, %v8617
      %v8619 = vpop.f32.mrb[0].mxu0
      %v8620 = vadd.f32 %v8392, %v8619
      %8621 = vdwg.mxu0
      %v8622 = vld [vmem:[#allocation2 + $0x50] sm:$0xff]
      %s8623 = scalar_lea.vmem %s20, 16
      %v8624 = vld [vmem:[%s8623] sm:$0xff]
      %v8626 = vshrl.u32 %v8217, 16
      %v8628 = vrot.slane %v8626, 7
      %v8629 = vrot.slane %v8403, 7
      %v8630 = vor.u32 %v8629, %v8406
      %v8631 = vsel %vm1859, %v8628, %v8630
      %v8632 = vrot.slane %v8412, 7
      %v8633 = vor.u32 %v8632, %v8415
      %v8634 = vsel %vm1859, %v8629, %v8633
      %v8635 = vrot.slane %v8421, 7
      %v8636 = vor.u32 %v8635, %v8424
      %v8637 = vsel %vm1859, %v8632, %v8636
      %v8638 = vrot.slane %v8430, 7
      %v8639 = vor.u32 %v8638, %v8433
      %v8640 = vsel %vm1859, %v8635, %v8639
      %v8641 = vrot.slane %v8439, 7
      %v8642 = vor.u32 %v8641, %v8442
      %v8643 = vsel %vm1859, %v8638, %v8642
      %v8644 = vrot.slane %v8448, 7
      %v8645 = vor.u32 %v8644, %v8451
      %v8646 = vsel %vm1859, %v8641, %v8645
      %v8647 = vrot.slane %v8457, 7
      %v8648 = vor.u32 %v8647, %v8460
      %v8649 = vsel %vm1859, %v8644, %v8648
      %v8651 = vshrl.u32 %v8622, 16
      %v8653 = vrot.slane %v8651, 7
      %v8654 = vshll.u32 %v8622, 16
      %v8656 = vor.u32 %v8653, %v8654
      %v8657 = vsel %vm1859, %v8647, %v8656
      %v8659 = vunpack.c.l.b16 %v8624
      %v8660 = vunpack.c.h.b16 %v8624
      %v8661 = vpack.c.b16 %v8659, %v8659
      %v8662 = vpack.c.b16 %v8660, %v8660
      %v8664 = vsel %vm793, %v8631, 0
      %v8667 = vsel %vm793, %v8634, 0
      %v8670 = vsel %vm793, %v8637, 0
      %v8673 = vsel %vm793, %v8640, 0
      %v8676 = vsel %vm793, %v8643, 0
      %v8679 = vsel %vm793, %v8646, 0
      %v8682 = vsel %vm793, %v8649, 0
      %v8685 = vsel %vm793, %v8657, 0
      %v8688 = vsel %vm900, %v8661, 0
      %v8691 = vsel %vm900, %v8662, 0
      %8693 = vmatprep.subr.bf16.mxu0 %v8691
      %8694 = vmatpush1.bf16.msra.mxu0 %v8688
      %8695 = vmatprep.subr.bf16.mxu0 0
      %8696 = vmatpush1.bf16.msra.mxu0 0
      %8697 = vmatprep.subr.bf16.mxu0 0
      %8698 = vmatpush1.bf16.msra.mxu0 0
      %8699 = vmatprep.subr.bf16.mxu0 0
      %8700 = vmatpush1.bf16.msra.mxu0 0
      %8701 = vmatprep.subr.bf16.mxu0 0
      %8702 = vmatpush1.bf16.msra.mxu0 0
      %8703 = vmatprep.subr.bf16.mxu0 0
      %8704 = vmatpush1.bf16.msra.mxu0 0
      %8705 = vmatprep.subr.bf16.mxu0 0
      %8706 = vmatpush1.bf16.msra.mxu0 0
      %8707 = vmatprep.subr.bf16.mxu0 0
      %8708 = vmatpush1.bf16.msra.mxu0 0
      %8709 = vmatprep.subr.bf16.mxu0 0
      %8710 = vmatpush1.bf16.msra.mxu0 0
      %8711 = vmatprep.subr.bf16.mxu0 0
      %8712 = vmatpush1.bf16.msra.mxu0 0
      %8713 = vmatprep.subr.bf16.mxu0 0
      %8714 = vmatpush1.bf16.msra.mxu0 0
      %8715 = vmatprep.subr.bf16.mxu0 0
      %8716 = vmatpush1.bf16.msra.mxu0 0
      %8717 = vmatprep.subr.bf16.mxu0 0
      %8718 = vmatpush1.bf16.msra.mxu0 0
      %8719 = vmatprep.subr.bf16.mxu0 0
      %8720 = vmatpush1.bf16.msra.mxu0 0
      %8721 = vmatprep.subr.bf16.mxu0 0
      %8722 = vmatpush1.bf16.msra.mxu0 0
      %8723 = vmatprep.subr.bf16.mxu0 0
      %8724 = vmatpush1.bf16.msra.mxu0 0
      %8725 = vmatprep.mubr.bf16.mxu0 0
      %8726 = vmatmul.mubr.bf16.gmra.mrb[0].mxu0 %v8664
      %v8727 = vpop.f32.mrb[0].mxu0
      %v8728 = vadd.f32 0.0, %v8727
      %v8729 = vpop.f32.mrb[0].mxu0
      %v8730 = vadd.f32 0.0, %v8729
      %v8731 = vpop.f32.mrb[0].mxu0
      %v8732 = vadd.f32 0.0, %v8731
      %v8733 = vpop.f32.mrb[0].mxu0
      %v8734 = vadd.f32 0.0, %v8733
      %8735 = vmatprep.mubr.bf16.mxu0 0
      %8736 = vmatmul.mubr.bf16.gmra.mrb[0].mxu0 %v8667
      %v8737 = vpop.f32.mrb[0].mxu0
      %v8738 = vadd.f32 0.0, %v8737
      %v8739 = vpop.f32.mrb[0].mxu0
      %v8740 = vadd.f32 0.0, %v8739
      %v8741 = vpop.f32.mrb[0].mxu0
      %v8742 = vadd.f32 0.0, %v8741
      %v8743 = vpop.f32.mrb[0].mxu0
      %v8744 = vadd.f32 0.0, %v8743
      %8745 = vmatprep.mubr.bf16.mxu0 0
      %8746 = vmatmul.mubr.bf16.gmra.mrb[0].mxu0 %v8670
      %v8747 = vpop.f32.mrb[0].mxu0
      %v8748 = vadd.f32 0.0, %v8747
      %v8749 = vpop.f32.mrb[0].mxu0
      %v8750 = vadd.f32 0.0, %v8749
      %v8751 = vpop.f32.mrb[0].mxu0
      %v8752 = vadd.f32 0.0, %v8751
      %v8753 = vpop.f32.mrb[0].mxu0
      %v8754 = vadd.f32 0.0, %v8753
      %8755 = vmatprep.mubr.bf16.mxu0 0
      %8756 = vmatmul.mubr.bf16.gmra.mrb[0].mxu0 %v8673
      %v8757 = vpop.f32.mrb[0].mxu0
      %v8758 = vadd.f32 0.0, %v8757
      %v8759 = vpop.f32.mrb[0].mxu0
      %v8760 = vadd.f32 0.0, %v8759
      %v8761 = vpop.f32.mrb[0].mxu0
      %v8762 = vadd.f32 0.0, %v8761
      %v8763 = vpop.f32.mrb[0].mxu0
      %v8764 = vadd.f32 0.0, %v8763
      %8765 = vmatprep.mubr.bf16.mxu0 0
      %8766 = vmatmul.mubr.bf16.gmra.mrb[0].mxu0 %v8676
      %v8767 = vpop.f32.mrb[0].mxu0
      %v8768 = vadd.f32 0.0, %v8767
      %v8769 = vpop.f32.mrb[0].mxu0
      %v8770 = vadd.f32 0.0, %v8769
      %v8771 = vpop.f32.mrb[0].mxu0
      %v8772 = vadd.f32 0.0, %v8771
      %v8773 = vpop.f32.mrb[0].mxu0
      %v8774 = vadd.f32 0.0, %v8773
      %8775 = vmatprep.mubr.bf16.mxu0 0
      %8776 = vmatmul.mubr.bf16.gmra.mrb[0].mxu0 %v8679
      %v8777 = vpop.f32.mrb[0].mxu0
      %v8778 = vadd.f32 0.0, %v8777
      %v8779 = vpop.f32.mrb[0].mxu0
      %v8780 = vadd.f32 0.0, %v8779
      %v8781 = vpop.f32.mrb[0].mxu0
      %v8782 = vadd.f32 0.0, %v8781
      %v8783 = vpop.f32.mrb[0].mxu0
      %v8784 = vadd.f32 0.0, %v8783
      %8785 = vmatprep.mubr.bf16.mxu0 0
      %8786 = vmatmul.mubr.bf16.gmra.mrb[0].mxu0 %v8682
      %v8787 = vpop.f32.mrb[0].mxu0
      %v8788 = vadd.f32 0.0, %v8787
      %v8789 = vpop.f32.mrb[0].mxu0
      %v8790 = vadd.f32 0.0, %v8789
      %v8791 = vpop.f32.mrb[0].mxu0
      %v8792 = vadd.f32 0.0, %v8791
      %v8793 = vpop.f32.mrb[0].mxu0
      %v8794 = vadd.f32 0.0, %v8793
      %8795 = vmatprep.mubr.bf16.mxu0 0
      %8796 = vmatmul.mubr.bf16.gmra.mrb[0].mxu0 %v8685
      %v8797 = vpop.f32.mrb[0].mxu0
      %v8798 = vadd.f32 0.0, %v8797
      %v8799 = vpop.f32.mrb[0].mxu0
      %v8800 = vadd.f32 0.0, %v8799
      %v8801 = vpop.f32.mrb[0].mxu0
      %v8802 = vadd.f32 0.0, %v8801
      %v8803 = vpop.f32.mrb[0].mxu0
      %v8804 = vadd.f32 0.0, %v8803
      %8805 = vdwg.mxu0
      %v8806 = vadd.f32 %v8544, %v8728
      %v8807 = vadd.f32 %v8546, %v8730
      %v8808 = vadd.f32 %v8548, %v8732
      %v8809 = vadd.f32 %v8550, %v8734
      %v8810 = vadd.f32 %v8554, %v8738
      %v8811 = vadd.f32 %v8556, %v8740
      %v8812 = vadd.f32 %v8558, %v8742
      %v8813 = vadd.f32 %v8560, %v8744
      %v8814 = vadd.f32 %v8564, %v8748
      %v8815 = vadd.f32 %v8566, %v8750
      %v8816 = vadd.f32 %v8568, %v8752
      %v8817 = vadd.f32 %v8570, %v8754
      %v8818 = vadd.f32 %v8574, %v8758
      %v8819 = vadd.f32 %v8576, %v8760
      %v8820 = vadd.f32 %v8578, %v8762
      %v8821 = vadd.f32 %v8580, %v8764
      %v8822 = vadd.f32 %v8584, %v8768
      %v8823 = vadd.f32 %v8586, %v8770
      %v8824 = vadd.f32 %v8588, %v8772
      %v8825 = vadd.f32 %v8590, %v8774
      %v8826 = vadd.f32 %v8594, %v8778
      %v8827 = vadd.f32 %v8596, %v8780
      %v8828 = vadd.f32 %v8598, %v8782
      %v8829 = vadd.f32 %v8600, %v8784
      %v8830 = vadd.f32 %v8604, %v8788
      %v8831 = vadd.f32 %v8606, %v8790
      %v8832 = vadd.f32 %v8608, %v8792
      %v8833 = vadd.f32 %v8610, %v8794
      %v8834 = vadd.f32 %v8614, %v8798
      %v8835 = vadd.f32 %v8616, %v8800
      %v8836 = vadd.f32 %v8618, %v8802
      %v8837 = vadd.f32 %v8620, %v8804
      %s8838 = scalar_lea.vmem %s20, 24
      %v8839 = vld [vmem:[%s8838] sm:$0xff]
      %v8841 = vunpack.c.l.b16 %v8839
      %v8842 = vunpack.c.h.b16 %v8839
      %v8843 = vpack.c.b16 %v8841, %v8841
      %v8844 = vpack.c.b16 %v8842, %v8842
      %v8845 = vsel %vm793, %v8208, 0
      %v8847 = vsel %vm793, %v8209, 0
      %v8849 = vsel %vm793, %v8210, 0
      %v8851 = vsel %vm793, %v8211, 0
      %v8853 = vsel %vm793, %v8212, 0
      %v8855 = vsel %vm793, %v8213, 0
      %v8857 = vsel %vm793, %v8214, 0
      %v8859 = vsel %vm793, %v8622, 0
      %v8862 = vsel %vm900, %v8843, 0
      %v8865 = vsel %vm900, %v8844, 0
      %8867 = vmatprep.subr.bf16.mxu0 %v8865
      %8868 = vmatpush1.bf16.msra.mxu0 %v8862
      %8869 = vmatprep.subr.bf16.mxu0 0
      %8870 = vmatpush1.bf16.msra.mxu0 0
      %8871 = vmatprep.subr.bf16.mxu0 0
      %8872 = vmatpush1.bf16.msra.mxu0 0
      %8873 = vmatprep.subr.bf16.mxu0 0
      %8874 = vmatpush1.bf16.msra.mxu0 0
      %8875 = vmatprep.subr.bf16.mxu0 0
      %8876 = vmatpush1.bf16.msra.mxu0 0
      %8877 = vmatprep.subr.bf16.mxu0 0
      %8878 = vmatpush1.bf16.msra.mxu0 0
      %8879 = vmatprep.subr.bf16.mxu0 0
      %8880 = vmatpush1.bf16.msra.mxu0 0
      %8881 = vmatprep.subr.bf16.mxu0 0
      %8882 = vmatpush1.bf16.msra.mxu0 0
      %8883 = vmatprep.subr.bf16.mxu0 0
      %8884 = vmatpush1.bf16.msra.mxu0 0
      %8885 = vmatprep.subr.bf16.mxu0 0
      %8886 = vmatpush1.bf16.msra.mxu0 0
      %8887 = vmatprep.subr.bf16.mxu0 0
      %8888 = vmatpush1.bf16.msra.mxu0 0
      %8889 = vmatprep.subr.bf16.mxu0 0
      %8890 = vmatpush1.bf16.msra.mxu0 0
      %8891 = vmatprep.subr.bf16.mxu0 0
      %8892 = vmatpush1.bf16.msra.mxu0 0
      %8893 = vmatprep.subr.bf16.mxu0 0
      %8894 = vmatpush1.bf16.msra.mxu0 0
      %8895 = vmatprep.subr.bf16.mxu0 0
      %8896 = vmatpush1.bf16.msra.mxu0 0
      %8897 = vmatprep.subr.bf16.mxu0 0
      %8898 = vmatpush1.bf16.msra.mxu0 0
      %8899 = vmatprep.mubr.bf16.mxu0 0
      %8900 = vmatmul.mubr.bf16.gmra.mrb[0].mxu0 %v8845
      %v8901 = vpop.f32.mrb[0].mxu0
      %v8902 = vadd.f32 0.0, %v8901
      %v8903 = vpop.f32.mrb[0].mxu0
      %v8904 = vadd.f32 0.0, %v8903
      %v8905 = vpop.f32.mrb[0].mxu0
      %v8906 = vadd.f32 0.0, %v8905
      %v8907 = vpop.f32.mrb[0].mxu0
      %v8908 = vadd.f32 0.0, %v8907
      %8909 = vmatprep.mubr.bf16.mxu0 0
      %8910 = vmatmul.mubr.bf16.gmra.mrb[0].mxu0 %v8847
      %v8911 = vpop.f32.mrb[0].mxu0
      %v8912 = vadd.f32 0.0, %v8911
      %v8913 = vpop.f32.mrb[0].mxu0
      %v8914 = vadd.f32 0.0, %v8913
      %v8915 = vpop.f32.mrb[0].mxu0
      %v8916 = vadd.f32 0.0, %v8915
      %v8917 = vpop.f32.mrb[0].mxu0
      %v8918 = vadd.f32 0.0, %v8917
      %8919 = vmatprep.mubr.bf16.mxu0 0
      %8920 = vmatmul.mubr.bf16.gmra.mrb[0].mxu0 %v8849
      %v8921 = vpop.f32.mrb[0].mxu0
      %v8922 = vadd.f32 0.0, %v8921
      %v8923 = vpop.f32.mrb[0].mxu0
      %v8924 = vadd.f32 0.0, %v8923
      %v8925 = vpop.f32.mrb[0].mxu0
      %v8926 = vadd.f32 0.0, %v8925
      %v8927 = vpop.f32.mrb[0].mxu0
      %v8928 = vadd.f32 0.0, %v8927
      %8929 = vmatprep.mubr.bf16.mxu0 0
      %8930 = vmatmul.mubr.bf16.gmra.mrb[0].mxu0 %v8851
      %v8931 = vpop.f32.mrb[0].mxu0
      %v8932 = vadd.f32 0.0, %v8931
      %v8933 = vpop.f32.mrb[0].mxu0
      %v8934 = vadd.f32 0.0, %v8933
      %v8935 = vpop.f32.mrb[0].mxu0
      %v8936 = vadd.f32 0.0, %v8935
      %v8937 = vpop.f32.mrb[0].mxu0
      %v8938 = vadd.f32 0.0, %v8937
      %8939 = vmatprep.mubr.bf16.mxu0 0
      %8940 = vmatmul.mubr.bf16.gmra.mrb[0].mxu0 %v8853
      %v8941 = vpop.f32.mrb[0].mxu0
      %v8942 = vadd.f32 0.0, %v8941
      %v8943 = vpop.f32.mrb[0].mxu0
      %v8944 = vadd.f32 0.0, %v8943
      %v8945 = vpop.f32.mrb[0].mxu0
      %v8946 = vadd.f32 0.0, %v8945
      %v8947 = vpop.f32.mrb[0].mxu0
      %v8948 = vadd.f32 0.0, %v8947
      %8949 = vmatprep.mubr.bf16.mxu0 0
      %8950 = vmatmul.mubr.bf16.gmra.mrb[0].mxu0 %v8855
      %v8951 = vpop.f32.mrb[0].mxu0
      %v8952 = vadd.f32 0.0, %v8951
      %v8953 = vpop.f32.mrb[0].mxu0
      %v8954 = vadd.f32 0.0, %v8953
      %v8955 = vpop.f32.mrb[0].mxu0
      %v8956 = vadd.f32 0.0, %v8955
      %v8957 = vpop.f32.mrb[0].mxu0
      %v8958 = vadd.f32 0.0, %v8957
      %8959 = vmatprep.mubr.bf16.mxu0 0
      %8960 = vmatmul.mubr.bf16.gmra.mrb[0].mxu0 %v8857
      %v8961 = vpop.f32.mrb[0].mxu0
      %v8962 = vadd.f32 0.0, %v8961
      %v8963 = vpop.f32.mrb[0].mxu0
      %v8964 = vadd.f32 0.0, %v8963
      %v8965 = vpop.f32.mrb[0].mxu0
      %v8966 = vadd.f32 0.0, %v8965
      %v8967 = vpop.f32.mrb[0].mxu0
      %v8968 = vadd.f32 0.0, %v8967
      %8969 = vmatprep.mubr.bf16.mxu0 0
      %8970 = vmatmul.mubr.bf16.gmra.mrb[0].mxu0 %v8859
      %v8971 = vpop.f32.mrb[0].mxu0
      %v8972 = vadd.f32 0.0, %v8971
      %v8973 = vpop.f32.mrb[0].mxu0
      %v8974 = vadd.f32 0.0, %v8973
      %v8975 = vpop.f32.mrb[0].mxu0
      %v8976 = vadd.f32 0.0, %v8975
      %v8977 = vpop.f32.mrb[0].mxu0
      %v8978 = vadd.f32 0.0, %v8977
      %8979 = vdwg.mxu0
      %v8980 = vadd.f32 %v8806, %v8902
      %v8981 = vadd.f32 %v8807, %v8904
      %v8982 = vadd.f32 %v8808, %v8906
      %v8983 = vadd.f32 %v8809, %v8908
      %v8984 = vadd.f32 %v8810, %v8912
      %v8985 = vadd.f32 %v8811, %v8914
      %v8986 = vadd.f32 %v8812, %v8916
      %v8987 = vadd.f32 %v8813, %v8918
      %v8988 = vadd.f32 %v8814, %v8922
      %v8989 = vadd.f32 %v8815, %v8924
      %v8990 = vadd.f32 %v8816, %v8926
      %v8991 = vadd.f32 %v8817, %v8928
      %v8992 = vadd.f32 %v8818, %v8932
      %v8993 = vadd.f32 %v8819, %v8934
      %v8994 = vadd.f32 %v8820, %v8936
      %v8995 = vadd.f32 %v8821, %v8938
      %v8996 = vadd.f32 %v8822, %v8942
      %v8997 = vadd.f32 %v8823, %v8944
      %v8998 = vadd.f32 %v8824, %v8946
      %v8999 = vadd.f32 %v8825, %v8948
      %v9000 = vadd.f32 %v8826, %v8952
      %v9001 = vadd.f32 %v8827, %v8954
      %v9002 = vadd.f32 %v8828, %v8956
      %v9003 = vadd.f32 %v8829, %v8958
      %v9004 = vadd.f32 %v8830, %v8962
      %v9005 = vadd.f32 %v8831, %v8964
      %v9006 = vadd.f32 %v8832, %v8966
      %v9007 = vadd.f32 %v8833, %v8968
      %v9008 = vadd.f32 %v8834, %v8972
      %v9009 = vadd.f32 %v8835, %v8974
      %v9010 = vadd.f32 %v8836, %v8976
      %v9011 = vadd.f32 %v8837, %v8978
      %v9012 = vld [vmem:[#allocation2 + $0x18] sm:$0xff]
      %v9013 = vld [vmem:[#allocation2 + $0x20] sm:$0xff]
      %v9014 = vld [vmem:[#allocation2 + $0x28] sm:$0xff]
      %v9015 = vld [vmem:[#allocation2 + $0x30] sm:$0xff]
      %v9016 = vld [vmem:[#allocation2 + $0x38] sm:$0xff]
      %v9017 = vld [vmem:[#allocation2 + $0x40] sm:$0xff]
      %v9018 = vld [vmem:[#allocation2 + $0x48] sm:$0xff]
      %v9019 = vld [vmem:[#allocation2 + $0x50] sm:$0xff]
      %v9020 = vld [vmem:[#allocation2 + $0x58] sm:$0x1]
      %s9021 = scalar_lea.vmem %s20, 32
      %v9022 = vld [vmem:[%s9021] sm:$0xff]
      %v9024 = vshrl.u32 %v9012, 16
      %v9026 = vshll.u32 %v9012, 16
      %v9028 = vrot.slane %v9026, 1
      %v9029 = vor.u32 %v9024, %v9028
      %v9031 = vshll.u32 %v9013, 16
      %v9033 = vrot.slane %v9031, 1
      %v9034 = vsel %vm2178, %v9029, %v9033
      %v9035 = vshrl.u32 %v9013, 16
      %v9037 = vor.u32 %v9035, %v9033
      %v9039 = vshll.u32 %v9014, 16
      %v9041 = vrot.slane %v9039, 1
      %v9042 = vsel %vm2178, %v9037, %v9041
      %v9043 = vshrl.u32 %v9014, 16
      %v9045 = vor.u32 %v9043, %v9041
      %v9047 = vshll.u32 %v9015, 16
      %v9049 = vrot.slane %v9047, 1
      %v9050 = vsel %vm2178, %v9045, %v9049
      %v9051 = vshrl.u32 %v9015, 16
      %v9053 = vor.u32 %v9051, %v9049
      %v9055 = vshll.u32 %v9016, 16
      %v9057 = vrot.slane %v9055, 1
      %v9058 = vsel %vm2178, %v9053, %v9057
      %v9059 = vshrl.u32 %v9016, 16
      %v9061 = vor.u32 %v9059, %v9057
      %v9063 = vshll.u32 %v9017, 16
      %v9065 = vrot.slane %v9063, 1
      %v9066 = vsel %vm2178, %v9061, %v9065
      %v9067 = vshrl.u32 %v9017, 16
      %v9069 = vor.u32 %v9067, %v9065
      %v9071 = vshll.u32 %v9018, 16
      %v9073 = vrot.slane %v9071, 1
      %v9074 = vsel %vm2178, %v9069, %v9073
      %v9075 = vshrl.u32 %v9018, 16
      %v9077 = vor.u32 %v9075, %v9073
      %v9079 = vshll.u32 %v9019, 16
      %v9081 = vrot.slane %v9079, 1
      %v9082 = vsel %vm2178, %v9077, %v9081
      %v9083 = vshrl.u32 %v9019, 16
      %v9085 = vor.u32 %v9083, %v9081
      %v9087 = vshll.u32 %v9020, 16
      %v9089 = vrot.slane %v9087, 1
      %v9090 = vsel %vm2178, %v9085, %v9089
      %v9092 = vunpack.c.l.b16 %v9022
      %v9093 = vunpack.c.h.b16 %v9022
      %v9094 = vpack.c.b16 %v9092, %v9092
      %v9095 = vpack.c.b16 %v9093, %v9093
      %v9097 = vsel %vm793, %v9034, 0
      %v9100 = vsel %vm793, %v9042, 0
      %v9103 = vsel %vm793, %v9050, 0
      %v9106 = vsel %vm793, %v9058, 0
      %v9109 = vsel %vm793, %v9066, 0
      %v9112 = vsel %vm793, %v9074, 0
      %v9115 = vsel %vm793, %v9082, 0
      %v9118 = vsel %vm793, %v9090, 0
      %v9121 = vsel %vm900, %v9094, 0
      %v9124 = vsel %vm900, %v9095, 0
      %9126 = vmatprep.subr.bf16.mxu0 %v9124
      %9127 = vmatpush1.bf16.msra.mxu0 %v9121
      %9128 = vmatprep.subr.bf16.mxu0 0
      %9129 = vmatpush1.bf16.msra.mxu0 0
      %9130 = vmatprep.subr.bf16.mxu0 0
      %9131 = vmatpush1.bf16.msra.mxu0 0
      %9132 = vmatprep.subr.bf16.mxu0 0
      %9133 = vmatpush1.bf16.msra.mxu0 0
      %9134 = vmatprep.subr.bf16.mxu0 0
      %9135 = vmatpush1.bf16.msra.mxu0 0
      %9136 = vmatprep.subr.bf16.mxu0 0
      %9137 = vmatpush1.bf16.msra.mxu0 0
      %9138 = vmatprep.subr.bf16.mxu0 0
      %9139 = vmatpush1.bf16.msra.mxu0 0
      %9140 = vmatprep.subr.bf16.mxu0 0
      %9141 = vmatpush1.bf16.msra.mxu0 0
      %9142 = vmatprep.subr.bf16.mxu0 0
      %9143 = vmatpush1.bf16.msra.mxu0 0
      %9144 = vmatprep.subr.bf16.mxu0 0
      %9145 = vmatpush1.bf16.msra.mxu0 0
      %9146 = vmatprep.subr.bf16.mxu0 0
      %9147 = vmatpush1.bf16.msra.mxu0 0
      %9148 = vmatprep.subr.bf16.mxu0 0
      %9149 = vmatpush1.bf16.msra.mxu0 0
      %9150 = vmatprep.subr.bf16.mxu0 0
      %9151 = vmatpush1.bf16.msra.mxu0 0
      %9152 = vmatprep.subr.bf16.mxu0 0
      %9153 = vmatpush1.bf16.msra.mxu0 0
      %9154 = vmatprep.subr.bf16.mxu0 0
      %9155 = vmatpush1.bf16.msra.mxu0 0
      %9156 = vmatprep.subr.bf16.mxu0 0
      %9157 = vmatpush1.bf16.msra.mxu0 0
      %9158 = vmatprep.mubr.bf16.mxu0 0
      %9159 = vmatmul.mubr.bf16.gmra.mrb[0].mxu0 %v9097
      %v9160 = vpop.f32.mrb[0].mxu0
      %v9161 = vadd.f32 0.0, %v9160
      %v9162 = vpop.f32.mrb[0].mxu0
      %v9163 = vadd.f32 0.0, %v9162
      %v9164 = vpop.f32.mrb[0].mxu0
      %v9165 = vadd.f32 0.0, %v9164
      %v9166 = vpop.f32.mrb[0].mxu0
      %v9167 = vadd.f32 0.0, %v9166
      %9168 = vmatprep.mubr.bf16.mxu0 0
      %9169 = vmatmul.mubr.bf16.gmra.mrb[0].mxu0 %v9100
      %v9170 = vpop.f32.mrb[0].mxu0
      %v9171 = vadd.f32 0.0, %v9170
      %v9172 = vpop.f32.mrb[0].mxu0
      %v9173 = vadd.f32 0.0, %v9172
      %v9174 = vpop.f32.mrb[0].mxu0
      %v9175 = vadd.f32 0.0, %v9174
      %v9176 = vpop.f32.mrb[0].mxu0
      %v9177 = vadd.f32 0.0, %v9176
      %9178 = vmatprep.mubr.bf16.mxu0 0
      %9179 = vmatmul.mubr.bf16.gmra.mrb[0].mxu0 %v9103
      %v9180 = vpop.f32.mrb[0].mxu0
      %v9181 = vadd.f32 0.0, %v9180
      %v9182 = vpop.f32.mrb[0].mxu0
      %v9183 = vadd.f32 0.0, %v9182
      %v9184 = vpop.f32.mrb[0].mxu0
      %v9185 = vadd.f32 0.0, %v9184
      %v9186 = vpop.f32.mrb[0].mxu0
      %v9187 = vadd.f32 0.0, %v9186
      %9188 = vmatprep.mubr.bf16.mxu0 0
      %9189 = vmatmul.mubr.bf16.gmra.mrb[0].mxu0 %v9106
      %v9190 = vpop.f32.mrb[0].mxu0
      %v9191 = vadd.f32 0.0, %v9190
      %v9192 = vpop.f32.mrb[0].mxu0
      %v9193 = vadd.f32 0.0, %v9192
      %v9194 = vpop.f32.mrb[0].mxu0
      %v9195 = vadd.f32 0.0, %v9194
      %v9196 = vpop.f32.mrb[0].mxu0
      %v9197 = vadd.f32 0.0, %v9196
      %9198 = vmatprep.mubr.bf16.mxu0 0
      %9199 = vmatmul.mubr.bf16.gmra.mrb[0].mxu0 %v9109
      %v9200 = vpop.f32.mrb[0].mxu0
      %v9201 = vadd.f32 0.0, %v9200
      %v9202 = vpop.f32.mrb[0].mxu0
      %v9203 = vadd.f32 0.0, %v9202
      %v9204 = vpop.f32.mrb[0].mxu0
      %v9205 = vadd.f32 0.0, %v9204
      %v9206 = vpop.f32.mrb[0].mxu0
      %v9207 = vadd.f32 0.0, %v9206
      %9208 = vmatprep.mubr.bf16.mxu0 0
      %9209 = vmatmul.mubr.bf16.gmra.mrb[0].mxu0 %v9112
      %v9210 = vpop.f32.mrb[0].mxu0
      %v9211 = vadd.f32 0.0, %v9210
      %v9212 = vpop.f32.mrb[0].mxu0
      %v9213 = vadd.f32 0.0, %v9212
      %v9214 = vpop.f32.mrb[0].mxu0
      %v9215 = vadd.f32 0.0, %v9214
      %v9216 = vpop.f32.mrb[0].mxu0
      %v9217 = vadd.f32 0.0, %v9216
      %9218 = vmatprep.mubr.bf16.mxu0 0
      %9219 = vmatmul.mubr.bf16.gmra.mrb[0].mxu0 %v9115
      %v9220 = vpop.f32.mrb[0].mxu0
      %v9221 = vadd.f32 0.0, %v9220
      %v9222 = vpop.f32.mrb[0].mxu0
      %v9223 = vadd.f32 0.0, %v9222
      %v9224 = vpop.f32.mrb[0].mxu0
      %v9225 = vadd.f32 0.0, %v9224
      %v9226 = vpop.f32.mrb[0].mxu0
      %v9227 = vadd.f32 0.0, %v9226
      %9228 = vmatprep.mubr.bf16.mxu0 0
      %9229 = vmatmul.mubr.bf16.gmra.mrb[0].mxu0 %v9118
      %v9230 = vpop.f32.mrb[0].mxu0
      %v9231 = vadd.f32 0.0, %v9230
      %v9232 = vpop.f32.mrb[0].mxu0
      %v9233 = vadd.f32 0.0, %v9232
      %v9234 = vpop.f32.mrb[0].mxu0
      %v9235 = vadd.f32 0.0, %v9234
      %v9236 = vpop.f32.mrb[0].mxu0
      %v9237 = vadd.f32 0.0, %v9236
      %9238 = vdwg.mxu0
      %v9239 = vadd.f32 %v8980, %v9161
      %v9240 = vadd.f32 %v8981, %v9163
      %v9241 = vadd.f32 %v8982, %v9165
      %v9242 = vadd.f32 %v8983, %v9167
      %v9243 = vadd.f32 %v8984, %v9171
      %v9244 = vadd.f32 %v8985, %v9173
      %v9245 = vadd.f32 %v8986, %v9175
      %v9246 = vadd.f32 %v8987, %v9177
      %v9247 = vadd.f32 %v8988, %v9181
      %v9248 = vadd.f32 %v8989, %v9183
      %v9249 = vadd.f32 %v8990, %v9185
      %v9250 = vadd.f32 %v8991, %v9187
      %v9251 = vadd.f32 %v8992, %v9191
      %v9252 = vadd.f32 %v8993, %v9193
      %v9253 = vadd.f32 %v8994, %v9195
      %v9254 = vadd.f32 %v8995, %v9197
      %v9255 = vadd.f32 %v8996, %v9201
      %v9256 = vadd.f32 %v8997, %v9203
      %v9257 = vadd.f32 %v8998, %v9205
      %v9258 = vadd.f32 %v8999, %v9207
      %v9259 = vadd.f32 %v9000, %v9211
      %v9260 = vadd.f32 %v9001, %v9213
      %v9261 = vadd.f32 %v9002, %v9215
      %v9262 = vadd.f32 %v9003, %v9217
      %v9263 = vadd.f32 %v9004, %v9221
      %v9264 = vadd.f32 %v9005, %v9223
      %v9265 = vadd.f32 %v9006, %v9225
      %v9266 = vadd.f32 %v9007, %v9227
      %v9267 = vadd.f32 %v9008, %v9231
      %v9268 = vadd.f32 %v9009, %v9233
      %v9269 = vadd.f32 %v9010, %v9235
      %v9270 = vadd.f32 %v9011, %v9237
      %v9271 = vld [vmem:[#allocation2 + $0x18] sm:$0xfe]
      %s9272 = scalar_lea.vmem %s20, 40
      %v9273 = vld [vmem:[%s9272] sm:$0xff]
      %v9283 = vrot.slane %v9271, 1
      %v9284 = vrot.slane %v9013, 1
      %v9285 = vsel %vm2399, %v9283, %v9284
      %v9286 = vrot.slane %v9014, 1
      %v9287 = vsel %vm2399, %v9284, %v9286
      %v9288 = vrot.slane %v9015, 1
      %v9289 = vsel %vm2399, %v9286, %v9288
      %v9290 = vrot.slane %v9016, 1
      %v9291 = vsel %vm2399, %v9288, %v9290
      %v9292 = vrot.slane %v9017, 1
      %v9293 = vsel %vm2399, %v9290, %v9292
      %v9294 = vrot.slane %v9018, 1
      %v9295 = vsel %vm2399, %v9292, %v9294
      %v9296 = vrot.slane %v9019, 1
      %v9297 = vsel %vm2399, %v9294, %v9296
      %v9298 = vrot.slane %v9020, 1
      %v9299 = vsel %vm2399, %v9296, %v9298
      %v9301 = vunpack.c.l.b16 %v9273
      %v9302 = vunpack.c.h.b16 %v9273
      %v9303 = vpack.c.b16 %v9301, %v9301
      %v9304 = vpack.c.b16 %v9302, %v9302
      %v9306 = vsel %vm793, %v9285, 0
      %v9309 = vsel %vm793, %v9287, 0
      %v9312 = vsel %vm793, %v9289, 0
      %v9315 = vsel %vm793, %v9291, 0
      %v9318 = vsel %vm793, %v9293, 0
      %v9321 = vsel %vm793, %v9295, 0
      %v9324 = vsel %vm793, %v9297, 0
      %v9327 = vsel %vm793, %v9299, 0
      %v9330 = vsel %vm900, %v9303, 0
      %v9333 = vsel %vm900, %v9304, 0
      %9335 = vmatprep.subr.bf16.mxu0 %v9333
      %9336 = vmatpush1.bf16.msra.mxu0 %v9330
      %9337 = vmatprep.subr.bf16.mxu0 0
      %9338 = vmatpush1.bf16.msra.mxu0 0
      %9339 = vmatprep.subr.bf16.mxu0 0
      %9340 = vmatpush1.bf16.msra.mxu0 0
      %9341 = vmatprep.subr.bf16.mxu0 0
      %9342 = vmatpush1.bf16.msra.mxu0 0
      %9343 = vmatprep.subr.bf16.mxu0 0
      %9344 = vmatpush1.bf16.msra.mxu0 0
      %9345 = vmatprep.subr.bf16.mxu0 0
      %9346 = vmatpush1.bf16.msra.mxu0 0
      %9347 = vmatprep.subr.bf16.mxu0 0
      %9348 = vmatpush1.bf16.msra.mxu0 0
      %9349 = vmatprep.subr.bf16.mxu0 0
      %9350 = vmatpush1.bf16.msra.mxu0 0
      %9351 = vmatprep.subr.bf16.mxu0 0
      %9352 = vmatpush1.bf16.msra.mxu0 0
      %9353 = vmatprep.subr.bf16.mxu0 0
      %9354 = vmatpush1.bf16.msra.mxu0 0
      %9355 = vmatprep.subr.bf16.mxu0 0
      %9356 = vmatpush1.bf16.msra.mxu0 0
      %9357 = vmatprep.subr.bf16.mxu0 0
      %9358 = vmatpush1.bf16.msra.mxu0 0
      %9359 = vmatprep.subr.bf16.mxu0 0
      %9360 = vmatpush1.bf16.msra.mxu0 0
      %9361 = vmatprep.subr.bf16.mxu0 0
      %9362 = vmatpush1.bf16.msra.mxu0 0
      %9363 = vmatprep.subr.bf16.mxu0 0
      %9364 = vmatpush1.bf16.msra.mxu0 0
      %9365 = vmatprep.subr.bf16.mxu0 0
      %9366 = vmatpush1.bf16.msra.mxu0 0
      %9367 = vmatprep.mubr.bf16.mxu0 0
      %9368 = vmatmul.mubr.bf16.gmra.mrb[0].mxu0 %v9306
      %v9369 = vpop.f32.mrb[0].mxu0
      %v9370 = vadd.f32 0.0, %v9369
      %v9371 = vpop.f32.mrb[0].mxu0
      %v9372 = vadd.f32 0.0, %v9371
      %v9373 = vpop.f32.mrb[0].mxu0
      %v9374 = vadd.f32 0.0, %v9373
      %v9375 = vpop.f32.mrb[0].mxu0
      %v9376 = vadd.f32 0.0, %v9375
      %9377 = vmatprep.mubr.bf16.mxu0 0
      %9378 = vmatmul.mubr.bf16.gmra.mrb[0].mxu0 %v9309
      %v9379 = vpop.f32.mrb[0].mxu0
      %v9380 = vadd.f32 0.0, %v9379
      %v9381 = vpop.f32.mrb[0].mxu0
      %v9382 = vadd.f32 0.0, %v9381
      %v9383 = vpop.f32.mrb[0].mxu0
      %v9384 = vadd.f32 0.0, %v9383
      %v9385 = vpop.f32.mrb[0].mxu0
      %v9386 = vadd.f32 0.0, %v9385
      %9387 = vmatprep.mubr.bf16.mxu0 0
      %9388 = vmatmul.mubr.bf16.gmra.mrb[0].mxu0 %v9312
      %v9389 = vpop.f32.mrb[0].mxu0
      %v9390 = vadd.f32 0.0, %v9389
      %v9391 = vpop.f32.mrb[0].mxu0
      %v9392 = vadd.f32 0.0, %v9391
      %v9393 = vpop.f32.mrb[0].mxu0
      %v9394 = vadd.f32 0.0, %v9393
      %v9395 = vpop.f32.mrb[0].mxu0
      %v9396 = vadd.f32 0.0, %v9395
      %9397 = vmatprep.mubr.bf16.mxu0 0
      %9398 = vmatmul.mubr.bf16.gmra.mrb[0].mxu0 %v9315
      %v9399 = vpop.f32.mrb[0].mxu0
      %v9400 = vadd.f32 0.0, %v9399
      %v9401 = vpop.f32.mrb[0].mxu0
      %v9402 = vadd.f32 0.0, %v9401
      %v9403 = vpop.f32.mrb[0].mxu0
      %v9404 = vadd.f32 0.0, %v9403
      %v9405 = vpop.f32.mrb[0].mxu0
      %v9406 = vadd.f32 0.0, %v9405
      %9407 = vmatprep.mubr.bf16.mxu0 0
      %9408 = vmatmul.mubr.bf16.gmra.mrb[0].mxu0 %v9318
      %v9409 = vpop.f32.mrb[0].mxu0
      %v9410 = vadd.f32 0.0, %v9409
      %v9411 = vpop.f32.mrb[0].mxu0
      %v9412 = vadd.f32 0.0, %v9411
      %v9413 = vpop.f32.mrb[0].mxu0
      %v9414 = vadd.f32 0.0, %v9413
      %v9415 = vpop.f32.mrb[0].mxu0
      %v9416 = vadd.f32 0.0, %v9415
      %9417 = vmatprep.mubr.bf16.mxu0 0
      %9418 = vmatmul.mubr.bf16.gmra.mrb[0].mxu0 %v9321
      %v9419 = vpop.f32.mrb[0].mxu0
      %v9420 = vadd.f32 0.0, %v9419
      %v9421 = vpop.f32.mrb[0].mxu0
      %v9422 = vadd.f32 0.0, %v9421
      %v9423 = vpop.f32.mrb[0].mxu0
      %v9424 = vadd.f32 0.0, %v9423
      %v9425 = vpop.f32.mrb[0].mxu0
      %v9426 = vadd.f32 0.0, %v9425
      %9427 = vmatprep.mubr.bf16.mxu0 0
      %9428 = vmatmul.mubr.bf16.gmra.mrb[0].mxu0 %v9324
      %v9429 = vpop.f32.mrb[0].mxu0
      %v9430 = vadd.f32 0.0, %v9429
      %v9431 = vpop.f32.mrb[0].mxu0
      %v9432 = vadd.f32 0.0, %v9431
      %v9433 = vpop.f32.mrb[0].mxu0
      %v9434 = vadd.f32 0.0, %v9433
      %v9435 = vpop.f32.mrb[0].mxu0
      %v9436 = vadd.f32 0.0, %v9435
      %9437 = vmatprep.mubr.bf16.mxu0 0
      %9438 = vmatmul.mubr.bf16.gmra.mrb[0].mxu0 %v9327
      %v9439 = vpop.f32.mrb[0].mxu0
      %v9440 = vadd.f32 0.0, %v9439
      %v9441 = vpop.f32.mrb[0].mxu0
      %v9442 = vadd.f32 0.0, %v9441
      %v9443 = vpop.f32.mrb[0].mxu0
      %v9444 = vadd.f32 0.0, %v9443
      %v9445 = vpop.f32.mrb[0].mxu0
      %v9446 = vadd.f32 0.0, %v9445
      %9447 = vdwg.mxu0
      %v9448 = vadd.f32 %v9239, %v9370
      %v9449 = vadd.f32 %v9240, %v9372
      %v9450 = vadd.f32 %v9241, %v9374
      %v9451 = vadd.f32 %v9242, %v9376
      %v9452 = vadd.f32 %v9243, %v9380
      %v9453 = vadd.f32 %v9244, %v9382
      %v9454 = vadd.f32 %v9245, %v9384
      %v9455 = vadd.f32 %v9246, %v9386
      %v9456 = vadd.f32 %v9247, %v9390
      %v9457 = vadd.f32 %v9248, %v9392
      %v9458 = vadd.f32 %v9249, %v9394
      %v9459 = vadd.f32 %v9250, %v9396
      %v9460 = vadd.f32 %v9251, %v9400
      %v9461 = vadd.f32 %v9252, %v9402
      %v9462 = vadd.f32 %v9253, %v9404
      %v9463 = vadd.f32 %v9254, %v9406
      %v9464 = vadd.f32 %v9255, %v9410
      %v9465 = vadd.f32 %v9256, %v9412
      %v9466 = vadd.f32 %v9257, %v9414
      %v9467 = vadd.f32 %v9258, %v9416
      %v9468 = vadd.f32 %v9259, %v9420
      %v9469 = vadd.f32 %v9260, %v9422
      %v9470 = vadd.f32 %v9261, %v9424
      %v9471 = vadd.f32 %v9262, %v9426
      %v9472 = vadd.f32 %v9263, %v9430
      %v9473 = vadd.f32 %v9264, %v9432
      %v9474 = vadd.f32 %v9265, %v9434
      %v9475 = vadd.f32 %v9266, %v9436
      %v9476 = vadd.f32 %v9267, %v9440
      %v9477 = vadd.f32 %v9268, %v9442
      %v9478 = vadd.f32 %v9269, %v9444
      %v9479 = vadd.f32 %v9270, %v9446
      %v9480 = vld [vmem:[#allocation2 + $0x58] sm:$0x3]
      %s9481 = scalar_lea.vmem %s20, 48
      %v9482 = vld [vmem:[%s9481] sm:$0xff]
      %v9484 = vshrl.u32 %v9271, 16
      %v9486 = vrot.slane %v9484, 1
      %v9487 = vshll.u32 %v9271, 16
      %v9489 = vrot.slane %v9487, 2
      %v9490 = vor.u32 %v9486, %v9489
      %v9491 = vrot.slane %v9035, 1
      %v9492 = vrot.slane %v9031, 2
      %v9493 = vor.u32 %v9491, %v9492
      %v9494 = vsel %vm2560, %v9490, %v9493
      %v9495 = vrot.slane %v9043, 1
      %v9496 = vrot.slane %v9039, 2
      %v9497 = vor.u32 %v9495, %v9496
      %v9498 = vsel %vm2560, %v9493, %v9497
      %v9499 = vrot.slane %v9051, 1
      %v9500 = vrot.slane %v9047, 2
      %v9501 = vor.u32 %v9499, %v9500
      %v9502 = vsel %vm2560, %v9497, %v9501
      %v9503 = vrot.slane %v9059, 1
      %v9504 = vrot.slane %v9055, 2
      %v9505 = vor.u32 %v9503, %v9504
      %v9506 = vsel %vm2560, %v9501, %v9505
      %v9507 = vrot.slane %v9067, 1
      %v9508 = vrot.slane %v9063, 2
      %v9509 = vor.u32 %v9507, %v9508
      %v9510 = vsel %vm2560, %v9505, %v9509
      %v9511 = vrot.slane %v9075, 1
      %v9512 = vrot.slane %v9071, 2
      %v9513 = vor.u32 %v9511, %v9512
      %v9514 = vsel %vm2560, %v9509, %v9513
      %v9515 = vrot.slane %v9083, 1
      %v9516 = vrot.slane %v9079, 2
      %v9517 = vor.u32 %v9515, %v9516
      %v9518 = vsel %vm2560, %v9513, %v9517
      %v9520 = vshrl.u32 %v9480, 16
      %v9522 = vrot.slane %v9520, 1
      %v9523 = vshll.u32 %v9480, 16
      %v9525 = vrot.slane %v9523, 2
      %v9526 = vor.u32 %v9522, %v9525
      %v9527 = vsel %vm2560, %v9517, %v9526
      %v9529 = vunpack.c.l.b16 %v9482
      %v9530 = vunpack.c.h.b16 %v9482
      %v9531 = vpack.c.b16 %v9529, %v9529
      %v9532 = vpack.c.b16 %v9530, %v9530
      %v9534 = vsel %vm793, %v9494, 0
      %v9537 = vsel %vm793, %v9498, 0
      %v9540 = vsel %vm793, %v9502, 0
      %v9543 = vsel %vm793, %v9506, 0
      %v9546 = vsel %vm793, %v9510, 0
      %v9549 = vsel %vm793, %v9514, 0
      %v9552 = vsel %vm793, %v9518, 0
      %v9555 = vsel %vm793, %v9527, 0
      %v9558 = vsel %vm900, %v9531, 0
      %v9561 = vsel %vm900, %v9532, 0
      %9563 = vmatprep.subr.bf16.mxu0 %v9561
      %9564 = vmatpush1.bf16.msra.mxu0 %v9558
      %9565 = vmatprep.subr.bf16.mxu0 0
      %9566 = vmatpush1.bf16.msra.mxu0 0
      %9567 = vmatprep.subr.bf16.mxu0 0
      %9568 = vmatpush1.bf16.msra.mxu0 0
      %9569 = vmatprep.subr.bf16.mxu0 0
      %9570 = vmatpush1.bf16.msra.mxu0 0
      %9571 = vmatprep.subr.bf16.mxu0 0
      %9572 = vmatpush1.bf16.msra.mxu0 0
      %9573 = vmatprep.subr.bf16.mxu0 0
      %9574 = vmatpush1.bf16.msra.mxu0 0
      %9575 = vmatprep.subr.bf16.mxu0 0
      %9576 = vmatpush1.bf16.msra.mxu0 0
      %9577 = vmatprep.subr.bf16.mxu0 0
      %9578 = vmatpush1.bf16.msra.mxu0 0
      %9579 = vmatprep.subr.bf16.mxu0 0
      %9580 = vmatpush1.bf16.msra.mxu0 0
      %9581 = vmatprep.subr.bf16.mxu0 0
      %9582 = vmatpush1.bf16.msra.mxu0 0
      %9583 = vmatprep.subr.bf16.mxu0 0
      %9584 = vmatpush1.bf16.msra.mxu0 0
      %9585 = vmatprep.subr.bf16.mxu0 0
      %9586 = vmatpush1.bf16.msra.mxu0 0
      %9587 = vmatprep.subr.bf16.mxu0 0
      %9588 = vmatpush1.bf16.msra.mxu0 0
      %9589 = vmatprep.subr.bf16.mxu0 0
      %9590 = vmatpush1.bf16.msra.mxu0 0
      %9591 = vmatprep.subr.bf16.mxu0 0
      %9592 = vmatpush1.bf16.msra.mxu0 0
      %9593 = vmatprep.subr.bf16.mxu0 0
      %9594 = vmatpush1.bf16.msra.mxu0 0
      %9595 = vmatprep.mubr.bf16.mxu0 0
      %9596 = vmatmul.mubr.bf16.gmra.mrb[0].mxu0 %v9534
      %v9597 = vpop.f32.mrb[0].mxu0
      %v9598 = vadd.f32 0.0, %v9597
      %v9599 = vpop.f32.mrb[0].mxu0
      %v9600 = vadd.f32 0.0, %v9599
      %v9601 = vpop.f32.mrb[0].mxu0
      %v9602 = vadd.f32 0.0, %v9601
      %v9603 = vpop.f32.mrb[0].mxu0
      %v9604 = vadd.f32 0.0, %v9603
      %9605 = vmatprep.mubr.bf16.mxu0 0
      %9606 = vmatmul.mubr.bf16.gmra.mrb[0].mxu0 %v9537
      %v9607 = vpop.f32.mrb[0].mxu0
      %v9608 = vadd.f32 0.0, %v9607
      %v9609 = vpop.f32.mrb[0].mxu0
      %v9610 = vadd.f32 0.0, %v9609
      %v9611 = vpop.f32.mrb[0].mxu0
      %v9612 = vadd.f32 0.0, %v9611
      %v9613 = vpop.f32.mrb[0].mxu0
      %v9614 = vadd.f32 0.0, %v9613
      %9615 = vmatprep.mubr.bf16.mxu0 0
      %9616 = vmatmul.mubr.bf16.gmra.mrb[0].mxu0 %v9540
      %v9617 = vpop.f32.mrb[0].mxu0
      %v9618 = vadd.f32 0.0, %v9617
      %v9619 = vpop.f32.mrb[0].mxu0
      %v9620 = vadd.f32 0.0, %v9619
      %v9621 = vpop.f32.mrb[0].mxu0
      %v9622 = vadd.f32 0.0, %v9621
      %v9623 = vpop.f32.mrb[0].mxu0
      %v9624 = vadd.f32 0.0, %v9623
      %9625 = vmatprep.mubr.bf16.mxu0 0
      %9626 = vmatmul.mubr.bf16.gmra.mrb[0].mxu0 %v9543
      %v9627 = vpop.f32.mrb[0].mxu0
      %v9628 = vadd.f32 0.0, %v9627
      %v9629 = vpop.f32.mrb[0].mxu0
      %v9630 = vadd.f32 0.0, %v9629
      %v9631 = vpop.f32.mrb[0].mxu0
      %v9632 = vadd.f32 0.0, %v9631
      %v9633 = vpop.f32.mrb[0].mxu0
      %v9634 = vadd.f32 0.0, %v9633
      %9635 = vmatprep.mubr.bf16.mxu0 0
      %9636 = vmatmul.mubr.bf16.gmra.mrb[0].mxu0 %v9546
      %v9637 = vpop.f32.mrb[0].mxu0
      %v9638 = vadd.f32 0.0, %v9637
      %v9639 = vpop.f32.mrb[0].mxu0
      %v9640 = vadd.f32 0.0, %v9639
      %v9641 = vpop.f32.mrb[0].mxu0
      %v9642 = vadd.f32 0.0, %v9641
      %v9643 = vpop.f32.mrb[0].mxu0
      %v9644 = vadd.f32 0.0, %v9643
      %9645 = vmatprep.mubr.bf16.mxu0 0
      %9646 = vmatmul.mubr.bf16.gmra.mrb[0].mxu0 %v9549
      %v9647 = vpop.f32.mrb[0].mxu0
      %v9648 = vadd.f32 0.0, %v9647
      %v9649 = vpop.f32.mrb[0].mxu0
      %v9650 = vadd.f32 0.0, %v9649
      %v9651 = vpop.f32.mrb[0].mxu0
      %v9652 = vadd.f32 0.0, %v9651
      %v9653 = vpop.f32.mrb[0].mxu0
      %v9654 = vadd.f32 0.0, %v9653
      %9655 = vmatprep.mubr.bf16.mxu0 0
      %9656 = vmatmul.mubr.bf16.gmra.mrb[0].mxu0 %v9552
      %v9657 = vpop.f32.mrb[0].mxu0
      %v9658 = vadd.f32 0.0, %v9657
      %v9659 = vpop.f32.mrb[0].mxu0
      %v9660 = vadd.f32 0.0, %v9659
      %v9661 = vpop.f32.mrb[0].mxu0
      %v9662 = vadd.f32 0.0, %v9661
      %v9663 = vpop.f32.mrb[0].mxu0
      %v9664 = vadd.f32 0.0, %v9663
      %9665 = vmatprep.mubr.bf16.mxu0 0
      %9666 = vmatmul.mubr.bf16.gmra.mrb[0].mxu0 %v9555
      %v9667 = vpop.f32.mrb[0].mxu0
      %v9668 = vadd.f32 0.0, %v9667
      %v9669 = vpop.f32.mrb[0].mxu0
      %v9670 = vadd.f32 0.0, %v9669
      %v9671 = vpop.f32.mrb[0].mxu0
      %v9672 = vadd.f32 0.0, %v9671
      %v9673 = vpop.f32.mrb[0].mxu0
      %v9674 = vadd.f32 0.0, %v9673
      %9675 = vdwg.mxu0
      %v9676 = vadd.f32 %v9448, %v9598
      %v9677 = vadd.f32 %v9449, %v9600
      %v9678 = vadd.f32 %v9450, %v9602
      %v9679 = vadd.f32 %v9451, %v9604
      %v9680 = vadd.f32 %v9452, %v9608
      %v9681 = vadd.f32 %v9453, %v9610
      %v9682 = vadd.f32 %v9454, %v9612
      %v9683 = vadd.f32 %v9455, %v9614
      %v9684 = vadd.f32 %v9456, %v9618
      %v9685 = vadd.f32 %v9457, %v9620
      %v9686 = vadd.f32 %v9458, %v9622
      %v9687 = vadd.f32 %v9459, %v9624
      %v9688 = vadd.f32 %v9460, %v9628
      %v9689 = vadd.f32 %v9461, %v9630
      %v9690 = vadd.f32 %v9462, %v9632
      %v9691 = vadd.f32 %v9463, %v9634
      %v9692 = vadd.f32 %v9464, %v9638
      %v9693 = vadd.f32 %v9465, %v9640
      %v9694 = vadd.f32 %v9466, %v9642
      %v9695 = vadd.f32 %v9467, %v9644
      %v9696 = vadd.f32 %v9468, %v9648
      %v9697 = vadd.f32 %v9469, %v9650
      %v9698 = vadd.f32 %v9470, %v9652
      %v9699 = vadd.f32 %v9471, %v9654
      %v9700 = vadd.f32 %v9472, %v9658
      %v9701 = vadd.f32 %v9473, %v9660
      %v9702 = vadd.f32 %v9474, %v9662
      %v9703 = vadd.f32 %v9475, %v9664
      %v9704 = vadd.f32 %v9476, %v9668
      %v9705 = vadd.f32 %v9477, %v9670
      %v9706 = vadd.f32 %v9478, %v9672
      %v9707 = vadd.f32 %v9479, %v9674
      %v9709 = vlaneseq
      %v9710 = vshrl.u32 %v9709, 7
      %v9711 = vsub.s32 0, %v9710
      %v9712 = vrot.slane %v8205, %v9711
      %v9713 = vlaneseq
      %v9714 = vshrl.u32 %v9713, 7
      %v9715 = vsub.s32 1, %v9714
      %v9716 = vrot.slane %v8205, %v9715
      %v9719 = vmul.f32 %v9676, %v9712
      %v9720 = vmul.f32 %v9677, %v9716
      %v9721 = vmul.f32 %v9678, %v9712
      %v9722 = vmul.f32 %v9679, %v9716
      %v9723 = vmul.f32 %v9680, %v9712
      %v9724 = vmul.f32 %v9681, %v9716
      %v9725 = vmul.f32 %v9682, %v9712
      %v9726 = vmul.f32 %v9683, %v9716
      %v9727 = vmul.f32 %v9684, %v9712
      %v9728 = vmul.f32 %v9685, %v9716
      %v9729 = vmul.f32 %v9686, %v9712
      %v9730 = vmul.f32 %v9687, %v9716
      %v9731 = vmul.f32 %v9688, %v9712
      %v9732 = vmul.f32 %v9689, %v9716
      %v9733 = vmul.f32 %v9690, %v9712
      %v9734 = vmul.f32 %v9691, %v9716
      %v9735 = vmul.f32 %v9692, %v9712
      %v9736 = vmul.f32 %v9693, %v9716
      %v9737 = vmul.f32 %v9694, %v9712
      %v9738 = vmul.f32 %v9695, %v9716
      %v9739 = vmul.f32 %v9696, %v9712
      %v9740 = vmul.f32 %v9697, %v9716
      %v9741 = vmul.f32 %v9698, %v9712
      %v9742 = vmul.f32 %v9699, %v9716
      %v9743 = vmul.f32 %v9700, %v9712
      %v9744 = vmul.f32 %v9701, %v9716
      %v9745 = vmul.f32 %v9702, %v9712
      %v9746 = vmul.f32 %v9703, %v9716
      %v9747 = vmul.f32 %v9704, %v9712
      %v9748 = vmul.f32 %v9705, %v9716
      %v9749 = vmul.f32 %v9706, %v9712
      %v9750 = vmul.f32 %v9707, %v9716
      %v9752 = vlaneseq
      %v9753 = vshrl.u32 %v9752, 7
      %v9754 = vsub.s32 0, %v9753
      %v9755 = vrot.slane %v8206, %v9754
      %v9756 = vlaneseq
      %v9757 = vshrl.u32 %v9756, 7
      %v9758 = vsub.s32 1, %v9757
      %v9759 = vrot.slane %v8206, %v9758
      %v9762 = vadd.f32 %v9719, %v9755
      %v9763 = vadd.f32 %v9720, %v9759
      %v9764 = vadd.f32 %v9721, %v9755
      %v9765 = vadd.f32 %v9722, %v9759
      %v9766 = vadd.f32 %v9723, %v9755
      %v9767 = vadd.f32 %v9724, %v9759
      %v9768 = vadd.f32 %v9725, %v9755
      %v9769 = vadd.f32 %v9726, %v9759
      %v9770 = vadd.f32 %v9727, %v9755
      %v9771 = vadd.f32 %v9728, %v9759
      %v9772 = vadd.f32 %v9729, %v9755
      %v9773 = vadd.f32 %v9730, %v9759
      %v9774 = vadd.f32 %v9731, %v9755
      %v9775 = vadd.f32 %v9732, %v9759
      %v9776 = vadd.f32 %v9733, %v9755
      %v9777 = vadd.f32 %v9734, %v9759
      %v9778 = vadd.f32 %v9735, %v9755
      %v9779 = vadd.f32 %v9736, %v9759
      %v9780 = vadd.f32 %v9737, %v9755
      %v9781 = vadd.f32 %v9738, %v9759
      %v9782 = vadd.f32 %v9739, %v9755
      %v9783 = vadd.f32 %v9740, %v9759
      %v9784 = vadd.f32 %v9741, %v9755
      %v9785 = vadd.f32 %v9742, %v9759
      %v9786 = vadd.f32 %v9743, %v9755
      %v9787 = vadd.f32 %v9744, %v9759
      %v9788 = vadd.f32 %v9745, %v9755
      %v9789 = vadd.f32 %v9746, %v9759
      %v9790 = vadd.f32 %v9747, %v9755
      %v9791 = vadd.f32 %v9748, %v9759
      %v9792 = vadd.f32 %v9749, %v9755
      %v9793 = vadd.f32 %v9750, %v9759
      %v9794 = vmax.f32 %v9762, 0.0
      %v9795 = vmax.f32 %v9763, 0.0
      %v9796 = vmax.f32 %v9764, 0.0
      %v9797 = vmax.f32 %v9765, 0.0
      %v9798 = vmax.f32 %v9766, 0.0
      %v9799 = vmax.f32 %v9767, 0.0
      %v9800 = vmax.f32 %v9768, 0.0
      %v9801 = vmax.f32 %v9769, 0.0
      %v9802 = vmax.f32 %v9770, 0.0
      %v9803 = vmax.f32 %v9771, 0.0
      %v9804 = vmax.f32 %v9772, 0.0
      %v9805 = vmax.f32 %v9773, 0.0
      %v9806 = vmax.f32 %v9774, 0.0
      %v9807 = vmax.f32 %v9775, 0.0
      %v9808 = vmax.f32 %v9776, 0.0
      %v9809 = vmax.f32 %v9777, 0.0
      %v9810 = vmax.f32 %v9778, 0.0
      %v9811 = vmax.f32 %v9779, 0.0
      %v9812 = vmax.f32 %v9780, 0.0
      %v9813 = vmax.f32 %v9781, 0.0
      %v9814 = vmax.f32 %v9782, 0.0
      %v9815 = vmax.f32 %v9783, 0.0
      %v9816 = vmax.f32 %v9784, 0.0
      %v9817 = vmax.f32 %v9785, 0.0
      %v9818 = vmax.f32 %v9786, 0.0
      %v9819 = vmax.f32 %v9787, 0.0
      %v9820 = vmax.f32 %v9788, 0.0
      %v9821 = vmax.f32 %v9789, 0.0
      %v9822 = vmax.f32 %v9790, 0.0
      %v9823 = vmax.f32 %v9791, 0.0
      %v9824 = vmax.f32 %v9792, 0.0
      %v9825 = vmax.f32 %v9793, 0.0
      %v9826 = vpack.c.bf16 %v9796, %v9794
      %v9827 = vpack.c.bf16 %v9797, %v9795
      %v9828 = vpack.c.bf16 %v9800, %v9798
      %v9829 = vpack.c.bf16 %v9801, %v9799
      %v9830 = vpack.c.bf16 %v9804, %v9802
      %v9831 = vpack.c.bf16 %v9805, %v9803
      %v9832 = vpack.c.bf16 %v9808, %v9806
      %v9833 = vpack.c.bf16 %v9809, %v9807
      %v9834 = vpack.c.bf16 %v9812, %v9810
      %v9835 = vpack.c.bf16 %v9813, %v9811
      %v9836 = vpack.c.bf16 %v9816, %v9814
      %v9837 = vpack.c.bf16 %v9817, %v9815
      %v9838 = vpack.c.bf16 %v9820, %v9818
      %v9839 = vpack.c.bf16 %v9821, %v9819
      %v9840 = vpack.c.bf16 %v9824, %v9822
      %v9841 = vpack.c.bf16 %v9825, %v9823
      %v9858 = vunpack.c.l.b16 %v9826
      %v9859 = vunpack.c.l.b16 %v9827
      %v9860 = vunpack.c.h.b16 %v9826
      %v9861 = vunpack.c.h.b16 %v9827
      %v9862 = vunpack.c.l.b16 %v9828
      %v9863 = vunpack.c.l.b16 %v9829
      %v9864 = vunpack.c.h.b16 %v9828
      %v9865 = vunpack.c.h.b16 %v9829
      %v9866 = vunpack.c.l.b16 %v9830
      %v9867 = vunpack.c.l.b16 %v9831
      %v9868 = vunpack.c.h.b16 %v9830
      %v9869 = vunpack.c.h.b16 %v9831
      %v9870 = vunpack.c.l.b16 %v9832
      %v9871 = vunpack.c.l.b16 %v9833
      %v9872 = vunpack.c.h.b16 %v9832
      %v9873 = vunpack.c.h.b16 %v9833
      %v9874 = vunpack.c.l.b16 %v9834
      %v9875 = vunpack.c.l.b16 %v9835
      %v9876 = vunpack.c.h.b16 %v9834
      %v9877 = vunpack.c.h.b16 %v9835
      %v9878 = vunpack.c.l.b16 %v9836
      %v9879 = vunpack.c.l.b16 %v9837
      %v9880 = vunpack.c.h.b16 %v9836
      %v9881 = vunpack.c.h.b16 %v9837
      %v9882 = vunpack.c.l.b16 %v9838
      %v9883 = vunpack.c.l.b16 %v9839
      %v9884 = vunpack.c.h.b16 %v9838
      %v9885 = vunpack.c.h.b16 %v9839
      %v9886 = vunpack.c.l.b16 %v9840
      %v9887 = vunpack.c.l.b16 %v9841
      %v9888 = vunpack.c.h.b16 %v9840
      %v9889 = vunpack.c.h.b16 %v9841
      %v9890 = vpack.c.b16 %v9859, %v9858
      %v9891 = vpack.c.b16 %v9861, %v9860
      %v9892 = vpack.c.b16 %v9863, %v9862
      %v9893 = vpack.c.b16 %v9865, %v9864
      %v9894 = vpack.c.b16 %v9867, %v9866
      %v9895 = vpack.c.b16 %v9869, %v9868
      %v9896 = vpack.c.b16 %v9871, %v9870
      %v9897 = vpack.c.b16 %v9873, %v9872
      %v9898 = vpack.c.b16 %v9875, %v9874
      %v9899 = vpack.c.b16 %v9877, %v9876
      %v9900 = vpack.c.b16 %v9879, %v9878
      %v9901 = vpack.c.b16 %v9881, %v9880
      %v9902 = vpack.c.b16 %v9883, %v9882
      %v9903 = vpack.c.b16 %v9885, %v9884
      %v9904 = vpack.c.b16 %v9887, %v9886
      %v9905 = vpack.c.b16 %v9889, %v9888
      %s9922 = scalar_lea.vmem %s791, 256
      %9923 = vst.msk [vmem:[%s9922] sm:$0xff] %vm1468, %v9890
      %9924 = vst.msk [vmem:[%s9922 + $0x8] sm:$0xff] %vm1468, %v9891
      %9925 = vst.msk [vmem:[%s9922 + $0x10] sm:$0xff] %vm1468, %v9892
      %9926 = vst.msk [vmem:[%s9922 + $0x18] sm:$0xff] %vm1468, %v9893
      %9927 = vst.msk [vmem:[%s9922 + $0x20] sm:$0xff] %vm1468, %v9894
      %9928 = vst.msk [vmem:[%s9922 + $0x28] sm:$0xff] %vm1468, %v9895
      %9929 = vst.msk [vmem:[%s9922 + $0x30] sm:$0xff] %vm1468, %v9896
      %9930 = vst.msk [vmem:[%s9922 + $0x38] sm:$0xff] %vm1468, %v9897
      %9931 = vst.msk [vmem:[%s9922 + $0x40] sm:$0xff] %vm1468, %v9898
      %9932 = vst.msk [vmem:[%s9922 + $0x48] sm:$0xff] %vm1468, %v9899
      %9933 = vst.msk [vmem:[%s9922 + $0x50] sm:$0xff] %vm1468, %v9900
      %9934 = vst.msk [vmem:[%s9922 + $0x58] sm:$0xff] %vm1468, %v9901
      %9935 = vst.msk [vmem:[%s9922 + $0x60] sm:$0xff] %vm1468, %v9902
      %9936 = vst.msk [vmem:[%s9922 + $0x68] sm:$0xff] %vm1468, %v9903
      %9937 = vst.msk [vmem:[%s9922 + $0x70] sm:$0xff] %vm1468, %v9904
      %9938 = vst.msk [vmem:[%s9922 + $0x78] sm:$0xff] %vm1468, %v9905
      %v9939 = vld [vmem:[%s24] sm:$0x3]
      %v9940 = vld [vmem:[%s25] sm:$0x3]
      %v9941 = vld [vmem:[%s786 + $0xc] sm:$0x8]
      %v9942 = vld [vmem:[%s786 + $0x10] sm:$0xf]
      %v9943 = vld [vmem:[%s786 + $0x14] sm:$0xf]
      %v9944 = vld [vmem:[%s786 + $0x18] sm:$0xf]
      %v9945 = vld [vmem:[%s786 + $0x1c] sm:$0xf]
      %v9946 = vld [vmem:[%s786 + $0x20] sm:$0xf]
      %v9947 = vld [vmem:[%s786 + $0x24] sm:$0xf]
      %v9948 = vld [vmem:[%s786 + $0x28] sm:$0xf]
      %v9949 = vld [vmem:[%s786 + $0x2c] sm:$0xf]
      %v9950 = vld [vmem:[%s786 + $0x30] sm:$0xf]
      %v9951 = vld [vmem:[%s786 + $0x34] sm:$0xf]
      %v9952 = vld [vmem:[%s786 + $0x38] sm:$0xf]
      %v9953 = vld [vmem:[%s786 + $0x3c] sm:$0xf]
      %v9954 = vld [vmem:[%s786 + $0x40] sm:$0xf]
      %v9955 = vld [vmem:[%s786 + $0x44] sm:$0xf]
      %v9956 = vld [vmem:[%s786 + $0x48] sm:$0xf]
      %v9957 = vld [vmem:[%s786 + $0x4c] sm:$0xf]
      %v9958 = vunpack.c.l.bf16 %v9941
      %v9959 = vunpack.c.l.bf16 %v9942
      %v9960 = vunpack.c.l.bf16 %v9943
      %v9961 = vunpack.c.l.bf16 %v9944
      %v9962 = vunpack.c.l.bf16 %v9945
      %v9963 = vunpack.c.l.bf16 %v9946
      %v9964 = vunpack.c.l.bf16 %v9947
      %v9965 = vunpack.c.l.bf16 %v9948
      %v9966 = vunpack.c.l.bf16 %v9949
      %v9967 = vunpack.c.l.bf16 %v9950
      %v9968 = vunpack.c.l.bf16 %v9951
      %v9969 = vunpack.c.l.bf16 %v9952
      %v9970 = vunpack.c.l.bf16 %v9953
      %v9971 = vunpack.c.l.bf16 %v9954
      %v9972 = vunpack.c.l.bf16 %v9955
      %v9973 = vunpack.c.l.bf16 %v9956
      %v9974 = vunpack.c.l.bf16 %v9957
      %vm9991 = vcmask 1046528
      %v9992 = vrot.slane %v9959, 1
      %v9993 = vrot.slane %v9960, 1
      %v9994 = vsel %vm9991, %v9992, %v9993
      %v9995 = vrot.slane %v9961, 1
      %v9996 = vsel %vm9991, %v9993, %v9995
      %v9997 = vrot.slane %v9962, 1
      %v9998 = vsel %vm9991, %v9995, %v9997
      %v9999 = vrot.slane %v9963, 1
      %v10000 = vsel %vm9991, %v9997, %v9999
      %v10001 = vrot.slane %v9964, 1
      %v10002 = vsel %vm9991, %v9999, %v10001
      %v10003 = vrot.slane %v9965, 1
      %v10004 = vsel %vm9991, %v10001, %v10003
      %v10005 = vrot.slane %v9966, 1
      %v10006 = vsel %vm9991, %v10003, %v10005
      %v10007 = vrot.slane %v9967, 1
      %v10008 = vsel %vm9991, %v10005, %v10007
      %v10009 = vrot.slane %v9968, 1
      %v10010 = vsel %vm9991, %v10007, %v10009
      %v10011 = vrot.slane %v9969, 1
      %v10012 = vsel %vm9991, %v10009, %v10011
      %v10013 = vrot.slane %v9970, 1
      %v10014 = vsel %vm9991, %v10011, %v10013
      %v10015 = vrot.slane %v9971, 1
      %v10016 = vsel %vm9991, %v10013, %v10015
      %v10017 = vrot.slane %v9972, 1
      %v10018 = vsel %vm9991, %v10015, %v10017
      %v10019 = vrot.slane %v9973, 1
      %v10020 = vsel %vm9991, %v10017, %v10019
      %v10021 = vrot.slane %v9974, 1
      %v10022 = vsel %vm9991, %v10019, %v10021
      %v10040 = vadd.f32 %v9958, %v9992
      %v10041 = vadd.f32 %v9959, %v9994
      %v10042 = vadd.f32 %v9960, %v9996
      %v10043 = vadd.f32 %v9961, %v9998
      %v10044 = vadd.f32 %v9962, %v10000
      %v10045 = vadd.f32 %v9963, %v10002
      %v10046 = vadd.f32 %v9964, %v10004
      %v10047 = vadd.f32 %v9965, %v10006
      %v10048 = vadd.f32 %v9966, %v10008
      %v10049 = vadd.f32 %v9967, %v10010
      %v10050 = vadd.f32 %v9968, %v10012
      %v10051 = vadd.f32 %v9969, %v10014
      %v10052 = vadd.f32 %v9970, %v10016
      %v10053 = vadd.f32 %v9971, %v10018
      %v10054 = vadd.f32 %v9972, %v10020
      %v10055 = vadd.f32 %v9973, %v10022
      %v10056 = vadd.f32 %v9974, %v10021
      %v10057 = vld [vmem:[%s786 + $0x50] sm:$0x1]
      %v10058 = vunpack.c.l.bf16 %v10057
      %vm10060 = vcmask 1045504
      %v10061 = vrot.slane %v9959, 2
      %v10062 = vrot.slane %v9960, 2
      %v10063 = vsel %vm10060, %v10061, %v10062
      %v10064 = vrot.slane %v9961, 2
      %v10065 = vsel %vm10060, %v10062, %v10064
      %v10066 = vrot.slane %v9962, 2
      %v10067 = vsel %vm10060, %v10064, %v10066
      %v10068 = vrot.slane %v9963, 2
      %v10069 = vsel %vm10060, %v10066, %v10068
      %v10070 = vrot.slane %v9964, 2
      %v10071 = vsel %vm10060, %v10068, %v10070
      %v10072 = vrot.slane %v9965, 2
      %v10073 = vsel %vm10060, %v10070, %v10072
      %v10074 = vrot.slane %v9966, 2
      %v10075 = vsel %vm10060, %v10072, %v10074
      %v10076 = vrot.slane %v9967, 2
      %v10077 = vsel %vm10060, %v10074, %v10076
      %v10078 = vrot.slane %v9968, 2
      %v10079 = vsel %vm10060, %v10076, %v10078
      %v10080 = vrot.slane %v9969, 2
      %v10081 = vsel %vm10060, %v10078, %v10080
      %v10082 = vrot.slane %v9970, 2
      %v10083 = vsel %vm10060, %v10080, %v10082
      %v10084 = vrot.slane %v9971, 2
      %v10085 = vsel %vm10060, %v10082, %v10084
      %v10086 = vrot.slane %v9972, 2
      %v10087 = vsel %vm10060, %v10084, %v10086
      %v10088 = vrot.slane %v9973, 2
      %v10089 = vsel %vm10060, %v10086, %v10088
      %v10090 = vrot.slane %v9974, 2
      %v10091 = vsel %vm10060, %v10088, %v10090
      %v10092 = vrot.slane %v10058, 2
      %v10093 = vsel %vm10060, %v10090, %v10092
      %v10111 = vadd.f32 %v10040, %v10061
      %v10112 = vadd.f32 %v10041, %v10063
      %v10113 = vadd.f32 %v10042, %v10065
      %v10114 = vadd.f32 %v10043, %v10067
      %v10115 = vadd.f32 %v10044, %v10069
      %v10116 = vadd.f32 %v10045, %v10071
      %v10117 = vadd.f32 %v10046, %v10073
      %v10118 = vadd.f32 %v10047, %v10075
      %v10119 = vadd.f32 %v10048, %v10077
      %v10120 = vadd.f32 %v10049, %v10079
      %v10121 = vadd.f32 %v10050, %v10081
      %v10122 = vadd.f32 %v10051, %v10083
      %v10123 = vadd.f32 %v10052, %v10085
      %v10124 = vadd.f32 %v10053, %v10087
      %v10125 = vadd.f32 %v10054, %v10089
      %v10126 = vadd.f32 %v10055, %v10091
      %v10127 = vadd.f32 %v10056, %v10093
      %v10128 = vld [vmem:[%s786 + $0x14] sm:$0x8]
      %v10129 = vld [vmem:[%s786 + $0x50] sm:$0xf]
      %v10130 = vld [vmem:[%s786 + $0x54] sm:$0xf]
      %v10131 = vunpack.c.l.bf16 %v10128
      %v10132 = vunpack.c.l.bf16 %v10129
      %v10133 = vunpack.c.l.bf16 %v10130
      %v10134 = vadd.f32 %v10111, %v10131
      %v10135 = vadd.f32 %v10112, %v9961
      %v10136 = vadd.f32 %v10113, %v9962
      %v10137 = vadd.f32 %v10114, %v9963
      %v10138 = vadd.f32 %v10115, %v9964
      %v10139 = vadd.f32 %v10116, %v9965
      %v10140 = vadd.f32 %v10117, %v9966
      %v10141 = vadd.f32 %v10118, %v9967
      %v10142 = vadd.f32 %v10119, %v9968
      %v10143 = vadd.f32 %v10120, %v9969
      %v10144 = vadd.f32 %v10121, %v9970
      %v10145 = vadd.f32 %v10122, %v9971
      %v10146 = vadd.f32 %v10123, %v9972
      %v10147 = vadd.f32 %v10124, %v9973
      %v10148 = vadd.f32 %v10125, %v9974
      %v10149 = vadd.f32 %v10126, %v10132
      %v10150 = vadd.f32 %v10127, %v10133
      %v10153 = vrot.slane %v10132, 1
      %v10154 = vsel %vm9991, %v10021, %v10153
      %v10155 = vrot.slane %v10133, 1
      %v10156 = vsel %vm9991, %v10153, %v10155
      %v10161 = vadd.f32 %v10134, %v9995
      %v10162 = vadd.f32 %v10135, %v9998
      %v10163 = vadd.f32 %v10136, %v10000
      %v10164 = vadd.f32 %v10137, %v10002
      %v10165 = vadd.f32 %v10138, %v10004
      %v10166 = vadd.f32 %v10139, %v10006
      %v10167 = vadd.f32 %v10140, %v10008
      %v10168 = vadd.f32 %v10141, %v10010
      %v10169 = vadd.f32 %v10142, %v10012
      %v10170 = vadd.f32 %v10143, %v10014
      %v10171 = vadd.f32 %v10144, %v10016
      %v10172 = vadd.f32 %v10145, %v10018
      %v10173 = vadd.f32 %v10146, %v10020
      %v10174 = vadd.f32 %v10147, %v10022
      %v10175 = vadd.f32 %v10148, %v10154
      %v10176 = vadd.f32 %v10149, %v10156
      %v10177 = vadd.f32 %v10150, %v10155
      %v10178 = vld [vmem:[%s786 + $0x58] sm:$0x1]
      %v10179 = vunpack.c.l.bf16 %v10178
      %v10181 = vrot.slane %v10132, 2
      %v10182 = vsel %vm10060, %v10090, %v10181
      %v10183 = vrot.slane %v10133, 2
      %v10184 = vsel %vm10060, %v10181, %v10183
      %v10185 = vrot.slane %v10179, 2
      %v10186 = vsel %vm10060, %v10183, %v10185
      %v10191 = vadd.f32 %v10161, %v10064
      %v10192 = vadd.f32 %v10162, %v10067
      %v10193 = vadd.f32 %v10163, %v10069
      %v10194 = vadd.f32 %v10164, %v10071
      %v10195 = vadd.f32 %v10165, %v10073
      %v10196 = vadd.f32 %v10166, %v10075
      %v10197 = vadd.f32 %v10167, %v10077
      %v10198 = vadd.f32 %v10168, %v10079
      %v10199 = vadd.f32 %v10169, %v10081
      %v10200 = vadd.f32 %v10170, %v10083
      %v10201 = vadd.f32 %v10171, %v10085
      %v10202 = vadd.f32 %v10172, %v10087
      %v10203 = vadd.f32 %v10173, %v10089
      %v10204 = vadd.f32 %v10174, %v10091
      %v10205 = vadd.f32 %v10175, %v10182
      %v10206 = vadd.f32 %v10176, %v10184
      %v10207 = vadd.f32 %v10177, %v10186
      %v10208 = vld [vmem:[%s786 + $0x1c] sm:$0x8]
      %v10209 = vld [vmem:[%s786 + $0x58] sm:$0xf]
      %v10210 = vld [vmem:[%s786 + $0x5c] sm:$0xf]
      %v10211 = vunpack.c.l.bf16 %v10208
      %v10212 = vunpack.c.l.bf16 %v10209
      %v10213 = vunpack.c.l.bf16 %v10210
      %v10214 = vadd.f32 %v10191, %v10211
      %v10215 = vadd.f32 %v10192, %v9963
      %v10216 = vadd.f32 %v10193, %v9964
      %v10217 = vadd.f32 %v10194, %v9965
      %v10218 = vadd.f32 %v10195, %v9966
      %v10219 = vadd.f32 %v10196, %v9967
      %v10220 = vadd.f32 %v10197, %v9968
      %v10221 = vadd.f32 %v10198, %v9969
      %v10222 = vadd.f32 %v10199, %v9970
      %v10223 = vadd.f32 %v10200, %v9971
      %v10224 = vadd.f32 %v10201, %v9972
      %v10225 = vadd.f32 %v10202, %v9973
      %v10226 = vadd.f32 %v10203, %v9974
      %v10227 = vadd.f32 %v10204, %v10132
      %v10228 = vadd.f32 %v10205, %v10133
      %v10229 = vadd.f32 %v10206, %v10212
      %v10230 = vadd.f32 %v10207, %v10213
      %v10233 = vrot.slane %v10212, 1
      %v10234 = vsel %vm9991, %v10155, %v10233
      %v10235 = vrot.slane %v10213, 1
      %v10236 = vsel %vm9991, %v10233, %v10235
      %v10241 = vadd.f32 %v10214, %v9999
      %v10242 = vadd.f32 %v10215, %v10002
      %v10243 = vadd.f32 %v10216, %v10004
      %v10244 = vadd.f32 %v10217, %v10006
      %v10245 = vadd.f32 %v10218, %v10008
      %v10246 = vadd.f32 %v10219, %v10010
      %v10247 = vadd.f32 %v10220, %v10012
      %v10248 = vadd.f32 %v10221, %v10014
      %v10249 = vadd.f32 %v10222, %v10016
      %v10250 = vadd.f32 %v10223, %v10018
      %v10251 = vadd.f32 %v10224, %v10020
      %v10252 = vadd.f32 %v10225, %v10022
      %v10253 = vadd.f32 %v10226, %v10154
      %v10254 = vadd.f32 %v10227, %v10156
      %v10255 = vadd.f32 %v10228, %v10234
      %v10256 = vadd.f32 %v10229, %v10236
      %v10257 = vadd.f32 %v10230, %v10235
      %v10258 = vld [vmem:[%s786 + $0x60] sm:$0x1]
      %v10259 = vunpack.c.l.bf16 %v10258
      %v10261 = vrot.slane %v10212, 2
      %v10262 = vsel %vm10060, %v10183, %v10261
      %v10263 = vrot.slane %v10213, 2
      %v10264 = vsel %vm10060, %v10261, %v10263
      %v10265 = vrot.slane %v10259, 2
      %v10266 = vsel %vm10060, %v10263, %v10265
      %v10271 = vadd.f32 %v10241, %v10068
      %v10272 = vadd.f32 %v10242, %v10071
      %v10273 = vadd.f32 %v10243, %v10073
      %v10274 = vadd.f32 %v10244, %v10075
      %v10275 = vadd.f32 %v10245, %v10077
      %v10276 = vadd.f32 %v10246, %v10079
      %v10277 = vadd.f32 %v10247, %v10081
      %v10278 = vadd.f32 %v10248, %v10083
      %v10279 = vadd.f32 %v10249, %v10085
      %v10280 = vadd.f32 %v10250, %v10087
      %v10281 = vadd.f32 %v10251, %v10089
      %v10282 = vadd.f32 %v10252, %v10091
      %v10283 = vadd.f32 %v10253, %v10182
      %v10284 = vadd.f32 %v10254, %v10184
      %v10285 = vadd.f32 %v10255, %v10262
      %v10286 = vadd.f32 %v10256, %v10264
      %v10287 = vadd.f32 %v10257, %v10266
      %v10288 = vmul.f32 %v10271, 0.11111111
      %v10289 = vmul.f32 %v10272, 0.11111111
      %v10290 = vmul.f32 %v10273, 0.11111111
      %v10291 = vmul.f32 %v10274, 0.11111111
      %v10292 = vmul.f32 %v10275, 0.11111111
      %v10293 = vmul.f32 %v10276, 0.11111111
      %v10294 = vmul.f32 %v10277, 0.11111111
      %v10295 = vmul.f32 %v10278, 0.11111111
      %v10296 = vmul.f32 %v10279, 0.11111111
      %v10297 = vmul.f32 %v10280, 0.11111111
      %v10298 = vmul.f32 %v10281, 0.11111111
      %v10299 = vmul.f32 %v10282, 0.11111111
      %v10300 = vmul.f32 %v10283, 0.11111111
      %v10301 = vmul.f32 %v10284, 0.11111111
      %v10302 = vmul.f32 %v10285, 0.11111111
      %v10303 = vmul.f32 %v10286, 0.11111111
      %v10304 = vmul.f32 %v10287, 0.11111111
      %v10305 = vpack.c.bf16 %v10289, %v10288
      %v10306 = vpack.c.bf16 %v10291, %v10290
      %v10307 = vpack.c.bf16 %v10293, %v10292
      %v10308 = vpack.c.bf16 %v10295, %v10294
      %v10309 = vpack.c.bf16 %v10297, %v10296
      %v10310 = vpack.c.bf16 %v10299, %v10298
      %v10311 = vpack.c.bf16 %v10301, %v10300
      %v10312 = vpack.c.bf16 %v10303, %v10302
      %v10313 = vpack.c.bf16 %v10304, %v10304
      %v10314 = vld [vmem:[%s23] sm:$0xff]
      %vm10315 = vsmask.f32 4352
      %v10317 = vshrl.u32 %v10305, 16
      %v10319 = vrot.slane %v10317, 3
      %v10320 = vshll.u32 %v10305, 16
      %v10322 = vrot.slane %v10320, 4
      %v10323 = vor.u32 %v10319, %v10322
      %v10325 = vshrl.u32 %v10306, 16
      %v10327 = vrot.slane %v10325, 3
      %v10328 = vshll.u32 %v10306, 16
      %v10330 = vrot.slane %v10328, 4
      %v10331 = vor.u32 %v10327, %v10330
      %v10332 = vsel %vm10315, %v10323, %v10331
      %v10334 = vshrl.u32 %v10307, 16
      %v10336 = vrot.slane %v10334, 3
      %v10337 = vshll.u32 %v10307, 16
      %v10339 = vrot.slane %v10337, 4
      %v10340 = vor.u32 %v10336, %v10339
      %v10341 = vsel %vm10315, %v10331, %v10340
      %v10343 = vshrl.u32 %v10308, 16
      %v10345 = vrot.slane %v10343, 3
      %v10346 = vshll.u32 %v10308, 16
      %v10348 = vrot.slane %v10346, 4
      %v10349 = vor.u32 %v10345, %v10348
      %v10350 = vsel %vm10315, %v10340, %v10349
      %v10352 = vshrl.u32 %v10309, 16
      %v10354 = vrot.slane %v10352, 3
      %v10355 = vshll.u32 %v10309, 16
      %v10357 = vrot.slane %v10355, 4
      %v10358 = vor.u32 %v10354, %v10357
      %v10359 = vsel %vm10315, %v10349, %v10358
      %v10361 = vshrl.u32 %v10310, 16
      %v10363 = vrot.slane %v10361, 3
      %v10364 = vshll.u32 %v10310, 16
      %v10366 = vrot.slane %v10364, 4
      %v10367 = vor.u32 %v10363, %v10366
      %v10368 = vsel %vm10315, %v10358, %v10367
      %v10370 = vshrl.u32 %v10311, 16
      %v10372 = vrot.slane %v10370, 3
      %v10373 = vshll.u32 %v10311, 16
      %v10375 = vrot.slane %v10373, 4
      %v10376 = vor.u32 %v10372, %v10375
      %v10377 = vsel %vm10315, %v10367, %v10376
      %v10379 = vshrl.u32 %v10312, 16
      %v10381 = vrot.slane %v10379, 3
      %v10382 = vshll.u32 %v10312, 16
      %v10384 = vrot.slane %v10382, 4
      %v10385 = vor.u32 %v10381, %v10384
      %v10386 = vsel %vm10315, %v10376, %v10385
      %v10388 = vshrl.u32 %v10313, 16
      %v10390 = vrot.slane %v10388, 3
      %v10391 = vshll.u32 %v10313, 16
      %v10393 = vrot.slane %v10391, 4
      %v10394 = vor.u32 %v10390, %v10393
      %v10395 = vsel %vm10315, %v10385, %v10394
      %v10397 = vunpack.c.l.b16 %v10314
      %v10398 = vunpack.c.h.b16 %v10314
      %v10399 = vpack.c.b16 %v10397, %v10397
      %v10400 = vpack.c.b16 %v10398, %v10398
      %v10402 = vsel %vm793, %v10332, 0
      %v10405 = vsel %vm793, %v10341, 0
      %v10408 = vsel %vm793, %v10350, 0
      %v10411 = vsel %vm793, %v10359, 0
      %v10414 = vsel %vm793, %v10368, 0
      %v10417 = vsel %vm793, %v10377, 0
      %v10420 = vsel %vm793, %v10386, 0
      %v10423 = vsel %vm793, %v10395, 0
      %v10426 = vsel %vm900, %v10399, 0
      %v10429 = vsel %vm900, %v10400, 0
      %10431 = vmatprep.subr.bf16.mxu0 %v10429
      %10432 = vmatpush1.bf16.msra.mxu0 %v10426
      %10433 = vmatprep.subr.bf16.mxu0 0
      %10434 = vmatpush1.bf16.msra.mxu0 0
      %10435 = vmatprep.subr.bf16.mxu0 0
      %10436 = vmatpush1.bf16.msra.mxu0 0
      %10437 = vmatprep.subr.bf16.mxu0 0
      %10438 = vmatpush1.bf16.msra.mxu0 0
      %10439 = vmatprep.subr.bf16.mxu0 0
      %10440 = vmatpush1.bf16.msra.mxu0 0
      %10441 = vmatprep.subr.bf16.mxu0 0
      %10442 = vmatpush1.bf16.msra.mxu0 0
      %10443 = vmatprep.subr.bf16.mxu0 0
      %10444 = vmatpush1.bf16.msra.mxu0 0
      %10445 = vmatprep.subr.bf16.mxu0 0
      %10446 = vmatpush1.bf16.msra.mxu0 0
      %10447 = vmatprep.subr.bf16.mxu0 0
      %10448 = vmatpush1.bf16.msra.mxu0 0
      %10449 = vmatprep.subr.bf16.mxu0 0
      %10450 = vmatpush1.bf16.msra.mxu0 0
      %10451 = vmatprep.subr.bf16.mxu0 0
      %10452 = vmatpush1.bf16.msra.mxu0 0
      %10453 = vmatprep.subr.bf16.mxu0 0
      %10454 = vmatpush1.bf16.msra.mxu0 0
      %10455 = vmatprep.subr.bf16.mxu0 0
      %10456 = vmatpush1.bf16.msra.mxu0 0
      %10457 = vmatprep.subr.bf16.mxu0 0
      %10458 = vmatpush1.bf16.msra.mxu0 0
      %10459 = vmatprep.subr.bf16.mxu0 0
      %10460 = vmatpush1.bf16.msra.mxu0 0
      %10461 = vmatprep.subr.bf16.mxu0 0
      %10462 = vmatpush1.bf16.msra.mxu0 0
      %10463 = vmatprep.mubr.bf16.mxu0 0
      %10464 = vmatmul.mubr.bf16.gmra.mrb[0].mxu0 %v10402
      %v10465 = vpop.f32.mrb[0].mxu0
      %v10466 = vadd.f32 0.0, %v10465
      %v10467 = vpop.f32.mrb[0].mxu0
      %v10468 = vadd.f32 0.0, %v10467
      %v10469 = vpop.f32.mrb[0].mxu0
      %v10470 = vadd.f32 0.0, %v10469
      %v10471 = vpop.f32.mrb[0].mxu0
      %v10472 = vadd.f32 0.0, %v10471
      %10473 = vmatprep.mubr.bf16.mxu0 0
      %10474 = vmatmul.mubr.bf16.gmra.mrb[0].mxu0 %v10405
      %v10475 = vpop.f32.mrb[0].mxu0
      %v10476 = vadd.f32 0.0, %v10475
      %v10477 = vpop.f32.mrb[0].mxu0
      %v10478 = vadd.f32 0.0, %v10477
      %v10479 = vpop.f32.mrb[0].mxu0
      %v10480 = vadd.f32 0.0, %v10479
      %v10481 = vpop.f32.mrb[0].mxu0
      %v10482 = vadd.f32 0.0, %v10481
      %10483 = vmatprep.mubr.bf16.mxu0 0
      %10484 = vmatmul.mubr.bf16.gmra.mrb[0].mxu0 %v10408
      %v10485 = vpop.f32.mrb[0].mxu0
      %v10486 = vadd.f32 0.0, %v10485
      %v10487 = vpop.f32.mrb[0].mxu0
      %v10488 = vadd.f32 0.0, %v10487
      %v10489 = vpop.f32.mrb[0].mxu0
      %v10490 = vadd.f32 0.0, %v10489
      %v10491 = vpop.f32.mrb[0].mxu0
      %v10492 = vadd.f32 0.0, %v10491
      %10493 = vmatprep.mubr.bf16.mxu0 0
      %10494 = vmatmul.mubr.bf16.gmra.mrb[0].mxu0 %v10411
      %v10495 = vpop.f32.mrb[0].mxu0
      %v10496 = vadd.f32 0.0, %v10495
      %v10497 = vpop.f32.mrb[0].mxu0
      %v10498 = vadd.f32 0.0, %v10497
      %v10499 = vpop.f32.mrb[0].mxu0
      %v10500 = vadd.f32 0.0, %v10499
      %v10501 = vpop.f32.mrb[0].mxu0
      %v10502 = vadd.f32 0.0, %v10501
      %10503 = vmatprep.mubr.bf16.mxu0 0
      %10504 = vmatmul.mubr.bf16.gmra.mrb[0].mxu0 %v10414
      %v10505 = vpop.f32.mrb[0].mxu0
      %v10506 = vadd.f32 0.0, %v10505
      %v10507 = vpop.f32.mrb[0].mxu0
      %v10508 = vadd.f32 0.0, %v10507
      %v10509 = vpop.f32.mrb[0].mxu0
      %v10510 = vadd.f32 0.0, %v10509
      %v10511 = vpop.f32.mrb[0].mxu0
      %v10512 = vadd.f32 0.0, %v10511
      %10513 = vmatprep.mubr.bf16.mxu0 0
      %10514 = vmatmul.mubr.bf16.gmra.mrb[0].mxu0 %v10417
      %v10515 = vpop.f32.mrb[0].mxu0
      %v10516 = vadd.f32 0.0, %v10515
      %v10517 = vpop.f32.mrb[0].mxu0
      %v10518 = vadd.f32 0.0, %v10517
      %v10519 = vpop.f32.mrb[0].mxu0
      %v10520 = vadd.f32 0.0, %v10519
      %v10521 = vpop.f32.mrb[0].mxu0
      %v10522 = vadd.f32 0.0, %v10521
      %10523 = vmatprep.mubr.bf16.mxu0 0
      %10524 = vmatmul.mubr.bf16.gmra.mrb[0].mxu0 %v10420
      %v10525 = vpop.f32.mrb[0].mxu0
      %v10526 = vadd.f32 0.0, %v10525
      %v10527 = vpop.f32.mrb[0].mxu0
      %v10528 = vadd.f32 0.0, %v10527
      %v10529 = vpop.f32.mrb[0].mxu0
      %v10530 = vadd.f32 0.0, %v10529
      %v10531 = vpop.f32.mrb[0].mxu0
      %v10532 = vadd.f32 0.0, %v10531
      %10533 = vmatprep.mubr.bf16.mxu0 0
      %10534 = vmatmul.mubr.bf16.gmra.mrb[0].mxu0 %v10423
      %v10535 = vpop.f32.mrb[0].mxu0
      %v10536 = vadd.f32 0.0, %v10535
      %v10537 = vpop.f32.mrb[0].mxu0
      %v10538 = vadd.f32 0.0, %v10537
      %v10539 = vpop.f32.mrb[0].mxu0
      %v10540 = vadd.f32 0.0, %v10539
      %v10541 = vpop.f32.mrb[0].mxu0
      %v10542 = vadd.f32 0.0, %v10541
      %10543 = vdwg.mxu0
      %v10545 = vlaneseq
      %v10546 = vshrl.u32 %v10545, 7
      %v10547 = vsub.s32 0, %v10546
      %v10548 = vrot.slane %v9939, %v10547
      %v10549 = vlaneseq
      %v10550 = vshrl.u32 %v10549, 7
      %v10551 = vsub.s32 1, %v10550
      %v10552 = vrot.slane %v9939, %v10551
      %v10555 = vmul.f32 %v10466, %v10548
      %v10556 = vmul.f32 %v10468, %v10552
      %v10557 = vmul.f32 %v10470, %v10548
      %v10558 = vmul.f32 %v10472, %v10552
      %v10559 = vmul.f32 %v10476, %v10548
      %v10560 = vmul.f32 %v10478, %v10552
      %v10561 = vmul.f32 %v10480, %v10548
      %v10562 = vmul.f32 %v10482, %v10552
      %v10563 = vmul.f32 %v10486, %v10548
      %v10564 = vmul.f32 %v10488, %v10552
      %v10565 = vmul.f32 %v10490, %v10548
      %v10566 = vmul.f32 %v10492, %v10552
      %v10567 = vmul.f32 %v10496, %v10548
      %v10568 = vmul.f32 %v10498, %v10552
      %v10569 = vmul.f32 %v10500, %v10548
      %v10570 = vmul.f32 %v10502, %v10552
      %v10571 = vmul.f32 %v10506, %v10548
      %v10572 = vmul.f32 %v10508, %v10552
      %v10573 = vmul.f32 %v10510, %v10548
      %v10574 = vmul.f32 %v10512, %v10552
      %v10575 = vmul.f32 %v10516, %v10548
      %v10576 = vmul.f32 %v10518, %v10552
      %v10577 = vmul.f32 %v10520, %v10548
      %v10578 = vmul.f32 %v10522, %v10552
      %v10579 = vmul.f32 %v10526, %v10548
      %v10580 = vmul.f32 %v10528, %v10552
      %v10581 = vmul.f32 %v10530, %v10548
      %v10582 = vmul.f32 %v10532, %v10552
      %v10583 = vmul.f32 %v10536, %v10548
      %v10584 = vmul.f32 %v10538, %v10552
      %v10585 = vmul.f32 %v10540, %v10548
      %v10586 = vmul.f32 %v10542, %v10552
      %v10588 = vlaneseq
      %v10589 = vshrl.u32 %v10588, 7
      %v10590 = vsub.s32 0, %v10589
      %v10591 = vrot.slane %v9940, %v10590
      %v10592 = vlaneseq
      %v10593 = vshrl.u32 %v10592, 7
      %v10594 = vsub.s32 1, %v10593
      %v10595 = vrot.slane %v9940, %v10594
      %v10598 = vadd.f32 %v10555, %v10591
      %v10599 = vadd.f32 %v10556, %v10595
      %v10600 = vadd.f32 %v10557, %v10591
      %v10601 = vadd.f32 %v10558, %v10595
      %v10602 = vadd.f32 %v10559, %v10591
      %v10603 = vadd.f32 %v10560, %v10595
      %v10604 = vadd.f32 %v10561, %v10591
      %v10605 = vadd.f32 %v10562, %v10595
      %v10606 = vadd.f32 %v10563, %v10591
      %v10607 = vadd.f32 %v10564, %v10595
      %v10608 = vadd.f32 %v10565, %v10591
      %v10609 = vadd.f32 %v10566, %v10595
      %v10610 = vadd.f32 %v10567, %v10591
      %v10611 = vadd.f32 %v10568, %v10595
      %v10612 = vadd.f32 %v10569, %v10591
      %v10613 = vadd.f32 %v10570, %v10595
      %v10614 = vadd.f32 %v10571, %v10591
      %v10615 = vadd.f32 %v10572, %v10595
      %v10616 = vadd.f32 %v10573, %v10591
      %v10617 = vadd.f32 %v10574, %v10595
      %v10618 = vadd.f32 %v10575, %v10591
      %v10619 = vadd.f32 %v10576, %v10595
      %v10620 = vadd.f32 %v10577, %v10591
      %v10621 = vadd.f32 %v10578, %v10595
      %v10622 = vadd.f32 %v10579, %v10591
      %v10623 = vadd.f32 %v10580, %v10595
      %v10624 = vadd.f32 %v10581, %v10591
      %v10625 = vadd.f32 %v10582, %v10595
      %v10626 = vadd.f32 %v10583, %v10591
      %v10627 = vadd.f32 %v10584, %v10595
      %v10628 = vadd.f32 %v10585, %v10591
      %v10629 = vadd.f32 %v10586, %v10595
      %v10630 = vmax.f32 %v10598, 0.0
      %v10631 = vmax.f32 %v10599, 0.0
      %v10632 = vmax.f32 %v10600, 0.0
      %v10633 = vmax.f32 %v10601, 0.0
      %v10634 = vmax.f32 %v10602, 0.0
      %v10635 = vmax.f32 %v10603, 0.0
      %v10636 = vmax.f32 %v10604, 0.0
      %v10637 = vmax.f32 %v10605, 0.0
      %v10638 = vmax.f32 %v10606, 0.0
      %v10639 = vmax.f32 %v10607, 0.0
      %v10640 = vmax.f32 %v10608, 0.0
      %v10641 = vmax.f32 %v10609, 0.0
      %v10642 = vmax.f32 %v10610, 0.0
      %v10643 = vmax.f32 %v10611, 0.0
      %v10644 = vmax.f32 %v10612, 0.0
      %v10645 = vmax.f32 %v10613, 0.0
      %v10646 = vmax.f32 %v10614, 0.0
      %v10647 = vmax.f32 %v10615, 0.0
      %v10648 = vmax.f32 %v10616, 0.0
      %v10649 = vmax.f32 %v10617, 0.0
      %v10650 = vmax.f32 %v10618, 0.0
      %v10651 = vmax.f32 %v10619, 0.0
      %v10652 = vmax.f32 %v10620, 0.0
      %v10653 = vmax.f32 %v10621, 0.0
      %v10654 = vmax.f32 %v10622, 0.0
      %v10655 = vmax.f32 %v10623, 0.0
      %v10656 = vmax.f32 %v10624, 0.0
      %v10657 = vmax.f32 %v10625, 0.0
      %v10658 = vmax.f32 %v10626, 0.0
      %v10659 = vmax.f32 %v10627, 0.0
      %v10660 = vmax.f32 %v10628, 0.0
      %v10661 = vmax.f32 %v10629, 0.0
      %v10662 = vpack.c.bf16 %v10632, %v10630
      %v10663 = vpack.c.bf16 %v10633, %v10631
      %v10664 = vpack.c.bf16 %v10636, %v10634
      %v10665 = vpack.c.bf16 %v10637, %v10635
      %v10666 = vpack.c.bf16 %v10640, %v10638
      %v10667 = vpack.c.bf16 %v10641, %v10639
      %v10668 = vpack.c.bf16 %v10644, %v10642
      %v10669 = vpack.c.bf16 %v10645, %v10643
      %v10670 = vpack.c.bf16 %v10648, %v10646
      %v10671 = vpack.c.bf16 %v10649, %v10647
      %v10672 = vpack.c.bf16 %v10652, %v10650
      %v10673 = vpack.c.bf16 %v10653, %v10651
      %v10674 = vpack.c.bf16 %v10656, %v10654
      %v10675 = vpack.c.bf16 %v10657, %v10655
      %v10676 = vpack.c.bf16 %v10660, %v10658
      %v10677 = vpack.c.bf16 %v10661, %v10659
      %v10694 = vunpack.c.l.b16 %v10662
      %v10695 = vunpack.c.l.b16 %v10663
      %v10696 = vunpack.c.h.b16 %v10662
      %v10697 = vunpack.c.h.b16 %v10663
      %v10698 = vunpack.c.l.b16 %v10664
      %v10699 = vunpack.c.l.b16 %v10665
      %v10700 = vunpack.c.h.b16 %v10664
      %v10701 = vunpack.c.h.b16 %v10665
      %v10702 = vunpack.c.l.b16 %v10666
      %v10703 = vunpack.c.l.b16 %v10667
      %v10704 = vunpack.c.h.b16 %v10666
      %v10705 = vunpack.c.h.b16 %v10667
      %v10706 = vunpack.c.l.b16 %v10668
      %v10707 = vunpack.c.l.b16 %v10669
      %v10708 = vunpack.c.h.b16 %v10668
      %v10709 = vunpack.c.h.b16 %v10669
      %v10710 = vunpack.c.l.b16 %v10670
      %v10711 = vunpack.c.l.b16 %v10671
      %v10712 = vunpack.c.h.b16 %v10670
      %v10713 = vunpack.c.h.b16 %v10671
      %v10714 = vunpack.c.l.b16 %v10672
      %v10715 = vunpack.c.l.b16 %v10673
      %v10716 = vunpack.c.h.b16 %v10672
      %v10717 = vunpack.c.h.b16 %v10673
      %v10718 = vunpack.c.l.b16 %v10674
      %v10719 = vunpack.c.l.b16 %v10675
      %v10720 = vunpack.c.h.b16 %v10674
      %v10721 = vunpack.c.h.b16 %v10675
      %v10722 = vunpack.c.l.b16 %v10676
      %v10723 = vunpack.c.l.b16 %v10677
      %v10724 = vunpack.c.h.b16 %v10676
      %v10725 = vunpack.c.h.b16 %v10677
      %v10726 = vpack.c.b16 %v10695, %v10694
      %v10727 = vpack.c.b16 %v10697, %v10696
      %v10728 = vpack.c.b16 %v10699, %v10698
      %v10729 = vpack.c.b16 %v10701, %v10700
      %v10730 = vpack.c.b16 %v10703, %v10702
      %v10731 = vpack.c.b16 %v10705, %v10704
      %v10732 = vpack.c.b16 %v10707, %v10706
      %v10733 = vpack.c.b16 %v10709, %v10708
      %v10734 = vpack.c.b16 %v10711, %v10710
      %v10735 = vpack.c.b16 %v10713, %v10712
      %v10736 = vpack.c.b16 %v10715, %v10714
      %v10737 = vpack.c.b16 %v10717, %v10716
      %v10738 = vpack.c.b16 %v10719, %v10718
      %v10739 = vpack.c.b16 %v10721, %v10720
      %v10740 = vpack.c.b16 %v10723, %v10722
      %v10741 = vpack.c.b16 %v10725, %v10724
      %s10758 = scalar_lea.vmem %s791, 384
      %10759 = vst.msk [vmem:[%s10758] sm:$0xff] %vm1468, %v10726
      %10760 = vst.msk [vmem:[%s10758 + $0x8] sm:$0xff] %vm1468, %v10727
      %10761 = vst.msk [vmem:[%s10758 + $0x10] sm:$0xff] %vm1468, %v10728
      %10762 = vst.msk [vmem:[%s10758 + $0x18] sm:$0xff] %vm1468, %v10729
      %10763 = vst.msk [vmem:[%s10758 + $0x20] sm:$0xff] %vm1468, %v10730
      %10764 = vst.msk [vmem:[%s10758 + $0x28] sm:$0xff] %vm1468, %v10731
      %10765 = vst.msk [vmem:[%s10758 + $0x30] sm:$0xff] %vm1468, %v10732
      %10766 = vst.msk [vmem:[%s10758 + $0x38] sm:$0xff] %vm1468, %v10733
      %10767 = vst.msk [vmem:[%s10758 + $0x40] sm:$0xff] %vm1468, %v10734
      %10768 = vst.msk [vmem:[%s10758 + $0x48] sm:$0xff] %vm1468, %v10735
      %10769 = vst.msk [vmem:[%s10758 + $0x50] sm:$0xff] %vm1468, %v10736
      %10770 = vst.msk [vmem:[%s10758 + $0x58] sm:$0xff] %vm1468, %v10737
      %10771 = vst.msk [vmem:[%s10758 + $0x60] sm:$0xff] %vm1468, %v10738
      %10772 = vst.msk [vmem:[%s10758 + $0x68] sm:$0xff] %vm1468, %v10739
      %10773 = vst.msk [vmem:[%s10758 + $0x70] sm:$0xff] %vm1468, %v10740
      %10774 = vst.msk [vmem:[%s10758 + $0x78] sm:$0xff] %vm1468, %v10741
      %p10775 = scmp.lt.s32.totalorder %s37, 1
      %s10776 = scalar_select %p10775, %s37, 1
      %s10777 = smul.addr %s10776, 128
      %s10778 = smul.addr %s10777, 4
      %s10779 = scalar_lea.vmem %s26, %s10778
      // Predicated region
      $region125: #{inception_c_forward.1} parent=123 // pred_check
        %p10780 = pneg %p606
      $region126: #{inception_c_forward.1} parent=123 // pred_check_branch
        %10782 = sbr.rel (%p10780) target = $region128
      $region127: #{inception_c_forward.1} parent=123 // pred_region
        _
      $region128: #{inception_c_forward.1} parent=123 // pred_fallthru
        _
    $region124: #{inception_c_forward.1} parent=5 // pred_fallthru
      _
    %p10783 = scmp.le.s32.totalorder 2, %s32
    // Predicated region
    $region129: #{inception_c_forward.1} parent=5 // pred_check
      %p10784 = pneg %p10783
    $region130: #{inception_c_forward.1} parent=5 // pred_check_branch
      %10786 = sbr.rel (%p10784) target = $region132
    $region131: #{inception_c_forward.1} parent=5 // pred_region
      %s10787 = ssub.s32 %s32, 2
      // Predicated region
      $region133: #{inception_c_forward.1} parent=131 // pred_check
        %p10788 = pneg %p612
      $region134: #{inception_c_forward.1} parent=131 // pred_check_branch
        %10790 = sbr.rel (%p10788) target = $region136
      $region135: #{inception_c_forward.1} parent=131 // pred_region
        %p10791 = scmp.lt.s32.totalorder %s38, 1
        %s10792 = scalar_select %p10791, %s38, 1
        %s10793 = smul.addr %s10792, 128
        %s10794 = smul.addr %s10793, 4
        %s10795 = scalar_lea.vmem %s26, %s10794
      $region136: #{inception_c_forward.1} parent=131 // pred_fallthru
        _
    $region132: #{inception_c_forward.1} parent=5 // pred_fallthru
      _
  $region6: #{inception_c_forward.1} parent=0 // loop_footer
    %s36 = sadd.s32 1, %s32
  $region7: #{inception_c_forward.1} parent=0 // loop_footer_branch
    %31 = sbr.rel target = $region3
  $region8: #{inception_c_forward.1} parent=0 // loop_exit
    _

</llo_original>
